<compile_context>
chip_gen: v7x
topology: tpu7x:2x2x1
jax: 0.10.0
libtpu: 0.0.40
codegen_flags: <defaults>
</compile_context>

<pallas_src>
import functools

import jax
import jax.numpy as jnp
import numpy as np
from jax import lax
from jax.experimental import pallas as pl
from jax.experimental.pallas import tpu as pltpu

NEG_SLOPE = 0.01   # MONAI dynunet LeakyReLU negative_slope
EPS = 1e-5         # InstanceNorm eps
PADL = 8           # left halo pad inside the scratch (sublane-tile aligned for f32)


def _instance_norm_lrelu(v, gamma, beta):
    # v: (M, C) f32 conv output of one sample.  Single traversal: sum + sum-of-squares,
    # biased variance (matches PyTorch InstanceNorm2d), then affine + LeakyReLU.
    inv_m = 1.0 / v.shape[0]
    s1 = jnp.sum(v, axis=0, keepdims=True)
    s2 = jnp.sum(v * v, axis=0, keepdims=True)
    mean = s1 * inv_m
    var = jnp.maximum(s2 * inv_m - mean * mean, 0.0)
    y = (v - mean) * lax.rsqrt(var + EPS)
    y = y * gamma + beta
    return jnp.where(y >= 0, y, NEG_SLOPE * y)


def _fused_up_block_kernel(x_ref, skip_ref, wt_ref, w1u_ref, w1s_ref,
                           g1_ref, b1_ref, w2_ref, g2_ref, b2_ref,
                           o_ref, pad_a, pad_b, *, compute_dtype):
    # x_ref   : (1, H,  W,  Cin)  low-res input
    # skip_ref: (1, Ho, Wo, C)    skip connection (Ho=2H, Wo=2W)
    # wt_ref  : (Cin, 4C)         transp-conv weight, columns ordered (b, a, co)
    # w1u_ref : (9C, C)           conv1 weight (up-path input channels), rows (ky,kx,ci)
    # w1s_ref : (9C, C)           conv1 weight (skip-path input channels)
    # w2_ref  : (9C, C)           conv2 weight
    # g*/b*   : (1, C)            InstanceNorm affine params
    # o_ref   : (1, Ho, Wo, C)
    # pad_a/pad_b: VMEM (Ho+2, Wo+2*PADL, C) halo-padded scratches
    _, H, W, Cin = x_ref.shape
    _, Ho, Wo, C = o_ref.shape
    M = Ho * Wo
    c2 = 2 * C
    f32 = jnp.float32
    Wp = pad_a.shape[1]

    # ---- 0) zero ONLY the halo cells that the 3x3 taps read (done every step, so it
    #         is correct even when the batch grid axis is split across cores). -------
    zero_row = jnp.zeros((Wp, C), f32)
    zero_col = jnp.zeros((Ho, 1, C), f32)
    for pref in (pad_a, pad_b):
        pref[0, :, :] = zero_row                                  # top halo row
        pref[Ho + 1, :, :] = zero_row                             # bottom halo row
        pref[1:Ho + 1, PADL - 1:PADL, :] = zero_col               # left halo column
        pref[1:Ho + 1, PADL + Wo:PADL + Wo + 1, :] = zero_col     # right halo column

    # ---- 1) skip connection into its halo scratch (concat is folded away by
    #         splitting conv1's weight along its input channels). --------------------
    pad_b[1:Ho + 1, PADL:PADL + Wo, :] = skip_ref[0].astype(f32)

    # ---- 2) ConvTranspose2d(k=stride=2) + scatter, one low-res row per iteration ---
    # y_row[j, (2b+a)*C + co] = up[2i+a, 2j+b, co].  Two tiny 0/1 matmuls interleave
    # the even (b=0) / odd (b=1) columns; lanes [0:C) hold phase a=0, [C:2C) a=1.
    wt = wt_ref[...].astype(compute_dtype)                         # (Cin, 4C)
    w_idx = lax.broadcasted_iota(jnp.int32, (Wo, W), 0)
    j_idx = lax.broadcasted_iota(jnp.int32, (Wo, W), 1)
    sel_e = (w_idx == 2 * j_idx).astype(f32)                       # (Wo, W) 0/1
    sel_o = (w_idx == 2 * j_idx + 1).astype(f32)

    def scatter_row(i, carry):
        x_row = x_ref[0, i, :, :].astype(compute_dtype)            # (W, Cin)
        y_row = jnp.dot(x_row, wt, preferred_element_type=f32)     # (W, 4C)
        both = (jnp.dot(sel_e, y_row[:, :c2], preferred_element_type=f32) +
                jnp.dot(sel_o, y_row[:, c2:], preferred_element_type=f32))   # (Wo, 2C)
        r0 = 1 + 2 * i
        pad_a[r0, PADL:PADL + Wo, :] = both[:, :C]                 # dense row 2i
        pad_a[r0 + 1, PADL:PADL + Wo, :] = both[:, C:]             # dense row 2i+1
        return carry

    lax.fori_loop(0, H, scatter_row, 0)

    # ---- 3) 3x3 conv as 9 accumulating MXU dots (no (M, 9C) patch materialization) -
    def conv3x3_acc(pref, w_ref, acc):
        for dy in range(3):
            for dx in range(3):
                t = dy * 3 + dx
                lhs = pref[dy:dy + Ho, PADL - 1 + dx:PADL - 1 + dx + Wo, :]
                lhs = lhs.reshape(M, C).astype(compute_dtype)
                w_t = w_ref[t * C:(t + 1) * C, :].astype(compute_dtype)
                acc = acc + jnp.dot(lhs, w_t, preferred_element_type=f32)
        return acc

    # stage 1: conv3x3(cat([up, skip])) -> InstanceNorm -> LeakyReLU
    acc1 = jnp.zeros((M, C), f32)
    acc1 = conv3x3_acc(pad_a, w1u_ref, acc1)
    acc1 = conv3x3_acc(pad_b, w1s_ref, acc1)
    h = _instance_norm_lrelu(acc1, g1_ref[...], b1_ref[...])

    # stage 2: reuse pad_a (its halo is still zero, only the interior is rewritten)
    pad_a[1:Ho + 1, PADL:PADL + Wo, :] = h.reshape(Ho, Wo, C)
    acc2 = conv3x3_acc(pad_a, w2_ref, jnp.zeros((M, C), f32))
    out = _instance_norm_lrelu(acc2, g2_ref[...], b2_ref[...])

    o_ref[...] = out.reshape(1, Ho, Wo, C).astype(o_ref.dtype)


# ------------------------------------------------------------------------------------
# Full UnetrUpBlock1 forward (NCHW in / NCHW out, like PyTorch)
# ------------------------------------------------------------------------------------
def unetr_up_block1_forward(inp_nchw, skip_nchw, params, compute_dtype=jnp.float32):
    x = jnp.transpose(inp_nchw, (0, 2, 3, 1))        # NCHW -> NHWC
    skip = jnp.transpose(skip_nchw, (0, 2, 3, 1))
    N, H, W, Cin = x.shape
    _, Ho, Wo, C = skip.shape
    assert (Ho, Wo) == (2 * H, 2 * W)
    assert W % 8 == 0 and Wo % 8 == 0, "kernel assumes sublane-aligned widths"

    # ConvTranspose2d weight (Cin, C, 2, 2) -> (Cin, 4C) with columns ordered (b, a, co)
    wt2d = jnp.transpose(params["transp_w"], (0, 3, 2, 1)).reshape(Cin, 4 * C)
    # conv1 (C, 2C, 3, 3): split along input channels (up | skip), rows ordered (ky,kx,ci)
    c1 = params["conv1_w"]
    w1u = jnp.transpose(c1[:, :C], (2, 3, 1, 0)).reshape(9 * C, C)
    w1s = jnp.transpose(c1[:, C:], (2, 3, 1, 0)).reshape(9 * C, C)
    w2 = jnp.transpose(params["conv2_w"], (2, 3, 1, 0)).reshape(9 * C, C)
    g1 = params["norm1_g"].reshape(1, C).astype(jnp.float32)
    b1 = params["norm1_b"].reshape(1, C).astype(jnp.float32)
    g2 = params["norm2_g"].reshape(1, C).astype(jnp.float32)
    b2 = params["norm2_b"].reshape(1, C).astype(jnp.float32)

    kernel = functools.partial(_fused_up_block_kernel, compute_dtype=compute_dtype)

    # explicit scoped-VMEM budget: per-step footprint (double-buffered blocks, weights,
    # halo scratches, in-kernel temporaries) with headroom, capped below physical VMEM.
    f32b = 4
    hp, wp = Ho + 2, Wo + 2 * PADL
    per_step = (
        2 * (H * W * Cin + 2 * Ho * Wo * C) * f32b          # x / skip / out blocks (x2 buf)
        + 2 * (Cin * 4 * C + 3 * 9 * C * C + 4 * C) * f32b  # weights + affine params
        + 2 * hp * wp * C * f32b                            # halo scratches
        + 8 * Ho * Wo * C * f32b                            # conv accumulators / temps
    )
    vmem_limit = int(min(max(2 * per_step, 32 * 1024 * 1024), 100 * 1024 * 1024))

    out = pl.pallas_call(
        kernel,
        out_shape=jax.ShapeDtypeStruct((N, Ho, Wo, C), jnp.float32),
        grid=(N,),
        in_specs=[
            pl.BlockSpec((1, H, W, Cin), lambda n: (n, 0, 0, 0)),
            pl.BlockSpec((1, Ho, Wo, C), lambda n: (n, 0, 0, 0)),
            pl.BlockSpec((Cin, 4 * C), lambda n: (0, 0)),
            pl.BlockSpec((9 * C, C), lambda n: (0, 0)),
            pl.BlockSpec((9 * C, C), lambda n: (0, 0)),
            pl.BlockSpec((1, C), lambda n: (0, 0)),
            pl.BlockSpec((1, C), lambda n: (0, 0)),
            pl.BlockSpec((9 * C, C), lambda n: (0, 0)),
            pl.BlockSpec((1, C), lambda n: (0, 0)),
            pl.BlockSpec((1, C), lambda n: (0, 0)),
        ],
        out_specs=pl.BlockSpec((1, Ho, Wo, C), lambda n: (n, 0, 0, 0)),
        scratch_shapes=[
            pltpu.VMEM((Ho + 2, Wo + 2 * PADL, C), jnp.float32),
            pltpu.VMEM((Ho + 2, Wo + 2 * PADL, C), jnp.float32),
        ],
        compiler_params=pltpu.CompilerParams(
            dimension_semantics=("parallel",),
            vmem_limit_bytes=vmem_limit,
        ),
    )(x, skip, wt2d, w1u, w1s, g1, b1, w2, g2, b2)

    return jnp.transpose(out, (0, 3, 1, 2))          # NHWC -> NCHW


# ------------------------------------------------------------------------------------
# Pure-JAX reference (for correctness check)
# ------------------------------------------------------------------------------------
def ref_forward(inp_nchw, skip_nchw, params):
    x = jnp.transpose(inp_nchw, (0, 2, 3, 1))
    skip = jnp.transpose(skip_nchw, (0, 2, 3, 1))
    Wt = params["transp_w"]
    N, H, W, _ = x.shape
    Co = Wt.shape[1]
    up = jnp.einsum("nhwc,cdab->nhawbd", x, Wt).reshape(N, 2 * H, 2 * W, Co)
    cat = jnp.concatenate([up, skip], axis=-1)

    def conv_in_lrelu(xx, w_pt, g, b):
        w_hwio = jnp.transpose(w_pt, (2, 3, 1, 0))
        y = lax.conv_general_dilated(xx, w_hwio, (1, 1), "SAME",
                                     dimension_numbers=("NHWC", "HWIO", "NHWC"))
        m = jnp.mean(y, axis=(1, 2), keepdims=True)
        v = jnp.mean(jnp.square(y - m), axis=(1, 2), keepdims=True)
        y = (y - m) * lax.rsqrt(v + EPS)
        y = y * g.reshape(1, 1, 1, -1) + b.reshape(1, 1, 1, -1)
        return jnp.where(y >= 0, y, NEG_SLOPE * y)

    h = conv_in_lrelu(cat, params["conv1_w"], params["norm1_g"], params["norm1_b"])
    h = conv_in_lrelu(h, params["conv2_w"], params["norm2_g"], params["norm2_b"])
    return jnp.transpose(h, (0, 3, 1, 2))


if __name__ == "__main__":
    # Module config: spatial_dims=2, in_channels=8, out_channels=4, kernel_size=3,
    # upsample_kernel_size=2, norm_name=("instance", {"affine": True}), res_block=False
    N, Cin, Cout, H, W = 2, 8, 4, 8, 8
    key = jax.random.PRNGKey(0)
    ks = jax.random.split(key, 8)

    inp = jax.random.normal(ks[0], (N, Cin, H, W), jnp.float32)            # NCHW
    skip = jax.random.normal(ks[1], (N, Cout, 2 * H, 2 * W), jnp.float32)  # NCHW

    params = {
        # ConvTranspose2d weight (in_ch, out_ch, kH, kW), bias=False
        "transp_w": 0.1 * jax.random.normal(ks[2], (Cin, Cout, 2, 2), jnp.float32),
        # conv1: (out_ch, 2*out_ch, 3, 3), conv2: (out_ch, out_ch, 3, 3), bias=False
        "conv1_w": 0.1 * jax.random.normal(ks[3], (Cout, 2 * Cout, 3, 3), jnp.float32),
        "conv2_w": 0.1 * jax.random.normal(ks[4], (Cout, Cout, 3, 3), jnp.float32),
        # InstanceNorm affine params
        "norm1_g": 1.0 + 0.1 * jax.random.normal(ks[5], (Cout,), jnp.float32),
        "norm1_b": 0.1 * jax.random.normal(ks[6], (Cout,), jnp.float32),
        "norm2_g": jnp.ones((Cout,), jnp.float32),
        "norm2_b": jnp.zeros((Cout,), jnp.float32),
    }

    out = jax.block_until_ready(unetr_up_block1_forward(inp, skip, params))
    ref = jax.block_until_ready(ref_forward(inp, skip, params))

    assert out.shape == (N, Cout, 2 * H, 2 * W), out.shape
    np.testing.assert_allclose(np.asarray(out), np.asarray(ref), rtol=1e-4, atol=1e-4)
    print("KERNEL_OK")
</pallas_src>

<mosaic_0001>
module attributes {stable_mosaic.version = 11 : i64} {
  func.func @_fused_up_block_kernel(%arg0: i32, %arg1: memref<1x8x8x8xf32, #tpu.memory_space<vmem>>, %arg2: memref<1x16x16x4xf32, #tpu.memory_space<vmem>>, %arg3: memref<8x16xf32, #tpu.memory_space<vmem>>, %arg4: memref<36x4xf32, #tpu.memory_space<vmem>>, %arg5: memref<36x4xf32, #tpu.memory_space<vmem>>, %arg6: memref<1x4xf32, #tpu.memory_space<vmem>>, %arg7: memref<1x4xf32, #tpu.memory_space<vmem>>, %arg8: memref<36x4xf32, #tpu.memory_space<vmem>>, %arg9: memref<1x4xf32, #tpu.memory_space<vmem>>, %arg10: memref<1x4xf32, #tpu.memory_space<vmem>>, %arg11: memref<1x16x16x4xf32, #tpu.memory_space<vmem>>, %arg12: memref<18x32x4xf32, #tpu.memory_space<vmem>>, %arg13: memref<18x32x4xf32, #tpu.memory_space<vmem>>) attributes {dimension_semantics = [#tpu.dimension_semantics<parallel>], iteration_bounds = array<i64: 2>, scalar_prefetch = 0 : i64, scratch_operands = 2 : i64, tpu.core_type = #tpu.core_type<tc>, window_params = [{transform_indices = @transform_0, window_bounds = array<i64: 1, 8, 8, 8>}, {transform_indices = @transform_1, window_bounds = array<i64: 1, 16, 16, 4>}, {pipeline_mode = #tpu.pipeline_mode<synchronous>, transform_indices = @transform_2, window_bounds = array<i64: 8, 16>}, {pipeline_mode = #tpu.pipeline_mode<synchronous>, transform_indices = @transform_3, window_bounds = array<i64: 36, 4>}, {pipeline_mode = #tpu.pipeline_mode<synchronous>, transform_indices = @transform_4, window_bounds = array<i64: 36, 4>}, {pipeline_mode = #tpu.pipeline_mode<synchronous>, transform_indices = @transform_5, window_bounds = array<i64: 1, 4>}, {pipeline_mode = #tpu.pipeline_mode<synchronous>, transform_indices = @transform_6, window_bounds = array<i64: 1, 4>}, {pipeline_mode = #tpu.pipeline_mode<synchronous>, transform_indices = @transform_7, window_bounds = array<i64: 36, 4>}, {pipeline_mode = #tpu.pipeline_mode<synchronous>, transform_indices = @transform_8, window_bounds = array<i64: 1, 4>}, {pipeline_mode = #tpu.pipeline_mode<synchronous>, transform_indices = @transform_9, window_bounds = array<i64: 1, 4>}, {transform_indices = @transform_10, window_bounds = array<i64: 1, 16, 16, 4>}]} {
    %cst = arith.constant 0.000000e+00 : f32
    %0 = vector.broadcast %cst : f32 to vector<32x4xf32>
    %cst_0 = arith.constant 0.000000e+00 : f32
    %1 = vector.broadcast %cst_0 : f32 to vector<16x1x4xf32>
    %c0 = arith.constant 0 : index
    %c0_1 = arith.constant 0 : index
    %c0_2 = arith.constant 0 : index
    %2 = vector.load %arg12[%c0, %c0_1, %c0_2] : memref<18x32x4xf32, #tpu.memory_space<vmem>>, vector<1x32x4xf32>
    %3 = vector.shape_cast %2 : vector<1x32x4xf32> to vector<32x4xf32>
    %4 = vector.shape_cast %0 : vector<32x4xf32> to vector<1x32x4xf32>
    tpu.vector_store %arg12[%c0, %c0_1, %c0_2], %4 {strides = array<i32>} : memref<18x32x4xf32, #tpu.memory_space<vmem>>, vector<1x32x4xf32>,
    %c17 = arith.constant 17 : index
    %c0_3 = arith.constant 0 : index
    %c0_4 = arith.constant 0 : index
    %5 = vector.load %arg12[%c17, %c0_3, %c0_4] : memref<18x32x4xf32, #tpu.memory_space<vmem>>, vector<1x32x4xf32>
    %6 = vector.shape_cast %5 : vector<1x32x4xf32> to vector<32x4xf32>
    %7 = vector.shape_cast %0 : vector<32x4xf32> to vector<1x32x4xf32>
    tpu.vector_store %arg12[%c17, %c0_3, %c0_4], %7 {strides = array<i32>} : memref<18x32x4xf32, #tpu.memory_space<vmem>>, vector<1x32x4xf32>,
    %c1 = arith.constant 1 : index
    %c7 = arith.constant 7 : index
    %c0_5 = arith.constant 0 : index
    %8 = vector.load %arg12[%c1, %c7, %c0_5] : memref<18x32x4xf32, #tpu.memory_space<vmem>>, vector<16x1x4xf32>
    tpu.vector_store %arg12[%c1, %c7, %c0_5], %1 {strides = array<i32>} : memref<18x32x4xf32, #tpu.memory_space<vmem>>, vector<16x1x4xf32>,
    %c1_6 = arith.constant 1 : index
    %c24 = arith.constant 24 : index
    %c0_7 = arith.constant 0 : index
    %9 = vector.load %arg12[%c1_6, %c24, %c0_7] : memref<18x32x4xf32, #tpu.memory_space<vmem>>, vector<16x1x4xf32>
    tpu.vector_store %arg12[%c1_6, %c24, %c0_7], %1 {strides = array<i32>} : memref<18x32x4xf32, #tpu.memory_space<vmem>>, vector<16x1x4xf32>,
    %c0_8 = arith.constant 0 : index
    %c0_9 = arith.constant 0 : index
    %c0_10 = arith.constant 0 : index
    %10 = vector.load %arg13[%c0_8, %c0_9, %c0_10] : memref<18x32x4xf32, #tpu.memory_space<vmem>>, vector<1x32x4xf32>
    %11 = vector.shape_cast %10 : vector<1x32x4xf32> to vector<32x4xf32>
    %12 = vector.shape_cast %0 : vector<32x4xf32> to vector<1x32x4xf32>
    tpu.vector_store %arg13[%c0_8, %c0_9, %c0_10], %12 {strides = array<i32>} : memref<18x32x4xf32, #tpu.memory_space<vmem>>, vector<1x32x4xf32>,
    %c17_11 = arith.constant 17 : index
    %c0_12 = arith.constant 0 : index
    %c0_13 = arith.constant 0 : index
    %13 = vector.load %arg13[%c17_11, %c0_12, %c0_13] : memref<18x32x4xf32, #tpu.memory_space<vmem>>, vector<1x32x4xf32>
    %14 = vector.shape_cast %13 : vector<1x32x4xf32> to vector<32x4xf32>
    %15 = vector.shape_cast %0 : vector<32x4xf32> to vector<1x32x4xf32>
    tpu.vector_store %arg13[%c17_11, %c0_12, %c0_13], %15 {strides = array<i32>} : memref<18x32x4xf32, #tpu.memory_space<vmem>>, vector<1x32x4xf32>,
    %c1_14 = arith.constant 1 : index
    %c7_15 = arith.constant 7 : index
    %c0_16 = arith.constant 0 : index
    %16 = vector.load %arg13[%c1_14, %c7_15, %c0_16] : memref<18x32x4xf32, #tpu.memory_space<vmem>>, vector<16x1x4xf32>
    tpu.vector_store %arg13[%c1_14, %c7_15, %c0_16], %1 {strides = array<i32>} : memref<18x32x4xf32, #tpu.memory_space<vmem>>, vector<16x1x4xf32>,
    %c1_17 = arith.constant 1 : index
    %c24_18 = arith.constant 24 : index
    %c0_19 = arith.constant 0 : index
    %17 = vector.load %arg13[%c1_17, %c24_18, %c0_19] : memref<18x32x4xf32, #tpu.memory_space<vmem>>, vector<16x1x4xf32>
    tpu.vector_store %arg13[%c1_17, %c24_18, %c0_19], %1 {strides = array<i32>} : memref<18x32x4xf32, #tpu.memory_space<vmem>>, vector<16x1x4xf32>,
    %c0_20 = arith.constant 0 : index
    %c0_21 = arith.constant 0 : index
    %c0_22 = arith.constant 0 : index
    %c0_23 = arith.constant 0 : index
    %18 = vector.load %arg2[%c0_20, %c0_21, %c0_22, %c0_23] : memref<1x16x16x4xf32, #tpu.memory_space<vmem>>, vector<1x16x16x4xf32>
    %19 = vector.shape_cast %18 : vector<1x16x16x4xf32> to vector<16x16x4xf32>
    %c1_24 = arith.constant 1 : index
    %c8 = arith.constant 8 : index
    %c0_25 = arith.constant 0 : index
    %20 = vector.load %arg13[%c1_24, %c8, %c0_25] : memref<18x32x4xf32, #tpu.memory_space<vmem>>, vector<16x16x4xf32>
    tpu.vector_store %arg13[%c1_24, %c8, %c0_25], %19 {strides = array<i32>} : memref<18x32x4xf32, #tpu.memory_space<vmem>>, vector<16x16x4xf32>,
    %c0_26 = arith.constant 0 : index
    %c0_27 = arith.constant 0 : index
    %21 = vector.load %arg3[%c0_26, %c0_27] : memref<8x16xf32, #tpu.memory_space<vmem>>, vector<8x16xf32>
    %22 = tpu.iota {dimensions = array<i32: 0>} : vector<16x8xi32>
    %23 = tpu.iota {dimensions = array<i32: 1>} : vector<16x8xi32>
    %c2_i32 = arith.constant 2 : i32
    %24 = vector.broadcast %c2_i32 : i32 to vector<16x8xi32>
    %25 = arith.muli %24, %23 : vector<16x8xi32>
    %26 = arith.cmpi eq, %22, %25 : vector<16x8xi32>
    %27 = arith.extui %26 : vector<16x8xi1> to vector<16x8xi32>
    %28 = arith.sitofp %27 : vector<16x8xi32> to vector<16x8xf32>
    %c2_i32_28 = arith.constant 2 : i32
    %29 = vector.broadcast %c2_i32_28 : i32 to vector<16x8xi32>
    %30 = arith.muli %29, %23 : vector<16x8xi32>
    %c1_i32 = arith.constant 1 : i32
    %31 = vector.broadcast %c1_i32 : i32 to vector<16x8xi32>
    %32 = arith.addi %30, %31 : vector<16x8xi32>
    %33 = arith.cmpi eq, %22, %32 : vector<16x8xi32>
    %34 = arith.extui %33 : vector<16x8xi1> to vector<16x8xi32>
    %35 = arith.sitofp %34 : vector<16x8xi32> to vector<16x8xf32>
    %c0_i32 = arith.constant 0 : i32
    %c8_i32 = arith.constant 8 : i32
    %36 = arith.addi %c0_i32, %c8_i32 : i32
    %c1_i32_29 = arith.constant 1 : i32
    scf.for %arg14 = %c0_i32 to %36 step %c1_i32_29  : i32 {
      %c0_218 = arith.constant 0 : index
      %240 = arith.index_cast %arg14 : i32 to index
      %c0_219 = arith.constant 0 : index
      %c0_220 = arith.constant 0 : index
      %241 = vector.load %arg1[%c0_218, %240, %c0_219, %c0_220] : memref<1x8x8x8xf32, #tpu.memory_space<vmem>>, vector<1x1x8x8xf32>
      %242 = vector.shape_cast %241 : vector<1x1x8x8xf32> to vector<8x8xf32>
      %cst_221 = arith.constant dense<0.000000e+00> : vector<8x16xf32>
      %243 = tpu.matmul %242, %21, %cst_221 {dimension_numbers = #tpu.dot_dimension_numbers<[1], [0], [0], [1], [0, 0, 1, 1], [], []>} : vector<8x8xf32>, vector<8x16xf32>, vector<8x16xf32> -> vector<8x16xf32>
      %244 = vector.extract_strided_slice %243 {offsets = [0, 0], sizes = [8, 8], strides = [1, 1]} : vector<8x16xf32> to vector<8x8xf32>
      %cst_222 = arith.constant dense<0.000000e+00> : vector<16x8xf32>
      %245 = tpu.matmul %28, %244, %cst_222 {dimension_numbers = #tpu.dot_dimension_numbers<[1], [0], [0], [1], [0, 0, 1, 1], [], []>} : vector<16x8xf32>, vector<8x8xf32>, vector<16x8xf32> -> vector<16x8xf32>
      %246 = vector.extract_strided_slice %243 {offsets = [0, 8], sizes = [8, 8], strides = [1, 1]} : vector<8x16xf32> to vector<8x8xf32>
      %cst_223 = arith.constant dense<0.000000e+00> : vector<16x8xf32>
      %247 = tpu.matmul %35, %246, %cst_223 {dimension_numbers = #tpu.dot_dimension_numbers<[1], [0], [0], [1], [0, 0, 1, 1], [], []>} : vector<16x8xf32>, vector<8x8xf32>, vector<16x8xf32> -> vector<16x8xf32>
      %248 = arith.addf %245, %247 : vector<16x8xf32>
      %c2_i32_224 = arith.constant 2 : i32
      %249 = arith.muli %c2_i32_224, %arg14 : i32
      %c1_i32_225 = arith.constant 1 : i32
      %250 = arith.addi %c1_i32_225, %249 : i32
      %251 = vector.extract_strided_slice %248 {offsets = [0, 0], sizes = [16, 4], strides = [1, 1]} : vector<16x8xf32> to vector<16x4xf32>
      %252 = arith.index_cast %250 : i32 to index
      %c8_226 = arith.constant 8 : index
      %c0_227 = arith.constant 0 : index
      %253 = vector.load %arg12[%252, %c8_226, %c0_227] : memref<18x32x4xf32, #tpu.memory_space<vmem>>, vector<1x16x4xf32>
      %254 = vector.shape_cast %253 : vector<1x16x4xf32> to vector<16x4xf32>
      %255 = vector.shape_cast %251 : vector<16x4xf32> to vector<1x16x4xf32>
      tpu.vector_store %arg12[%252, %c8_226, %c0_227], %255 {strides = array<i32>} : memref<18x32x4xf32, #tpu.memory_space<vmem>>, vector<1x16x4xf32>,
      %256 = vector.extract_strided_slice %248 {offsets = [0, 4], sizes = [16, 4], strides = [1, 1]} : vector<16x8xf32> to vector<16x4xf32>
      %c1_i32_228 = arith.constant 1 : i32
      %257 = arith.addi %250, %c1_i32_228 : i32
      %258 = arith.index_cast %257 : i32 to index
      %c8_229 = arith.constant 8 : index
      %c0_230 = arith.constant 0 : index
      %259 = vector.load %arg12[%258, %c8_229, %c0_230] : memref<18x32x4xf32, #tpu.memory_space<vmem>>, vector<1x16x4xf32>
      %260 = vector.shape_cast %259 : vector<1x16x4xf32> to vector<16x4xf32>
      %261 = vector.shape_cast %256 : vector<16x4xf32> to vector<1x16x4xf32>
      tpu.vector_store %arg12[%258, %c8_229, %c0_230], %261 {strides = array<i32>} : memref<18x32x4xf32, #tpu.memory_space<vmem>>, vector<1x16x4xf32>,
    }
    %c8_i32_30 = arith.constant 8 : i32
    %cst_31 = arith.constant 0.000000e+00 : f32
    %37 = vector.broadcast %cst_31 : f32 to vector<256x4xf32>
    %c0_32 = arith.constant 0 : index
    %c7_33 = arith.constant 7 : index
    %c0_34 = arith.constant 0 : index
    %38 = vector.load %arg12[%c0_32, %c7_33, %c0_34] : memref<18x32x4xf32, #tpu.memory_space<vmem>>, vector<16x16x4xf32>
    %39 = vector.shape_cast %38 : vector<16x16x4xf32> to vector<256x4xf32>
    %c0_35 = arith.constant 0 : index
    %c0_36 = arith.constant 0 : index
    %40 = vector.load %arg4[%c0_35, %c0_36] : memref<36x4xf32, #tpu.memory_space<vmem>>, vector<4x4xf32>
    %cst_37 = arith.constant dense<0.000000e+00> : vector<256x4xf32>
    %41 = tpu.matmul %39, %40, %cst_37 {dimension_numbers = #tpu.dot_dimension_numbers<[1], [0], [0], [1], [0, 0, 1, 1], [], []>} : vector<256x4xf32>, vector<4x4xf32>, vector<256x4xf32> -> vector<256x4xf32>
    %42 = arith.addf %37, %41 : vector<256x4xf32>
    %c0_38 = arith.constant 0 : index
    %c8_39 = arith.constant 8 : index
    %c0_40 = arith.constant 0 : index
    %43 = vector.load %arg12[%c0_38, %c8_39, %c0_40] : memref<18x32x4xf32, #tpu.memory_space<vmem>>, vector<16x16x4xf32>
    %44 = vector.shape_cast %43 : vector<16x16x4xf32> to vector<256x4xf32>
    %c4 = arith.constant 4 : index
    %c0_41 = arith.constant 0 : index
    %45 = vector.load %arg4[%c4, %c0_41] : memref<36x4xf32, #tpu.memory_space<vmem>>, vector<4x4xf32>
    %cst_42 = arith.constant dense<0.000000e+00> : vector<256x4xf32>
    %46 = tpu.matmul %44, %45, %cst_42 {dimension_numbers = #tpu.dot_dimension_numbers<[1], [0], [0], [1], [0, 0, 1, 1], [], []>} : vector<256x4xf32>, vector<4x4xf32>, vector<256x4xf32> -> vector<256x4xf32>
    %47 = arith.addf %42, %46 : vector<256x4xf32>
    %c0_43 = arith.constant 0 : index
    %c9 = arith.constant 9 : index
    %c0_44 = arith.constant 0 : index
    %48 = vector.load %arg12[%c0_43, %c9, %c0_44] : memref<18x32x4xf32, #tpu.memory_space<vmem>>, vector<16x16x4xf32>
    %49 = vector.shape_cast %48 : vector<16x16x4xf32> to vector<256x4xf32>
    %c8_45 = arith.constant 8 : index
    %c0_46 = arith.constant 0 : index
    %50 = vector.load %arg4[%c8_45, %c0_46] : memref<36x4xf32, #tpu.memory_space<vmem>>, vector<4x4xf32>
    %cst_47 = arith.constant dense<0.000000e+00> : vector<256x4xf32>
    %51 = tpu.matmul %49, %50, %cst_47 {dimension_numbers = #tpu.dot_dimension_numbers<[1], [0], [0], [1], [0, 0, 1, 1], [], []>} : vector<256x4xf32>, vector<4x4xf32>, vector<256x4xf32> -> vector<256x4xf32>
    %52 = arith.addf %47, %51 : vector<256x4xf32>
    %c1_48 = arith.constant 1 : index
    %c7_49 = arith.constant 7 : index
    %c0_50 = arith.constant 0 : index
    %53 = vector.load %arg12[%c1_48, %c7_49, %c0_50] : memref<18x32x4xf32, #tpu.memory_space<vmem>>, vector<16x16x4xf32>
    %54 = vector.shape_cast %53 : vector<16x16x4xf32> to vector<256x4xf32>
    %c12 = arith.constant 12 : index
    %c0_51 = arith.constant 0 : index
    %55 = vector.load %arg4[%c12, %c0_51] : memref<36x4xf32, #tpu.memory_space<vmem>>, vector<4x4xf32>
    %cst_52 = arith.constant dense<0.000000e+00> : vector<256x4xf32>
    %56 = tpu.matmul %54, %55, %cst_52 {dimension_numbers = #tpu.dot_dimension_numbers<[1], [0], [0], [1], [0, 0, 1, 1], [], []>} : vector<256x4xf32>, vector<4x4xf32>, vector<256x4xf32> -> vector<256x4xf32>
    %57 = arith.addf %52, %56 : vector<256x4xf32>
    %c1_53 = arith.constant 1 : index
    %c8_54 = arith.constant 8 : index
    %c0_55 = arith.constant 0 : index
    %58 = vector.load %arg12[%c1_53, %c8_54, %c0_55] : memref<18x32x4xf32, #tpu.memory_space<vmem>>, vector<16x16x4xf32>
    %59 = vector.shape_cast %58 : vector<16x16x4xf32> to vector<256x4xf32>
    %c16 = arith.constant 16 : index
    %c0_56 = arith.constant 0 : index
    %60 = vector.load %arg4[%c16, %c0_56] : memref<36x4xf32, #tpu.memory_space<vmem>>, vector<4x4xf32>
    %cst_57 = arith.constant dense<0.000000e+00> : vector<256x4xf32>
    %61 = tpu.matmul %59, %60, %cst_57 {dimension_numbers = #tpu.dot_dimension_numbers<[1], [0], [0], [1], [0, 0, 1, 1], [], []>} : vector<256x4xf32>, vector<4x4xf32>, vector<256x4xf32> -> vector<256x4xf32>
    %62 = arith.addf %57, %61 : vector<256x4xf32>
    %c1_58 = arith.constant 1 : index
    %c9_59 = arith.constant 9 : index
    %c0_60 = arith.constant 0 : index
    %63 = vector.load %arg12[%c1_58, %c9_59, %c0_60] : memref<18x32x4xf32, #tpu.memory_space<vmem>>, vector<16x16x4xf32>
    %64 = vector.shape_cast %63 : vector<16x16x4xf32> to vector<256x4xf32>
    %c20 = arith.constant 20 : index
    %c0_61 = arith.constant 0 : index
    %65 = vector.load %arg4[%c20, %c0_61] : memref<36x4xf32, #tpu.memory_space<vmem>>, vector<4x4xf32>
    %cst_62 = arith.constant dense<0.000000e+00> : vector<256x4xf32>
    %66 = tpu.matmul %64, %65, %cst_62 {dimension_numbers = #tpu.dot_dimension_numbers<[1], [0], [0], [1], [0, 0, 1, 1], [], []>} : vector<256x4xf32>, vector<4x4xf32>, vector<256x4xf32> -> vector<256x4xf32>
    %67 = arith.addf %62, %66 : vector<256x4xf32>
    %c2 = arith.constant 2 : index
    %c7_63 = arith.constant 7 : index
    %c0_64 = arith.constant 0 : index
    %68 = vector.load %arg12[%c2, %c7_63, %c0_64] : memref<18x32x4xf32, #tpu.memory_space<vmem>>, vector<16x16x4xf32>
    %69 = vector.shape_cast %68 : vector<16x16x4xf32> to vector<256x4xf32>
    %c24_65 = arith.constant 24 : index
    %c0_66 = arith.constant 0 : index
    %70 = vector.load %arg4[%c24_65, %c0_66] : memref<36x4xf32, #tpu.memory_space<vmem>>, vector<4x4xf32>
    %cst_67 = arith.constant dense<0.000000e+00> : vector<256x4xf32>
    %71 = tpu.matmul %69, %70, %cst_67 {dimension_numbers = #tpu.dot_dimension_numbers<[1], [0], [0], [1], [0, 0, 1, 1], [], []>} : vector<256x4xf32>, vector<4x4xf32>, vector<256x4xf32> -> vector<256x4xf32>
    %72 = arith.addf %67, %71 : vector<256x4xf32>
    %c2_68 = arith.constant 2 : index
    %c8_69 = arith.constant 8 : index
    %c0_70 = arith.constant 0 : index
    %73 = vector.load %arg12[%c2_68, %c8_69, %c0_70] : memref<18x32x4xf32, #tpu.memory_space<vmem>>, vector<16x16x4xf32>
    %74 = vector.shape_cast %73 : vector<16x16x4xf32> to vector<256x4xf32>
    %c28 = arith.constant 28 : index
    %c0_71 = arith.constant 0 : index
    %75 = vector.load %arg4[%c28, %c0_71] : memref<36x4xf32, #tpu.memory_space<vmem>>, vector<4x4xf32>
    %cst_72 = arith.constant dense<0.000000e+00> : vector<256x4xf32>
    %76 = tpu.matmul %74, %75, %cst_72 {dimension_numbers = #tpu.dot_dimension_numbers<[1], [0], [0], [1], [0, 0, 1, 1], [], []>} : vector<256x4xf32>, vector<4x4xf32>, vector<256x4xf32> -> vector<256x4xf32>
    %77 = arith.addf %72, %76 : vector<256x4xf32>
    %c2_73 = arith.constant 2 : index
    %c9_74 = arith.constant 9 : index
    %c0_75 = arith.constant 0 : index
    %78 = vector.load %arg12[%c2_73, %c9_74, %c0_75] : memref<18x32x4xf32, #tpu.memory_space<vmem>>, vector<16x16x4xf32>
    %79 = vector.shape_cast %78 : vector<16x16x4xf32> to vector<256x4xf32>
    %c32 = arith.constant 32 : index
    %c0_76 = arith.constant 0 : index
    %80 = vector.load %arg4[%c32, %c0_76] : memref<36x4xf32, #tpu.memory_space<vmem>>, vector<4x4xf32>
    %cst_77 = arith.constant dense<0.000000e+00> : vector<256x4xf32>
    %81 = tpu.matmul %79, %80, %cst_77 {dimension_numbers = #tpu.dot_dimension_numbers<[1], [0], [0], [1], [0, 0, 1, 1], [], []>} : vector<256x4xf32>, vector<4x4xf32>, vector<256x4xf32> -> vector<256x4xf32>
    %82 = arith.addf %77, %81 : vector<256x4xf32>
    %c0_78 = arith.constant 0 : index
    %c7_79 = arith.constant 7 : index
    %c0_80 = arith.constant 0 : index
    %83 = vector.load %arg13[%c0_78, %c7_79, %c0_80] : memref<18x32x4xf32, #tpu.memory_space<vmem>>, vector<16x16x4xf32>
    %84 = vector.shape_cast %83 : vector<16x16x4xf32> to vector<256x4xf32>
    %c0_81 = arith.constant 0 : index
    %c0_82 = arith.constant 0 : index
    %85 = vector.load %arg5[%c0_81, %c0_82] : memref<36x4xf32, #tpu.memory_space<vmem>>, vector<4x4xf32>
    %cst_83 = arith.constant dense<0.000000e+00> : vector<256x4xf32>
    %86 = tpu.matmul %84, %85, %cst_83 {dimension_numbers = #tpu.dot_dimension_numbers<[1], [0], [0], [1], [0, 0, 1, 1], [], []>} : vector<256x4xf32>, vector<4x4xf32>, vector<256x4xf32> -> vector<256x4xf32>
    %87 = arith.addf %82, %86 : vector<256x4xf32>
    %c0_84 = arith.constant 0 : index
    %c8_85 = arith.constant 8 : index
    %c0_86 = arith.constant 0 : index
    %88 = vector.load %arg13[%c0_84, %c8_85, %c0_86] : memref<18x32x4xf32, #tpu.memory_space<vmem>>, vector<16x16x4xf32>
    %89 = vector.shape_cast %88 : vector<16x16x4xf32> to vector<256x4xf32>
    %c4_87 = arith.constant 4 : index
    %c0_88 = arith.constant 0 : index
    %90 = vector.load %arg5[%c4_87, %c0_88] : memref<36x4xf32, #tpu.memory_space<vmem>>, vector<4x4xf32>
    %cst_89 = arith.constant dense<0.000000e+00> : vector<256x4xf32>
    %91 = tpu.matmul %89, %90, %cst_89 {dimension_numbers = #tpu.dot_dimension_numbers<[1], [0], [0], [1], [0, 0, 1, 1], [], []>} : vector<256x4xf32>, vector<4x4xf32>, vector<256x4xf32> -> vector<256x4xf32>
    %92 = arith.addf %87, %91 : vector<256x4xf32>
    %c0_90 = arith.constant 0 : index
    %c9_91 = arith.constant 9 : index
    %c0_92 = arith.constant 0 : index
    %93 = vector.load %arg13[%c0_90, %c9_91, %c0_92] : memref<18x32x4xf32, #tpu.memory_space<vmem>>, vector<16x16x4xf32>
    %94 = vector.shape_cast %93 : vector<16x16x4xf32> to vector<256x4xf32>
    %c8_93 = arith.constant 8 : index
    %c0_94 = arith.constant 0 : index
    %95 = vector.load %arg5[%c8_93, %c0_94] : memref<36x4xf32, #tpu.memory_space<vmem>>, vector<4x4xf32>
    %cst_95 = arith.constant dense<0.000000e+00> : vector<256x4xf32>
    %96 = tpu.matmul %94, %95, %cst_95 {dimension_numbers = #tpu.dot_dimension_numbers<[1], [0], [0], [1], [0, 0, 1, 1], [], []>} : vector<256x4xf32>, vector<4x4xf32>, vector<256x4xf32> -> vector<256x4xf32>
    %97 = arith.addf %92, %96 : vector<256x4xf32>
    %c1_96 = arith.constant 1 : index
    %c7_97 = arith.constant 7 : index
    %c0_98 = arith.constant 0 : index
    %98 = vector.load %arg13[%c1_96, %c7_97, %c0_98] : memref<18x32x4xf32, #tpu.memory_space<vmem>>, vector<16x16x4xf32>
    %99 = vector.shape_cast %98 : vector<16x16x4xf32> to vector<256x4xf32>
    %c12_99 = arith.constant 12 : index
    %c0_100 = arith.constant 0 : index
    %100 = vector.load %arg5[%c12_99, %c0_100] : memref<36x4xf32, #tpu.memory_space<vmem>>, vector<4x4xf32>
    %cst_101 = arith.constant dense<0.000000e+00> : vector<256x4xf32>
    %101 = tpu.matmul %99, %100, %cst_101 {dimension_numbers = #tpu.dot_dimension_numbers<[1], [0], [0], [1], [0, 0, 1, 1], [], []>} : vector<256x4xf32>, vector<4x4xf32>, vector<256x4xf32> -> vector<256x4xf32>
    %102 = arith.addf %97, %101 : vector<256x4xf32>
    %c1_102 = arith.constant 1 : index
    %c8_103 = arith.constant 8 : index
    %c0_104 = arith.constant 0 : index
    %103 = vector.load %arg13[%c1_102, %c8_103, %c0_104] : memref<18x32x4xf32, #tpu.memory_space<vmem>>, vector<16x16x4xf32>
    %104 = vector.shape_cast %103 : vector<16x16x4xf32> to vector<256x4xf32>
    %c16_105 = arith.constant 16 : index
    %c0_106 = arith.constant 0 : index
    %105 = vector.load %arg5[%c16_105, %c0_106] : memref<36x4xf32, #tpu.memory_space<vmem>>, vector<4x4xf32>
    %cst_107 = arith.constant dense<0.000000e+00> : vector<256x4xf32>
    %106 = tpu.matmul %104, %105, %cst_107 {dimension_numbers = #tpu.dot_dimension_numbers<[1], [0], [0], [1], [0, 0, 1, 1], [], []>} : vector<256x4xf32>, vector<4x4xf32>, vector<256x4xf32> -> vector<256x4xf32>
    %107 = arith.addf %102, %106 : vector<256x4xf32>
    %c1_108 = arith.constant 1 : index
    %c9_109 = arith.constant 9 : index
    %c0_110 = arith.constant 0 : index
    %108 = vector.load %arg13[%c1_108, %c9_109, %c0_110] : memref<18x32x4xf32, #tpu.memory_space<vmem>>, vector<16x16x4xf32>
    %109 = vector.shape_cast %108 : vector<16x16x4xf32> to vector<256x4xf32>
    %c20_111 = arith.constant 20 : index
    %c0_112 = arith.constant 0 : index
    %110 = vector.load %arg5[%c20_111, %c0_112] : memref<36x4xf32, #tpu.memory_space<vmem>>, vector<4x4xf32>
    %cst_113 = arith.constant dense<0.000000e+00> : vector<256x4xf32>
    %111 = tpu.matmul %109, %110, %cst_113 {dimension_numbers = #tpu.dot_dimension_numbers<[1], [0], [0], [1], [0, 0, 1, 1], [], []>} : vector<256x4xf32>, vector<4x4xf32>, vector<256x4xf32> -> vector<256x4xf32>
    %112 = arith.addf %107, %111 : vector<256x4xf32>
    %c2_114 = arith.constant 2 : index
    %c7_115 = arith.constant 7 : index
    %c0_116 = arith.constant 0 : index
    %113 = vector.load %arg13[%c2_114, %c7_115, %c0_116] : memref<18x32x4xf32, #tpu.memory_space<vmem>>, vector<16x16x4xf32>
    %114 = vector.shape_cast %113 : vector<16x16x4xf32> to vector<256x4xf32>
    %c24_117 = arith.constant 24 : index
    %c0_118 = arith.constant 0 : index
    %115 = vector.load %arg5[%c24_117, %c0_118] : memref<36x4xf32, #tpu.memory_space<vmem>>, vector<4x4xf32>
    %cst_119 = arith.constant dense<0.000000e+00> : vector<256x4xf32>
    %116 = tpu.matmul %114, %115, %cst_119 {dimension_numbers = #tpu.dot_dimension_numbers<[1], [0], [0], [1], [0, 0, 1, 1], [], []>} : vector<256x4xf32>, vector<4x4xf32>, vector<256x4xf32> -> vector<256x4xf32>
    %117 = arith.addf %112, %116 : vector<256x4xf32>
    %c2_120 = arith.constant 2 : index
    %c8_121 = arith.constant 8 : index
    %c0_122 = arith.constant 0 : index
    %118 = vector.load %arg13[%c2_120, %c8_121, %c0_122] : memref<18x32x4xf32, #tpu.memory_space<vmem>>, vector<16x16x4xf32>
    %119 = vector.shape_cast %118 : vector<16x16x4xf32> to vector<256x4xf32>
    %c28_123 = arith.constant 28 : index
    %c0_124 = arith.constant 0 : index
    %120 = vector.load %arg5[%c28_123, %c0_124] : memref<36x4xf32, #tpu.memory_space<vmem>>, vector<4x4xf32>
    %cst_125 = arith.constant dense<0.000000e+00> : vector<256x4xf32>
    %121 = tpu.matmul %119, %120, %cst_125 {dimension_numbers = #tpu.dot_dimension_numbers<[1], [0], [0], [1], [0, 0, 1, 1], [], []>} : vector<256x4xf32>, vector<4x4xf32>, vector<256x4xf32> -> vector<256x4xf32>
    %122 = arith.addf %117, %121 : vector<256x4xf32>
    %c2_126 = arith.constant 2 : index
    %c9_127 = arith.constant 9 : index
    %c0_128 = arith.constant 0 : index
    %123 = vector.load %arg13[%c2_126, %c9_127, %c0_128] : memref<18x32x4xf32, #tpu.memory_space<vmem>>, vector<16x16x4xf32>
    %124 = vector.shape_cast %123 : vector<16x16x4xf32> to vector<256x4xf32>
    %c32_129 = arith.constant 32 : index
    %c0_130 = arith.constant 0 : index
    %125 = vector.load %arg5[%c32_129, %c0_130] : memref<36x4xf32, #tpu.memory_space<vmem>>, vector<4x4xf32>
    %cst_131 = arith.constant dense<0.000000e+00> : vector<256x4xf32>
    %126 = tpu.matmul %124, %125, %cst_131 {dimension_numbers = #tpu.dot_dimension_numbers<[1], [0], [0], [1], [0, 0, 1, 1], [], []>} : vector<256x4xf32>, vector<4x4xf32>, vector<256x4xf32> -> vector<256x4xf32>
    %127 = arith.addf %122, %126 : vector<256x4xf32>
    %c0_132 = arith.constant 0 : index
    %c0_133 = arith.constant 0 : index
    %128 = vector.load %arg6[%c0_132, %c0_133] : memref<1x4xf32, #tpu.memory_space<vmem>>, vector<1x4xf32>
    %c0_134 = arith.constant 0 : index
    %c0_135 = arith.constant 0 : index
    %129 = vector.load %arg7[%c0_134, %c0_135] : memref<1x4xf32, #tpu.memory_space<vmem>>, vector<1x4xf32>
    %cst_136 = arith.constant dense<0.000000e+00> : vector<4xf32>
    %130 = vector.multi_reduction <add>, %127, %cst_136 [0] : vector<256x4xf32> to vector<4xf32>
    %131 = vector.shape_cast %130 : vector<4xf32> to vector<1x4xf32>
    %132 = arith.mulf %127, %127 : vector<256x4xf32>
    %cst_137 = arith.constant dense<0.000000e+00> : vector<4xf32>
    %133 = vector.multi_reduction <add>, %132, %cst_137 [0] : vector<256x4xf32> to vector<4xf32>
    %134 = vector.shape_cast %133 : vector<4xf32> to vector<1x4xf32>
    %cst_138 = arith.constant 3.906250e-03 : f32
    %135 = vector.broadcast %cst_138 : f32 to vector<1x4xf32>
    %136 = arith.mulf %131, %135 : vector<1x4xf32>
    %cst_139 = arith.constant 3.906250e-03 : f32
    %137 = vector.broadcast %cst_139 : f32 to vector<1x4xf32>
    %138 = arith.mulf %134, %137 : vector<1x4xf32>
    %139 = arith.mulf %136, %136 : vector<1x4xf32>
    %140 = arith.subf %138, %139 : vector<1x4xf32>
    %cst_140 = arith.constant 0.000000e+00 : f32
    %141 = vector.broadcast %cst_140 : f32 to vector<1x4xf32>
    %142 = arith.maximumf %140, %141 : vector<1x4xf32>
    %143 = vector.broadcast %136 : vector<1x4xf32> to vector<256x4xf32>
    %144 = arith.subf %127, %143 : vector<256x4xf32>
    %cst_141 = arith.constant 9.99999974E-6 : f32
    %145 = vector.broadcast %cst_141 : f32 to vector<1x4xf32>
    %146 = arith.addf %142, %145 : vector<1x4xf32>
    %147 = math.rsqrt %146 : vector<1x4xf32>
    %148 = vector.broadcast %147 : vector<1x4xf32> to vector<256x4xf32>
    %149 = arith.mulf %144, %148 : vector<256x4xf32>
    %150 = vector.broadcast %128 : vector<1x4xf32> to vector<256x4xf32>
    %151 = arith.mulf %149, %150 : vector<256x4xf32>
    %152 = vector.broadcast %129 : vector<1x4xf32> to vector<256x4xf32>
    %153 = arith.addf %151, %152 : vector<256x4xf32>
    %cst_142 = arith.constant 0.000000e+00 : f32
    %154 = vector.broadcast %cst_142 : f32 to vector<256x4xf32>
    %155 = arith.cmpf oge, %153, %154 : vector<256x4xf32>
    %cst_143 = arith.constant 0.00999999977 : f32
    %156 = vector.broadcast %cst_143 : f32 to vector<256x4xf32>
    %157 = arith.mulf %156, %153 : vector<256x4xf32>
    %158 = arith.select %155, %153, %157 : vector<256x4xi1>, vector<256x4xf32>
    %159 = vector.shape_cast %158 : vector<256x4xf32> to vector<16x16x4xf32>
    %c1_144 = arith.constant 1 : index
    %c8_145 = arith.constant 8 : index
    %c0_146 = arith.constant 0 : index
    %160 = vector.load %arg12[%c1_144, %c8_145, %c0_146] : memref<18x32x4xf32, #tpu.memory_space<vmem>>, vector<16x16x4xf32>
    tpu.vector_store %arg12[%c1_144, %c8_145, %c0_146], %159 {strides = array<i32>} : memref<18x32x4xf32, #tpu.memory_space<vmem>>, vector<16x16x4xf32>,
    %cst_147 = arith.constant 0.000000e+00 : f32
    %161 = vector.broadcast %cst_147 : f32 to vector<256x4xf32>
    %c0_148 = arith.constant 0 : index
    %c7_149 = arith.constant 7 : index
    %c0_150 = arith.constant 0 : index
    %162 = vector.load %arg12[%c0_148, %c7_149, %c0_150] : memref<18x32x4xf32, #tpu.memory_space<vmem>>, vector<16x16x4xf32>
    %163 = vector.shape_cast %162 : vector<16x16x4xf32> to vector<256x4xf32>
    %c0_151 = arith.constant 0 : index
    %c0_152 = arith.constant 0 : index
    %164 = vector.load %arg8[%c0_151, %c0_152] : memref<36x4xf32, #tpu.memory_space<vmem>>, vector<4x4xf32>
    %cst_153 = arith.constant dense<0.000000e+00> : vector<256x4xf32>
    %165 = tpu.matmul %163, %164, %cst_153 {dimension_numbers = #tpu.dot_dimension_numbers<[1], [0], [0], [1], [0, 0, 1, 1], [], []>} : vector<256x4xf32>, vector<4x4xf32>, vector<256x4xf32> -> vector<256x4xf32>
    %166 = arith.addf %161, %165 : vector<256x4xf32>
    %c0_154 = arith.constant 0 : index
    %c8_155 = arith.constant 8 : index
    %c0_156 = arith.constant 0 : index
    %167 = vector.load %arg12[%c0_154, %c8_155, %c0_156] : memref<18x32x4xf32, #tpu.memory_space<vmem>>, vector<16x16x4xf32>
    %168 = vector.shape_cast %167 : vector<16x16x4xf32> to vector<256x4xf32>
    %c4_157 = arith.constant 4 : index
    %c0_158 = arith.constant 0 : index
    %169 = vector.load %arg8[%c4_157, %c0_158] : memref<36x4xf32, #tpu.memory_space<vmem>>, vector<4x4xf32>
    %cst_159 = arith.constant dense<0.000000e+00> : vector<256x4xf32>
    %170 = tpu.matmul %168, %169, %cst_159 {dimension_numbers = #tpu.dot_dimension_numbers<[1], [0], [0], [1], [0, 0, 1, 1], [], []>} : vector<256x4xf32>, vector<4x4xf32>, vector<256x4xf32> -> vector<256x4xf32>
    %171 = arith.addf %166, %170 : vector<256x4xf32>
    %c0_160 = arith.constant 0 : index
    %c9_161 = arith.constant 9 : index
    %c0_162 = arith.constant 0 : index
    %172 = vector.load %arg12[%c0_160, %c9_161, %c0_162] : memref<18x32x4xf32, #tpu.memory_space<vmem>>, vector<16x16x4xf32>
    %173 = vector.shape_cast %172 : vector<16x16x4xf32> to vector<256x4xf32>
    %c8_163 = arith.constant 8 : index
    %c0_164 = arith.constant 0 : index
    %174 = vector.load %arg8[%c8_163, %c0_164] : memref<36x4xf32, #tpu.memory_space<vmem>>, vector<4x4xf32>
    %cst_165 = arith.constant dense<0.000000e+00> : vector<256x4xf32>
    %175 = tpu.matmul %173, %174, %cst_165 {dimension_numbers = #tpu.dot_dimension_numbers<[1], [0], [0], [1], [0, 0, 1, 1], [], []>} : vector<256x4xf32>, vector<4x4xf32>, vector<256x4xf32> -> vector<256x4xf32>
    %176 = arith.addf %171, %175 : vector<256x4xf32>
    %c1_166 = arith.constant 1 : index
    %c7_167 = arith.constant 7 : index
    %c0_168 = arith.constant 0 : index
    %177 = vector.load %arg12[%c1_166, %c7_167, %c0_168] : memref<18x32x4xf32, #tpu.memory_space<vmem>>, vector<16x16x4xf32>
    %178 = vector.shape_cast %177 : vector<16x16x4xf32> to vector<256x4xf32>
    %c12_169 = arith.constant 12 : index
    %c0_170 = arith.constant 0 : index
    %179 = vector.load %arg8[%c12_169, %c0_170] : memref<36x4xf32, #tpu.memory_space<vmem>>, vector<4x4xf32>
    %cst_171 = arith.constant dense<0.000000e+00> : vector<256x4xf32>
    %180 = tpu.matmul %178, %179, %cst_171 {dimension_numbers = #tpu.dot_dimension_numbers<[1], [0], [0], [1], [0, 0, 1, 1], [], []>} : vector<256x4xf32>, vector<4x4xf32>, vector<256x4xf32> -> vector<256x4xf32>
    %181 = arith.addf %176, %180 : vector<256x4xf32>
    %c1_172 = arith.constant 1 : index
    %c8_173 = arith.constant 8 : index
    %c0_174 = arith.constant 0 : index
    %182 = vector.load %arg12[%c1_172, %c8_173, %c0_174] : memref<18x32x4xf32, #tpu.memory_space<vmem>>, vector<16x16x4xf32>
    %183 = vector.shape_cast %182 : vector<16x16x4xf32> to vector<256x4xf32>
    %c16_175 = arith.constant 16 : index
    %c0_176 = arith.constant 0 : index
    %184 = vector.load %arg8[%c16_175, %c0_176] : memref<36x4xf32, #tpu.memory_space<vmem>>, vector<4x4xf32>
    %cst_177 = arith.constant dense<0.000000e+00> : vector<256x4xf32>
    %185 = tpu.matmul %183, %184, %cst_177 {dimension_numbers = #tpu.dot_dimension_numbers<[1], [0], [0], [1], [0, 0, 1, 1], [], []>} : vector<256x4xf32>, vector<4x4xf32>, vector<256x4xf32> -> vector<256x4xf32>
    %186 = arith.addf %181, %185 : vector<256x4xf32>
    %c1_178 = arith.constant 1 : index
    %c9_179 = arith.constant 9 : index
    %c0_180 = arith.constant 0 : index
    %187 = vector.load %arg12[%c1_178, %c9_179, %c0_180] : memref<18x32x4xf32, #tpu.memory_space<vmem>>, vector<16x16x4xf32>
    %188 = vector.shape_cast %187 : vector<16x16x4xf32> to vector<256x4xf32>
    %c20_181 = arith.constant 20 : index
    %c0_182 = arith.constant 0 : index
    %189 = vector.load %arg8[%c20_181, %c0_182] : memref<36x4xf32, #tpu.memory_space<vmem>>, vector<4x4xf32>
    %cst_183 = arith.constant dense<0.000000e+00> : vector<256x4xf32>
    %190 = tpu.matmul %188, %189, %cst_183 {dimension_numbers = #tpu.dot_dimension_numbers<[1], [0], [0], [1], [0, 0, 1, 1], [], []>} : vector<256x4xf32>, vector<4x4xf32>, vector<256x4xf32> -> vector<256x4xf32>
    %191 = arith.addf %186, %190 : vector<256x4xf32>
    %c2_184 = arith.constant 2 : index
    %c7_185 = arith.constant 7 : index
    %c0_186 = arith.constant 0 : index
    %192 = vector.load %arg12[%c2_184, %c7_185, %c0_186] : memref<18x32x4xf32, #tpu.memory_space<vmem>>, vector<16x16x4xf32>
    %193 = vector.shape_cast %192 : vector<16x16x4xf32> to vector<256x4xf32>
    %c24_187 = arith.constant 24 : index
    %c0_188 = arith.constant 0 : index
    %194 = vector.load %arg8[%c24_187, %c0_188] : memref<36x4xf32, #tpu.memory_space<vmem>>, vector<4x4xf32>
    %cst_189 = arith.constant dense<0.000000e+00> : vector<256x4xf32>
    %195 = tpu.matmul %193, %194, %cst_189 {dimension_numbers = #tpu.dot_dimension_numbers<[1], [0], [0], [1], [0, 0, 1, 1], [], []>} : vector<256x4xf32>, vector<4x4xf32>, vector<256x4xf32> -> vector<256x4xf32>
    %196 = arith.addf %191, %195 : vector<256x4xf32>
    %c2_190 = arith.constant 2 : index
    %c8_191 = arith.constant 8 : index
    %c0_192 = arith.constant 0 : index
    %197 = vector.load %arg12[%c2_190, %c8_191, %c0_192] : memref<18x32x4xf32, #tpu.memory_space<vmem>>, vector<16x16x4xf32>
    %198 = vector.shape_cast %197 : vector<16x16x4xf32> to vector<256x4xf32>
    %c28_193 = arith.constant 28 : index
    %c0_194 = arith.constant 0 : index
    %199 = vector.load %arg8[%c28_193, %c0_194] : memref<36x4xf32, #tpu.memory_space<vmem>>, vector<4x4xf32>
    %cst_195 = arith.constant dense<0.000000e+00> : vector<256x4xf32>
    %200 = tpu.matmul %198, %199, %cst_195 {dimension_numbers = #tpu.dot_dimension_numbers<[1], [0], [0], [1], [0, 0, 1, 1], [], []>} : vector<256x4xf32>, vector<4x4xf32>, vector<256x4xf32> -> vector<256x4xf32>
    %201 = arith.addf %196, %200 : vector<256x4xf32>
    %c2_196 = arith.constant 2 : index
    %c9_197 = arith.constant 9 : index
    %c0_198 = arith.constant 0 : index
    %202 = vector.load %arg12[%c2_196, %c9_197, %c0_198] : memref<18x32x4xf32, #tpu.memory_space<vmem>>, vector<16x16x4xf32>
    %203 = vector.shape_cast %202 : vector<16x16x4xf32> to vector<256x4xf32>
    %c32_199 = arith.constant 32 : index
    %c0_200 = arith.constant 0 : index
    %204 = vector.load %arg8[%c32_199, %c0_200] : memref<36x4xf32, #tpu.memory_space<vmem>>, vector<4x4xf32>
    %cst_201 = arith.constant dense<0.000000e+00> : vector<256x4xf32>
    %205 = tpu.matmul %203, %204, %cst_201 {dimension_numbers = #tpu.dot_dimension_numbers<[1], [0], [0], [1], [0, 0, 1, 1], [], []>} : vector<256x4xf32>, vector<4x4xf32>, vector<256x4xf32> -> vector<256x4xf32>
    %206 = arith.addf %201, %205 : vector<256x4xf32>
    %c0_202 = arith.constant 0 : index
    %c0_203 = arith.constant 0 : index
    %207 = vector.load %arg9[%c0_202, %c0_203] : memref<1x4xf32, #tpu.memory_space<vmem>>, vector<1x4xf32>
    %c0_204 = arith.constant 0 : index
    %c0_205 = arith.constant 0 : index
    %208 = vector.load %arg10[%c0_204, %c0_205] : memref<1x4xf32, #tpu.memory_space<vmem>>, vector<1x4xf32>
    %cst_206 = arith.constant dense<0.000000e+00> : vector<4xf32>
    %209 = vector.multi_reduction <add>, %206, %cst_206 [0] : vector<256x4xf32> to vector<4xf32>
    %210 = vector.shape_cast %209 : vector<4xf32> to vector<1x4xf32>
    %211 = arith.mulf %206, %206 : vector<256x4xf32>
    %cst_207 = arith.constant dense<0.000000e+00> : vector<4xf32>
    %212 = vector.multi_reduction <add>, %211, %cst_207 [0] : vector<256x4xf32> to vector<4xf32>
    %213 = vector.shape_cast %212 : vector<4xf32> to vector<1x4xf32>
    %cst_208 = arith.constant 3.906250e-03 : f32
    %214 = vector.broadcast %cst_208 : f32 to vector<1x4xf32>
    %215 = arith.mulf %210, %214 : vector<1x4xf32>
    %cst_209 = arith.constant 3.906250e-03 : f32
    %216 = vector.broadcast %cst_209 : f32 to vector<1x4xf32>
    %217 = arith.mulf %213, %216 : vector<1x4xf32>
    %218 = arith.mulf %215, %215 : vector<1x4xf32>
    %219 = arith.subf %217, %218 : vector<1x4xf32>
    %cst_210 = arith.constant 0.000000e+00 : f32
    %220 = vector.broadcast %cst_210 : f32 to vector<1x4xf32>
    %221 = arith.maximumf %219, %220 : vector<1x4xf32>
    %222 = vector.broadcast %215 : vector<1x4xf32> to vector<256x4xf32>
    %223 = arith.subf %206, %222 : vector<256x4xf32>
    %cst_211 = arith.constant 9.99999974E-6 : f32
    %224 = vector.broadcast %cst_211 : f32 to vector<1x4xf32>
    %225 = arith.addf %221, %224 : vector<1x4xf32>
    %226 = math.rsqrt %225 : vector<1x4xf32>
    %227 = vector.broadcast %226 : vector<1x4xf32> to vector<256x4xf32>
    %228 = arith.mulf %223, %227 : vector<256x4xf32>
    %229 = vector.broadcast %207 : vector<1x4xf32> to vector<256x4xf32>
    %230 = arith.mulf %228, %229 : vector<256x4xf32>
    %231 = vector.broadcast %208 : vector<1x4xf32> to vector<256x4xf32>
    %232 = arith.addf %230, %231 : vector<256x4xf32>
    %cst_212 = arith.constant 0.000000e+00 : f32
    %233 = vector.broadcast %cst_212 : f32 to vector<256x4xf32>
    %234 = arith.cmpf oge, %232, %233 : vector<256x4xf32>
    %cst_213 = arith.constant 0.00999999977 : f32
    %235 = vector.broadcast %cst_213 : f32 to vector<256x4xf32>
    %236 = arith.mulf %235, %232 : vector<256x4xf32>
    %237 = arith.select %234, %232, %236 : vector<256x4xi1>, vector<256x4xf32>
    %238 = vector.shape_cast %237 : vector<256x4xf32> to vector<1x16x16x4xf32>
    %c0_214 = arith.constant 0 : index
    %c0_215 = arith.constant 0 : index
    %c0_216 = arith.constant 0 : index
    %c0_217 = arith.constant 0 : index
    %239 = vector.load %arg11[%c0_214, %c0_215, %c0_216, %c0_217] : memref<1x16x16x4xf32, #tpu.memory_space<vmem>>, vector<1x16x16x4xf32>
    tpu.vector_store %arg11[%c0_214, %c0_215, %c0_216, %c0_217], %238 {strides = array<i32>} : memref<1x16x16x4xf32, #tpu.memory_space<vmem>>, vector<1x16x16x4xf32>,
    return
  }
  func.func @transform_0(%arg0: i32) -> (i32, i32, i32, i32) {
    %c0_i32 = arith.constant 0 : i32
    %c0_i32_0 = arith.constant 0 : i32
    %c0_i32_1 = arith.constant 0 : i32
    %c0_i32_2 = arith.constant 0 : i32
    return %arg0, %c0_i32, %c0_i32_0, %c0_i32_1 : i32, i32, i32, i32
  }
  func.func @transform_1(%arg0: i32) -> (i32, i32, i32, i32) {
    %c0_i32 = arith.constant 0 : i32
    %c0_i32_0 = arith.constant 0 : i32
    %c0_i32_1 = arith.constant 0 : i32
    %c0_i32_2 = arith.constant 0 : i32
    return %arg0, %c0_i32, %c0_i32_0, %c0_i32_1 : i32, i32, i32, i32
  }
  func.func @transform_2(%arg0: i32) -> (i32, i32) {
    %c0_i32 = arith.constant 0 : i32
    %c0_i32_0 = arith.constant 0 : i32
    %c0_i32_1 = arith.constant 0 : i32
    return %c0_i32, %c0_i32_0 : i32, i32
  }
  func.func @transform_3(%arg0: i32) -> (i32, i32) {
    %c0_i32 = arith.constant 0 : i32
    %c0_i32_0 = arith.constant 0 : i32
    %c0_i32_1 = arith.constant 0 : i32
    return %c0_i32, %c0_i32_0 : i32, i32
  }
  func.func @transform_4(%arg0: i32) -> (i32, i32) {
    %c0_i32 = arith.constant 0 : i32
    %c0_i32_0 = arith.constant 0 : i32
    %c0_i32_1 = arith.constant 0 : i32
    return %c0_i32, %c0_i32_0 : i32, i32
  }
  func.func @transform_5(%arg0: i32) -> (i32, i32) {
    %c0_i32 = arith.constant 0 : i32
    %c0_i32_0 = arith.constant 0 : i32
    %c0_i32_1 = arith.constant 0 : i32
    return %c0_i32, %c0_i32_0 : i32, i32
  }
  func.func @transform_6(%arg0: i32) -> (i32, i32) {
    %c0_i32 = arith.constant 0 : i32
    %c0_i32_0 = arith.constant 0 : i32
    %c0_i32_1 = arith.constant 0 : i32
    return %c0_i32, %c0_i32_0 : i32, i32
  }
  func.func @transform_7(%arg0: i32) -> (i32, i32) {
    %c0_i32 = arith.constant 0 : i32
    %c0_i32_0 = arith.constant 0 : i32
    %c0_i32_1 = arith.constant 0 : i32
    return %c0_i32, %c0_i32_0 : i32, i32
  }
  func.func @transform_8(%arg0: i32) -> (i32, i32) {
    %c0_i32 = arith.constant 0 : i32
    %c0_i32_0 = arith.constant 0 : i32
    %c0_i32_1 = arith.constant 0 : i32
    return %c0_i32, %c0_i32_0 : i32, i32
  }
  func.func @transform_9(%arg0: i32) -> (i32, i32) {
    %c0_i32 = arith.constant 0 : i32
    %c0_i32_0 = arith.constant 0 : i32
    %c0_i32_1 = arith.constant 0 : i32
    return %c0_i32, %c0_i32_0 : i32, i32
  }
  func.func @transform_10(%arg0: i32) -> (i32, i32, i32, i32) {
    %c0_i32 = arith.constant 0 : i32
    %c0_i32_0 = arith.constant 0 : i32
    %c0_i32_1 = arith.constant 0 : i32
    %c0_i32_2 = arith.constant 0 : i32
    return %arg0, %c0_i32, %c0_i32_0, %c0_i32_1 : i32, i32, i32, i32
  }
}

</mosaic_0001>

<llo_original>
// kernel: tpu_custom_call.1
$region0: #{tpu_custom_call.1}
  #allocation0 [shape = 'u32[]', space=smem, size = 0x4, offset = 0x4, fixed_abs, tag = 'smem constant byte address 0x4 - core index']
  #allocation1 [shape = 'u32[144,128]{1,0:T(1,128)}', space=vmem, size = 0x12000, scoped, tag = 'internal scratch']
  #allocation2 [shape = 'f32[18,32,4]{2,1,0:T(8,128)}', space=vmem, size = 0x48000, scoped, tag = 'scratch operand']
  #allocation3 [shape = 'f32[18,32,4]{2,1,0:T(8,128)}', space=vmem, size = 0x48000, scoped, tag = 'scratch operand']
  %s0 = inlined_call_operand.vmem [shape: f32[2,8,8,8], index: 0, kind: input, shape index: {}]
  %s1 = inlined_call_operand.vmem [shape: f32[2,16,16,4], index: 1, kind: input, shape index: {}]
  %s2 = inlined_call_operand.vmem [shape: f32[8,16], index: 2, kind: input, shape index: {}]
  %s3 = inlined_call_operand.vmem [shape: f32[36,4], index: 3, kind: input, shape index: {}]
  %s4 = inlined_call_operand.vmem [shape: f32[36,4], index: 4, kind: input, shape index: {}]
  %s5 = inlined_call_operand.vmem [shape: f32[1,4], index: 5, kind: input, shape index: {}]
  %s6 = inlined_call_operand.vmem [shape: f32[1,4], index: 6, kind: input, shape index: {}]
  %s7 = inlined_call_operand.vmem [shape: f32[36,4], index: 7, kind: input, shape index: {}]
  %s8 = inlined_call_operand.vmem [shape: f32[1,4], index: 8, kind: input, shape index: {}]
  %s9 = inlined_call_operand.vmem [shape: f32[1,4], index: 9, kind: input, shape index: {}]
  %s10 = inlined_call_operand.vmem [shape: f32[2,16,16,4], index: 10, kind: output, shape index: {}]
  %s11 = sld [smem:[#allocation0]]
  $region80: #{tpu_custom_call.1} parent=0
    _
  %s13 = ssub.s32 1, %s11
  %s14 = scalar_select 0, %s13, %s11
  loop: start=0, step=1, limit=4
  $region2: #{tpu_custom_call.1} parent=0 // loop_pre_header
    _
  $region3: #{tpu_custom_call.1} parent=0 // loop_header
    %s16 = sphi 0, %s20
    %p17 = scmp.ge.s32.totalorder %s16, 4
    %s26 = sphi 0, %s28
    %s29 = sphi 0, %s26
    %s30 = sphi 0, %s29
    %s46 = sphi 0, %s30
    %s52 = sphi 0, %s54
    %s55 = sphi 0, %s52
    %s56 = sphi 0, %s55
    %s72 = sphi 0, %s56
    %s76 = sphi 0, %s76
    %s78 = sphi 0, %s76
    %s79 = sphi 0, %s78
    %s93 = sphi 0, %s79
    %s97 = sphi 0, %s97
    %s99 = sphi 0, %s97
    %s100 = sphi 0, %s99
    %s114 = sphi 0, %s100
    %s118 = sphi 0, %s118
    %s120 = sphi 0, %s118
    %s121 = sphi 0, %s120
    %s135 = sphi 0, %s121
    %s139 = sphi 0, %s139
    %s141 = sphi 0, %s139
    %s142 = sphi 0, %s141
    %s156 = sphi 0, %s142
    %s160 = sphi 0, %s160
    %s162 = sphi 0, %s160
    %s163 = sphi 0, %s162
    %s177 = sphi 0, %s163
    %s181 = sphi 0, %s181
    %s183 = sphi 0, %s181
    %s184 = sphi 0, %s183
    %s198 = sphi 0, %s184
    %s202 = sphi 0, %s202
    %s204 = sphi 0, %s202
    %s205 = sphi 0, %s204
    %s219 = sphi 0, %s205
    %s223 = sphi 0, %s223
    %s225 = sphi 0, %s223
    %s226 = sphi 0, %s225
    %s240 = sphi 0, %s226
    %s246 = sphi 0, %s248
    %s249 = sphi 0, %s246
    %s250 = sphi 0, %s249
    %s266 = sphi 0, %s250
  $region4: #{tpu_custom_call.1} parent=0 // loop_header_branch
    %19 = sbr.rel (%p17) target = $region8
  $region5: #{tpu_custom_call.1} parent=0 // loop_body
    %s21 = ssub.s32 %s16, 1
    %s22 = ssub.s32 %s16, 2
    %s23 = sadd.s32 %s16, 1
    %s24 = ssub.s32 %s16, %s23
    %p25 = scmp.eq.s32.totalorder %s24, 0
    %s27 = sadd.s32 %s26, 1
    %s28 = scalar_select %p25, %s26, %s27
    %p31 = pneg %p25
    %p32 = scmp.eq.s32.totalorder %s16, 1
    %p33 = por %p31, %p32
    %p34 = scmp.ne.s32.totalorder %s26, %s29
    %p35 = scmp.eq.s32.totalorder %s16, 0
    %p36 = por %p34, %p35
    %p37 = scmp.ne.s32.totalorder %s26, %s29
    %p38 = scmp.eq.s32.totalorder %s21, 1
    %p39 = por %p37, %p38
    %p40 = scmp.ne.s32.totalorder %s29, %s30
    %p41 = scmp.eq.s32.totalorder %s21, 0
    %p42 = por %p40, %p41
    %p43 = scmp.ne.s32.totalorder %s29, %s30
    %p44 = scmp.eq.s32.totalorder %s22, 1
    %p45 = por %p43, %p44
    %p47 = scmp.ne.s32.totalorder %s30, %s46
    %p48 = scmp.eq.s32.totalorder %s22, 0
    %p49 = por %p47, %p48
    %s50 = ssub.s32 %s16, %s23
    %p51 = scmp.eq.s32.totalorder %s50, 0
    %s53 = sadd.s32 %s52, 1
    %s54 = scalar_select %p51, %s52, %s53
    %p57 = pneg %p51
    %p58 = scmp.eq.s32.totalorder %s16, 1
    %p59 = por %p57, %p58
    %p60 = scmp.ne.s32.totalorder %s52, %s55
    %p61 = scmp.eq.s32.totalorder %s16, 0
    %p62 = por %p60, %p61
    %p63 = scmp.ne.s32.totalorder %s52, %s55
    %p64 = scmp.eq.s32.totalorder %s21, 1
    %p65 = por %p63, %p64
    %p66 = scmp.ne.s32.totalorder %s55, %s56
    %p67 = scmp.eq.s32.totalorder %s21, 0
    %p68 = por %p66, %p67
    %p69 = scmp.ne.s32.totalorder %s55, %s56
    %p70 = scmp.eq.s32.totalorder %s22, 1
    %p71 = por %p69, %p70
    %p73 = scmp.ne.s32.totalorder %s56, %s72
    %p74 = scmp.eq.s32.totalorder %s22, 0
    %p75 = por %p73, %p74
    %s77 = sadd.s32 %s76, 1
    %p80 = scmp.eq.s32.totalorder %s16, 1
    %p81 = scmp.ne.s32.totalorder %s76, %s78
    %p82 = scmp.eq.s32.totalorder %s16, 0
    %p83 = por %p81, %p82
    %p84 = scmp.ne.s32.totalorder %s76, %s78
    %p85 = scmp.eq.s32.totalorder %s21, 1
    %p86 = por %p84, %p85
    %p87 = scmp.ne.s32.totalorder %s78, %s79
    %p88 = scmp.eq.s32.totalorder %s21, 0
    %p89 = por %p87, %p88
    %p90 = scmp.ne.s32.totalorder %s78, %s79
    %p91 = scmp.eq.s32.totalorder %s22, 1
    %p92 = por %p90, %p91
    %p94 = scmp.ne.s32.totalorder %s79, %s93
    %p95 = scmp.eq.s32.totalorder %s22, 0
    %p96 = por %p94, %p95
    %s98 = sadd.s32 %s97, 1
    %p101 = scmp.eq.s32.totalorder %s16, 1
    %p102 = scmp.ne.s32.totalorder %s97, %s99
    %p103 = scmp.eq.s32.totalorder %s16, 0
    %p104 = por %p102, %p103
    %p105 = scmp.ne.s32.totalorder %s97, %s99
    %p106 = scmp.eq.s32.totalorder %s21, 1
    %p107 = por %p105, %p106
    %p108 = scmp.ne.s32.totalorder %s99, %s100
    %p109 = scmp.eq.s32.totalorder %s21, 0
    %p110 = por %p108, %p109
    %p111 = scmp.ne.s32.totalorder %s99, %s100
    %p112 = scmp.eq.s32.totalorder %s22, 1
    %p113 = por %p111, %p112
    %p115 = scmp.ne.s32.totalorder %s100, %s114
    %p116 = scmp.eq.s32.totalorder %s22, 0
    %p117 = por %p115, %p116
    %s119 = sadd.s32 %s118, 1
    %p122 = scmp.eq.s32.totalorder %s16, 1
    %p123 = scmp.ne.s32.totalorder %s118, %s120
    %p124 = scmp.eq.s32.totalorder %s16, 0
    %p125 = por %p123, %p124
    %p126 = scmp.ne.s32.totalorder %s118, %s120
    %p127 = scmp.eq.s32.totalorder %s21, 1
    %p128 = por %p126, %p127
    %p129 = scmp.ne.s32.totalorder %s120, %s121
    %p130 = scmp.eq.s32.totalorder %s21, 0
    %p131 = por %p129, %p130
    %p132 = scmp.ne.s32.totalorder %s120, %s121
    %p133 = scmp.eq.s32.totalorder %s22, 1
    %p134 = por %p132, %p133
    %p136 = scmp.ne.s32.totalorder %s121, %s135
    %p137 = scmp.eq.s32.totalorder %s22, 0
    %p138 = por %p136, %p137
    %s140 = sadd.s32 %s139, 1
    %p143 = scmp.eq.s32.totalorder %s16, 1
    %p144 = scmp.ne.s32.totalorder %s139, %s141
    %p145 = scmp.eq.s32.totalorder %s16, 0
    %p146 = por %p144, %p145
    %p147 = scmp.ne.s32.totalorder %s139, %s141
    %p148 = scmp.eq.s32.totalorder %s21, 1
    %p149 = por %p147, %p148
    %p150 = scmp.ne.s32.totalorder %s141, %s142
    %p151 = scmp.eq.s32.totalorder %s21, 0
    %p152 = por %p150, %p151
    %p153 = scmp.ne.s32.totalorder %s141, %s142
    %p154 = scmp.eq.s32.totalorder %s22, 1
    %p155 = por %p153, %p154
    %p157 = scmp.ne.s32.totalorder %s142, %s156
    %p158 = scmp.eq.s32.totalorder %s22, 0
    %p159 = por %p157, %p158
    %s161 = sadd.s32 %s160, 1
    %p164 = scmp.eq.s32.totalorder %s16, 1
    %p165 = scmp.ne.s32.totalorder %s160, %s162
    %p166 = scmp.eq.s32.totalorder %s16, 0
    %p167 = por %p165, %p166
    %p168 = scmp.ne.s32.totalorder %s160, %s162
    %p169 = scmp.eq.s32.totalorder %s21, 1
    %p170 = por %p168, %p169
    %p171 = scmp.ne.s32.totalorder %s162, %s163
    %p172 = scmp.eq.s32.totalorder %s21, 0
    %p173 = por %p171, %p172
    %p174 = scmp.ne.s32.totalorder %s162, %s163
    %p175 = scmp.eq.s32.totalorder %s22, 1
    %p176 = por %p174, %p175
    %p178 = scmp.ne.s32.totalorder %s163, %s177
    %p179 = scmp.eq.s32.totalorder %s22, 0
    %p180 = por %p178, %p179
    %s182 = sadd.s32 %s181, 1
    %p185 = scmp.eq.s32.totalorder %s16, 1
    %p186 = scmp.ne.s32.totalorder %s181, %s183
    %p187 = scmp.eq.s32.totalorder %s16, 0
    %p188 = por %p186, %p187
    %p189 = scmp.ne.s32.totalorder %s181, %s183
    %p190 = scmp.eq.s32.totalorder %s21, 1
    %p191 = por %p189, %p190
    %p192 = scmp.ne.s32.totalorder %s183, %s184
    %p193 = scmp.eq.s32.totalorder %s21, 0
    %p194 = por %p192, %p193
    %p195 = scmp.ne.s32.totalorder %s183, %s184
    %p196 = scmp.eq.s32.totalorder %s22, 1
    %p197 = por %p195, %p196
    %p199 = scmp.ne.s32.totalorder %s184, %s198
    %p200 = scmp.eq.s32.totalorder %s22, 0
    %p201 = por %p199, %p200
    %s203 = sadd.s32 %s202, 1
    %p206 = scmp.eq.s32.totalorder %s16, 1
    %p207 = scmp.ne.s32.totalorder %s202, %s204
    %p208 = scmp.eq.s32.totalorder %s16, 0
    %p209 = por %p207, %p208
    %p210 = scmp.ne.s32.totalorder %s202, %s204
    %p211 = scmp.eq.s32.totalorder %s21, 1
    %p212 = por %p210, %p211
    %p213 = scmp.ne.s32.totalorder %s204, %s205
    %p214 = scmp.eq.s32.totalorder %s21, 0
    %p215 = por %p213, %p214
    %p216 = scmp.ne.s32.totalorder %s204, %s205
    %p217 = scmp.eq.s32.totalorder %s22, 1
    %p218 = por %p216, %p217
    %p220 = scmp.ne.s32.totalorder %s205, %s219
    %p221 = scmp.eq.s32.totalorder %s22, 0
    %p222 = por %p220, %p221
    %s224 = sadd.s32 %s223, 1
    %p227 = scmp.eq.s32.totalorder %s16, 1
    %p228 = scmp.ne.s32.totalorder %s223, %s225
    %p229 = scmp.eq.s32.totalorder %s16, 0
    %p230 = por %p228, %p229
    %p231 = scmp.ne.s32.totalorder %s223, %s225
    %p232 = scmp.eq.s32.totalorder %s21, 1
    %p233 = por %p231, %p232
    %p234 = scmp.ne.s32.totalorder %s225, %s226
    %p235 = scmp.eq.s32.totalorder %s21, 0
    %p236 = por %p234, %p235
    %p237 = scmp.ne.s32.totalorder %s225, %s226
    %p238 = scmp.eq.s32.totalorder %s22, 1
    %p239 = por %p237, %p238
    %p241 = scmp.ne.s32.totalorder %s226, %s240
    %p242 = scmp.eq.s32.totalorder %s22, 0
    %p243 = por %p241, %p242
    %s244 = ssub.s32 %s16, %s23
    %p245 = scmp.eq.s32.totalorder %s244, 0
    %s247 = sadd.s32 %s246, 1
    %s248 = scalar_select %p245, %s246, %s247
    %p251 = pneg %p245
    %p252 = scmp.eq.s32.totalorder %s16, 1
    %p253 = por %p251, %p252
    %p254 = scmp.ne.s32.totalorder %s246, %s249
    %p255 = scmp.eq.s32.totalorder %s16, 0
    %p256 = por %p254, %p255
    %p257 = scmp.ne.s32.totalorder %s246, %s249
    %p258 = scmp.eq.s32.totalorder %s21, 1
    %p259 = por %p257, %p258
    %p260 = scmp.ne.s32.totalorder %s249, %s250
    %p261 = scmp.eq.s32.totalorder %s21, 0
    %p262 = por %p260, %p261
    %p263 = scmp.ne.s32.totalorder %s249, %s250
    %p264 = scmp.eq.s32.totalorder %s22, 1
    %p265 = por %p263, %p264
    %p267 = scmp.ne.s32.totalorder %s250, %s266
    %p268 = scmp.eq.s32.totalorder %s22, 0
    %p269 = por %p267, %p268
    %p270 = scmp.le.s32.totalorder 1, %s16
    %p271 = scmp.lt.s32.totalorder %s16, 3
    %p272 = pnand %p270, %p271
    %p273 = pneg %p272
    // Predicated region
    $region9: #{tpu_custom_call.1} parent=5 // pred_check
      _
    $region10: #{tpu_custom_call.1} parent=5 // pred_check_branch
      %275 = sbr.rel (%p272) target = $region12
    $region11: #{tpu_custom_call.1} parent=5 // pred_region
      %s276 = ssub.s32 %s16, 1
      // Predicated region
      $region13: #{tpu_custom_call.1} parent=11 // pred_check
        %p277 = pneg %p89
      $region14: #{tpu_custom_call.1} parent=11 // pred_check_branch
        %279 = sbr.rel (%p277) target = $region16
      $region15: #{tpu_custom_call.1} parent=11 // pred_region
        _
      $region16: #{tpu_custom_call.1} parent=11 // pred_fallthru
        _
      // Predicated region
      $region17: #{tpu_custom_call.1} parent=11 // pred_check
        %p280 = pneg %p110
      $region18: #{tpu_custom_call.1} parent=11 // pred_check_branch
        %282 = sbr.rel (%p280) target = $region20
      $region19: #{tpu_custom_call.1} parent=11 // pred_region
        _
      $region20: #{tpu_custom_call.1} parent=11 // pred_fallthru
        _
      // Predicated region
      $region21: #{tpu_custom_call.1} parent=11 // pred_check
        %p283 = pneg %p131
      $region22: #{tpu_custom_call.1} parent=11 // pred_check_branch
        %285 = sbr.rel (%p283) target = $region24
      $region23: #{tpu_custom_call.1} parent=11 // pred_region
        _
      $region24: #{tpu_custom_call.1} parent=11 // pred_fallthru
        _
      // Predicated region
      $region25: #{tpu_custom_call.1} parent=11 // pred_check
        %p286 = pneg %p152
      $region26: #{tpu_custom_call.1} parent=11 // pred_check_branch
        %288 = sbr.rel (%p286) target = $region28
      $region27: #{tpu_custom_call.1} parent=11 // pred_region
        _
      $region28: #{tpu_custom_call.1} parent=11 // pred_fallthru
        _
      // Predicated region
      $region29: #{tpu_custom_call.1} parent=11 // pred_check
        %p289 = pneg %p173
      $region30: #{tpu_custom_call.1} parent=11 // pred_check_branch
        %291 = sbr.rel (%p289) target = $region32
      $region31: #{tpu_custom_call.1} parent=11 // pred_region
        _
      $region32: #{tpu_custom_call.1} parent=11 // pred_fallthru
        _
      // Predicated region
      $region33: #{tpu_custom_call.1} parent=11 // pred_check
        %p292 = pneg %p194
      $region34: #{tpu_custom_call.1} parent=11 // pred_check_branch
        %294 = sbr.rel (%p292) target = $region36
      $region35: #{tpu_custom_call.1} parent=11 // pred_region
        _
      $region36: #{tpu_custom_call.1} parent=11 // pred_fallthru
        _
      // Predicated region
      $region37: #{tpu_custom_call.1} parent=11 // pred_check
        %p295 = pneg %p215
      $region38: #{tpu_custom_call.1} parent=11 // pred_check_branch
        %297 = sbr.rel (%p295) target = $region40
      $region39: #{tpu_custom_call.1} parent=11 // pred_region
        _
      $region40: #{tpu_custom_call.1} parent=11 // pred_fallthru
        _
      // Predicated region
      $region41: #{tpu_custom_call.1} parent=11 // pred_check
        %p298 = pneg %p236
      $region42: #{tpu_custom_call.1} parent=11 // pred_check_branch
        %300 = sbr.rel (%p298) target = $region44
      $region43: #{tpu_custom_call.1} parent=11 // pred_region
        _
      $region44: #{tpu_custom_call.1} parent=11 // pred_fallthru
        _
    $region12: #{tpu_custom_call.1} parent=5 // pred_fallthru
      _
    %p301 = scmp.lt.s32.totalorder %s16, 2
    // Predicated region
    $region45: #{tpu_custom_call.1} parent=5 // pred_check
      %p302 = pneg %p301
    $region46: #{tpu_custom_call.1} parent=5 // pred_check_branch
      %304 = sbr.rel (%p302) target = $region48
    $region47: #{tpu_custom_call.1} parent=5 // pred_region
      // Predicated region
      $region49: #{tpu_custom_call.1} parent=47 // pred_check
        %p305 = pneg %p36
      $region50: #{tpu_custom_call.1} parent=47 // pred_check_branch
        %307 = sbr.rel (%p305) target = $region52
      $region51: #{tpu_custom_call.1} parent=47 // pred_region
        %p308 = scmp.lt.s32.totalorder %s16, 1
        %s309 = scalar_select %p308, %s16, 1
        %s310 = smul.addr %s309, 8
        %s311 = smul.addr %s310, 8
        %s312 = scalar_lea.vmem %s0, %s311
      $region52: #{tpu_custom_call.1} parent=47 // pred_fallthru
        _
      // Predicated region
      $region53: #{tpu_custom_call.1} parent=47 // pred_check
        %p313 = pneg %p62
      $region54: #{tpu_custom_call.1} parent=47 // pred_check_branch
        %315 = sbr.rel (%p313) target = $region56
      $region55: #{tpu_custom_call.1} parent=47 // pred_region
        %p316 = scmp.lt.s32.totalorder %s16, 1
        %s317 = scalar_select %p316, %s16, 1
        %s318 = smul.addr %s317, 32
        %s319 = smul.addr %s318, 8
        %s320 = scalar_lea.vmem %s1, %s319
      $region56: #{tpu_custom_call.1} parent=47 // pred_fallthru
        _
    $region48: #{tpu_custom_call.1} parent=5 // pred_fallthru
      _
    %p321 = scmp.le.s32.totalorder 1, %s16
    %p322 = scmp.lt.s32.totalorder %s16, 3
    %p323 = pnand %p321, %p322
    %p324 = pneg %p323
    // Predicated region
    $region57: #{tpu_custom_call.1} parent=5 // pred_check
      _
    $region58: #{tpu_custom_call.1} parent=5 // pred_check_branch
      %326 = sbr.rel (%p323) target = $region60
    $region59: #{tpu_custom_call.1} parent=5 // pred_region
      %s327 = ssub.s32 %s16, 1
      %p328 = scmp.lt.s32.totalorder %s21, 1
      %s329 = scalar_select %p328, %s21, 1
      %s330 = smul.addr %s329, 8
      %s331 = smul.addr %s330, 8
      %s332 = scalar_lea.vmem %s0, %s331
      %p333 = pneg %p42
      %p334 = pneg %p39
      %p335 = scmp.lt.s32.totalorder %s21, 1
      %s336 = scalar_select %p335, %s21, 1
      %s337 = smul.addr %s336, 32
      %s338 = smul.addr %s337, 8
      %s339 = scalar_lea.vmem %s1, %s338
      %p340 = pneg %p68
      %p341 = pneg %p65
      %p342 = pneg %p89
      %p343 = pneg %p86
      %p344 = pneg %p110
      %p345 = pneg %p107
      %p346 = pneg %p131
      %p347 = pneg %p128
      %p348 = pneg %p152
      %p349 = pneg %p149
      %p350 = pneg %p173
      %p351 = pneg %p170
      %p352 = pneg %p194
      %p353 = pneg %p191
      %p354 = pneg %p215
      %p355 = pneg %p212
      %p356 = pneg %p236
      %p357 = pneg %p233
      %p358 = pneg %p262
      %p359 = pneg %p259
      %p360 = scmp.lt.s32.totalorder %s21, 1
      %s361 = scalar_select %p360, %s21, 1
      %s362 = smul.addr %s361, 32
      %s363 = smul.addr %s362, 8
      %s364 = scalar_lea.vmem %s10, %s363
      %p365 = scmp.lt.s32.totalorder %s21, 1
      %s366 = scalar_select %p365, %s21, 1
      %s367 = smul.addr %s366, 8
      %s368 = smul.addr %s367, 8
      %s369 = scalar_lea.vmem %s0, %s368
      %p370 = scmp.lt.s32.totalorder %s21, 1
      %s371 = scalar_select %p370, %s21, 1
      %s372 = smul.addr %s371, 32
      %s373 = smul.addr %s372, 8
      %s374 = scalar_lea.vmem %s1, %s373
      %p375 = scmp.lt.s32.totalorder %s21, 1
      %s376 = scalar_select %p375, %s21, 1
      %s377 = smul.addr %s376, 32
      %s378 = smul.addr %s377, 8
      %s379 = scalar_lea.vmem %s10, %s378
      %vm380 = vcmask 31744
      %381 = vst.msk [vmem:[#allocation2] sm:$0xff] %vm380, 0.0
      %382 = vst.msk [vmem:[#allocation2 + $0x8] sm:$0xff] %vm380, 0.0
      %383 = vst.msk [vmem:[#allocation2 + $0x10] sm:$0xff] %vm380, 0.0
      %384 = vst.msk [vmem:[#allocation2 + $0x18] sm:$0xff] %vm380, 0.0
      %s385 = scalar_lea.vmem [#allocation2], 544
      %386 = vst.msk [vmem:[%s385] sm:$0xff] %vm380, 0.0
      %387 = vst.msk [vmem:[%s385 + $0x8] sm:$0xff] %vm380, 0.0
      %388 = vst.msk [vmem:[%s385 + $0x10] sm:$0xff] %vm380, 0.0
      %389 = vst.msk [vmem:[%s385 + $0x18] sm:$0xff] %vm380, 0.0
      %s390 = scalar_lea.vmem [#allocation2], 32
      %vm391 = vcmask 24576
      %392 = vst.msk [vmem:[%s390 + $0x7] sm:$0x1] %vm391, 0.0
      %393 = vst.msk [vmem:[%s390 + $0x27] sm:$0x1] %vm391, 0.0
      %394 = vst.msk [vmem:[%s390 + $0x47] sm:$0x1] %vm391, 0.0
      %395 = vst.msk [vmem:[%s390 + $0x67] sm:$0x1] %vm391, 0.0
      %396 = vst.msk [vmem:[%s390 + $0x87] sm:$0x1] %vm391, 0.0
      %397 = vst.msk [vmem:[%s390 + $0xa7] sm:$0x1] %vm391, 0.0
      %398 = vst.msk [vmem:[%s390 + $0xc7] sm:$0x1] %vm391, 0.0
      %399 = vst.msk [vmem:[%s390 + $0xe7] sm:$0x1] %vm391, 0.0
      %400 = vst.msk [vmem:[%s390 + $0x107] sm:$0x1] %vm391, 0.0
      %401 = vst.msk [vmem:[%s390 + $0x127] sm:$0x1] %vm391, 0.0
      %402 = vst.msk [vmem:[%s390 + $0x147] sm:$0x1] %vm391, 0.0
      %403 = vst.msk [vmem:[%s390 + $0x167] sm:$0x1] %vm391, 0.0
      %404 = vst.msk [vmem:[%s390 + $0x187] sm:$0x1] %vm391, 0.0
      %405 = vst.msk [vmem:[%s390 + $0x1a7] sm:$0x1] %vm391, 0.0
      %406 = vst.msk [vmem:[%s390 + $0x1c7] sm:$0x1] %vm391, 0.0
      %407 = vst.msk [vmem:[%s390 + $0x1e7] sm:$0x1] %vm391, 0.0
      %408 = vst.msk [vmem:[%s390 + $0x18] sm:$0x1] %vm391, 0.0
      %409 = vst.msk [vmem:[%s390 + $0x38] sm:$0x1] %vm391, 0.0
      %410 = vst.msk [vmem:[%s390 + $0x58] sm:$0x1] %vm391, 0.0
      %411 = vst.msk [vmem:[%s390 + $0x78] sm:$0x1] %vm391, 0.0
      %412 = vst.msk [vmem:[%s390 + $0x98] sm:$0x1] %vm391, 0.0
      %413 = vst.msk [vmem:[%s390 + $0xb8] sm:$0x1] %vm391, 0.0
      %414 = vst.msk [vmem:[%s390 + $0xd8] sm:$0x1] %vm391, 0.0
      %415 = vst.msk [vmem:[%s390 + $0xf8] sm:$0x1] %vm391, 0.0
      %416 = vst.msk [vmem:[%s390 + $0x118] sm:$0x1] %vm391, 0.0
      %417 = vst.msk [vmem:[%s390 + $0x138] sm:$0x1] %vm391, 0.0
      %418 = vst.msk [vmem:[%s390 + $0x158] sm:$0x1] %vm391, 0.0
      %419 = vst.msk [vmem:[%s390 + $0x178] sm:$0x1] %vm391, 0.0
      %420 = vst.msk [vmem:[%s390 + $0x198] sm:$0x1] %vm391, 0.0
      %421 = vst.msk [vmem:[%s390 + $0x1b8] sm:$0x1] %vm391, 0.0
      %422 = vst.msk [vmem:[%s390 + $0x1d8] sm:$0x1] %vm391, 0.0
      %423 = vst.msk [vmem:[%s390 + $0x1f8] sm:$0x1] %vm391, 0.0
      %424 = vst.msk [vmem:[#allocation3] sm:$0xff] %vm380, 0.0
      %425 = vst.msk [vmem:[#allocation3 + $0x8] sm:$0xff] %vm380, 0.0
      %426 = vst.msk [vmem:[#allocation3 + $0x10] sm:$0xff] %vm380, 0.0
      %427 = vst.msk [vmem:[#allocation3 + $0x18] sm:$0xff] %vm380, 0.0
      %s428 = scalar_lea.vmem [#allocation3], 544
      %429 = vst.msk [vmem:[%s428] sm:$0xff] %vm380, 0.0
      %430 = vst.msk [vmem:[%s428 + $0x8] sm:$0xff] %vm380, 0.0
      %431 = vst.msk [vmem:[%s428 + $0x10] sm:$0xff] %vm380, 0.0
      %432 = vst.msk [vmem:[%s428 + $0x18] sm:$0xff] %vm380, 0.0
      %s433 = scalar_lea.vmem [#allocation3], 32
      %434 = vst.msk [vmem:[%s433 + $0x7] sm:$0x1] %vm391, 0.0
      %435 = vst.msk [vmem:[%s433 + $0x27] sm:$0x1] %vm391, 0.0
      %436 = vst.msk [vmem:[%s433 + $0x47] sm:$0x1] %vm391, 0.0
      %437 = vst.msk [vmem:[%s433 + $0x67] sm:$0x1] %vm391, 0.0
      %438 = vst.msk [vmem:[%s433 + $0x87] sm:$0x1] %vm391, 0.0
      %439 = vst.msk [vmem:[%s433 + $0xa7] sm:$0x1] %vm391, 0.0
      %440 = vst.msk [vmem:[%s433 + $0xc7] sm:$0x1] %vm391, 0.0
      %441 = vst.msk [vmem:[%s433 + $0xe7] sm:$0x1] %vm391, 0.0
      %442 = vst.msk [vmem:[%s433 + $0x107] sm:$0x1] %vm391, 0.0
      %443 = vst.msk [vmem:[%s433 + $0x127] sm:$0x1] %vm391, 0.0
      %444 = vst.msk [vmem:[%s433 + $0x147] sm:$0x1] %vm391, 0.0
      %445 = vst.msk [vmem:[%s433 + $0x167] sm:$0x1] %vm391, 0.0
      %446 = vst.msk [vmem:[%s433 + $0x187] sm:$0x1] %vm391, 0.0
      %447 = vst.msk [vmem:[%s433 + $0x1a7] sm:$0x1] %vm391, 0.0
      %448 = vst.msk [vmem:[%s433 + $0x1c7] sm:$0x1] %vm391, 0.0
      %449 = vst.msk [vmem:[%s433 + $0x1e7] sm:$0x1] %vm391, 0.0
      %450 = vst.msk [vmem:[%s433 + $0x18] sm:$0x1] %vm391, 0.0
      %451 = vst.msk [vmem:[%s433 + $0x38] sm:$0x1] %vm391, 0.0
      %452 = vst.msk [vmem:[%s433 + $0x58] sm:$0x1] %vm391, 0.0
      %453 = vst.msk [vmem:[%s433 + $0x78] sm:$0x1] %vm391, 0.0
      %454 = vst.msk [vmem:[%s433 + $0x98] sm:$0x1] %vm391, 0.0
      %455 = vst.msk [vmem:[%s433 + $0xb8] sm:$0x1] %vm391, 0.0
      %456 = vst.msk [vmem:[%s433 + $0xd8] sm:$0x1] %vm391, 0.0
      %457 = vst.msk [vmem:[%s433 + $0xf8] sm:$0x1] %vm391, 0.0
      %458 = vst.msk [vmem:[%s433 + $0x118] sm:$0x1] %vm391, 0.0
      %459 = vst.msk [vmem:[%s433 + $0x138] sm:$0x1] %vm391, 0.0
      %460 = vst.msk [vmem:[%s433 + $0x158] sm:$0x1] %vm391, 0.0
      %461 = vst.msk [vmem:[%s433 + $0x178] sm:$0x1] %vm391, 0.0
      %462 = vst.msk [vmem:[%s433 + $0x198] sm:$0x1] %vm391, 0.0
      %463 = vst.msk [vmem:[%s433 + $0x1b8] sm:$0x1] %vm391, 0.0
      %464 = vst.msk [vmem:[%s433 + $0x1d8] sm:$0x1] %vm391, 0.0
      %465 = vst.msk [vmem:[%s433 + $0x1f8] sm:$0x1] %vm391, 0.0
      %v466 = vld [vmem:[%s374] sm:$0xff]
      %v467 = vld [vmem:[%s374 + $0x8] sm:$0xff]
      %v468 = vld [vmem:[%s374 + $0x10] sm:$0xff]
      %v469 = vld [vmem:[%s374 + $0x18] sm:$0xff]
      %v470 = vld [vmem:[%s374 + $0x20] sm:$0xff]
      %v471 = vld [vmem:[%s374 + $0x28] sm:$0xff]
      %v472 = vld [vmem:[%s374 + $0x30] sm:$0xff]
      %v473 = vld [vmem:[%s374 + $0x38] sm:$0xff]
      %v474 = vld [vmem:[%s374 + $0x40] sm:$0xff]
      %v475 = vld [vmem:[%s374 + $0x48] sm:$0xff]
      %v476 = vld [vmem:[%s374 + $0x50] sm:$0xff]
      %v477 = vld [vmem:[%s374 + $0x58] sm:$0xff]
      %v478 = vld [vmem:[%s374 + $0x60] sm:$0xff]
      %v479 = vld [vmem:[%s374 + $0x68] sm:$0xff]
      %v480 = vld [vmem:[%s374 + $0x70] sm:$0xff]
      %v481 = vld [vmem:[%s374 + $0x78] sm:$0xff]
      %v482 = vld [vmem:[%s374 + $0x80] sm:$0xff]
      %v483 = vld [vmem:[%s374 + $0x88] sm:$0xff]
      %v484 = vld [vmem:[%s374 + $0x90] sm:$0xff]
      %v485 = vld [vmem:[%s374 + $0x98] sm:$0xff]
      %v486 = vld [vmem:[%s374 + $0xa0] sm:$0xff]
      %v487 = vld [vmem:[%s374 + $0xa8] sm:$0xff]
      %v488 = vld [vmem:[%s374 + $0xb0] sm:$0xff]
      %v489 = vld [vmem:[%s374 + $0xb8] sm:$0xff]
      %v490 = vld [vmem:[%s374 + $0xc0] sm:$0xff]
      %v491 = vld [vmem:[%s374 + $0xc8] sm:$0xff]
      %v492 = vld [vmem:[%s374 + $0xd0] sm:$0xff]
      %v493 = vld [vmem:[%s374 + $0xd8] sm:$0xff]
      %v494 = vld [vmem:[%s374 + $0xe0] sm:$0xff]
      %v495 = vld [vmem:[%s374 + $0xe8] sm:$0xff]
      %v496 = vld [vmem:[%s374 + $0xf0] sm:$0xff]
      %v497 = vld [vmem:[%s374 + $0xf8] sm:$0xff]
      %498 = vst.msk [vmem:[%s433 + $0x8] sm:$0xff] %vm380, %v466
      %499 = vst.msk [vmem:[%s433 + $0x10] sm:$0xff] %vm380, %v467
      %500 = vst.msk [vmem:[%s433 + $0x28] sm:$0xff] %vm380, %v468
      %501 = vst.msk [vmem:[%s433 + $0x30] sm:$0xff] %vm380, %v469
      %502 = vst.msk [vmem:[%s433 + $0x48] sm:$0xff] %vm380, %v470
      %503 = vst.msk [vmem:[%s433 + $0x50] sm:$0xff] %vm380, %v471
      %504 = vst.msk [vmem:[%s433 + $0x68] sm:$0xff] %vm380, %v472
      %505 = vst.msk [vmem:[%s433 + $0x70] sm:$0xff] %vm380, %v473
      %506 = vst.msk [vmem:[%s433 + $0x88] sm:$0xff] %vm380, %v474
      %507 = vst.msk [vmem:[%s433 + $0x90] sm:$0xff] %vm380, %v475
      %508 = vst.msk [vmem:[%s433 + $0xa8] sm:$0xff] %vm380, %v476
      %509 = vst.msk [vmem:[%s433 + $0xb0] sm:$0xff] %vm380, %v477
      %510 = vst.msk [vmem:[%s433 + $0xc8] sm:$0xff] %vm380, %v478
      %511 = vst.msk [vmem:[%s433 + $0xd0] sm:$0xff] %vm380, %v479
      %512 = vst.msk [vmem:[%s433 + $0xe8] sm:$0xff] %vm380, %v480
      %513 = vst.msk [vmem:[%s433 + $0xf0] sm:$0xff] %vm380, %v481
      %514 = vst.msk [vmem:[%s433 + $0x108] sm:$0xff] %vm380, %v482
      %515 = vst.msk [vmem:[%s433 + $0x110] sm:$0xff] %vm380, %v483
      %516 = vst.msk [vmem:[%s433 + $0x128] sm:$0xff] %vm380, %v484
      %517 = vst.msk [vmem:[%s433 + $0x130] sm:$0xff] %vm380, %v485
      %518 = vst.msk [vmem:[%s433 + $0x148] sm:$0xff] %vm380, %v486
      %519 = vst.msk [vmem:[%s433 + $0x150] sm:$0xff] %vm380, %v487
      %520 = vst.msk [vmem:[%s433 + $0x168] sm:$0xff] %vm380, %v488
      %521 = vst.msk [vmem:[%s433 + $0x170] sm:$0xff] %vm380, %v489
      %522 = vst.msk [vmem:[%s433 + $0x188] sm:$0xff] %vm380, %v490
      %523 = vst.msk [vmem:[%s433 + $0x190] sm:$0xff] %vm380, %v491
      %524 = vst.msk [vmem:[%s433 + $0x1a8] sm:$0xff] %vm380, %v492
      %525 = vst.msk [vmem:[%s433 + $0x1b0] sm:$0xff] %vm380, %v493
      %526 = vst.msk [vmem:[%s433 + $0x1c8] sm:$0xff] %vm380, %v494
      %527 = vst.msk [vmem:[%s433 + $0x1d0] sm:$0xff] %vm380, %v495
      %528 = vst.msk [vmem:[%s433 + $0x1e8] sm:$0xff] %vm380, %v496
      %529 = vst.msk [vmem:[%s433 + $0x1f0] sm:$0xff] %vm380, %v497
      %v530 = vld [vmem:[%s2] sm:$0xff]
      %v531 = vlaneseq
      %v532 = vshrl.u32 %v531, 7
      %v533 = vadd.s32 %v532, 8
      %v534 = vlaneseq
      %v535 = vand.u32 %v534, 127
      %v536 = vmul.u32 %v535, 2
      %vm537 = vcmp.eq.s32.totalorder %v532, %v536
      %vm538 = vcmp.eq.s32.totalorder %v533, %v536
      %v539 = vsel %vm537, 1, 0
      %v540 = vsel %vm538, 1, 0
      %v541 = vcvt.s32.f32 %v539
      %v542 = vcvt.s32.f32 %v540
      %v543 = vadd.s32 %v536, 1
      %vm544 = vcmp.eq.s32.totalorder %v532, %v543
      %vm545 = vcmp.eq.s32.totalorder %v533, %v543
      %v546 = vsel %vm544, 1, 0
      %v547 = vsel %vm545, 1, 0
      %v548 = vcvt.s32.f32 %v546
      %v549 = vcvt.s32.f32 %v547
      loop: start=0, step=1, limit=8
      $region61: #{tpu_custom_call.1} parent=59 // loop_pre_header
        _
      $region62: #{tpu_custom_call.1} parent=59 // loop_header
        %s551 = sphi 0, %s555
        %p552 = scmp.ge.s32.totalorder %s551, 8
      $region63: #{tpu_custom_call.1} parent=59 // loop_header_branch
        %554 = sbr.rel (%p552) target = $region67
      $region64: #{tpu_custom_call.1} parent=59 // loop_body
        %s556 = smul.u32 %s551, 8
        %s557 = scalar_lea.vmem %s369, %s556
        %v558 = vld [vmem:[%s557] sm:$0xff]
        %vm559 = vcmask 64512
        %v561 = vsel %vm559, %v558, 0
        %563 = vmatprep.subr.mxu0 0.0
        %564 = vmatpush1.msra.mxu0 %v530
        %565 = vmatprep.subr.mxu0 0.0
        %566 = vmatpush1.msra.mxu0 0.0
        %567 = vmatprep.subr.mxu0 0.0
        %568 = vmatpush1.msra.mxu0 0.0
        %569 = vmatprep.subr.mxu0 0.0
        %570 = vmatpush1.msra.mxu0 0.0
        %571 = vmatprep.subr.mxu0 0.0
        %572 = vmatpush1.msra.mxu0 0.0
        %573 = vmatprep.subr.mxu0 0.0
        %574 = vmatpush1.msra.mxu0 0.0
        %575 = vmatprep.subr.mxu0 0.0
        %576 = vmatpush1.msra.mxu0 0.0
        %577 = vmatprep.subr.mxu0 0.0
        %578 = vmatpush1.msra.mxu0 0.0
        %579 = vmatprep.subr.mxu0 0.0
        %580 = vmatpush1.msra.mxu0 0.0
        %581 = vmatprep.subr.mxu0 0.0
        %582 = vmatpush1.msra.mxu0 0.0
        %583 = vmatprep.subr.mxu0 0.0
        %584 = vmatpush1.msra.mxu0 0.0
        %585 = vmatprep.subr.mxu0 0.0
        %586 = vmatpush1.msra.mxu0 0.0
        %587 = vmatprep.subr.mxu0 0.0
        %588 = vmatpush1.msra.mxu0 0.0
        %589 = vmatprep.subr.mxu0 0.0
        %590 = vmatpush1.msra.mxu0 0.0
        %591 = vmatprep.subr.mxu0 0.0
        %592 = vmatpush1.msra.mxu0 0.0
        %593 = vmatprep.subr.mxu0 0.0
        %594 = vmatpush1.msra.mxu0 0.0
        %595 = vmatprep.subr.mxu0 0.0
        %596 = vmatpush1.msra.mxu0 0.0
        %597 = vmatprep.subr.mxu0 0.0
        %598 = vmatpush1.msra.mxu0 0.0
        %599 = vmatprep.subr.mxu0 0.0
        %600 = vmatpush1.msra.mxu0 0.0
        %601 = vmatprep.subr.mxu0 0.0
        %602 = vmatpush1.msra.mxu0 0.0
        %603 = vmatprep.subr.mxu0 0.0
        %604 = vmatpush1.msra.mxu0 0.0
        %605 = vmatprep.subr.mxu0 0.0
        %606 = vmatpush1.msra.mxu0 0.0
        %607 = vmatprep.subr.mxu0 0.0
        %608 = vmatpush1.msra.mxu0 0.0
        %609 = vmatprep.subr.mxu0 0.0
        %610 = vmatpush1.msra.mxu0 0.0
        %611 = vmatprep.subr.mxu0 0.0
        %612 = vmatpush1.msra.mxu0 0.0
        %613 = vmatprep.subr.mxu0 0.0
        %614 = vmatpush1.msra.mxu0 0.0
        %615 = vmatprep.subr.mxu0 0.0
        %616 = vmatpush1.msra.mxu0 0.0
        %617 = vmatprep.subr.mxu0 0.0
        %618 = vmatpush1.msra.mxu0 0.0
        %619 = vmatprep.subr.mxu0 0.0
        %620 = vmatpush1.msra.mxu0 0.0
        %621 = vmatprep.subr.mxu0 0.0
        %622 = vmatpush1.msra.mxu0 0.0
        %623 = vmatprep.subr.mxu0 0.0
        %624 = vmatpush1.msra.mxu0 0.0
        %625 = vmatprep.subr.mxu0 0.0
        %626 = vmatpush1.msra.mxu0 0.0
        %627 = vmatprep.mubr.f32.mxu0 0.0
        %628 = vmatmul.mubr.f32.gmra.mrb[0].mxu0 %v561
        %v629 = vpop.f32.mrb[0].mxu0
        %v630 = vadd.f32 0.0, %v629
        %v631 = vpop.f32.mrb[0].mxu0
        %632 = vdwg.mxu0
        %634 = vrot.lane.b32.xlu0 %v630, 120
        %v635 = vpop.permute.xlu0 %634
        %v638 = vsel %vm559, %v548, 0
        %v641 = vsel %vm559, %v549, 0
        %643 = vmatprep.subr.mxu0 0.0
        %644 = vmatpush1.msra.mxu0 %v635
        %645 = vmatprep.subr.mxu0 0.0
        %646 = vmatpush1.msra.mxu0 0.0
        %647 = vmatprep.subr.mxu0 0.0
        %648 = vmatpush1.msra.mxu0 0.0
        %649 = vmatprep.subr.mxu0 0.0
        %650 = vmatpush1.msra.mxu0 0.0
        %651 = vmatprep.subr.mxu0 0.0
        %652 = vmatpush1.msra.mxu0 0.0
        %653 = vmatprep.subr.mxu0 0.0
        %654 = vmatpush1.msra.mxu0 0.0
        %655 = vmatprep.subr.mxu0 0.0
        %656 = vmatpush1.msra.mxu0 0.0
        %657 = vmatprep.subr.mxu0 0.0
        %658 = vmatpush1.msra.mxu0 0.0
        %659 = vmatprep.subr.mxu0 0.0
        %660 = vmatpush1.msra.mxu0 0.0
        %661 = vmatprep.subr.mxu0 0.0
        %662 = vmatpush1.msra.mxu0 0.0
        %663 = vmatprep.subr.mxu0 0.0
        %664 = vmatpush1.msra.mxu0 0.0
        %665 = vmatprep.subr.mxu0 0.0
        %666 = vmatpush1.msra.mxu0 0.0
        %667 = vmatprep.subr.mxu0 0.0
        %668 = vmatpush1.msra.mxu0 0.0
        %669 = vmatprep.subr.mxu0 0.0
        %670 = vmatpush1.msra.mxu0 0.0
        %671 = vmatprep.subr.mxu0 0.0
        %672 = vmatpush1.msra.mxu0 0.0
        %673 = vmatprep.subr.mxu0 0.0
        %674 = vmatpush1.msra.mxu0 0.0
        %675 = vmatprep.subr.mxu0 0.0
        %676 = vmatpush1.msra.mxu0 0.0
        %677 = vmatprep.subr.mxu0 0.0
        %678 = vmatpush1.msra.mxu0 0.0
        %679 = vmatprep.subr.mxu0 0.0
        %680 = vmatpush1.msra.mxu0 0.0
        %681 = vmatprep.subr.mxu0 0.0
        %682 = vmatpush1.msra.mxu0 0.0
        %683 = vmatprep.subr.mxu0 0.0
        %684 = vmatpush1.msra.mxu0 0.0
        %685 = vmatprep.subr.mxu0 0.0
        %686 = vmatpush1.msra.mxu0 0.0
        %687 = vmatprep.subr.mxu0 0.0
        %688 = vmatpush1.msra.mxu0 0.0
        %689 = vmatprep.subr.mxu0 0.0
        %690 = vmatpush1.msra.mxu0 0.0
        %691 = vmatprep.subr.mxu0 0.0
        %692 = vmatpush1.msra.mxu0 0.0
        %693 = vmatprep.subr.mxu0 0.0
        %694 = vmatpush1.msra.mxu0 0.0
        %695 = vmatprep.subr.mxu0 0.0
        %696 = vmatpush1.msra.mxu0 0.0
        %697 = vmatprep.subr.mxu0 0.0
        %698 = vmatpush1.msra.mxu0 0.0
        %699 = vmatprep.subr.mxu0 0.0
        %700 = vmatpush1.msra.mxu0 0.0
        %701 = vmatprep.subr.mxu0 0.0
        %702 = vmatpush1.msra.mxu0 0.0
        %703 = vmatprep.subr.mxu0 0.0
        %704 = vmatpush1.msra.mxu0 0.0
        %705 = vmatprep.subr.mxu0 0.0
        %706 = vmatpush1.msra.mxu0 0.0
        %707 = vmatprep.mubr.f32.mxu0 0.0
        %708 = vmatmul.mubr.f32.gmra.mrb[0].mxu0 %v638
        %v709 = vpop.f32.mrb[0].mxu0
        %v710 = vadd.f32 0.0, %v709
        %v711 = vpop.f32.mrb[0].mxu0
        %712 = vmatprep.mubr.f32.mxu0 0.0
        %713 = vmatmul.mubr.f32.gmra.mrb[0].mxu0 %v641
        %v714 = vpop.f32.mrb[0].mxu0
        %v715 = vadd.f32 0.0, %v714
        %v716 = vpop.f32.mrb[0].mxu0
        %717 = vdwg.mxu0
        %v719 = vsel %vm559, %v541, 0
        %v722 = vsel %vm559, %v542, 0
        %724 = vmatprep.subr.mxu0 0.0
        %725 = vmatpush1.msra.mxu0 %v630
        %726 = vmatprep.subr.mxu0 0.0
        %727 = vmatpush1.msra.mxu0 0.0
        %728 = vmatprep.subr.mxu0 0.0
        %729 = vmatpush1.msra.mxu0 0.0
        %730 = vmatprep.subr.mxu0 0.0
        %731 = vmatpush1.msra.mxu0 0.0
        %732 = vmatprep.subr.mxu0 0.0
        %733 = vmatpush1.msra.mxu0 0.0
        %734 = vmatprep.subr.mxu0 0.0
        %735 = vmatpush1.msra.mxu0 0.0
        %736 = vmatprep.subr.mxu0 0.0
        %737 = vmatpush1.msra.mxu0 0.0
        %738 = vmatprep.subr.mxu0 0.0
        %739 = vmatpush1.msra.mxu0 0.0
        %740 = vmatprep.subr.mxu0 0.0
        %741 = vmatpush1.msra.mxu0 0.0
        %742 = vmatprep.subr.mxu0 0.0
        %743 = vmatpush1.msra.mxu0 0.0
        %744 = vmatprep.subr.mxu0 0.0
        %745 = vmatpush1.msra.mxu0 0.0
        %746 = vmatprep.subr.mxu0 0.0
        %747 = vmatpush1.msra.mxu0 0.0
        %748 = vmatprep.subr.mxu0 0.0
        %749 = vmatpush1.msra.mxu0 0.0
        %750 = vmatprep.subr.mxu0 0.0
        %751 = vmatpush1.msra.mxu0 0.0
        %752 = vmatprep.subr.mxu0 0.0
        %753 = vmatpush1.msra.mxu0 0.0
        %754 = vmatprep.subr.mxu0 0.0
        %755 = vmatpush1.msra.mxu0 0.0
        %756 = vmatprep.subr.mxu0 0.0
        %757 = vmatpush1.msra.mxu0 0.0
        %758 = vmatprep.subr.mxu0 0.0
        %759 = vmatpush1.msra.mxu0 0.0
        %760 = vmatprep.subr.mxu0 0.0
        %761 = vmatpush1.msra.mxu0 0.0
        %762 = vmatprep.subr.mxu0 0.0
        %763 = vmatpush1.msra.mxu0 0.0
        %764 = vmatprep.subr.mxu0 0.0
        %765 = vmatpush1.msra.mxu0 0.0
        %766 = vmatprep.subr.mxu0 0.0
        %767 = vmatpush1.msra.mxu0 0.0
        %768 = vmatprep.subr.mxu0 0.0
        %769 = vmatpush1.msra.mxu0 0.0
        %770 = vmatprep.subr.mxu0 0.0
        %771 = vmatpush1.msra.mxu0 0.0
        %772 = vmatprep.subr.mxu0 0.0
        %773 = vmatpush1.msra.mxu0 0.0
        %774 = vmatprep.subr.mxu0 0.0
        %775 = vmatpush1.msra.mxu0 0.0
        %776 = vmatprep.subr.mxu0 0.0
        %777 = vmatpush1.msra.mxu0 0.0
        %778 = vmatprep.subr.mxu0 0.0
        %779 = vmatpush1.msra.mxu0 0.0
        %780 = vmatprep.subr.mxu0 0.0
        %781 = vmatpush1.msra.mxu0 0.0
        %782 = vmatprep.subr.mxu0 0.0
        %783 = vmatpush1.msra.mxu0 0.0
        %784 = vmatprep.subr.mxu0 0.0
        %785 = vmatpush1.msra.mxu0 0.0
        %786 = vmatprep.subr.mxu0 0.0
        %787 = vmatpush1.msra.mxu0 0.0
        %788 = vmatprep.mubr.f32.mxu0 0.0
        %789 = vmatmul.mubr.f32.gmra.mrb[0].mxu0 %v719
        %v790 = vpop.f32.mrb[0].mxu0
        %v791 = vadd.f32 %v710, %v790
        %v792 = vpop.f32.mrb[0].mxu0
        %793 = vmatprep.mubr.f32.mxu0 0.0
        %794 = vmatmul.mubr.f32.gmra.mrb[0].mxu0 %v722
        %v795 = vpop.f32.mrb[0].mxu0
        %v796 = vadd.f32 %v715, %v795
        %v797 = vpop.f32.mrb[0].mxu0
        %798 = vdwg.mxu0
        %s799 = smul.u32 %s551, 2
        %s800 = sadd.s32 %s799, 1
        %s801 = smul.u32 %s800, 32
        %s802 = scalar_lea.vmem [#allocation2], %s801
        %803 = vst.msk [vmem:[%s802 + $0x8] sm:$0xff] %vm380, %v791
        %804 = vst.msk [vmem:[%s802 + $0x10] sm:$0xff] %vm380, %v796
        %s805 = sadd.s32 %s799, 2
        %808 = vrot.lane.b32.xlu0 %v791, 124
        %v809 = vpop.permute.xlu0 %808
        %810 = vrot.lane.b32.xlu0 %v796, 124
        %v811 = vpop.permute.xlu0 %810
        %s814 = smul.u32 %s805, 32
        %s815 = scalar_lea.vmem [#allocation2], %s814
        %816 = vst.msk [vmem:[%s815 + $0x8] sm:$0xff] %vm380, %v809
        %817 = vst.msk [vmem:[%s815 + $0x10] sm:$0xff] %vm380, %v811
      $region65: #{tpu_custom_call.1} parent=59 // loop_footer
        %s555 = sadd.s32 1, %s551
      $region66: #{tpu_custom_call.1} parent=59 // loop_footer_branch
        %550 = sbr.rel target = $region62
      $region67: #{tpu_custom_call.1} parent=59 // loop_exit
        _
      %v818 = vld [vmem:[#allocation2 + $0x7] sm:$0xff]
      %v819 = vld [vmem:[#allocation2 + $0xf] sm:$0xff]
      %v820 = vld [vmem:[#allocation2 + $0x27] sm:$0xff]
      %v821 = vld [vmem:[#allocation2 + $0x2f] sm:$0xff]
      %v822 = vld [vmem:[#allocation2 + $0x47] sm:$0xff]
      %v823 = vld [vmem:[#allocation2 + $0x4f] sm:$0xff]
      %v824 = vld [vmem:[#allocation2 + $0x67] sm:$0xff]
      %v825 = vld [vmem:[#allocation2 + $0x6f] sm:$0xff]
      %v826 = vld [vmem:[#allocation2 + $0x87] sm:$0xff]
      %v827 = vld [vmem:[#allocation2 + $0x8f] sm:$0xff]
      %v828 = vld [vmem:[#allocation2 + $0xa7] sm:$0xff]
      %v829 = vld [vmem:[#allocation2 + $0xaf] sm:$0xff]
      %v830 = vld [vmem:[#allocation2 + $0xc7] sm:$0xff]
      %v831 = vld [vmem:[#allocation2 + $0xcf] sm:$0xff]
      %v832 = vld [vmem:[#allocation2 + $0xe7] sm:$0xff]
      %v833 = vld [vmem:[#allocation2 + $0xef] sm:$0xff]
      %v834 = vld [vmem:[#allocation2 + $0x107] sm:$0xff]
      %v835 = vld [vmem:[#allocation2 + $0x10f] sm:$0xff]
      %v836 = vld [vmem:[#allocation2 + $0x127] sm:$0xff]
      %v837 = vld [vmem:[#allocation2 + $0x12f] sm:$0xff]
      %v838 = vld [vmem:[#allocation2 + $0x147] sm:$0xff]
      %v839 = vld [vmem:[#allocation2 + $0x14f] sm:$0xff]
      %v840 = vld [vmem:[#allocation2 + $0x167] sm:$0xff]
      %v841 = vld [vmem:[#allocation2 + $0x16f] sm:$0xff]
      %v842 = vld [vmem:[#allocation2 + $0x187] sm:$0xff]
      %v843 = vld [vmem:[#allocation2 + $0x18f] sm:$0xff]
      %v844 = vld [vmem:[#allocation2 + $0x1a7] sm:$0xff]
      %v845 = vld [vmem:[#allocation2 + $0x1af] sm:$0xff]
      %v846 = vld [vmem:[#allocation2 + $0x1c7] sm:$0xff]
      %v847 = vld [vmem:[#allocation2 + $0x1cf] sm:$0xff]
      %v848 = vld [vmem:[#allocation2 + $0x1e7] sm:$0xff]
      %v849 = vld [vmem:[#allocation2 + $0x1ef] sm:$0xff]
      %v850 = vld [vmem:[%s3] sm:$0xf]
      %v851 = vld [vmem:[#allocation2 + $0x8] sm:$0xff]
      %v852 = vld [vmem:[#allocation2 + $0x10] sm:$0xff]
      %v853 = vld [vmem:[#allocation2 + $0x28] sm:$0xff]
      %v854 = vld [vmem:[#allocation2 + $0x30] sm:$0xff]
      %v855 = vld [vmem:[#allocation2 + $0x48] sm:$0xff]
      %v856 = vld [vmem:[#allocation2 + $0x50] sm:$0xff]
      %v857 = vld [vmem:[#allocation2 + $0x68] sm:$0xff]
      %v858 = vld [vmem:[#allocation2 + $0x70] sm:$0xff]
      %v859 = vld [vmem:[#allocation2 + $0x88] sm:$0xff]
      %v860 = vld [vmem:[#allocation2 + $0x90] sm:$0xff]
      %v861 = vld [vmem:[#allocation2 + $0xa8] sm:$0xff]
      %v862 = vld [vmem:[#allocation2 + $0xb0] sm:$0xff]
      %v863 = vld [vmem:[#allocation2 + $0xc8] sm:$0xff]
      %v864 = vld [vmem:[#allocation2 + $0xd0] sm:$0xff]
      %v865 = vld [vmem:[#allocation2 + $0xe8] sm:$0xff]
      %v866 = vld [vmem:[#allocation2 + $0xf0] sm:$0xff]
      %v867 = vld [vmem:[#allocation2 + $0x108] sm:$0xff]
      %v868 = vld [vmem:[#allocation2 + $0x110] sm:$0xff]
      %v869 = vld [vmem:[#allocation2 + $0x128] sm:$0xff]
      %v870 = vld [vmem:[#allocation2 + $0x130] sm:$0xff]
      %v871 = vld [vmem:[#allocation2 + $0x148] sm:$0xff]
      %v872 = vld [vmem:[#allocation2 + $0x150] sm:$0xff]
      %v873 = vld [vmem:[#allocation2 + $0x168] sm:$0xff]
      %v874 = vld [vmem:[#allocation2 + $0x170] sm:$0xff]
      %v875 = vld [vmem:[#allocation2 + $0x188] sm:$0xff]
      %v876 = vld [vmem:[#allocation2 + $0x190] sm:$0xff]
      %v877 = vld [vmem:[#allocation2 + $0x1a8] sm:$0xff]
      %v878 = vld [vmem:[#allocation2 + $0x1b0] sm:$0xff]
      %v879 = vld [vmem:[#allocation2 + $0x1c8] sm:$0xff]
      %v880 = vld [vmem:[#allocation2 + $0x1d0] sm:$0xff]
      %v881 = vld [vmem:[#allocation2 + $0x1e8] sm:$0xff]
      %v882 = vld [vmem:[#allocation2 + $0x1f0] sm:$0xff]
      %v883 = vld [vmem:[%s3 + $0x4] sm:$0xf]
      %v885 = vsel %vm380, %v851, 0
      %v888 = vsel %vm380, %v852, 0
      %v891 = vsel %vm380, %v853, 0
      %v894 = vsel %vm380, %v854, 0
      %v897 = vsel %vm380, %v855, 0
      %v900 = vsel %vm380, %v856, 0
      %v903 = vsel %vm380, %v857, 0
      %v906 = vsel %vm380, %v858, 0
      %v909 = vsel %vm380, %v859, 0
      %v912 = vsel %vm380, %v860, 0
      %v915 = vsel %vm380, %v861, 0
      %v918 = vsel %vm380, %v862, 0
      %v921 = vsel %vm380, %v863, 0
      %v924 = vsel %vm380, %v864, 0
      %v927 = vsel %vm380, %v865, 0
      %v930 = vsel %vm380, %v866, 0
      %v933 = vsel %vm380, %v867, 0
      %v936 = vsel %vm380, %v868, 0
      %v939 = vsel %vm380, %v869, 0
      %v942 = vsel %vm380, %v870, 0
      %v945 = vsel %vm380, %v871, 0
      %v948 = vsel %vm380, %v872, 0
      %v951 = vsel %vm380, %v873, 0
      %v954 = vsel %vm380, %v874, 0
      %v957 = vsel %vm380, %v875, 0
      %v960 = vsel %vm380, %v876, 0
      %v963 = vsel %vm380, %v877, 0
      %v966 = vsel %vm380, %v878, 0
      %v969 = vsel %vm380, %v879, 0
      %v972 = vsel %vm380, %v880, 0
      %v975 = vsel %vm380, %v881, 0
      %v978 = vsel %vm380, %v882, 0
      %vm980 = vcmask 1043456
      %v982 = vsel %vm980, %v883, 0
      %984 = vmatprep.subr.mxu0 0.0
      %985 = vmatpush1.msra.mxu0 %v982
      %986 = vmatprep.subr.mxu0 0.0
      %987 = vmatpush1.msra.mxu0 0.0
      %988 = vmatprep.subr.mxu0 0.0
      %989 = vmatpush1.msra.mxu0 0.0
      %990 = vmatprep.subr.mxu0 0.0
      %991 = vmatpush1.msra.mxu0 0.0
      %992 = vmatprep.subr.mxu0 0.0
      %993 = vmatpush1.msra.mxu0 0.0
      %994 = vmatprep.subr.mxu0 0.0
      %995 = vmatpush1.msra.mxu0 0.0
      %996 = vmatprep.subr.mxu0 0.0
      %997 = vmatpush1.msra.mxu0 0.0
      %998 = vmatprep.subr.mxu0 0.0
      %999 = vmatpush1.msra.mxu0 0.0
      %1000 = vmatprep.subr.mxu0 0.0
      %1001 = vmatpush1.msra.mxu0 0.0
      %1002 = vmatprep.subr.mxu0 0.0
      %1003 = vmatpush1.msra.mxu0 0.0
      %1004 = vmatprep.subr.mxu0 0.0
      %1005 = vmatpush1.msra.mxu0 0.0
      %1006 = vmatprep.subr.mxu0 0.0
      %1007 = vmatpush1.msra.mxu0 0.0
      %1008 = vmatprep.subr.mxu0 0.0
      %1009 = vmatpush1.msra.mxu0 0.0
      %1010 = vmatprep.subr.mxu0 0.0
      %1011 = vmatpush1.msra.mxu0 0.0
      %1012 = vmatprep.subr.mxu0 0.0
      %1013 = vmatpush1.msra.mxu0 0.0
      %1014 = vmatprep.subr.mxu0 0.0
      %1015 = vmatpush1.msra.mxu0 0.0
      %1016 = vmatprep.subr.mxu0 0.0
      %1017 = vmatpush1.msra.mxu0 0.0
      %1018 = vmatprep.subr.mxu0 0.0
      %1019 = vmatpush1.msra.mxu0 0.0
      %1020 = vmatprep.subr.mxu0 0.0
      %1021 = vmatpush1.msra.mxu0 0.0
      %1022 = vmatprep.subr.mxu0 0.0
      %1023 = vmatpush1.msra.mxu0 0.0
      %1024 = vmatprep.subr.mxu0 0.0
      %1025 = vmatpush1.msra.mxu0 0.0
      %1026 = vmatprep.subr.mxu0 0.0
      %1027 = vmatpush1.msra.mxu0 0.0
      %1028 = vmatprep.subr.mxu0 0.0
      %1029 = vmatpush1.msra.mxu0 0.0
      %1030 = vmatprep.subr.mxu0 0.0
      %1031 = vmatpush1.msra.mxu0 0.0
      %1032 = vmatprep.subr.mxu0 0.0
      %1033 = vmatpush1.msra.mxu0 0.0
      %1034 = vmatprep.subr.mxu0 0.0
      %1035 = vmatpush1.msra.mxu0 0.0
      %1036 = vmatprep.subr.mxu0 0.0
      %1037 = vmatpush1.msra.mxu0 0.0
      %1038 = vmatprep.subr.mxu0 0.0
      %1039 = vmatpush1.msra.mxu0 0.0
      %1040 = vmatprep.subr.mxu0 0.0
      %1041 = vmatpush1.msra.mxu0 0.0
      %1042 = vmatprep.subr.mxu0 0.0
      %1043 = vmatpush1.msra.mxu0 0.0
      %1044 = vmatprep.subr.mxu0 0.0
      %1045 = vmatpush1.msra.mxu0 0.0
      %1046 = vmatprep.subr.mxu0 0.0
      %1047 = vmatpush1.msra.mxu0 0.0
      %1048 = vmatprep.mubr.f32.mxu0 0.0
      %1049 = vmatmul.mubr.f32.gmra.mrb[0].mxu0 %v885
      %v1050 = vpop.f32.mrb[0].mxu0
      %v1051 = vadd.f32 0.0, %v1050
      %v1052 = vpop.f32.mrb[0].mxu0
      %1053 = vmatprep.mubr.f32.mxu0 0.0
      %1054 = vmatmul.mubr.f32.gmra.mrb[0].mxu0 %v888
      %v1055 = vpop.f32.mrb[0].mxu0
      %v1056 = vadd.f32 0.0, %v1055
      %v1057 = vpop.f32.mrb[0].mxu0
      %1058 = vmatprep.mubr.f32.mxu0 0.0
      %1059 = vmatmul.mubr.f32.gmra.mrb[0].mxu0 %v891
      %v1060 = vpop.f32.mrb[0].mxu0
      %v1061 = vadd.f32 0.0, %v1060
      %v1062 = vpop.f32.mrb[0].mxu0
      %1063 = vmatprep.mubr.f32.mxu0 0.0
      %1064 = vmatmul.mubr.f32.gmra.mrb[0].mxu0 %v894
      %v1065 = vpop.f32.mrb[0].mxu0
      %v1066 = vadd.f32 0.0, %v1065
      %v1067 = vpop.f32.mrb[0].mxu0
      %1068 = vmatprep.mubr.f32.mxu0 0.0
      %1069 = vmatmul.mubr.f32.gmra.mrb[0].mxu0 %v897
      %v1070 = vpop.f32.mrb[0].mxu0
      %v1071 = vadd.f32 0.0, %v1070
      %v1072 = vpop.f32.mrb[0].mxu0
      %1073 = vmatprep.mubr.f32.mxu0 0.0
      %1074 = vmatmul.mubr.f32.gmra.mrb[0].mxu0 %v900
      %v1075 = vpop.f32.mrb[0].mxu0
      %v1076 = vadd.f32 0.0, %v1075
      %v1077 = vpop.f32.mrb[0].mxu0
      %1078 = vmatprep.mubr.f32.mxu0 0.0
      %1079 = vmatmul.mubr.f32.gmra.mrb[0].mxu0 %v903
      %v1080 = vpop.f32.mrb[0].mxu0
      %v1081 = vadd.f32 0.0, %v1080
      %v1082 = vpop.f32.mrb[0].mxu0
      %1083 = vmatprep.mubr.f32.mxu0 0.0
      %1084 = vmatmul.mubr.f32.gmra.mrb[0].mxu0 %v906
      %v1085 = vpop.f32.mrb[0].mxu0
      %v1086 = vadd.f32 0.0, %v1085
      %v1087 = vpop.f32.mrb[0].mxu0
      %1088 = vmatprep.mubr.f32.mxu0 0.0
      %1089 = vmatmul.mubr.f32.gmra.mrb[0].mxu0 %v909
      %v1090 = vpop.f32.mrb[0].mxu0
      %v1091 = vadd.f32 0.0, %v1090
      %v1092 = vpop.f32.mrb[0].mxu0
      %1093 = vmatprep.mubr.f32.mxu0 0.0
      %1094 = vmatmul.mubr.f32.gmra.mrb[0].mxu0 %v912
      %v1095 = vpop.f32.mrb[0].mxu0
      %v1096 = vadd.f32 0.0, %v1095
      %v1097 = vpop.f32.mrb[0].mxu0
      %1098 = vmatprep.mubr.f32.mxu0 0.0
      %1099 = vmatmul.mubr.f32.gmra.mrb[0].mxu0 %v915
      %v1100 = vpop.f32.mrb[0].mxu0
      %v1101 = vadd.f32 0.0, %v1100
      %v1102 = vpop.f32.mrb[0].mxu0
      %1103 = vmatprep.mubr.f32.mxu0 0.0
      %1104 = vmatmul.mubr.f32.gmra.mrb[0].mxu0 %v918
      %v1105 = vpop.f32.mrb[0].mxu0
      %v1106 = vadd.f32 0.0, %v1105
      %v1107 = vpop.f32.mrb[0].mxu0
      %1108 = vmatprep.mubr.f32.mxu0 0.0
      %1109 = vmatmul.mubr.f32.gmra.mrb[0].mxu0 %v921
      %v1110 = vpop.f32.mrb[0].mxu0
      %v1111 = vadd.f32 0.0, %v1110
      %v1112 = vpop.f32.mrb[0].mxu0
      %1113 = vmatprep.mubr.f32.mxu0 0.0
      %1114 = vmatmul.mubr.f32.gmra.mrb[0].mxu0 %v924
      %v1115 = vpop.f32.mrb[0].mxu0
      %v1116 = vadd.f32 0.0, %v1115
      %v1117 = vpop.f32.mrb[0].mxu0
      %1118 = vmatprep.mubr.f32.mxu0 0.0
      %1119 = vmatmul.mubr.f32.gmra.mrb[0].mxu0 %v927
      %v1120 = vpop.f32.mrb[0].mxu0
      %v1121 = vadd.f32 0.0, %v1120
      %v1122 = vpop.f32.mrb[0].mxu0
      %1123 = vmatprep.mubr.f32.mxu0 0.0
      %1124 = vmatmul.mubr.f32.gmra.mrb[0].mxu0 %v930
      %v1125 = vpop.f32.mrb[0].mxu0
      %v1126 = vadd.f32 0.0, %v1125
      %v1127 = vpop.f32.mrb[0].mxu0
      %1128 = vmatprep.mubr.f32.mxu0 0.0
      %1129 = vmatmul.mubr.f32.gmra.mrb[0].mxu0 %v933
      %v1130 = vpop.f32.mrb[0].mxu0
      %v1131 = vadd.f32 0.0, %v1130
      %v1132 = vpop.f32.mrb[0].mxu0
      %1133 = vmatprep.mubr.f32.mxu0 0.0
      %1134 = vmatmul.mubr.f32.gmra.mrb[0].mxu0 %v936
      %v1135 = vpop.f32.mrb[0].mxu0
      %v1136 = vadd.f32 0.0, %v1135
      %v1137 = vpop.f32.mrb[0].mxu0
      %1138 = vmatprep.mubr.f32.mxu0 0.0
      %1139 = vmatmul.mubr.f32.gmra.mrb[0].mxu0 %v939
      %v1140 = vpop.f32.mrb[0].mxu0
      %v1141 = vadd.f32 0.0, %v1140
      %v1142 = vpop.f32.mrb[0].mxu0
      %1143 = vmatprep.mubr.f32.mxu0 0.0
      %1144 = vmatmul.mubr.f32.gmra.mrb[0].mxu0 %v942
      %v1145 = vpop.f32.mrb[0].mxu0
      %v1146 = vadd.f32 0.0, %v1145
      %v1147 = vpop.f32.mrb[0].mxu0
      %1148 = vmatprep.mubr.f32.mxu0 0.0
      %1149 = vmatmul.mubr.f32.gmra.mrb[0].mxu0 %v945
      %v1150 = vpop.f32.mrb[0].mxu0
      %v1151 = vadd.f32 0.0, %v1150
      %v1152 = vpop.f32.mrb[0].mxu0
      %1153 = vmatprep.mubr.f32.mxu0 0.0
      %1154 = vmatmul.mubr.f32.gmra.mrb[0].mxu0 %v948
      %v1155 = vpop.f32.mrb[0].mxu0
      %v1156 = vadd.f32 0.0, %v1155
      %v1157 = vpop.f32.mrb[0].mxu0
      %1158 = vmatprep.mubr.f32.mxu0 0.0
      %1159 = vmatmul.mubr.f32.gmra.mrb[0].mxu0 %v951
      %v1160 = vpop.f32.mrb[0].mxu0
      %v1161 = vadd.f32 0.0, %v1160
      %v1162 = vpop.f32.mrb[0].mxu0
      %1163 = vmatprep.mubr.f32.mxu0 0.0
      %1164 = vmatmul.mubr.f32.gmra.mrb[0].mxu0 %v954
      %v1165 = vpop.f32.mrb[0].mxu0
      %v1166 = vadd.f32 0.0, %v1165
      %v1167 = vpop.f32.mrb[0].mxu0
      %1168 = vmatprep.mubr.f32.mxu0 0.0
      %1169 = vmatmul.mubr.f32.gmra.mrb[0].mxu0 %v957
      %v1170 = vpop.f32.mrb[0].mxu0
      %v1171 = vadd.f32 0.0, %v1170
      %v1172 = vpop.f32.mrb[0].mxu0
      %1173 = vmatprep.mubr.f32.mxu0 0.0
      %1174 = vmatmul.mubr.f32.gmra.mrb[0].mxu0 %v960
      %v1175 = vpop.f32.mrb[0].mxu0
      %v1176 = vadd.f32 0.0, %v1175
      %v1177 = vpop.f32.mrb[0].mxu0
      %1178 = vmatprep.mubr.f32.mxu0 0.0
      %1179 = vmatmul.mubr.f32.gmra.mrb[0].mxu0 %v963
      %v1180 = vpop.f32.mrb[0].mxu0
      %v1181 = vadd.f32 0.0, %v1180
      %v1182 = vpop.f32.mrb[0].mxu0
      %1183 = vmatprep.mubr.f32.mxu0 0.0
      %1184 = vmatmul.mubr.f32.gmra.mrb[0].mxu0 %v966
      %v1185 = vpop.f32.mrb[0].mxu0
      %v1186 = vadd.f32 0.0, %v1185
      %v1187 = vpop.f32.mrb[0].mxu0
      %1188 = vmatprep.mubr.f32.mxu0 0.0
      %1189 = vmatmul.mubr.f32.gmra.mrb[0].mxu0 %v969
      %v1190 = vpop.f32.mrb[0].mxu0
      %v1191 = vadd.f32 0.0, %v1190
      %v1192 = vpop.f32.mrb[0].mxu0
      %1193 = vmatprep.mubr.f32.mxu0 0.0
      %1194 = vmatmul.mubr.f32.gmra.mrb[0].mxu0 %v972
      %v1195 = vpop.f32.mrb[0].mxu0
      %v1196 = vadd.f32 0.0, %v1195
      %v1197 = vpop.f32.mrb[0].mxu0
      %1198 = vmatprep.mubr.f32.mxu0 0.0
      %1199 = vmatmul.mubr.f32.gmra.mrb[0].mxu0 %v975
      %v1200 = vpop.f32.mrb[0].mxu0
      %v1201 = vadd.f32 0.0, %v1200
      %v1202 = vpop.f32.mrb[0].mxu0
      %1203 = vmatprep.mubr.f32.mxu0 0.0
      %1204 = vmatmul.mubr.f32.gmra.mrb[0].mxu0 %v978
      %v1205 = vpop.f32.mrb[0].mxu0
      %v1206 = vadd.f32 0.0, %v1205
      %v1207 = vpop.f32.mrb[0].mxu0
      %1208 = vdwg.mxu0
      %v1210 = vsel %vm380, %v818, 0
      %v1213 = vsel %vm380, %v819, 0
      %v1216 = vsel %vm380, %v820, 0
      %v1219 = vsel %vm380, %v821, 0
      %v1222 = vsel %vm380, %v822, 0
      %v1225 = vsel %vm380, %v823, 0
      %v1228 = vsel %vm380, %v824, 0
      %v1231 = vsel %vm380, %v825, 0
      %v1234 = vsel %vm380, %v826, 0
      %v1237 = vsel %vm380, %v827, 0
      %v1240 = vsel %vm380, %v828, 0
      %v1243 = vsel %vm380, %v829, 0
      %v1246 = vsel %vm380, %v830, 0
      %v1249 = vsel %vm380, %v831, 0
      %v1252 = vsel %vm380, %v832, 0
      %v1255 = vsel %vm380, %v833, 0
      %v1258 = vsel %vm380, %v834, 0
      %v1261 = vsel %vm380, %v835, 0
      %v1264 = vsel %vm380, %v836, 0
      %v1267 = vsel %vm380, %v837, 0
      %v1270 = vsel %vm380, %v838, 0
      %v1273 = vsel %vm380, %v839, 0
      %v1276 = vsel %vm380, %v840, 0
      %v1279 = vsel %vm380, %v841, 0
      %v1282 = vsel %vm380, %v842, 0
      %v1285 = vsel %vm380, %v843, 0
      %v1288 = vsel %vm380, %v844, 0
      %v1291 = vsel %vm380, %v845, 0
      %v1294 = vsel %vm380, %v846, 0
      %v1297 = vsel %vm380, %v847, 0
      %v1300 = vsel %vm380, %v848, 0
      %v1303 = vsel %vm380, %v849, 0
      %v1306 = vsel %vm980, %v850, 0
      %1308 = vmatprep.subr.mxu0 0.0
      %1309 = vmatpush1.msra.mxu0 %v1306
      %1310 = vmatprep.subr.mxu0 0.0
      %1311 = vmatpush1.msra.mxu0 0.0
      %1312 = vmatprep.subr.mxu0 0.0
      %1313 = vmatpush1.msra.mxu0 0.0
      %1314 = vmatprep.subr.mxu0 0.0
      %1315 = vmatpush1.msra.mxu0 0.0
      %1316 = vmatprep.subr.mxu0 0.0
      %1317 = vmatpush1.msra.mxu0 0.0
      %1318 = vmatprep.subr.mxu0 0.0
      %1319 = vmatpush1.msra.mxu0 0.0
      %1320 = vmatprep.subr.mxu0 0.0
      %1321 = vmatpush1.msra.mxu0 0.0
      %1322 = vmatprep.subr.mxu0 0.0
      %1323 = vmatpush1.msra.mxu0 0.0
      %1324 = vmatprep.subr.mxu0 0.0
      %1325 = vmatpush1.msra.mxu0 0.0
      %1326 = vmatprep.subr.mxu0 0.0
      %1327 = vmatpush1.msra.mxu0 0.0
      %1328 = vmatprep.subr.mxu0 0.0
      %1329 = vmatpush1.msra.mxu0 0.0
      %1330 = vmatprep.subr.mxu0 0.0
      %1331 = vmatpush1.msra.mxu0 0.0
      %1332 = vmatprep.subr.mxu0 0.0
      %1333 = vmatpush1.msra.mxu0 0.0
      %1334 = vmatprep.subr.mxu0 0.0
      %1335 = vmatpush1.msra.mxu0 0.0
      %1336 = vmatprep.subr.mxu0 0.0
      %1337 = vmatpush1.msra.mxu0 0.0
      %1338 = vmatprep.subr.mxu0 0.0
      %1339 = vmatpush1.msra.mxu0 0.0
      %1340 = vmatprep.subr.mxu0 0.0
      %1341 = vmatpush1.msra.mxu0 0.0
      %1342 = vmatprep.subr.mxu0 0.0
      %1343 = vmatpush1.msra.mxu0 0.0
      %1344 = vmatprep.subr.mxu0 0.0
      %1345 = vmatpush1.msra.mxu0 0.0
      %1346 = vmatprep.subr.mxu0 0.0
      %1347 = vmatpush1.msra.mxu0 0.0
      %1348 = vmatprep.subr.mxu0 0.0
      %1349 = vmatpush1.msra.mxu0 0.0
      %1350 = vmatprep.subr.mxu0 0.0
      %1351 = vmatpush1.msra.mxu0 0.0
      %1352 = vmatprep.subr.mxu0 0.0
      %1353 = vmatpush1.msra.mxu0 0.0
      %1354 = vmatprep.subr.mxu0 0.0
      %1355 = vmatpush1.msra.mxu0 0.0
      %1356 = vmatprep.subr.mxu0 0.0
      %1357 = vmatpush1.msra.mxu0 0.0
      %1358 = vmatprep.subr.mxu0 0.0
      %1359 = vmatpush1.msra.mxu0 0.0
      %1360 = vmatprep.subr.mxu0 0.0
      %1361 = vmatpush1.msra.mxu0 0.0
      %1362 = vmatprep.subr.mxu0 0.0
      %1363 = vmatpush1.msra.mxu0 0.0
      %1364 = vmatprep.subr.mxu0 0.0
      %1365 = vmatpush1.msra.mxu0 0.0
      %1366 = vmatprep.subr.mxu0 0.0
      %1367 = vmatpush1.msra.mxu0 0.0
      %1368 = vmatprep.subr.mxu0 0.0
      %1369 = vmatpush1.msra.mxu0 0.0
      %1370 = vmatprep.subr.mxu0 0.0
      %1371 = vmatpush1.msra.mxu0 0.0
      %1372 = vmatprep.mubr.f32.mxu0 0.0
      %1373 = vmatmul.mubr.f32.gmra.mrb[0].mxu0 %v1210
      %v1374 = vpop.f32.mrb[0].mxu0
      %v1375 = vadd.f32 %v1051, %v1374
      %v1376 = vpop.f32.mrb[0].mxu0
      %1377 = vmatprep.mubr.f32.mxu0 0.0
      %1378 = vmatmul.mubr.f32.gmra.mrb[0].mxu0 %v1213
      %v1379 = vpop.f32.mrb[0].mxu0
      %v1380 = vadd.f32 %v1056, %v1379
      %v1381 = vpop.f32.mrb[0].mxu0
      %1382 = vmatprep.mubr.f32.mxu0 0.0
      %1383 = vmatmul.mubr.f32.gmra.mrb[0].mxu0 %v1216
      %v1384 = vpop.f32.mrb[0].mxu0
      %v1385 = vadd.f32 %v1061, %v1384
      %v1386 = vpop.f32.mrb[0].mxu0
      %1387 = vmatprep.mubr.f32.mxu0 0.0
      %1388 = vmatmul.mubr.f32.gmra.mrb[0].mxu0 %v1219
      %v1389 = vpop.f32.mrb[0].mxu0
      %v1390 = vadd.f32 %v1066, %v1389
      %v1391 = vpop.f32.mrb[0].mxu0
      %1392 = vmatprep.mubr.f32.mxu0 0.0
      %1393 = vmatmul.mubr.f32.gmra.mrb[0].mxu0 %v1222
      %v1394 = vpop.f32.mrb[0].mxu0
      %v1395 = vadd.f32 %v1071, %v1394
      %v1396 = vpop.f32.mrb[0].mxu0
      %1397 = vmatprep.mubr.f32.mxu0 0.0
      %1398 = vmatmul.mubr.f32.gmra.mrb[0].mxu0 %v1225
      %v1399 = vpop.f32.mrb[0].mxu0
      %v1400 = vadd.f32 %v1076, %v1399
      %v1401 = vpop.f32.mrb[0].mxu0
      %1402 = vmatprep.mubr.f32.mxu0 0.0
      %1403 = vmatmul.mubr.f32.gmra.mrb[0].mxu0 %v1228
      %v1404 = vpop.f32.mrb[0].mxu0
      %v1405 = vadd.f32 %v1081, %v1404
      %v1406 = vpop.f32.mrb[0].mxu0
      %1407 = vmatprep.mubr.f32.mxu0 0.0
      %1408 = vmatmul.mubr.f32.gmra.mrb[0].mxu0 %v1231
      %v1409 = vpop.f32.mrb[0].mxu0
      %v1410 = vadd.f32 %v1086, %v1409
      %v1411 = vpop.f32.mrb[0].mxu0
      %1412 = vmatprep.mubr.f32.mxu0 0.0
      %1413 = vmatmul.mubr.f32.gmra.mrb[0].mxu0 %v1234
      %v1414 = vpop.f32.mrb[0].mxu0
      %v1415 = vadd.f32 %v1091, %v1414
      %v1416 = vpop.f32.mrb[0].mxu0
      %1417 = vmatprep.mubr.f32.mxu0 0.0
      %1418 = vmatmul.mubr.f32.gmra.mrb[0].mxu0 %v1237
      %v1419 = vpop.f32.mrb[0].mxu0
      %v1420 = vadd.f32 %v1096, %v1419
      %v1421 = vpop.f32.mrb[0].mxu0
      %1422 = vmatprep.mubr.f32.mxu0 0.0
      %1423 = vmatmul.mubr.f32.gmra.mrb[0].mxu0 %v1240
      %v1424 = vpop.f32.mrb[0].mxu0
      %v1425 = vadd.f32 %v1101, %v1424
      %v1426 = vpop.f32.mrb[0].mxu0
      %1427 = vmatprep.mubr.f32.mxu0 0.0
      %1428 = vmatmul.mubr.f32.gmra.mrb[0].mxu0 %v1243
      %v1429 = vpop.f32.mrb[0].mxu0
      %v1430 = vadd.f32 %v1106, %v1429
      %v1431 = vpop.f32.mrb[0].mxu0
      %1432 = vmatprep.mubr.f32.mxu0 0.0
      %1433 = vmatmul.mubr.f32.gmra.mrb[0].mxu0 %v1246
      %v1434 = vpop.f32.mrb[0].mxu0
      %v1435 = vadd.f32 %v1111, %v1434
      %v1436 = vpop.f32.mrb[0].mxu0
      %1437 = vmatprep.mubr.f32.mxu0 0.0
      %1438 = vmatmul.mubr.f32.gmra.mrb[0].mxu0 %v1249
      %v1439 = vpop.f32.mrb[0].mxu0
      %v1440 = vadd.f32 %v1116, %v1439
      %v1441 = vpop.f32.mrb[0].mxu0
      %1442 = vmatprep.mubr.f32.mxu0 0.0
      %1443 = vmatmul.mubr.f32.gmra.mrb[0].mxu0 %v1252
      %v1444 = vpop.f32.mrb[0].mxu0
      %v1445 = vadd.f32 %v1121, %v1444
      %v1446 = vpop.f32.mrb[0].mxu0
      %1447 = vmatprep.mubr.f32.mxu0 0.0
      %1448 = vmatmul.mubr.f32.gmra.mrb[0].mxu0 %v1255
      %v1449 = vpop.f32.mrb[0].mxu0
      %v1450 = vadd.f32 %v1126, %v1449
      %v1451 = vpop.f32.mrb[0].mxu0
      %1452 = vmatprep.mubr.f32.mxu0 0.0
      %1453 = vmatmul.mubr.f32.gmra.mrb[0].mxu0 %v1258
      %v1454 = vpop.f32.mrb[0].mxu0
      %v1455 = vadd.f32 %v1131, %v1454
      %v1456 = vpop.f32.mrb[0].mxu0
      %1457 = vmatprep.mubr.f32.mxu0 0.0
      %1458 = vmatmul.mubr.f32.gmra.mrb[0].mxu0 %v1261
      %v1459 = vpop.f32.mrb[0].mxu0
      %v1460 = vadd.f32 %v1136, %v1459
      %v1461 = vpop.f32.mrb[0].mxu0
      %1462 = vmatprep.mubr.f32.mxu0 0.0
      %1463 = vmatmul.mubr.f32.gmra.mrb[0].mxu0 %v1264
      %v1464 = vpop.f32.mrb[0].mxu0
      %v1465 = vadd.f32 %v1141, %v1464
      %v1466 = vpop.f32.mrb[0].mxu0
      %1467 = vmatprep.mubr.f32.mxu0 0.0
      %1468 = vmatmul.mubr.f32.gmra.mrb[0].mxu0 %v1267
      %v1469 = vpop.f32.mrb[0].mxu0
      %v1470 = vadd.f32 %v1146, %v1469
      %v1471 = vpop.f32.mrb[0].mxu0
      %1472 = vmatprep.mubr.f32.mxu0 0.0
      %1473 = vmatmul.mubr.f32.gmra.mrb[0].mxu0 %v1270
      %v1474 = vpop.f32.mrb[0].mxu0
      %v1475 = vadd.f32 %v1151, %v1474
      %v1476 = vpop.f32.mrb[0].mxu0
      %1477 = vmatprep.mubr.f32.mxu0 0.0
      %1478 = vmatmul.mubr.f32.gmra.mrb[0].mxu0 %v1273
      %v1479 = vpop.f32.mrb[0].mxu0
      %v1480 = vadd.f32 %v1156, %v1479
      %v1481 = vpop.f32.mrb[0].mxu0
      %1482 = vmatprep.mubr.f32.mxu0 0.0
      %1483 = vmatmul.mubr.f32.gmra.mrb[0].mxu0 %v1276
      %v1484 = vpop.f32.mrb[0].mxu0
      %v1485 = vadd.f32 %v1161, %v1484
      %v1486 = vpop.f32.mrb[0].mxu0
      %1487 = vmatprep.mubr.f32.mxu0 0.0
      %1488 = vmatmul.mubr.f32.gmra.mrb[0].mxu0 %v1279
      %v1489 = vpop.f32.mrb[0].mxu0
      %v1490 = vadd.f32 %v1166, %v1489
      %v1491 = vpop.f32.mrb[0].mxu0
      %1492 = vmatprep.mubr.f32.mxu0 0.0
      %1493 = vmatmul.mubr.f32.gmra.mrb[0].mxu0 %v1282
      %v1494 = vpop.f32.mrb[0].mxu0
      %v1495 = vadd.f32 %v1171, %v1494
      %v1496 = vpop.f32.mrb[0].mxu0
      %1497 = vmatprep.mubr.f32.mxu0 0.0
      %1498 = vmatmul.mubr.f32.gmra.mrb[0].mxu0 %v1285
      %v1499 = vpop.f32.mrb[0].mxu0
      %v1500 = vadd.f32 %v1176, %v1499
      %v1501 = vpop.f32.mrb[0].mxu0
      %1502 = vmatprep.mubr.f32.mxu0 0.0
      %1503 = vmatmul.mubr.f32.gmra.mrb[0].mxu0 %v1288
      %v1504 = vpop.f32.mrb[0].mxu0
      %v1505 = vadd.f32 %v1181, %v1504
      %v1506 = vpop.f32.mrb[0].mxu0
      %1507 = vmatprep.mubr.f32.mxu0 0.0
      %1508 = vmatmul.mubr.f32.gmra.mrb[0].mxu0 %v1291
      %v1509 = vpop.f32.mrb[0].mxu0
      %v1510 = vadd.f32 %v1186, %v1509
      %v1511 = vpop.f32.mrb[0].mxu0
      %1512 = vmatprep.mubr.f32.mxu0 0.0
      %1513 = vmatmul.mubr.f32.gmra.mrb[0].mxu0 %v1294
      %v1514 = vpop.f32.mrb[0].mxu0
      %v1515 = vadd.f32 %v1191, %v1514
      %v1516 = vpop.f32.mrb[0].mxu0
      %1517 = vmatprep.mubr.f32.mxu0 0.0
      %1518 = vmatmul.mubr.f32.gmra.mrb[0].mxu0 %v1297
      %v1519 = vpop.f32.mrb[0].mxu0
      %v1520 = vadd.f32 %v1196, %v1519
      %v1521 = vpop.f32.mrb[0].mxu0
      %1522 = vmatprep.mubr.f32.mxu0 0.0
      %1523 = vmatmul.mubr.f32.gmra.mrb[0].mxu0 %v1300
      %v1524 = vpop.f32.mrb[0].mxu0
      %v1525 = vadd.f32 %v1201, %v1524
      %v1526 = vpop.f32.mrb[0].mxu0
      %1527 = vmatprep.mubr.f32.mxu0 0.0
      %1528 = vmatmul.mubr.f32.gmra.mrb[0].mxu0 %v1303
      %v1529 = vpop.f32.mrb[0].mxu0
      %v1530 = vadd.f32 %v1206, %v1529
      %v1531 = vpop.f32.mrb[0].mxu0
      %1532 = vdwg.mxu0
      %v1533 = vld [vmem:[#allocation2 + $0x9] sm:$0xff]
      %v1534 = vld [vmem:[#allocation2 + $0x11] sm:$0xff]
      %v1535 = vld [vmem:[#allocation2 + $0x29] sm:$0xff]
      %v1536 = vld [vmem:[#allocation2 + $0x31] sm:$0xff]
      %v1537 = vld [vmem:[#allocation2 + $0x49] sm:$0xff]
      %v1538 = vld [vmem:[#allocation2 + $0x51] sm:$0xff]
      %v1539 = vld [vmem:[#allocation2 + $0x69] sm:$0xff]
      %v1540 = vld [vmem:[#allocation2 + $0x71] sm:$0xff]
      %v1541 = vld [vmem:[#allocation2 + $0x89] sm:$0xff]
      %v1542 = vld [vmem:[#allocation2 + $0x91] sm:$0xff]
      %v1543 = vld [vmem:[#allocation2 + $0xa9] sm:$0xff]
      %v1544 = vld [vmem:[#allocation2 + $0xb1] sm:$0xff]
      %v1545 = vld [vmem:[#allocation2 + $0xc9] sm:$0xff]
      %v1546 = vld [vmem:[#allocation2 + $0xd1] sm:$0xff]
      %v1547 = vld [vmem:[#allocation2 + $0xe9] sm:$0xff]
      %v1548 = vld [vmem:[#allocation2 + $0xf1] sm:$0xff]
      %v1549 = vld [vmem:[#allocation2 + $0x109] sm:$0xff]
      %v1550 = vld [vmem:[#allocation2 + $0x111] sm:$0xff]
      %v1551 = vld [vmem:[#allocation2 + $0x129] sm:$0xff]
      %v1552 = vld [vmem:[#allocation2 + $0x131] sm:$0xff]
      %v1553 = vld [vmem:[#allocation2 + $0x149] sm:$0xff]
      %v1554 = vld [vmem:[#allocation2 + $0x151] sm:$0xff]
      %v1555 = vld [vmem:[#allocation2 + $0x169] sm:$0xff]
      %v1556 = vld [vmem:[#allocation2 + $0x171] sm:$0xff]
      %v1557 = vld [vmem:[#allocation2 + $0x189] sm:$0xff]
      %v1558 = vld [vmem:[#allocation2 + $0x191] sm:$0xff]
      %v1559 = vld [vmem:[#allocation2 + $0x1a9] sm:$0xff]
      %v1560 = vld [vmem:[#allocation2 + $0x1b1] sm:$0xff]
      %v1561 = vld [vmem:[#allocation2 + $0x1c9] sm:$0xff]
      %v1562 = vld [vmem:[#allocation2 + $0x1d1] sm:$0xff]
      %v1563 = vld [vmem:[#allocation2 + $0x1e9] sm:$0xff]
      %v1564 = vld [vmem:[#allocation2 + $0x1f1] sm:$0xff]
      %v1565 = vld [vmem:[%s3 + $0x8] sm:$0xf]
      %v1567 = vsel %vm380, %v1533, 0
      %v1570 = vsel %vm380, %v1534, 0
      %v1573 = vsel %vm380, %v1535, 0
      %v1576 = vsel %vm380, %v1536, 0
      %v1579 = vsel %vm380, %v1537, 0
      %v1582 = vsel %vm380, %v1538, 0
      %v1585 = vsel %vm380, %v1539, 0
      %v1588 = vsel %vm380, %v1540, 0
      %v1591 = vsel %vm380, %v1541, 0
      %v1594 = vsel %vm380, %v1542, 0
      %v1597 = vsel %vm380, %v1543, 0
      %v1600 = vsel %vm380, %v1544, 0
      %v1603 = vsel %vm380, %v1545, 0
      %v1606 = vsel %vm380, %v1546, 0
      %v1609 = vsel %vm380, %v1547, 0
      %v1612 = vsel %vm380, %v1548, 0
      %v1615 = vsel %vm380, %v1549, 0
      %v1618 = vsel %vm380, %v1550, 0
      %v1621 = vsel %vm380, %v1551, 0
      %v1624 = vsel %vm380, %v1552, 0
      %v1627 = vsel %vm380, %v1553, 0
      %v1630 = vsel %vm380, %v1554, 0
      %v1633 = vsel %vm380, %v1555, 0
      %v1636 = vsel %vm380, %v1556, 0
      %v1639 = vsel %vm380, %v1557, 0
      %v1642 = vsel %vm380, %v1558, 0
      %v1645 = vsel %vm380, %v1559, 0
      %v1648 = vsel %vm380, %v1560, 0
      %v1651 = vsel %vm380, %v1561, 0
      %v1654 = vsel %vm380, %v1562, 0
      %v1657 = vsel %vm380, %v1563, 0
      %v1660 = vsel %vm380, %v1564, 0
      %v1663 = vsel %vm980, %v1565, 0
      %1665 = vmatprep.subr.mxu0 0.0
      %1666 = vmatpush1.msra.mxu0 %v1663
      %1667 = vmatprep.subr.mxu0 0.0
      %1668 = vmatpush1.msra.mxu0 0.0
      %1669 = vmatprep.subr.mxu0 0.0
      %1670 = vmatpush1.msra.mxu0 0.0
      %1671 = vmatprep.subr.mxu0 0.0
      %1672 = vmatpush1.msra.mxu0 0.0
      %1673 = vmatprep.subr.mxu0 0.0
      %1674 = vmatpush1.msra.mxu0 0.0
      %1675 = vmatprep.subr.mxu0 0.0
      %1676 = vmatpush1.msra.mxu0 0.0
      %1677 = vmatprep.subr.mxu0 0.0
      %1678 = vmatpush1.msra.mxu0 0.0
      %1679 = vmatprep.subr.mxu0 0.0
      %1680 = vmatpush1.msra.mxu0 0.0
      %1681 = vmatprep.subr.mxu0 0.0
      %1682 = vmatpush1.msra.mxu0 0.0
      %1683 = vmatprep.subr.mxu0 0.0
      %1684 = vmatpush1.msra.mxu0 0.0
      %1685 = vmatprep.subr.mxu0 0.0
      %1686 = vmatpush1.msra.mxu0 0.0
      %1687 = vmatprep.subr.mxu0 0.0
      %1688 = vmatpush1.msra.mxu0 0.0
      %1689 = vmatprep.subr.mxu0 0.0
      %1690 = vmatpush1.msra.mxu0 0.0
      %1691 = vmatprep.subr.mxu0 0.0
      %1692 = vmatpush1.msra.mxu0 0.0
      %1693 = vmatprep.subr.mxu0 0.0
      %1694 = vmatpush1.msra.mxu0 0.0
      %1695 = vmatprep.subr.mxu0 0.0
      %1696 = vmatpush1.msra.mxu0 0.0
      %1697 = vmatprep.subr.mxu0 0.0
      %1698 = vmatpush1.msra.mxu0 0.0
      %1699 = vmatprep.subr.mxu0 0.0
      %1700 = vmatpush1.msra.mxu0 0.0
      %1701 = vmatprep.subr.mxu0 0.0
      %1702 = vmatpush1.msra.mxu0 0.0
      %1703 = vmatprep.subr.mxu0 0.0
      %1704 = vmatpush1.msra.mxu0 0.0
      %1705 = vmatprep.subr.mxu0 0.0
      %1706 = vmatpush1.msra.mxu0 0.0
      %1707 = vmatprep.subr.mxu0 0.0
      %1708 = vmatpush1.msra.mxu0 0.0
      %1709 = vmatprep.subr.mxu0 0.0
      %1710 = vmatpush1.msra.mxu0 0.0
      %1711 = vmatprep.subr.mxu0 0.0
      %1712 = vmatpush1.msra.mxu0 0.0
      %1713 = vmatprep.subr.mxu0 0.0
      %1714 = vmatpush1.msra.mxu0 0.0
      %1715 = vmatprep.subr.mxu0 0.0
      %1716 = vmatpush1.msra.mxu0 0.0
      %1717 = vmatprep.subr.mxu0 0.0
      %1718 = vmatpush1.msra.mxu0 0.0
      %1719 = vmatprep.subr.mxu0 0.0
      %1720 = vmatpush1.msra.mxu0 0.0
      %1721 = vmatprep.subr.mxu0 0.0
      %1722 = vmatpush1.msra.mxu0 0.0
      %1723 = vmatprep.subr.mxu0 0.0
      %1724 = vmatpush1.msra.mxu0 0.0
      %1725 = vmatprep.subr.mxu0 0.0
      %1726 = vmatpush1.msra.mxu0 0.0
      %1727 = vmatprep.subr.mxu0 0.0
      %1728 = vmatpush1.msra.mxu0 0.0
      %1729 = vmatprep.mubr.f32.mxu0 0.0
      %1730 = vmatmul.mubr.f32.gmra.mrb[0].mxu0 %v1567
      %v1731 = vpop.f32.mrb[0].mxu0
      %v1732 = vadd.f32 0.0, %v1731
      %v1733 = vpop.f32.mrb[0].mxu0
      %1734 = vmatprep.mubr.f32.mxu0 0.0
      %1735 = vmatmul.mubr.f32.gmra.mrb[0].mxu0 %v1570
      %v1736 = vpop.f32.mrb[0].mxu0
      %v1737 = vadd.f32 0.0, %v1736
      %v1738 = vpop.f32.mrb[0].mxu0
      %1739 = vmatprep.mubr.f32.mxu0 0.0
      %1740 = vmatmul.mubr.f32.gmra.mrb[0].mxu0 %v1573
      %v1741 = vpop.f32.mrb[0].mxu0
      %v1742 = vadd.f32 0.0, %v1741
      %v1743 = vpop.f32.mrb[0].mxu0
      %1744 = vmatprep.mubr.f32.mxu0 0.0
      %1745 = vmatmul.mubr.f32.gmra.mrb[0].mxu0 %v1576
      %v1746 = vpop.f32.mrb[0].mxu0
      %v1747 = vadd.f32 0.0, %v1746
      %v1748 = vpop.f32.mrb[0].mxu0
      %1749 = vmatprep.mubr.f32.mxu0 0.0
      %1750 = vmatmul.mubr.f32.gmra.mrb[0].mxu0 %v1579
      %v1751 = vpop.f32.mrb[0].mxu0
      %v1752 = vadd.f32 0.0, %v1751
      %v1753 = vpop.f32.mrb[0].mxu0
      %1754 = vmatprep.mubr.f32.mxu0 0.0
      %1755 = vmatmul.mubr.f32.gmra.mrb[0].mxu0 %v1582
      %v1756 = vpop.f32.mrb[0].mxu0
      %v1757 = vadd.f32 0.0, %v1756
      %v1758 = vpop.f32.mrb[0].mxu0
      %1759 = vmatprep.mubr.f32.mxu0 0.0
      %1760 = vmatmul.mubr.f32.gmra.mrb[0].mxu0 %v1585
      %v1761 = vpop.f32.mrb[0].mxu0
      %v1762 = vadd.f32 0.0, %v1761
      %v1763 = vpop.f32.mrb[0].mxu0
      %1764 = vmatprep.mubr.f32.mxu0 0.0
      %1765 = vmatmul.mubr.f32.gmra.mrb[0].mxu0 %v1588
      %v1766 = vpop.f32.mrb[0].mxu0
      %v1767 = vadd.f32 0.0, %v1766
      %v1768 = vpop.f32.mrb[0].mxu0
      %1769 = vmatprep.mubr.f32.mxu0 0.0
      %1770 = vmatmul.mubr.f32.gmra.mrb[0].mxu0 %v1591
      %v1771 = vpop.f32.mrb[0].mxu0
      %v1772 = vadd.f32 0.0, %v1771
      %v1773 = vpop.f32.mrb[0].mxu0
      %1774 = vmatprep.mubr.f32.mxu0 0.0
      %1775 = vmatmul.mubr.f32.gmra.mrb[0].mxu0 %v1594
      %v1776 = vpop.f32.mrb[0].mxu0
      %v1777 = vadd.f32 0.0, %v1776
      %v1778 = vpop.f32.mrb[0].mxu0
      %1779 = vmatprep.mubr.f32.mxu0 0.0
      %1780 = vmatmul.mubr.f32.gmra.mrb[0].mxu0 %v1597
      %v1781 = vpop.f32.mrb[0].mxu0
      %v1782 = vadd.f32 0.0, %v1781
      %v1783 = vpop.f32.mrb[0].mxu0
      %1784 = vmatprep.mubr.f32.mxu0 0.0
      %1785 = vmatmul.mubr.f32.gmra.mrb[0].mxu0 %v1600
      %v1786 = vpop.f32.mrb[0].mxu0
      %v1787 = vadd.f32 0.0, %v1786
      %v1788 = vpop.f32.mrb[0].mxu0
      %1789 = vmatprep.mubr.f32.mxu0 0.0
      %1790 = vmatmul.mubr.f32.gmra.mrb[0].mxu0 %v1603
      %v1791 = vpop.f32.mrb[0].mxu0
      %v1792 = vadd.f32 0.0, %v1791
      %v1793 = vpop.f32.mrb[0].mxu0
      %1794 = vmatprep.mubr.f32.mxu0 0.0
      %1795 = vmatmul.mubr.f32.gmra.mrb[0].mxu0 %v1606
      %v1796 = vpop.f32.mrb[0].mxu0
      %v1797 = vadd.f32 0.0, %v1796
      %v1798 = vpop.f32.mrb[0].mxu0
      %1799 = vmatprep.mubr.f32.mxu0 0.0
      %1800 = vmatmul.mubr.f32.gmra.mrb[0].mxu0 %v1609
      %v1801 = vpop.f32.mrb[0].mxu0
      %v1802 = vadd.f32 0.0, %v1801
      %v1803 = vpop.f32.mrb[0].mxu0
      %1804 = vmatprep.mubr.f32.mxu0 0.0
      %1805 = vmatmul.mubr.f32.gmra.mrb[0].mxu0 %v1612
      %v1806 = vpop.f32.mrb[0].mxu0
      %v1807 = vadd.f32 0.0, %v1806
      %v1808 = vpop.f32.mrb[0].mxu0
      %1809 = vmatprep.mubr.f32.mxu0 0.0
      %1810 = vmatmul.mubr.f32.gmra.mrb[0].mxu0 %v1615
      %v1811 = vpop.f32.mrb[0].mxu0
      %v1812 = vadd.f32 0.0, %v1811
      %v1813 = vpop.f32.mrb[0].mxu0
      %1814 = vmatprep.mubr.f32.mxu0 0.0
      %1815 = vmatmul.mubr.f32.gmra.mrb[0].mxu0 %v1618
      %v1816 = vpop.f32.mrb[0].mxu0
      %v1817 = vadd.f32 0.0, %v1816
      %v1818 = vpop.f32.mrb[0].mxu0
      %1819 = vmatprep.mubr.f32.mxu0 0.0
      %1820 = vmatmul.mubr.f32.gmra.mrb[0].mxu0 %v1621
      %v1821 = vpop.f32.mrb[0].mxu0
      %v1822 = vadd.f32 0.0, %v1821
      %v1823 = vpop.f32.mrb[0].mxu0
      %1824 = vmatprep.mubr.f32.mxu0 0.0
      %1825 = vmatmul.mubr.f32.gmra.mrb[0].mxu0 %v1624
      %v1826 = vpop.f32.mrb[0].mxu0
      %v1827 = vadd.f32 0.0, %v1826
      %v1828 = vpop.f32.mrb[0].mxu0
      %1829 = vmatprep.mubr.f32.mxu0 0.0
      %1830 = vmatmul.mubr.f32.gmra.mrb[0].mxu0 %v1627
      %v1831 = vpop.f32.mrb[0].mxu0
      %v1832 = vadd.f32 0.0, %v1831
      %v1833 = vpop.f32.mrb[0].mxu0
      %1834 = vmatprep.mubr.f32.mxu0 0.0
      %1835 = vmatmul.mubr.f32.gmra.mrb[0].mxu0 %v1630
      %v1836 = vpop.f32.mrb[0].mxu0
      %v1837 = vadd.f32 0.0, %v1836
      %v1838 = vpop.f32.mrb[0].mxu0
      %1839 = vmatprep.mubr.f32.mxu0 0.0
      %1840 = vmatmul.mubr.f32.gmra.mrb[0].mxu0 %v1633
      %v1841 = vpop.f32.mrb[0].mxu0
      %v1842 = vadd.f32 0.0, %v1841
      %v1843 = vpop.f32.mrb[0].mxu0
      %1844 = vmatprep.mubr.f32.mxu0 0.0
      %1845 = vmatmul.mubr.f32.gmra.mrb[0].mxu0 %v1636
      %v1846 = vpop.f32.mrb[0].mxu0
      %v1847 = vadd.f32 0.0, %v1846
      %v1848 = vpop.f32.mrb[0].mxu0
      %1849 = vmatprep.mubr.f32.mxu0 0.0
      %1850 = vmatmul.mubr.f32.gmra.mrb[0].mxu0 %v1639
      %v1851 = vpop.f32.mrb[0].mxu0
      %v1852 = vadd.f32 0.0, %v1851
      %v1853 = vpop.f32.mrb[0].mxu0
      %1854 = vmatprep.mubr.f32.mxu0 0.0
      %1855 = vmatmul.mubr.f32.gmra.mrb[0].mxu0 %v1642
      %v1856 = vpop.f32.mrb[0].mxu0
      %v1857 = vadd.f32 0.0, %v1856
      %v1858 = vpop.f32.mrb[0].mxu0
      %1859 = vmatprep.mubr.f32.mxu0 0.0
      %1860 = vmatmul.mubr.f32.gmra.mrb[0].mxu0 %v1645
      %v1861 = vpop.f32.mrb[0].mxu0
      %v1862 = vadd.f32 0.0, %v1861
      %v1863 = vpop.f32.mrb[0].mxu0
      %1864 = vmatprep.mubr.f32.mxu0 0.0
      %1865 = vmatmul.mubr.f32.gmra.mrb[0].mxu0 %v1648
      %v1866 = vpop.f32.mrb[0].mxu0
      %v1867 = vadd.f32 0.0, %v1866
      %v1868 = vpop.f32.mrb[0].mxu0
      %1869 = vmatprep.mubr.f32.mxu0 0.0
      %1870 = vmatmul.mubr.f32.gmra.mrb[0].mxu0 %v1651
      %v1871 = vpop.f32.mrb[0].mxu0
      %v1872 = vadd.f32 0.0, %v1871
      %v1873 = vpop.f32.mrb[0].mxu0
      %1874 = vmatprep.mubr.f32.mxu0 0.0
      %1875 = vmatmul.mubr.f32.gmra.mrb[0].mxu0 %v1654
      %v1876 = vpop.f32.mrb[0].mxu0
      %v1877 = vadd.f32 0.0, %v1876
      %v1878 = vpop.f32.mrb[0].mxu0
      %1879 = vmatprep.mubr.f32.mxu0 0.0
      %1880 = vmatmul.mubr.f32.gmra.mrb[0].mxu0 %v1657
      %v1881 = vpop.f32.mrb[0].mxu0
      %v1882 = vadd.f32 0.0, %v1881
      %v1883 = vpop.f32.mrb[0].mxu0
      %1884 = vmatprep.mubr.f32.mxu0 0.0
      %1885 = vmatmul.mubr.f32.gmra.mrb[0].mxu0 %v1660
      %v1886 = vpop.f32.mrb[0].mxu0
      %v1887 = vadd.f32 0.0, %v1886
      %v1888 = vpop.f32.mrb[0].mxu0
      %1889 = vdwg.mxu0
      %v1890 = vadd.f32 %v1375, %v1732
      %v1891 = vadd.f32 %v1380, %v1737
      %v1892 = vadd.f32 %v1385, %v1742
      %v1893 = vadd.f32 %v1390, %v1747
      %v1894 = vadd.f32 %v1395, %v1752
      %v1895 = vadd.f32 %v1400, %v1757
      %v1896 = vadd.f32 %v1405, %v1762
      %v1897 = vadd.f32 %v1410, %v1767
      %v1898 = vadd.f32 %v1415, %v1772
      %v1899 = vadd.f32 %v1420, %v1777
      %v1900 = vadd.f32 %v1425, %v1782
      %v1901 = vadd.f32 %v1430, %v1787
      %v1902 = vadd.f32 %v1435, %v1792
      %v1903 = vadd.f32 %v1440, %v1797
      %v1904 = vadd.f32 %v1445, %v1802
      %v1905 = vadd.f32 %v1450, %v1807
      %v1906 = vadd.f32 %v1455, %v1812
      %v1907 = vadd.f32 %v1460, %v1817
      %v1908 = vadd.f32 %v1465, %v1822
      %v1909 = vadd.f32 %v1470, %v1827
      %v1910 = vadd.f32 %v1475, %v1832
      %v1911 = vadd.f32 %v1480, %v1837
      %v1912 = vadd.f32 %v1485, %v1842
      %v1913 = vadd.f32 %v1490, %v1847
      %v1914 = vadd.f32 %v1495, %v1852
      %v1915 = vadd.f32 %v1500, %v1857
      %v1916 = vadd.f32 %v1505, %v1862
      %v1917 = vadd.f32 %v1510, %v1867
      %v1918 = vadd.f32 %v1515, %v1872
      %v1919 = vadd.f32 %v1520, %v1877
      %v1920 = vadd.f32 %v1525, %v1882
      %v1921 = vadd.f32 %v1530, %v1887
      %v1922 = vld [vmem:[%s390 + $0x7] sm:$0xff]
      %v1923 = vld [vmem:[%s390 + $0xf] sm:$0xff]
      %v1924 = vld [vmem:[%s390 + $0x27] sm:$0xff]
      %v1925 = vld [vmem:[%s390 + $0x2f] sm:$0xff]
      %v1926 = vld [vmem:[%s390 + $0x47] sm:$0xff]
      %v1927 = vld [vmem:[%s390 + $0x4f] sm:$0xff]
      %v1928 = vld [vmem:[%s390 + $0x67] sm:$0xff]
      %v1929 = vld [vmem:[%s390 + $0x6f] sm:$0xff]
      %v1930 = vld [vmem:[%s390 + $0x87] sm:$0xff]
      %v1931 = vld [vmem:[%s390 + $0x8f] sm:$0xff]
      %v1932 = vld [vmem:[%s390 + $0xa7] sm:$0xff]
      %v1933 = vld [vmem:[%s390 + $0xaf] sm:$0xff]
      %v1934 = vld [vmem:[%s390 + $0xc7] sm:$0xff]
      %v1935 = vld [vmem:[%s390 + $0xcf] sm:$0xff]
      %v1936 = vld [vmem:[%s390 + $0xe7] sm:$0xff]
      %v1937 = vld [vmem:[%s390 + $0xef] sm:$0xff]
      %v1938 = vld [vmem:[%s390 + $0x107] sm:$0xff]
      %v1939 = vld [vmem:[%s390 + $0x10f] sm:$0xff]
      %v1940 = vld [vmem:[%s390 + $0x127] sm:$0xff]
      %v1941 = vld [vmem:[%s390 + $0x12f] sm:$0xff]
      %v1942 = vld [vmem:[%s390 + $0x147] sm:$0xff]
      %v1943 = vld [vmem:[%s390 + $0x14f] sm:$0xff]
      %v1944 = vld [vmem:[%s390 + $0x167] sm:$0xff]
      %v1945 = vld [vmem:[%s390 + $0x16f] sm:$0xff]
      %v1946 = vld [vmem:[%s390 + $0x187] sm:$0xff]
      %v1947 = vld [vmem:[%s390 + $0x18f] sm:$0xff]
      %v1948 = vld [vmem:[%s390 + $0x1a7] sm:$0xff]
      %v1949 = vld [vmem:[%s390 + $0x1af] sm:$0xff]
      %v1950 = vld [vmem:[%s390 + $0x1c7] sm:$0xff]
      %v1951 = vld [vmem:[%s390 + $0x1cf] sm:$0xff]
      %v1952 = vld [vmem:[%s390 + $0x1e7] sm:$0xff]
      %v1953 = vld [vmem:[%s390 + $0x1ef] sm:$0xff]
      %v1954 = vld [vmem:[%s3 + $0xc] sm:$0xf]
      %v1956 = vsel %vm380, %v1922, 0
      %v1959 = vsel %vm380, %v1923, 0
      %v1962 = vsel %vm380, %v1924, 0
      %v1965 = vsel %vm380, %v1925, 0
      %v1968 = vsel %vm380, %v1926, 0
      %v1971 = vsel %vm380, %v1927, 0
      %v1974 = vsel %vm380, %v1928, 0
      %v1977 = vsel %vm380, %v1929, 0
      %v1980 = vsel %vm380, %v1930, 0
      %v1983 = vsel %vm380, %v1931, 0
      %v1986 = vsel %vm380, %v1932, 0
      %v1989 = vsel %vm380, %v1933, 0
      %v1992 = vsel %vm380, %v1934, 0
      %v1995 = vsel %vm380, %v1935, 0
      %v1998 = vsel %vm380, %v1936, 0
      %v2001 = vsel %vm380, %v1937, 0
      %v2004 = vsel %vm380, %v1938, 0
      %v2007 = vsel %vm380, %v1939, 0
      %v2010 = vsel %vm380, %v1940, 0
      %v2013 = vsel %vm380, %v1941, 0
      %v2016 = vsel %vm380, %v1942, 0
      %v2019 = vsel %vm380, %v1943, 0
      %v2022 = vsel %vm380, %v1944, 0
      %v2025 = vsel %vm380, %v1945, 0
      %v2028 = vsel %vm380, %v1946, 0
      %v2031 = vsel %vm380, %v1947, 0
      %v2034 = vsel %vm380, %v1948, 0
      %v2037 = vsel %vm380, %v1949, 0
      %v2040 = vsel %vm380, %v1950, 0
      %v2043 = vsel %vm380, %v1951, 0
      %v2046 = vsel %vm380, %v1952, 0
      %v2049 = vsel %vm380, %v1953, 0
      %v2052 = vsel %vm980, %v1954, 0
      %2054 = vmatprep.subr.mxu0 0.0
      %2055 = vmatpush1.msra.mxu0 %v2052
      %2056 = vmatprep.subr.mxu0 0.0
      %2057 = vmatpush1.msra.mxu0 0.0
      %2058 = vmatprep.subr.mxu0 0.0
      %2059 = vmatpush1.msra.mxu0 0.0
      %2060 = vmatprep.subr.mxu0 0.0
      %2061 = vmatpush1.msra.mxu0 0.0
      %2062 = vmatprep.subr.mxu0 0.0
      %2063 = vmatpush1.msra.mxu0 0.0
      %2064 = vmatprep.subr.mxu0 0.0
      %2065 = vmatpush1.msra.mxu0 0.0
      %2066 = vmatprep.subr.mxu0 0.0
      %2067 = vmatpush1.msra.mxu0 0.0
      %2068 = vmatprep.subr.mxu0 0.0
      %2069 = vmatpush1.msra.mxu0 0.0
      %2070 = vmatprep.subr.mxu0 0.0
      %2071 = vmatpush1.msra.mxu0 0.0
      %2072 = vmatprep.subr.mxu0 0.0
      %2073 = vmatpush1.msra.mxu0 0.0
      %2074 = vmatprep.subr.mxu0 0.0
      %2075 = vmatpush1.msra.mxu0 0.0
      %2076 = vmatprep.subr.mxu0 0.0
      %2077 = vmatpush1.msra.mxu0 0.0
      %2078 = vmatprep.subr.mxu0 0.0
      %2079 = vmatpush1.msra.mxu0 0.0
      %2080 = vmatprep.subr.mxu0 0.0
      %2081 = vmatpush1.msra.mxu0 0.0
      %2082 = vmatprep.subr.mxu0 0.0
      %2083 = vmatpush1.msra.mxu0 0.0
      %2084 = vmatprep.subr.mxu0 0.0
      %2085 = vmatpush1.msra.mxu0 0.0
      %2086 = vmatprep.subr.mxu0 0.0
      %2087 = vmatpush1.msra.mxu0 0.0
      %2088 = vmatprep.subr.mxu0 0.0
      %2089 = vmatpush1.msra.mxu0 0.0
      %2090 = vmatprep.subr.mxu0 0.0
      %2091 = vmatpush1.msra.mxu0 0.0
      %2092 = vmatprep.subr.mxu0 0.0
      %2093 = vmatpush1.msra.mxu0 0.0
      %2094 = vmatprep.subr.mxu0 0.0
      %2095 = vmatpush1.msra.mxu0 0.0
      %2096 = vmatprep.subr.mxu0 0.0
      %2097 = vmatpush1.msra.mxu0 0.0
      %2098 = vmatprep.subr.mxu0 0.0
      %2099 = vmatpush1.msra.mxu0 0.0
      %2100 = vmatprep.subr.mxu0 0.0
      %2101 = vmatpush1.msra.mxu0 0.0
      %2102 = vmatprep.subr.mxu0 0.0
      %2103 = vmatpush1.msra.mxu0 0.0
      %2104 = vmatprep.subr.mxu0 0.0
      %2105 = vmatpush1.msra.mxu0 0.0
      %2106 = vmatprep.subr.mxu0 0.0
      %2107 = vmatpush1.msra.mxu0 0.0
      %2108 = vmatprep.subr.mxu0 0.0
      %2109 = vmatpush1.msra.mxu0 0.0
      %2110 = vmatprep.subr.mxu0 0.0
      %2111 = vmatpush1.msra.mxu0 0.0
      %2112 = vmatprep.subr.mxu0 0.0
      %2113 = vmatpush1.msra.mxu0 0.0
      %2114 = vmatprep.subr.mxu0 0.0
      %2115 = vmatpush1.msra.mxu0 0.0
      %2116 = vmatprep.subr.mxu0 0.0
      %2117 = vmatpush1.msra.mxu0 0.0
      %2118 = vmatprep.mubr.f32.mxu0 0.0
      %2119 = vmatmul.mubr.f32.gmra.mrb[0].mxu0 %v1956
      %v2120 = vpop.f32.mrb[0].mxu0
      %v2121 = vadd.f32 0.0, %v2120
      %v2122 = vpop.f32.mrb[0].mxu0
      %2123 = vmatprep.mubr.f32.mxu0 0.0
      %2124 = vmatmul.mubr.f32.gmra.mrb[0].mxu0 %v1959
      %v2125 = vpop.f32.mrb[0].mxu0
      %v2126 = vadd.f32 0.0, %v2125
      %v2127 = vpop.f32.mrb[0].mxu0
      %2128 = vmatprep.mubr.f32.mxu0 0.0
      %2129 = vmatmul.mubr.f32.gmra.mrb[0].mxu0 %v1962
      %v2130 = vpop.f32.mrb[0].mxu0
      %v2131 = vadd.f32 0.0, %v2130
      %v2132 = vpop.f32.mrb[0].mxu0
      %2133 = vmatprep.mubr.f32.mxu0 0.0
      %2134 = vmatmul.mubr.f32.gmra.mrb[0].mxu0 %v1965
      %v2135 = vpop.f32.mrb[0].mxu0
      %v2136 = vadd.f32 0.0, %v2135
      %v2137 = vpop.f32.mrb[0].mxu0
      %2138 = vmatprep.mubr.f32.mxu0 0.0
      %2139 = vmatmul.mubr.f32.gmra.mrb[0].mxu0 %v1968
      %v2140 = vpop.f32.mrb[0].mxu0
      %v2141 = vadd.f32 0.0, %v2140
      %v2142 = vpop.f32.mrb[0].mxu0
      %2143 = vmatprep.mubr.f32.mxu0 0.0
      %2144 = vmatmul.mubr.f32.gmra.mrb[0].mxu0 %v1971
      %v2145 = vpop.f32.mrb[0].mxu0
      %v2146 = vadd.f32 0.0, %v2145
      %v2147 = vpop.f32.mrb[0].mxu0
      %2148 = vmatprep.mubr.f32.mxu0 0.0
      %2149 = vmatmul.mubr.f32.gmra.mrb[0].mxu0 %v1974
      %v2150 = vpop.f32.mrb[0].mxu0
      %v2151 = vadd.f32 0.0, %v2150
      %v2152 = vpop.f32.mrb[0].mxu0
      %2153 = vmatprep.mubr.f32.mxu0 0.0
      %2154 = vmatmul.mubr.f32.gmra.mrb[0].mxu0 %v1977
      %v2155 = vpop.f32.mrb[0].mxu0
      %v2156 = vadd.f32 0.0, %v2155
      %v2157 = vpop.f32.mrb[0].mxu0
      %2158 = vmatprep.mubr.f32.mxu0 0.0
      %2159 = vmatmul.mubr.f32.gmra.mrb[0].mxu0 %v1980
      %v2160 = vpop.f32.mrb[0].mxu0
      %v2161 = vadd.f32 0.0, %v2160
      %v2162 = vpop.f32.mrb[0].mxu0
      %2163 = vmatprep.mubr.f32.mxu0 0.0
      %2164 = vmatmul.mubr.f32.gmra.mrb[0].mxu0 %v1983
      %v2165 = vpop.f32.mrb[0].mxu0
      %v2166 = vadd.f32 0.0, %v2165
      %v2167 = vpop.f32.mrb[0].mxu0
      %2168 = vmatprep.mubr.f32.mxu0 0.0
      %2169 = vmatmul.mubr.f32.gmra.mrb[0].mxu0 %v1986
      %v2170 = vpop.f32.mrb[0].mxu0
      %v2171 = vadd.f32 0.0, %v2170
      %v2172 = vpop.f32.mrb[0].mxu0
      %2173 = vmatprep.mubr.f32.mxu0 0.0
      %2174 = vmatmul.mubr.f32.gmra.mrb[0].mxu0 %v1989
      %v2175 = vpop.f32.mrb[0].mxu0
      %v2176 = vadd.f32 0.0, %v2175
      %v2177 = vpop.f32.mrb[0].mxu0
      %2178 = vmatprep.mubr.f32.mxu0 0.0
      %2179 = vmatmul.mubr.f32.gmra.mrb[0].mxu0 %v1992
      %v2180 = vpop.f32.mrb[0].mxu0
      %v2181 = vadd.f32 0.0, %v2180
      %v2182 = vpop.f32.mrb[0].mxu0
      %2183 = vmatprep.mubr.f32.mxu0 0.0
      %2184 = vmatmul.mubr.f32.gmra.mrb[0].mxu0 %v1995
      %v2185 = vpop.f32.mrb[0].mxu0
      %v2186 = vadd.f32 0.0, %v2185
      %v2187 = vpop.f32.mrb[0].mxu0
      %2188 = vmatprep.mubr.f32.mxu0 0.0
      %2189 = vmatmul.mubr.f32.gmra.mrb[0].mxu0 %v1998
      %v2190 = vpop.f32.mrb[0].mxu0
      %v2191 = vadd.f32 0.0, %v2190
      %v2192 = vpop.f32.mrb[0].mxu0
      %2193 = vmatprep.mubr.f32.mxu0 0.0
      %2194 = vmatmul.mubr.f32.gmra.mrb[0].mxu0 %v2001
      %v2195 = vpop.f32.mrb[0].mxu0
      %v2196 = vadd.f32 0.0, %v2195
      %v2197 = vpop.f32.mrb[0].mxu0
      %2198 = vmatprep.mubr.f32.mxu0 0.0
      %2199 = vmatmul.mubr.f32.gmra.mrb[0].mxu0 %v2004
      %v2200 = vpop.f32.mrb[0].mxu0
      %v2201 = vadd.f32 0.0, %v2200
      %v2202 = vpop.f32.mrb[0].mxu0
      %2203 = vmatprep.mubr.f32.mxu0 0.0
      %2204 = vmatmul.mubr.f32.gmra.mrb[0].mxu0 %v2007
      %v2205 = vpop.f32.mrb[0].mxu0
      %v2206 = vadd.f32 0.0, %v2205
      %v2207 = vpop.f32.mrb[0].mxu0
      %2208 = vmatprep.mubr.f32.mxu0 0.0
      %2209 = vmatmul.mubr.f32.gmra.mrb[0].mxu0 %v2010
      %v2210 = vpop.f32.mrb[0].mxu0
      %v2211 = vadd.f32 0.0, %v2210
      %v2212 = vpop.f32.mrb[0].mxu0
      %2213 = vmatprep.mubr.f32.mxu0 0.0
      %2214 = vmatmul.mubr.f32.gmra.mrb[0].mxu0 %v2013
      %v2215 = vpop.f32.mrb[0].mxu0
      %v2216 = vadd.f32 0.0, %v2215
      %v2217 = vpop.f32.mrb[0].mxu0
      %2218 = vmatprep.mubr.f32.mxu0 0.0
      %2219 = vmatmul.mubr.f32.gmra.mrb[0].mxu0 %v2016
      %v2220 = vpop.f32.mrb[0].mxu0
      %v2221 = vadd.f32 0.0, %v2220
      %v2222 = vpop.f32.mrb[0].mxu0
      %2223 = vmatprep.mubr.f32.mxu0 0.0
      %2224 = vmatmul.mubr.f32.gmra.mrb[0].mxu0 %v2019
      %v2225 = vpop.f32.mrb[0].mxu0
      %v2226 = vadd.f32 0.0, %v2225
      %v2227 = vpop.f32.mrb[0].mxu0
      %2228 = vmatprep.mubr.f32.mxu0 0.0
      %2229 = vmatmul.mubr.f32.gmra.mrb[0].mxu0 %v2022
      %v2230 = vpop.f32.mrb[0].mxu0
      %v2231 = vadd.f32 0.0, %v2230
      %v2232 = vpop.f32.mrb[0].mxu0
      %2233 = vmatprep.mubr.f32.mxu0 0.0
      %2234 = vmatmul.mubr.f32.gmra.mrb[0].mxu0 %v2025
      %v2235 = vpop.f32.mrb[0].mxu0
      %v2236 = vadd.f32 0.0, %v2235
      %v2237 = vpop.f32.mrb[0].mxu0
      %2238 = vmatprep.mubr.f32.mxu0 0.0
      %2239 = vmatmul.mubr.f32.gmra.mrb[0].mxu0 %v2028
      %v2240 = vpop.f32.mrb[0].mxu0
      %v2241 = vadd.f32 0.0, %v2240
      %v2242 = vpop.f32.mrb[0].mxu0
      %2243 = vmatprep.mubr.f32.mxu0 0.0
      %2244 = vmatmul.mubr.f32.gmra.mrb[0].mxu0 %v2031
      %v2245 = vpop.f32.mrb[0].mxu0
      %v2246 = vadd.f32 0.0, %v2245
      %v2247 = vpop.f32.mrb[0].mxu0
      %2248 = vmatprep.mubr.f32.mxu0 0.0
      %2249 = vmatmul.mubr.f32.gmra.mrb[0].mxu0 %v2034
      %v2250 = vpop.f32.mrb[0].mxu0
      %v2251 = vadd.f32 0.0, %v2250
      %v2252 = vpop.f32.mrb[0].mxu0
      %2253 = vmatprep.mubr.f32.mxu0 0.0
      %2254 = vmatmul.mubr.f32.gmra.mrb[0].mxu0 %v2037
      %v2255 = vpop.f32.mrb[0].mxu0
      %v2256 = vadd.f32 0.0, %v2255
      %v2257 = vpop.f32.mrb[0].mxu0
      %2258 = vmatprep.mubr.f32.mxu0 0.0
      %2259 = vmatmul.mubr.f32.gmra.mrb[0].mxu0 %v2040
      %v2260 = vpop.f32.mrb[0].mxu0
      %v2261 = vadd.f32 0.0, %v2260
      %v2262 = vpop.f32.mrb[0].mxu0
      %2263 = vmatprep.mubr.f32.mxu0 0.0
      %2264 = vmatmul.mubr.f32.gmra.mrb[0].mxu0 %v2043
      %v2265 = vpop.f32.mrb[0].mxu0
      %v2266 = vadd.f32 0.0, %v2265
      %v2267 = vpop.f32.mrb[0].mxu0
      %2268 = vmatprep.mubr.f32.mxu0 0.0
      %2269 = vmatmul.mubr.f32.gmra.mrb[0].mxu0 %v2046
      %v2270 = vpop.f32.mrb[0].mxu0
      %v2271 = vadd.f32 0.0, %v2270
      %v2272 = vpop.f32.mrb[0].mxu0
      %2273 = vmatprep.mubr.f32.mxu0 0.0
      %2274 = vmatmul.mubr.f32.gmra.mrb[0].mxu0 %v2049
      %v2275 = vpop.f32.mrb[0].mxu0
      %v2276 = vadd.f32 0.0, %v2275
      %v2277 = vpop.f32.mrb[0].mxu0
      %2278 = vdwg.mxu0
      %v2279 = vadd.f32 %v1890, %v2121
      %v2280 = vadd.f32 %v1891, %v2126
      %v2281 = vadd.f32 %v1892, %v2131
      %v2282 = vadd.f32 %v1893, %v2136
      %v2283 = vadd.f32 %v1894, %v2141
      %v2284 = vadd.f32 %v1895, %v2146
      %v2285 = vadd.f32 %v1896, %v2151
      %v2286 = vadd.f32 %v1897, %v2156
      %v2287 = vadd.f32 %v1898, %v2161
      %v2288 = vadd.f32 %v1899, %v2166
      %v2289 = vadd.f32 %v1900, %v2171
      %v2290 = vadd.f32 %v1901, %v2176
      %v2291 = vadd.f32 %v1902, %v2181
      %v2292 = vadd.f32 %v1903, %v2186
      %v2293 = vadd.f32 %v1904, %v2191
      %v2294 = vadd.f32 %v1905, %v2196
      %v2295 = vadd.f32 %v1906, %v2201
      %v2296 = vadd.f32 %v1907, %v2206
      %v2297 = vadd.f32 %v1908, %v2211
      %v2298 = vadd.f32 %v1909, %v2216
      %v2299 = vadd.f32 %v1910, %v2221
      %v2300 = vadd.f32 %v1911, %v2226
      %v2301 = vadd.f32 %v1912, %v2231
      %v2302 = vadd.f32 %v1913, %v2236
      %v2303 = vadd.f32 %v1914, %v2241
      %v2304 = vadd.f32 %v1915, %v2246
      %v2305 = vadd.f32 %v1916, %v2251
      %v2306 = vadd.f32 %v1917, %v2256
      %v2307 = vadd.f32 %v1918, %v2261
      %v2308 = vadd.f32 %v1919, %v2266
      %v2309 = vadd.f32 %v1920, %v2271
      %v2310 = vadd.f32 %v1921, %v2276
      %v2311 = vld [vmem:[%s390 + $0x8] sm:$0xff]
      %v2312 = vld [vmem:[%s390 + $0x10] sm:$0xff]
      %v2313 = vld [vmem:[%s390 + $0x28] sm:$0xff]
      %v2314 = vld [vmem:[%s390 + $0x30] sm:$0xff]
      %v2315 = vld [vmem:[%s390 + $0x48] sm:$0xff]
      %v2316 = vld [vmem:[%s390 + $0x50] sm:$0xff]
      %v2317 = vld [vmem:[%s390 + $0x68] sm:$0xff]
      %v2318 = vld [vmem:[%s390 + $0x70] sm:$0xff]
      %v2319 = vld [vmem:[%s390 + $0x88] sm:$0xff]
      %v2320 = vld [vmem:[%s390 + $0x90] sm:$0xff]
      %v2321 = vld [vmem:[%s390 + $0xa8] sm:$0xff]
      %v2322 = vld [vmem:[%s390 + $0xb0] sm:$0xff]
      %v2323 = vld [vmem:[%s390 + $0xc8] sm:$0xff]
      %v2324 = vld [vmem:[%s390 + $0xd0] sm:$0xff]
      %v2325 = vld [vmem:[%s390 + $0xe8] sm:$0xff]
      %v2326 = vld [vmem:[%s390 + $0xf0] sm:$0xff]
      %v2327 = vld [vmem:[%s390 + $0x108] sm:$0xff]
      %v2328 = vld [vmem:[%s390 + $0x110] sm:$0xff]
      %v2329 = vld [vmem:[%s390 + $0x128] sm:$0xff]
      %v2330 = vld [vmem:[%s390 + $0x130] sm:$0xff]
      %v2331 = vld [vmem:[%s390 + $0x148] sm:$0xff]
      %v2332 = vld [vmem:[%s390 + $0x150] sm:$0xff]
      %v2333 = vld [vmem:[%s390 + $0x168] sm:$0xff]
      %v2334 = vld [vmem:[%s390 + $0x170] sm:$0xff]
      %v2335 = vld [vmem:[%s390 + $0x188] sm:$0xff]
      %v2336 = vld [vmem:[%s390 + $0x190] sm:$0xff]
      %v2337 = vld [vmem:[%s390 + $0x1a8] sm:$0xff]
      %v2338 = vld [vmem:[%s390 + $0x1b0] sm:$0xff]
      %v2339 = vld [vmem:[%s390 + $0x1c8] sm:$0xff]
      %v2340 = vld [vmem:[%s390 + $0x1d0] sm:$0xff]
      %v2341 = vld [vmem:[%s390 + $0x1e8] sm:$0xff]
      %v2342 = vld [vmem:[%s390 + $0x1f0] sm:$0xff]
      %v2343 = vld [vmem:[%s3 + $0x10] sm:$0xf]
      %v2345 = vsel %vm380, %v2311, 0
      %v2348 = vsel %vm380, %v2312, 0
      %v2351 = vsel %vm380, %v2313, 0
      %v2354 = vsel %vm380, %v2314, 0
      %v2357 = vsel %vm380, %v2315, 0
      %v2360 = vsel %vm380, %v2316, 0
      %v2363 = vsel %vm380, %v2317, 0
      %v2366 = vsel %vm380, %v2318, 0
      %v2369 = vsel %vm380, %v2319, 0
      %v2372 = vsel %vm380, %v2320, 0
      %v2375 = vsel %vm380, %v2321, 0
      %v2378 = vsel %vm380, %v2322, 0
      %v2381 = vsel %vm380, %v2323, 0
      %v2384 = vsel %vm380, %v2324, 0
      %v2387 = vsel %vm380, %v2325, 0
      %v2390 = vsel %vm380, %v2326, 0
      %v2393 = vsel %vm380, %v2327, 0
      %v2396 = vsel %vm380, %v2328, 0
      %v2399 = vsel %vm380, %v2329, 0
      %v2402 = vsel %vm380, %v2330, 0
      %v2405 = vsel %vm380, %v2331, 0
      %v2408 = vsel %vm380, %v2332, 0
      %v2411 = vsel %vm380, %v2333, 0
      %v2414 = vsel %vm380, %v2334, 0
      %v2417 = vsel %vm380, %v2335, 0
      %v2420 = vsel %vm380, %v2336, 0
      %v2423 = vsel %vm380, %v2337, 0
      %v2426 = vsel %vm380, %v2338, 0
      %v2429 = vsel %vm380, %v2339, 0
      %v2432 = vsel %vm380, %v2340, 0
      %v2435 = vsel %vm380, %v2341, 0
      %v2438 = vsel %vm380, %v2342, 0
      %v2441 = vsel %vm980, %v2343, 0
      %2443 = vmatprep.subr.mxu0 0.0
      %2444 = vmatpush1.msra.mxu0 %v2441
      %2445 = vmatprep.subr.mxu0 0.0
      %2446 = vmatpush1.msra.mxu0 0.0
      %2447 = vmatprep.subr.mxu0 0.0
      %2448 = vmatpush1.msra.mxu0 0.0
      %2449 = vmatprep.subr.mxu0 0.0
      %2450 = vmatpush1.msra.mxu0 0.0
      %2451 = vmatprep.subr.mxu0 0.0
      %2452 = vmatpush1.msra.mxu0 0.0
      %2453 = vmatprep.subr.mxu0 0.0
      %2454 = vmatpush1.msra.mxu0 0.0
      %2455 = vmatprep.subr.mxu0 0.0
      %2456 = vmatpush1.msra.mxu0 0.0
      %2457 = vmatprep.subr.mxu0 0.0
      %2458 = vmatpush1.msra.mxu0 0.0
      %2459 = vmatprep.subr.mxu0 0.0
      %2460 = vmatpush1.msra.mxu0 0.0
      %2461 = vmatprep.subr.mxu0 0.0
      %2462 = vmatpush1.msra.mxu0 0.0
      %2463 = vmatprep.subr.mxu0 0.0
      %2464 = vmatpush1.msra.mxu0 0.0
      %2465 = vmatprep.subr.mxu0 0.0
      %2466 = vmatpush1.msra.mxu0 0.0
      %2467 = vmatprep.subr.mxu0 0.0
      %2468 = vmatpush1.msra.mxu0 0.0
      %2469 = vmatprep.subr.mxu0 0.0
      %2470 = vmatpush1.msra.mxu0 0.0
      %2471 = vmatprep.subr.mxu0 0.0
      %2472 = vmatpush1.msra.mxu0 0.0
      %2473 = vmatprep.subr.mxu0 0.0
      %2474 = vmatpush1.msra.mxu0 0.0
      %2475 = vmatprep.subr.mxu0 0.0
      %2476 = vmatpush1.msra.mxu0 0.0
      %2477 = vmatprep.subr.mxu0 0.0
      %2478 = vmatpush1.msra.mxu0 0.0
      %2479 = vmatprep.subr.mxu0 0.0
      %2480 = vmatpush1.msra.mxu0 0.0
      %2481 = vmatprep.subr.mxu0 0.0
      %2482 = vmatpush1.msra.mxu0 0.0
      %2483 = vmatprep.subr.mxu0 0.0
      %2484 = vmatpush1.msra.mxu0 0.0
      %2485 = vmatprep.subr.mxu0 0.0
      %2486 = vmatpush1.msra.mxu0 0.0
      %2487 = vmatprep.subr.mxu0 0.0
      %2488 = vmatpush1.msra.mxu0 0.0
      %2489 = vmatprep.subr.mxu0 0.0
      %2490 = vmatpush1.msra.mxu0 0.0
      %2491 = vmatprep.subr.mxu0 0.0
      %2492 = vmatpush1.msra.mxu0 0.0
      %2493 = vmatprep.subr.mxu0 0.0
      %2494 = vmatpush1.msra.mxu0 0.0
      %2495 = vmatprep.subr.mxu0 0.0
      %2496 = vmatpush1.msra.mxu0 0.0
      %2497 = vmatprep.subr.mxu0 0.0
      %2498 = vmatpush1.msra.mxu0 0.0
      %2499 = vmatprep.subr.mxu0 0.0
      %2500 = vmatpush1.msra.mxu0 0.0
      %2501 = vmatprep.subr.mxu0 0.0
      %2502 = vmatpush1.msra.mxu0 0.0
      %2503 = vmatprep.subr.mxu0 0.0
      %2504 = vmatpush1.msra.mxu0 0.0
      %2505 = vmatprep.subr.mxu0 0.0
      %2506 = vmatpush1.msra.mxu0 0.0
      %2507 = vmatprep.mubr.f32.mxu0 0.0
      %2508 = vmatmul.mubr.f32.gmra.mrb[0].mxu0 %v2345
      %v2509 = vpop.f32.mrb[0].mxu0
      %v2510 = vadd.f32 0.0, %v2509
      %v2511 = vpop.f32.mrb[0].mxu0
      %2512 = vmatprep.mubr.f32.mxu0 0.0
      %2513 = vmatmul.mubr.f32.gmra.mrb[0].mxu0 %v2348
      %v2514 = vpop.f32.mrb[0].mxu0
      %v2515 = vadd.f32 0.0, %v2514
      %v2516 = vpop.f32.mrb[0].mxu0
      %2517 = vmatprep.mubr.f32.mxu0 0.0
      %2518 = vmatmul.mubr.f32.gmra.mrb[0].mxu0 %v2351
      %v2519 = vpop.f32.mrb[0].mxu0
      %v2520 = vadd.f32 0.0, %v2519
      %v2521 = vpop.f32.mrb[0].mxu0
      %2522 = vmatprep.mubr.f32.mxu0 0.0
      %2523 = vmatmul.mubr.f32.gmra.mrb[0].mxu0 %v2354
      %v2524 = vpop.f32.mrb[0].mxu0
      %v2525 = vadd.f32 0.0, %v2524
      %v2526 = vpop.f32.mrb[0].mxu0
      %2527 = vmatprep.mubr.f32.mxu0 0.0
      %2528 = vmatmul.mubr.f32.gmra.mrb[0].mxu0 %v2357
      %v2529 = vpop.f32.mrb[0].mxu0
      %v2530 = vadd.f32 0.0, %v2529
      %v2531 = vpop.f32.mrb[0].mxu0
      %2532 = vmatprep.mubr.f32.mxu0 0.0
      %2533 = vmatmul.mubr.f32.gmra.mrb[0].mxu0 %v2360
      %v2534 = vpop.f32.mrb[0].mxu0
      %v2535 = vadd.f32 0.0, %v2534
      %v2536 = vpop.f32.mrb[0].mxu0
      %2537 = vmatprep.mubr.f32.mxu0 0.0
      %2538 = vmatmul.mubr.f32.gmra.mrb[0].mxu0 %v2363
      %v2539 = vpop.f32.mrb[0].mxu0
      %v2540 = vadd.f32 0.0, %v2539
      %v2541 = vpop.f32.mrb[0].mxu0
      %2542 = vmatprep.mubr.f32.mxu0 0.0
      %2543 = vmatmul.mubr.f32.gmra.mrb[0].mxu0 %v2366
      %v2544 = vpop.f32.mrb[0].mxu0
      %v2545 = vadd.f32 0.0, %v2544
      %v2546 = vpop.f32.mrb[0].mxu0
      %2547 = vmatprep.mubr.f32.mxu0 0.0
      %2548 = vmatmul.mubr.f32.gmra.mrb[0].mxu0 %v2369
      %v2549 = vpop.f32.mrb[0].mxu0
      %v2550 = vadd.f32 0.0, %v2549
      %v2551 = vpop.f32.mrb[0].mxu0
      %2552 = vmatprep.mubr.f32.mxu0 0.0
      %2553 = vmatmul.mubr.f32.gmra.mrb[0].mxu0 %v2372
      %v2554 = vpop.f32.mrb[0].mxu0
      %v2555 = vadd.f32 0.0, %v2554
      %v2556 = vpop.f32.mrb[0].mxu0
      %2557 = vmatprep.mubr.f32.mxu0 0.0
      %2558 = vmatmul.mubr.f32.gmra.mrb[0].mxu0 %v2375
      %v2559 = vpop.f32.mrb[0].mxu0
      %v2560 = vadd.f32 0.0, %v2559
      %v2561 = vpop.f32.mrb[0].mxu0
      %2562 = vmatprep.mubr.f32.mxu0 0.0
      %2563 = vmatmul.mubr.f32.gmra.mrb[0].mxu0 %v2378
      %v2564 = vpop.f32.mrb[0].mxu0
      %v2565 = vadd.f32 0.0, %v2564
      %v2566 = vpop.f32.mrb[0].mxu0
      %2567 = vmatprep.mubr.f32.mxu0 0.0
      %2568 = vmatmul.mubr.f32.gmra.mrb[0].mxu0 %v2381
      %v2569 = vpop.f32.mrb[0].mxu0
      %v2570 = vadd.f32 0.0, %v2569
      %v2571 = vpop.f32.mrb[0].mxu0
      %2572 = vmatprep.mubr.f32.mxu0 0.0
      %2573 = vmatmul.mubr.f32.gmra.mrb[0].mxu0 %v2384
      %v2574 = vpop.f32.mrb[0].mxu0
      %v2575 = vadd.f32 0.0, %v2574
      %v2576 = vpop.f32.mrb[0].mxu0
      %2577 = vmatprep.mubr.f32.mxu0 0.0
      %2578 = vmatmul.mubr.f32.gmra.mrb[0].mxu0 %v2387
      %v2579 = vpop.f32.mrb[0].mxu0
      %v2580 = vadd.f32 0.0, %v2579
      %v2581 = vpop.f32.mrb[0].mxu0
      %2582 = vmatprep.mubr.f32.mxu0 0.0
      %2583 = vmatmul.mubr.f32.gmra.mrb[0].mxu0 %v2390
      %v2584 = vpop.f32.mrb[0].mxu0
      %v2585 = vadd.f32 0.0, %v2584
      %v2586 = vpop.f32.mrb[0].mxu0
      %2587 = vmatprep.mubr.f32.mxu0 0.0
      %2588 = vmatmul.mubr.f32.gmra.mrb[0].mxu0 %v2393
      %v2589 = vpop.f32.mrb[0].mxu0
      %v2590 = vadd.f32 0.0, %v2589
      %v2591 = vpop.f32.mrb[0].mxu0
      %2592 = vmatprep.mubr.f32.mxu0 0.0
      %2593 = vmatmul.mubr.f32.gmra.mrb[0].mxu0 %v2396
      %v2594 = vpop.f32.mrb[0].mxu0
      %v2595 = vadd.f32 0.0, %v2594
      %v2596 = vpop.f32.mrb[0].mxu0
      %2597 = vmatprep.mubr.f32.mxu0 0.0
      %2598 = vmatmul.mubr.f32.gmra.mrb[0].mxu0 %v2399
      %v2599 = vpop.f32.mrb[0].mxu0
      %v2600 = vadd.f32 0.0, %v2599
      %v2601 = vpop.f32.mrb[0].mxu0
      %2602 = vmatprep.mubr.f32.mxu0 0.0
      %2603 = vmatmul.mubr.f32.gmra.mrb[0].mxu0 %v2402
      %v2604 = vpop.f32.mrb[0].mxu0
      %v2605 = vadd.f32 0.0, %v2604
      %v2606 = vpop.f32.mrb[0].mxu0
      %2607 = vmatprep.mubr.f32.mxu0 0.0
      %2608 = vmatmul.mubr.f32.gmra.mrb[0].mxu0 %v2405
      %v2609 = vpop.f32.mrb[0].mxu0
      %v2610 = vadd.f32 0.0, %v2609
      %v2611 = vpop.f32.mrb[0].mxu0
      %2612 = vmatprep.mubr.f32.mxu0 0.0
      %2613 = vmatmul.mubr.f32.gmra.mrb[0].mxu0 %v2408
      %v2614 = vpop.f32.mrb[0].mxu0
      %v2615 = vadd.f32 0.0, %v2614
      %v2616 = vpop.f32.mrb[0].mxu0
      %2617 = vmatprep.mubr.f32.mxu0 0.0
      %2618 = vmatmul.mubr.f32.gmra.mrb[0].mxu0 %v2411
      %v2619 = vpop.f32.mrb[0].mxu0
      %v2620 = vadd.f32 0.0, %v2619
      %v2621 = vpop.f32.mrb[0].mxu0
      %2622 = vmatprep.mubr.f32.mxu0 0.0
      %2623 = vmatmul.mubr.f32.gmra.mrb[0].mxu0 %v2414
      %v2624 = vpop.f32.mrb[0].mxu0
      %v2625 = vadd.f32 0.0, %v2624
      %v2626 = vpop.f32.mrb[0].mxu0
      %2627 = vmatprep.mubr.f32.mxu0 0.0
      %2628 = vmatmul.mubr.f32.gmra.mrb[0].mxu0 %v2417
      %v2629 = vpop.f32.mrb[0].mxu0
      %v2630 = vadd.f32 0.0, %v2629
      %v2631 = vpop.f32.mrb[0].mxu0
      %2632 = vmatprep.mubr.f32.mxu0 0.0
      %2633 = vmatmul.mubr.f32.gmra.mrb[0].mxu0 %v2420
      %v2634 = vpop.f32.mrb[0].mxu0
      %v2635 = vadd.f32 0.0, %v2634
      %v2636 = vpop.f32.mrb[0].mxu0
      %2637 = vmatprep.mubr.f32.mxu0 0.0
      %2638 = vmatmul.mubr.f32.gmra.mrb[0].mxu0 %v2423
      %v2639 = vpop.f32.mrb[0].mxu0
      %v2640 = vadd.f32 0.0, %v2639
      %v2641 = vpop.f32.mrb[0].mxu0
      %2642 = vmatprep.mubr.f32.mxu0 0.0
      %2643 = vmatmul.mubr.f32.gmra.mrb[0].mxu0 %v2426
      %v2644 = vpop.f32.mrb[0].mxu0
      %v2645 = vadd.f32 0.0, %v2644
      %v2646 = vpop.f32.mrb[0].mxu0
      %2647 = vmatprep.mubr.f32.mxu0 0.0
      %2648 = vmatmul.mubr.f32.gmra.mrb[0].mxu0 %v2429
      %v2649 = vpop.f32.mrb[0].mxu0
      %v2650 = vadd.f32 0.0, %v2649
      %v2651 = vpop.f32.mrb[0].mxu0
      %2652 = vmatprep.mubr.f32.mxu0 0.0
      %2653 = vmatmul.mubr.f32.gmra.mrb[0].mxu0 %v2432
      %v2654 = vpop.f32.mrb[0].mxu0
      %v2655 = vadd.f32 0.0, %v2654
      %v2656 = vpop.f32.mrb[0].mxu0
      %2657 = vmatprep.mubr.f32.mxu0 0.0
      %2658 = vmatmul.mubr.f32.gmra.mrb[0].mxu0 %v2435
      %v2659 = vpop.f32.mrb[0].mxu0
      %v2660 = vadd.f32 0.0, %v2659
      %v2661 = vpop.f32.mrb[0].mxu0
      %2662 = vmatprep.mubr.f32.mxu0 0.0
      %2663 = vmatmul.mubr.f32.gmra.mrb[0].mxu0 %v2438
      %v2664 = vpop.f32.mrb[0].mxu0
      %v2665 = vadd.f32 0.0, %v2664
      %v2666 = vpop.f32.mrb[0].mxu0
      %2667 = vdwg.mxu0
      %v2668 = vadd.f32 %v2279, %v2510
      %v2669 = vadd.f32 %v2280, %v2515
      %v2670 = vadd.f32 %v2281, %v2520
      %v2671 = vadd.f32 %v2282, %v2525
      %v2672 = vadd.f32 %v2283, %v2530
      %v2673 = vadd.f32 %v2284, %v2535
      %v2674 = vadd.f32 %v2285, %v2540
      %v2675 = vadd.f32 %v2286, %v2545
      %v2676 = vadd.f32 %v2287, %v2550
      %v2677 = vadd.f32 %v2288, %v2555
      %v2678 = vadd.f32 %v2289, %v2560
      %v2679 = vadd.f32 %v2290, %v2565
      %v2680 = vadd.f32 %v2291, %v2570
      %v2681 = vadd.f32 %v2292, %v2575
      %v2682 = vadd.f32 %v2293, %v2580
      %v2683 = vadd.f32 %v2294, %v2585
      %v2684 = vadd.f32 %v2295, %v2590
      %v2685 = vadd.f32 %v2296, %v2595
      %v2686 = vadd.f32 %v2297, %v2600
      %v2687 = vadd.f32 %v2298, %v2605
      %v2688 = vadd.f32 %v2299, %v2610
      %v2689 = vadd.f32 %v2300, %v2615
      %v2690 = vadd.f32 %v2301, %v2620
      %v2691 = vadd.f32 %v2302, %v2625
      %v2692 = vadd.f32 %v2303, %v2630
      %v2693 = vadd.f32 %v2304, %v2635
      %v2694 = vadd.f32 %v2305, %v2640
      %v2695 = vadd.f32 %v2306, %v2645
      %v2696 = vadd.f32 %v2307, %v2650
      %v2697 = vadd.f32 %v2308, %v2655
      %v2698 = vadd.f32 %v2309, %v2660
      %v2699 = vadd.f32 %v2310, %v2665
      %v2700 = vld [vmem:[%s390 + $0x9] sm:$0xff]
      %v2701 = vld [vmem:[%s390 + $0x11] sm:$0xff]
      %v2702 = vld [vmem:[%s390 + $0x29] sm:$0xff]
      %v2703 = vld [vmem:[%s390 + $0x31] sm:$0xff]
      %v2704 = vld [vmem:[%s390 + $0x49] sm:$0xff]
      %v2705 = vld [vmem:[%s390 + $0x51] sm:$0xff]
      %v2706 = vld [vmem:[%s390 + $0x69] sm:$0xff]
      %v2707 = vld [vmem:[%s390 + $0x71] sm:$0xff]
      %v2708 = vld [vmem:[%s390 + $0x89] sm:$0xff]
      %v2709 = vld [vmem:[%s390 + $0x91] sm:$0xff]
      %v2710 = vld [vmem:[%s390 + $0xa9] sm:$0xff]
      %v2711 = vld [vmem:[%s390 + $0xb1] sm:$0xff]
      %v2712 = vld [vmem:[%s390 + $0xc9] sm:$0xff]
      %v2713 = vld [vmem:[%s390 + $0xd1] sm:$0xff]
      %v2714 = vld [vmem:[%s390 + $0xe9] sm:$0xff]
      %v2715 = vld [vmem:[%s390 + $0xf1] sm:$0xff]
      %v2716 = vld [vmem:[%s390 + $0x109] sm:$0xff]
      %v2717 = vld [vmem:[%s390 + $0x111] sm:$0xff]
      %v2718 = vld [vmem:[%s390 + $0x129] sm:$0xff]
      %v2719 = vld [vmem:[%s390 + $0x131] sm:$0xff]
      %v2720 = vld [vmem:[%s390 + $0x149] sm:$0xff]
      %v2721 = vld [vmem:[%s390 + $0x151] sm:$0xff]
      %v2722 = vld [vmem:[%s390 + $0x169] sm:$0xff]
      %v2723 = vld [vmem:[%s390 + $0x171] sm:$0xff]
      %v2724 = vld [vmem:[%s390 + $0x189] sm:$0xff]
      %v2725 = vld [vmem:[%s390 + $0x191] sm:$0xff]
      %v2726 = vld [vmem:[%s390 + $0x1a9] sm:$0xff]
      %v2727 = vld [vmem:[%s390 + $0x1b1] sm:$0xff]
      %v2728 = vld [vmem:[%s390 + $0x1c9] sm:$0xff]
      %v2729 = vld [vmem:[%s390 + $0x1d1] sm:$0xff]
      %v2730 = vld [vmem:[%s390 + $0x1e9] sm:$0xff]
      %v2731 = vld [vmem:[%s390 + $0x1f1] sm:$0xff]
      %v2732 = vld [vmem:[%s3 + $0x14] sm:$0xf]
      %v2734 = vsel %vm380, %v2700, 0
      %v2737 = vsel %vm380, %v2701, 0
      %v2740 = vsel %vm380, %v2702, 0
      %v2743 = vsel %vm380, %v2703, 0
      %v2746 = vsel %vm380, %v2704, 0
      %v2749 = vsel %vm380, %v2705, 0
      %v2752 = vsel %vm380, %v2706, 0
      %v2755 = vsel %vm380, %v2707, 0
      %v2758 = vsel %vm380, %v2708, 0
      %v2761 = vsel %vm380, %v2709, 0
      %v2764 = vsel %vm380, %v2710, 0
      %v2767 = vsel %vm380, %v2711, 0
      %v2770 = vsel %vm380, %v2712, 0
      %v2773 = vsel %vm380, %v2713, 0
      %v2776 = vsel %vm380, %v2714, 0
      %v2779 = vsel %vm380, %v2715, 0
      %v2782 = vsel %vm380, %v2716, 0
      %v2785 = vsel %vm380, %v2717, 0
      %v2788 = vsel %vm380, %v2718, 0
      %v2791 = vsel %vm380, %v2719, 0
      %v2794 = vsel %vm380, %v2720, 0
      %v2797 = vsel %vm380, %v2721, 0
      %v2800 = vsel %vm380, %v2722, 0
      %v2803 = vsel %vm380, %v2723, 0
      %v2806 = vsel %vm380, %v2724, 0
      %v2809 = vsel %vm380, %v2725, 0
      %v2812 = vsel %vm380, %v2726, 0
      %v2815 = vsel %vm380, %v2727, 0
      %v2818 = vsel %vm380, %v2728, 0
      %v2821 = vsel %vm380, %v2729, 0
      %v2824 = vsel %vm380, %v2730, 0
      %v2827 = vsel %vm380, %v2731, 0
      %v2830 = vsel %vm980, %v2732, 0
      %2832 = vmatprep.subr.mxu0 0.0
      %2833 = vmatpush1.msra.mxu0 %v2830
      %2834 = vmatprep.subr.mxu0 0.0
      %2835 = vmatpush1.msra.mxu0 0.0
      %2836 = vmatprep.subr.mxu0 0.0
      %2837 = vmatpush1.msra.mxu0 0.0
      %2838 = vmatprep.subr.mxu0 0.0
      %2839 = vmatpush1.msra.mxu0 0.0
      %2840 = vmatprep.subr.mxu0 0.0
      %2841 = vmatpush1.msra.mxu0 0.0
      %2842 = vmatprep.subr.mxu0 0.0
      %2843 = vmatpush1.msra.mxu0 0.0
      %2844 = vmatprep.subr.mxu0 0.0
      %2845 = vmatpush1.msra.mxu0 0.0
      %2846 = vmatprep.subr.mxu0 0.0
      %2847 = vmatpush1.msra.mxu0 0.0
      %2848 = vmatprep.subr.mxu0 0.0
      %2849 = vmatpush1.msra.mxu0 0.0
      %2850 = vmatprep.subr.mxu0 0.0
      %2851 = vmatpush1.msra.mxu0 0.0
      %2852 = vmatprep.subr.mxu0 0.0
      %2853 = vmatpush1.msra.mxu0 0.0
      %2854 = vmatprep.subr.mxu0 0.0
      %2855 = vmatpush1.msra.mxu0 0.0
      %2856 = vmatprep.subr.mxu0 0.0
      %2857 = vmatpush1.msra.mxu0 0.0
      %2858 = vmatprep.subr.mxu0 0.0
      %2859 = vmatpush1.msra.mxu0 0.0
      %2860 = vmatprep.subr.mxu0 0.0
      %2861 = vmatpush1.msra.mxu0 0.0
      %2862 = vmatprep.subr.mxu0 0.0
      %2863 = vmatpush1.msra.mxu0 0.0
      %2864 = vmatprep.subr.mxu0 0.0
      %2865 = vmatpush1.msra.mxu0 0.0
      %2866 = vmatprep.subr.mxu0 0.0
      %2867 = vmatpush1.msra.mxu0 0.0
      %2868 = vmatprep.subr.mxu0 0.0
      %2869 = vmatpush1.msra.mxu0 0.0
      %2870 = vmatprep.subr.mxu0 0.0
      %2871 = vmatpush1.msra.mxu0 0.0
      %2872 = vmatprep.subr.mxu0 0.0
      %2873 = vmatpush1.msra.mxu0 0.0
      %2874 = vmatprep.subr.mxu0 0.0
      %2875 = vmatpush1.msra.mxu0 0.0
      %2876 = vmatprep.subr.mxu0 0.0
      %2877 = vmatpush1.msra.mxu0 0.0
      %2878 = vmatprep.subr.mxu0 0.0
      %2879 = vmatpush1.msra.mxu0 0.0
      %2880 = vmatprep.subr.mxu0 0.0
      %2881 = vmatpush1.msra.mxu0 0.0
      %2882 = vmatprep.subr.mxu0 0.0
      %2883 = vmatpush1.msra.mxu0 0.0
      %2884 = vmatprep.subr.mxu0 0.0
      %2885 = vmatpush1.msra.mxu0 0.0
      %2886 = vmatprep.subr.mxu0 0.0
      %2887 = vmatpush1.msra.mxu0 0.0
      %2888 = vmatprep.subr.mxu0 0.0
      %2889 = vmatpush1.msra.mxu0 0.0
      %2890 = vmatprep.subr.mxu0 0.0
      %2891 = vmatpush1.msra.mxu0 0.0
      %2892 = vmatprep.subr.mxu0 0.0
      %2893 = vmatpush1.msra.mxu0 0.0
      %2894 = vmatprep.subr.mxu0 0.0
      %2895 = vmatpush1.msra.mxu0 0.0
      %2896 = vmatprep.mubr.f32.mxu0 0.0
      %2897 = vmatmul.mubr.f32.gmra.mrb[0].mxu0 %v2734
      %v2898 = vpop.f32.mrb[0].mxu0
      %v2899 = vadd.f32 0.0, %v2898
      %v2900 = vpop.f32.mrb[0].mxu0
      %2901 = vmatprep.mubr.f32.mxu0 0.0
      %2902 = vmatmul.mubr.f32.gmra.mrb[0].mxu0 %v2737
      %v2903 = vpop.f32.mrb[0].mxu0
      %v2904 = vadd.f32 0.0, %v2903
      %v2905 = vpop.f32.mrb[0].mxu0
      %2906 = vmatprep.mubr.f32.mxu0 0.0
      %2907 = vmatmul.mubr.f32.gmra.mrb[0].mxu0 %v2740
      %v2908 = vpop.f32.mrb[0].mxu0
      %v2909 = vadd.f32 0.0, %v2908
      %v2910 = vpop.f32.mrb[0].mxu0
      %2911 = vmatprep.mubr.f32.mxu0 0.0
      %2912 = vmatmul.mubr.f32.gmra.mrb[0].mxu0 %v2743
      %v2913 = vpop.f32.mrb[0].mxu0
      %v2914 = vadd.f32 0.0, %v2913
      %v2915 = vpop.f32.mrb[0].mxu0
      %2916 = vmatprep.mubr.f32.mxu0 0.0
      %2917 = vmatmul.mubr.f32.gmra.mrb[0].mxu0 %v2746
      %v2918 = vpop.f32.mrb[0].mxu0
      %v2919 = vadd.f32 0.0, %v2918
      %v2920 = vpop.f32.mrb[0].mxu0
      %2921 = vmatprep.mubr.f32.mxu0 0.0
      %2922 = vmatmul.mubr.f32.gmra.mrb[0].mxu0 %v2749
      %v2923 = vpop.f32.mrb[0].mxu0
      %v2924 = vadd.f32 0.0, %v2923
      %v2925 = vpop.f32.mrb[0].mxu0
      %2926 = vmatprep.mubr.f32.mxu0 0.0
      %2927 = vmatmul.mubr.f32.gmra.mrb[0].mxu0 %v2752
      %v2928 = vpop.f32.mrb[0].mxu0
      %v2929 = vadd.f32 0.0, %v2928
      %v2930 = vpop.f32.mrb[0].mxu0
      %2931 = vmatprep.mubr.f32.mxu0 0.0
      %2932 = vmatmul.mubr.f32.gmra.mrb[0].mxu0 %v2755
      %v2933 = vpop.f32.mrb[0].mxu0
      %v2934 = vadd.f32 0.0, %v2933
      %v2935 = vpop.f32.mrb[0].mxu0
      %2936 = vmatprep.mubr.f32.mxu0 0.0
      %2937 = vmatmul.mubr.f32.gmra.mrb[0].mxu0 %v2758
      %v2938 = vpop.f32.mrb[0].mxu0
      %v2939 = vadd.f32 0.0, %v2938
      %v2940 = vpop.f32.mrb[0].mxu0
      %2941 = vmatprep.mubr.f32.mxu0 0.0
      %2942 = vmatmul.mubr.f32.gmra.mrb[0].mxu0 %v2761
      %v2943 = vpop.f32.mrb[0].mxu0
      %v2944 = vadd.f32 0.0, %v2943
      %v2945 = vpop.f32.mrb[0].mxu0
      %2946 = vmatprep.mubr.f32.mxu0 0.0
      %2947 = vmatmul.mubr.f32.gmra.mrb[0].mxu0 %v2764
      %v2948 = vpop.f32.mrb[0].mxu0
      %v2949 = vadd.f32 0.0, %v2948
      %v2950 = vpop.f32.mrb[0].mxu0
      %2951 = vmatprep.mubr.f32.mxu0 0.0
      %2952 = vmatmul.mubr.f32.gmra.mrb[0].mxu0 %v2767
      %v2953 = vpop.f32.mrb[0].mxu0
      %v2954 = vadd.f32 0.0, %v2953
      %v2955 = vpop.f32.mrb[0].mxu0
      %2956 = vmatprep.mubr.f32.mxu0 0.0
      %2957 = vmatmul.mubr.f32.gmra.mrb[0].mxu0 %v2770
      %v2958 = vpop.f32.mrb[0].mxu0
      %v2959 = vadd.f32 0.0, %v2958
      %v2960 = vpop.f32.mrb[0].mxu0
      %2961 = vmatprep.mubr.f32.mxu0 0.0
      %2962 = vmatmul.mubr.f32.gmra.mrb[0].mxu0 %v2773
      %v2963 = vpop.f32.mrb[0].mxu0
      %v2964 = vadd.f32 0.0, %v2963
      %v2965 = vpop.f32.mrb[0].mxu0
      %2966 = vmatprep.mubr.f32.mxu0 0.0
      %2967 = vmatmul.mubr.f32.gmra.mrb[0].mxu0 %v2776
      %v2968 = vpop.f32.mrb[0].mxu0
      %v2969 = vadd.f32 0.0, %v2968
      %v2970 = vpop.f32.mrb[0].mxu0
      %2971 = vmatprep.mubr.f32.mxu0 0.0
      %2972 = vmatmul.mubr.f32.gmra.mrb[0].mxu0 %v2779
      %v2973 = vpop.f32.mrb[0].mxu0
      %v2974 = vadd.f32 0.0, %v2973
      %v2975 = vpop.f32.mrb[0].mxu0
      %2976 = vmatprep.mubr.f32.mxu0 0.0
      %2977 = vmatmul.mubr.f32.gmra.mrb[0].mxu0 %v2782
      %v2978 = vpop.f32.mrb[0].mxu0
      %v2979 = vadd.f32 0.0, %v2978
      %v2980 = vpop.f32.mrb[0].mxu0
      %2981 = vmatprep.mubr.f32.mxu0 0.0
      %2982 = vmatmul.mubr.f32.gmra.mrb[0].mxu0 %v2785
      %v2983 = vpop.f32.mrb[0].mxu0
      %v2984 = vadd.f32 0.0, %v2983
      %v2985 = vpop.f32.mrb[0].mxu0
      %2986 = vmatprep.mubr.f32.mxu0 0.0
      %2987 = vmatmul.mubr.f32.gmra.mrb[0].mxu0 %v2788
      %v2988 = vpop.f32.mrb[0].mxu0
      %v2989 = vadd.f32 0.0, %v2988
      %v2990 = vpop.f32.mrb[0].mxu0
      %2991 = vmatprep.mubr.f32.mxu0 0.0
      %2992 = vmatmul.mubr.f32.gmra.mrb[0].mxu0 %v2791
      %v2993 = vpop.f32.mrb[0].mxu0
      %v2994 = vadd.f32 0.0, %v2993
      %v2995 = vpop.f32.mrb[0].mxu0
      %2996 = vmatprep.mubr.f32.mxu0 0.0
      %2997 = vmatmul.mubr.f32.gmra.mrb[0].mxu0 %v2794
      %v2998 = vpop.f32.mrb[0].mxu0
      %v2999 = vadd.f32 0.0, %v2998
      %v3000 = vpop.f32.mrb[0].mxu0
      %3001 = vmatprep.mubr.f32.mxu0 0.0
      %3002 = vmatmul.mubr.f32.gmra.mrb[0].mxu0 %v2797
      %v3003 = vpop.f32.mrb[0].mxu0
      %v3004 = vadd.f32 0.0, %v3003
      %v3005 = vpop.f32.mrb[0].mxu0
      %3006 = vmatprep.mubr.f32.mxu0 0.0
      %3007 = vmatmul.mubr.f32.gmra.mrb[0].mxu0 %v2800
      %v3008 = vpop.f32.mrb[0].mxu0
      %v3009 = vadd.f32 0.0, %v3008
      %v3010 = vpop.f32.mrb[0].mxu0
      %3011 = vmatprep.mubr.f32.mxu0 0.0
      %3012 = vmatmul.mubr.f32.gmra.mrb[0].mxu0 %v2803
      %v3013 = vpop.f32.mrb[0].mxu0
      %v3014 = vadd.f32 0.0, %v3013
      %v3015 = vpop.f32.mrb[0].mxu0
      %3016 = vmatprep.mubr.f32.mxu0 0.0
      %3017 = vmatmul.mubr.f32.gmra.mrb[0].mxu0 %v2806
      %v3018 = vpop.f32.mrb[0].mxu0
      %v3019 = vadd.f32 0.0, %v3018
      %v3020 = vpop.f32.mrb[0].mxu0
      %3021 = vmatprep.mubr.f32.mxu0 0.0
      %3022 = vmatmul.mubr.f32.gmra.mrb[0].mxu0 %v2809
      %v3023 = vpop.f32.mrb[0].mxu0
      %v3024 = vadd.f32 0.0, %v3023
      %v3025 = vpop.f32.mrb[0].mxu0
      %3026 = vmatprep.mubr.f32.mxu0 0.0
      %3027 = vmatmul.mubr.f32.gmra.mrb[0].mxu0 %v2812
      %v3028 = vpop.f32.mrb[0].mxu0
      %v3029 = vadd.f32 0.0, %v3028
      %v3030 = vpop.f32.mrb[0].mxu0
      %3031 = vmatprep.mubr.f32.mxu0 0.0
      %3032 = vmatmul.mubr.f32.gmra.mrb[0].mxu0 %v2815
      %v3033 = vpop.f32.mrb[0].mxu0
      %v3034 = vadd.f32 0.0, %v3033
      %v3035 = vpop.f32.mrb[0].mxu0
      %3036 = vmatprep.mubr.f32.mxu0 0.0
      %3037 = vmatmul.mubr.f32.gmra.mrb[0].mxu0 %v2818
      %v3038 = vpop.f32.mrb[0].mxu0
      %v3039 = vadd.f32 0.0, %v3038
      %v3040 = vpop.f32.mrb[0].mxu0
      %3041 = vmatprep.mubr.f32.mxu0 0.0
      %3042 = vmatmul.mubr.f32.gmra.mrb[0].mxu0 %v2821
      %v3043 = vpop.f32.mrb[0].mxu0
      %v3044 = vadd.f32 0.0, %v3043
      %v3045 = vpop.f32.mrb[0].mxu0
      %3046 = vmatprep.mubr.f32.mxu0 0.0
      %3047 = vmatmul.mubr.f32.gmra.mrb[0].mxu0 %v2824
      %v3048 = vpop.f32.mrb[0].mxu0
      %v3049 = vadd.f32 0.0, %v3048
      %v3050 = vpop.f32.mrb[0].mxu0
      %3051 = vmatprep.mubr.f32.mxu0 0.0
      %3052 = vmatmul.mubr.f32.gmra.mrb[0].mxu0 %v2827
      %v3053 = vpop.f32.mrb[0].mxu0
      %v3054 = vadd.f32 0.0, %v3053
      %v3055 = vpop.f32.mrb[0].mxu0
      %3056 = vdwg.mxu0
      %v3057 = vadd.f32 %v2668, %v2899
      %v3058 = vadd.f32 %v2669, %v2904
      %v3059 = vadd.f32 %v2670, %v2909
      %v3060 = vadd.f32 %v2671, %v2914
      %v3061 = vadd.f32 %v2672, %v2919
      %v3062 = vadd.f32 %v2673, %v2924
      %v3063 = vadd.f32 %v2674, %v2929
      %v3064 = vadd.f32 %v2675, %v2934
      %v3065 = vadd.f32 %v2676, %v2939
      %v3066 = vadd.f32 %v2677, %v2944
      %v3067 = vadd.f32 %v2678, %v2949
      %v3068 = vadd.f32 %v2679, %v2954
      %v3069 = vadd.f32 %v2680, %v2959
      %v3070 = vadd.f32 %v2681, %v2964
      %v3071 = vadd.f32 %v2682, %v2969
      %v3072 = vadd.f32 %v2683, %v2974
      %v3073 = vadd.f32 %v2684, %v2979
      %v3074 = vadd.f32 %v2685, %v2984
      %v3075 = vadd.f32 %v2686, %v2989
      %v3076 = vadd.f32 %v2687, %v2994
      %v3077 = vadd.f32 %v2688, %v2999
      %v3078 = vadd.f32 %v2689, %v3004
      %v3079 = vadd.f32 %v2690, %v3009
      %v3080 = vadd.f32 %v2691, %v3014
      %v3081 = vadd.f32 %v2692, %v3019
      %v3082 = vadd.f32 %v2693, %v3024
      %v3083 = vadd.f32 %v2694, %v3029
      %v3084 = vadd.f32 %v2695, %v3034
      %v3085 = vadd.f32 %v2696, %v3039
      %v3086 = vadd.f32 %v2697, %v3044
      %v3087 = vadd.f32 %v2698, %v3049
      %v3088 = vadd.f32 %v2699, %v3054
      %s3089 = scalar_lea.vmem [#allocation2], 64
      %v3090 = vld [vmem:[%s3089 + $0x7] sm:$0xff]
      %v3091 = vld [vmem:[%s3089 + $0xf] sm:$0xff]
      %v3092 = vld [vmem:[%s3089 + $0x27] sm:$0xff]
      %v3093 = vld [vmem:[%s3089 + $0x2f] sm:$0xff]
      %v3094 = vld [vmem:[%s3089 + $0x47] sm:$0xff]
      %v3095 = vld [vmem:[%s3089 + $0x4f] sm:$0xff]
      %v3096 = vld [vmem:[%s3089 + $0x67] sm:$0xff]
      %v3097 = vld [vmem:[%s3089 + $0x6f] sm:$0xff]
      %v3098 = vld [vmem:[%s3089 + $0x87] sm:$0xff]
      %v3099 = vld [vmem:[%s3089 + $0x8f] sm:$0xff]
      %v3100 = vld [vmem:[%s3089 + $0xa7] sm:$0xff]
      %v3101 = vld [vmem:[%s3089 + $0xaf] sm:$0xff]
      %v3102 = vld [vmem:[%s3089 + $0xc7] sm:$0xff]
      %v3103 = vld [vmem:[%s3089 + $0xcf] sm:$0xff]
      %v3104 = vld [vmem:[%s3089 + $0xe7] sm:$0xff]
      %v3105 = vld [vmem:[%s3089 + $0xef] sm:$0xff]
      %v3106 = vld [vmem:[%s3089 + $0x107] sm:$0xff]
      %v3107 = vld [vmem:[%s3089 + $0x10f] sm:$0xff]
      %v3108 = vld [vmem:[%s3089 + $0x127] sm:$0xff]
      %v3109 = vld [vmem:[%s3089 + $0x12f] sm:$0xff]
      %v3110 = vld [vmem:[%s3089 + $0x147] sm:$0xff]
      %v3111 = vld [vmem:[%s3089 + $0x14f] sm:$0xff]
      %v3112 = vld [vmem:[%s3089 + $0x167] sm:$0xff]
      %v3113 = vld [vmem:[%s3089 + $0x16f] sm:$0xff]
      %v3114 = vld [vmem:[%s3089 + $0x187] sm:$0xff]
      %v3115 = vld [vmem:[%s3089 + $0x18f] sm:$0xff]
      %v3116 = vld [vmem:[%s3089 + $0x1a7] sm:$0xff]
      %v3117 = vld [vmem:[%s3089 + $0x1af] sm:$0xff]
      %v3118 = vld [vmem:[%s3089 + $0x1c7] sm:$0xff]
      %v3119 = vld [vmem:[%s3089 + $0x1cf] sm:$0xff]
      %v3120 = vld [vmem:[%s3089 + $0x1e7] sm:$0xff]
      %v3121 = vld [vmem:[%s3089 + $0x1ef] sm:$0xff]
      %v3122 = vld [vmem:[%s3 + $0x18] sm:$0xf]
      %v3124 = vsel %vm380, %v3090, 0
      %v3127 = vsel %vm380, %v3091, 0
      %v3130 = vsel %vm380, %v3092, 0
      %v3133 = vsel %vm380, %v3093, 0
      %v3136 = vsel %vm380, %v3094, 0
      %v3139 = vsel %vm380, %v3095, 0
      %v3142 = vsel %vm380, %v3096, 0
      %v3145 = vsel %vm380, %v3097, 0
      %v3148 = vsel %vm380, %v3098, 0
      %v3151 = vsel %vm380, %v3099, 0
      %v3154 = vsel %vm380, %v3100, 0
      %v3157 = vsel %vm380, %v3101, 0
      %v3160 = vsel %vm380, %v3102, 0
      %v3163 = vsel %vm380, %v3103, 0
      %v3166 = vsel %vm380, %v3104, 0
      %v3169 = vsel %vm380, %v3105, 0
      %v3172 = vsel %vm380, %v3106, 0
      %v3175 = vsel %vm380, %v3107, 0
      %v3178 = vsel %vm380, %v3108, 0
      %v3181 = vsel %vm380, %v3109, 0
      %v3184 = vsel %vm380, %v3110, 0
      %v3187 = vsel %vm380, %v3111, 0
      %v3190 = vsel %vm380, %v3112, 0
      %v3193 = vsel %vm380, %v3113, 0
      %v3196 = vsel %vm380, %v3114, 0
      %v3199 = vsel %vm380, %v3115, 0
      %v3202 = vsel %vm380, %v3116, 0
      %v3205 = vsel %vm380, %v3117, 0
      %v3208 = vsel %vm380, %v3118, 0
      %v3211 = vsel %vm380, %v3119, 0
      %v3214 = vsel %vm380, %v3120, 0
      %v3217 = vsel %vm380, %v3121, 0
      %v3220 = vsel %vm980, %v3122, 0
      %3222 = vmatprep.subr.mxu0 0.0
      %3223 = vmatpush1.msra.mxu0 %v3220
      %3224 = vmatprep.subr.mxu0 0.0
      %3225 = vmatpush1.msra.mxu0 0.0
      %3226 = vmatprep.subr.mxu0 0.0
      %3227 = vmatpush1.msra.mxu0 0.0
      %3228 = vmatprep.subr.mxu0 0.0
      %3229 = vmatpush1.msra.mxu0 0.0
      %3230 = vmatprep.subr.mxu0 0.0
      %3231 = vmatpush1.msra.mxu0 0.0
      %3232 = vmatprep.subr.mxu0 0.0
      %3233 = vmatpush1.msra.mxu0 0.0
      %3234 = vmatprep.subr.mxu0 0.0
      %3235 = vmatpush1.msra.mxu0 0.0
      %3236 = vmatprep.subr.mxu0 0.0
      %3237 = vmatpush1.msra.mxu0 0.0
      %3238 = vmatprep.subr.mxu0 0.0
      %3239 = vmatpush1.msra.mxu0 0.0
      %3240 = vmatprep.subr.mxu0 0.0
      %3241 = vmatpush1.msra.mxu0 0.0
      %3242 = vmatprep.subr.mxu0 0.0
      %3243 = vmatpush1.msra.mxu0 0.0
      %3244 = vmatprep.subr.mxu0 0.0
      %3245 = vmatpush1.msra.mxu0 0.0
      %3246 = vmatprep.subr.mxu0 0.0
      %3247 = vmatpush1.msra.mxu0 0.0
      %3248 = vmatprep.subr.mxu0 0.0
      %3249 = vmatpush1.msra.mxu0 0.0
      %3250 = vmatprep.subr.mxu0 0.0
      %3251 = vmatpush1.msra.mxu0 0.0
      %3252 = vmatprep.subr.mxu0 0.0
      %3253 = vmatpush1.msra.mxu0 0.0
      %3254 = vmatprep.subr.mxu0 0.0
      %3255 = vmatpush1.msra.mxu0 0.0
      %3256 = vmatprep.subr.mxu0 0.0
      %3257 = vmatpush1.msra.mxu0 0.0
      %3258 = vmatprep.subr.mxu0 0.0
      %3259 = vmatpush1.msra.mxu0 0.0
      %3260 = vmatprep.subr.mxu0 0.0
      %3261 = vmatpush1.msra.mxu0 0.0
      %3262 = vmatprep.subr.mxu0 0.0
      %3263 = vmatpush1.msra.mxu0 0.0
      %3264 = vmatprep.subr.mxu0 0.0
      %3265 = vmatpush1.msra.mxu0 0.0
      %3266 = vmatprep.subr.mxu0 0.0
      %3267 = vmatpush1.msra.mxu0 0.0
      %3268 = vmatprep.subr.mxu0 0.0
      %3269 = vmatpush1.msra.mxu0 0.0
      %3270 = vmatprep.subr.mxu0 0.0
      %3271 = vmatpush1.msra.mxu0 0.0
      %3272 = vmatprep.subr.mxu0 0.0
      %3273 = vmatpush1.msra.mxu0 0.0
      %3274 = vmatprep.subr.mxu0 0.0
      %3275 = vmatpush1.msra.mxu0 0.0
      %3276 = vmatprep.subr.mxu0 0.0
      %3277 = vmatpush1.msra.mxu0 0.0
      %3278 = vmatprep.subr.mxu0 0.0
      %3279 = vmatpush1.msra.mxu0 0.0
      %3280 = vmatprep.subr.mxu0 0.0
      %3281 = vmatpush1.msra.mxu0 0.0
      %3282 = vmatprep.subr.mxu0 0.0
      %3283 = vmatpush1.msra.mxu0 0.0
      %3284 = vmatprep.subr.mxu0 0.0
      %3285 = vmatpush1.msra.mxu0 0.0
      %3286 = vmatprep.mubr.f32.mxu0 0.0
      %3287 = vmatmul.mubr.f32.gmra.mrb[0].mxu0 %v3124
      %v3288 = vpop.f32.mrb[0].mxu0
      %v3289 = vadd.f32 0.0, %v3288
      %v3290 = vpop.f32.mrb[0].mxu0
      %3291 = vmatprep.mubr.f32.mxu0 0.0
      %3292 = vmatmul.mubr.f32.gmra.mrb[0].mxu0 %v3127
      %v3293 = vpop.f32.mrb[0].mxu0
      %v3294 = vadd.f32 0.0, %v3293
      %v3295 = vpop.f32.mrb[0].mxu0
      %3296 = vmatprep.mubr.f32.mxu0 0.0
      %3297 = vmatmul.mubr.f32.gmra.mrb[0].mxu0 %v3130
      %v3298 = vpop.f32.mrb[0].mxu0
      %v3299 = vadd.f32 0.0, %v3298
      %v3300 = vpop.f32.mrb[0].mxu0
      %3301 = vmatprep.mubr.f32.mxu0 0.0
      %3302 = vmatmul.mubr.f32.gmra.mrb[0].mxu0 %v3133
      %v3303 = vpop.f32.mrb[0].mxu0
      %v3304 = vadd.f32 0.0, %v3303
      %v3305 = vpop.f32.mrb[0].mxu0
      %3306 = vmatprep.mubr.f32.mxu0 0.0
      %3307 = vmatmul.mubr.f32.gmra.mrb[0].mxu0 %v3136
      %v3308 = vpop.f32.mrb[0].mxu0
      %v3309 = vadd.f32 0.0, %v3308
      %v3310 = vpop.f32.mrb[0].mxu0
      %3311 = vmatprep.mubr.f32.mxu0 0.0
      %3312 = vmatmul.mubr.f32.gmra.mrb[0].mxu0 %v3139
      %v3313 = vpop.f32.mrb[0].mxu0
      %v3314 = vadd.f32 0.0, %v3313
      %v3315 = vpop.f32.mrb[0].mxu0
      %3316 = vmatprep.mubr.f32.mxu0 0.0
      %3317 = vmatmul.mubr.f32.gmra.mrb[0].mxu0 %v3142
      %v3318 = vpop.f32.mrb[0].mxu0
      %v3319 = vadd.f32 0.0, %v3318
      %v3320 = vpop.f32.mrb[0].mxu0
      %3321 = vmatprep.mubr.f32.mxu0 0.0
      %3322 = vmatmul.mubr.f32.gmra.mrb[0].mxu0 %v3145
      %v3323 = vpop.f32.mrb[0].mxu0
      %v3324 = vadd.f32 0.0, %v3323
      %v3325 = vpop.f32.mrb[0].mxu0
      %3326 = vmatprep.mubr.f32.mxu0 0.0
      %3327 = vmatmul.mubr.f32.gmra.mrb[0].mxu0 %v3148
      %v3328 = vpop.f32.mrb[0].mxu0
      %v3329 = vadd.f32 0.0, %v3328
      %v3330 = vpop.f32.mrb[0].mxu0
      %3331 = vmatprep.mubr.f32.mxu0 0.0
      %3332 = vmatmul.mubr.f32.gmra.mrb[0].mxu0 %v3151
      %v3333 = vpop.f32.mrb[0].mxu0
      %v3334 = vadd.f32 0.0, %v3333
      %v3335 = vpop.f32.mrb[0].mxu0
      %3336 = vmatprep.mubr.f32.mxu0 0.0
      %3337 = vmatmul.mubr.f32.gmra.mrb[0].mxu0 %v3154
      %v3338 = vpop.f32.mrb[0].mxu0
      %v3339 = vadd.f32 0.0, %v3338
      %v3340 = vpop.f32.mrb[0].mxu0
      %3341 = vmatprep.mubr.f32.mxu0 0.0
      %3342 = vmatmul.mubr.f32.gmra.mrb[0].mxu0 %v3157
      %v3343 = vpop.f32.mrb[0].mxu0
      %v3344 = vadd.f32 0.0, %v3343
      %v3345 = vpop.f32.mrb[0].mxu0
      %3346 = vmatprep.mubr.f32.mxu0 0.0
      %3347 = vmatmul.mubr.f32.gmra.mrb[0].mxu0 %v3160
      %v3348 = vpop.f32.mrb[0].mxu0
      %v3349 = vadd.f32 0.0, %v3348
      %v3350 = vpop.f32.mrb[0].mxu0
      %3351 = vmatprep.mubr.f32.mxu0 0.0
      %3352 = vmatmul.mubr.f32.gmra.mrb[0].mxu0 %v3163
      %v3353 = vpop.f32.mrb[0].mxu0
      %v3354 = vadd.f32 0.0, %v3353
      %v3355 = vpop.f32.mrb[0].mxu0
      %3356 = vmatprep.mubr.f32.mxu0 0.0
      %3357 = vmatmul.mubr.f32.gmra.mrb[0].mxu0 %v3166
      %v3358 = vpop.f32.mrb[0].mxu0
      %v3359 = vadd.f32 0.0, %v3358
      %v3360 = vpop.f32.mrb[0].mxu0
      %3361 = vmatprep.mubr.f32.mxu0 0.0
      %3362 = vmatmul.mubr.f32.gmra.mrb[0].mxu0 %v3169
      %v3363 = vpop.f32.mrb[0].mxu0
      %v3364 = vadd.f32 0.0, %v3363
      %v3365 = vpop.f32.mrb[0].mxu0
      %3366 = vmatprep.mubr.f32.mxu0 0.0
      %3367 = vmatmul.mubr.f32.gmra.mrb[0].mxu0 %v3172
      %v3368 = vpop.f32.mrb[0].mxu0
      %v3369 = vadd.f32 0.0, %v3368
      %v3370 = vpop.f32.mrb[0].mxu0
      %3371 = vmatprep.mubr.f32.mxu0 0.0
      %3372 = vmatmul.mubr.f32.gmra.mrb[0].mxu0 %v3175
      %v3373 = vpop.f32.mrb[0].mxu0
      %v3374 = vadd.f32 0.0, %v3373
      %v3375 = vpop.f32.mrb[0].mxu0
      %3376 = vmatprep.mubr.f32.mxu0 0.0
      %3377 = vmatmul.mubr.f32.gmra.mrb[0].mxu0 %v3178
      %v3378 = vpop.f32.mrb[0].mxu0
      %v3379 = vadd.f32 0.0, %v3378
      %v3380 = vpop.f32.mrb[0].mxu0
      %3381 = vmatprep.mubr.f32.mxu0 0.0
      %3382 = vmatmul.mubr.f32.gmra.mrb[0].mxu0 %v3181
      %v3383 = vpop.f32.mrb[0].mxu0
      %v3384 = vadd.f32 0.0, %v3383
      %v3385 = vpop.f32.mrb[0].mxu0
      %3386 = vmatprep.mubr.f32.mxu0 0.0
      %3387 = vmatmul.mubr.f32.gmra.mrb[0].mxu0 %v3184
      %v3388 = vpop.f32.mrb[0].mxu0
      %v3389 = vadd.f32 0.0, %v3388
      %v3390 = vpop.f32.mrb[0].mxu0
      %3391 = vmatprep.mubr.f32.mxu0 0.0
      %3392 = vmatmul.mubr.f32.gmra.mrb[0].mxu0 %v3187
      %v3393 = vpop.f32.mrb[0].mxu0
      %v3394 = vadd.f32 0.0, %v3393
      %v3395 = vpop.f32.mrb[0].mxu0
      %3396 = vmatprep.mubr.f32.mxu0 0.0
      %3397 = vmatmul.mubr.f32.gmra.mrb[0].mxu0 %v3190
      %v3398 = vpop.f32.mrb[0].mxu0
      %v3399 = vadd.f32 0.0, %v3398
      %v3400 = vpop.f32.mrb[0].mxu0
      %3401 = vmatprep.mubr.f32.mxu0 0.0
      %3402 = vmatmul.mubr.f32.gmra.mrb[0].mxu0 %v3193
      %v3403 = vpop.f32.mrb[0].mxu0
      %v3404 = vadd.f32 0.0, %v3403
      %v3405 = vpop.f32.mrb[0].mxu0
      %3406 = vmatprep.mubr.f32.mxu0 0.0
      %3407 = vmatmul.mubr.f32.gmra.mrb[0].mxu0 %v3196
      %v3408 = vpop.f32.mrb[0].mxu0
      %v3409 = vadd.f32 0.0, %v3408
      %v3410 = vpop.f32.mrb[0].mxu0
      %3411 = vmatprep.mubr.f32.mxu0 0.0
      %3412 = vmatmul.mubr.f32.gmra.mrb[0].mxu0 %v3199
      %v3413 = vpop.f32.mrb[0].mxu0
      %v3414 = vadd.f32 0.0, %v3413
      %v3415 = vpop.f32.mrb[0].mxu0
      %3416 = vmatprep.mubr.f32.mxu0 0.0
      %3417 = vmatmul.mubr.f32.gmra.mrb[0].mxu0 %v3202
      %v3418 = vpop.f32.mrb[0].mxu0
      %v3419 = vadd.f32 0.0, %v3418
      %v3420 = vpop.f32.mrb[0].mxu0
      %3421 = vmatprep.mubr.f32.mxu0 0.0
      %3422 = vmatmul.mubr.f32.gmra.mrb[0].mxu0 %v3205
      %v3423 = vpop.f32.mrb[0].mxu0
      %v3424 = vadd.f32 0.0, %v3423
      %v3425 = vpop.f32.mrb[0].mxu0
      %3426 = vmatprep.mubr.f32.mxu0 0.0
      %3427 = vmatmul.mubr.f32.gmra.mrb[0].mxu0 %v3208
      %v3428 = vpop.f32.mrb[0].mxu0
      %v3429 = vadd.f32 0.0, %v3428
      %v3430 = vpop.f32.mrb[0].mxu0
      %3431 = vmatprep.mubr.f32.mxu0 0.0
      %3432 = vmatmul.mubr.f32.gmra.mrb[0].mxu0 %v3211
      %v3433 = vpop.f32.mrb[0].mxu0
      %v3434 = vadd.f32 0.0, %v3433
      %v3435 = vpop.f32.mrb[0].mxu0
      %3436 = vmatprep.mubr.f32.mxu0 0.0
      %3437 = vmatmul.mubr.f32.gmra.mrb[0].mxu0 %v3214
      %v3438 = vpop.f32.mrb[0].mxu0
      %v3439 = vadd.f32 0.0, %v3438
      %v3440 = vpop.f32.mrb[0].mxu0
      %3441 = vmatprep.mubr.f32.mxu0 0.0
      %3442 = vmatmul.mubr.f32.gmra.mrb[0].mxu0 %v3217
      %v3443 = vpop.f32.mrb[0].mxu0
      %v3444 = vadd.f32 0.0, %v3443
      %v3445 = vpop.f32.mrb[0].mxu0
      %3446 = vdwg.mxu0
      %v3447 = vadd.f32 %v3057, %v3289
      %v3448 = vadd.f32 %v3058, %v3294
      %v3449 = vadd.f32 %v3059, %v3299
      %v3450 = vadd.f32 %v3060, %v3304
      %v3451 = vadd.f32 %v3061, %v3309
      %v3452 = vadd.f32 %v3062, %v3314
      %v3453 = vadd.f32 %v3063, %v3319
      %v3454 = vadd.f32 %v3064, %v3324
      %v3455 = vadd.f32 %v3065, %v3329
      %v3456 = vadd.f32 %v3066, %v3334
      %v3457 = vadd.f32 %v3067, %v3339
      %v3458 = vadd.f32 %v3068, %v3344
      %v3459 = vadd.f32 %v3069, %v3349
      %v3460 = vadd.f32 %v3070, %v3354
      %v3461 = vadd.f32 %v3071, %v3359
      %v3462 = vadd.f32 %v3072, %v3364
      %v3463 = vadd.f32 %v3073, %v3369
      %v3464 = vadd.f32 %v3074, %v3374
      %v3465 = vadd.f32 %v3075, %v3379
      %v3466 = vadd.f32 %v3076, %v3384
      %v3467 = vadd.f32 %v3077, %v3389
      %v3468 = vadd.f32 %v3078, %v3394
      %v3469 = vadd.f32 %v3079, %v3399
      %v3470 = vadd.f32 %v3080, %v3404
      %v3471 = vadd.f32 %v3081, %v3409
      %v3472 = vadd.f32 %v3082, %v3414
      %v3473 = vadd.f32 %v3083, %v3419
      %v3474 = vadd.f32 %v3084, %v3424
      %v3475 = vadd.f32 %v3085, %v3429
      %v3476 = vadd.f32 %v3086, %v3434
      %v3477 = vadd.f32 %v3087, %v3439
      %v3478 = vadd.f32 %v3088, %v3444
      %v3479 = vld [vmem:[%s3089 + $0x8] sm:$0xff]
      %v3480 = vld [vmem:[%s3089 + $0x10] sm:$0xff]
      %v3481 = vld [vmem:[%s3089 + $0x28] sm:$0xff]
      %v3482 = vld [vmem:[%s3089 + $0x30] sm:$0xff]
      %v3483 = vld [vmem:[%s3089 + $0x48] sm:$0xff]
      %v3484 = vld [vmem:[%s3089 + $0x50] sm:$0xff]
      %v3485 = vld [vmem:[%s3089 + $0x68] sm:$0xff]
      %v3486 = vld [vmem:[%s3089 + $0x70] sm:$0xff]
      %v3487 = vld [vmem:[%s3089 + $0x88] sm:$0xff]
      %v3488 = vld [vmem:[%s3089 + $0x90] sm:$0xff]
      %v3489 = vld [vmem:[%s3089 + $0xa8] sm:$0xff]
      %v3490 = vld [vmem:[%s3089 + $0xb0] sm:$0xff]
      %v3491 = vld [vmem:[%s3089 + $0xc8] sm:$0xff]
      %v3492 = vld [vmem:[%s3089 + $0xd0] sm:$0xff]
      %v3493 = vld [vmem:[%s3089 + $0xe8] sm:$0xff]
      %v3494 = vld [vmem:[%s3089 + $0xf0] sm:$0xff]
      %v3495 = vld [vmem:[%s3089 + $0x108] sm:$0xff]
      %v3496 = vld [vmem:[%s3089 + $0x110] sm:$0xff]
      %v3497 = vld [vmem:[%s3089 + $0x128] sm:$0xff]
      %v3498 = vld [vmem:[%s3089 + $0x130] sm:$0xff]
      %v3499 = vld [vmem:[%s3089 + $0x148] sm:$0xff]
      %v3500 = vld [vmem:[%s3089 + $0x150] sm:$0xff]
      %v3501 = vld [vmem:[%s3089 + $0x168] sm:$0xff]
      %v3502 = vld [vmem:[%s3089 + $0x170] sm:$0xff]
      %v3503 = vld [vmem:[%s3089 + $0x188] sm:$0xff]
      %v3504 = vld [vmem:[%s3089 + $0x190] sm:$0xff]
      %v3505 = vld [vmem:[%s3089 + $0x1a8] sm:$0xff]
      %v3506 = vld [vmem:[%s3089 + $0x1b0] sm:$0xff]
      %v3507 = vld [vmem:[%s3089 + $0x1c8] sm:$0xff]
      %v3508 = vld [vmem:[%s3089 + $0x1d0] sm:$0xff]
      %v3509 = vld [vmem:[%s3089 + $0x1e8] sm:$0xff]
      %v3510 = vld [vmem:[%s3089 + $0x1f0] sm:$0xff]
      %v3511 = vld [vmem:[%s3 + $0x1c] sm:$0xf]
      %v3513 = vsel %vm380, %v3479, 0
      %v3516 = vsel %vm380, %v3480, 0
      %v3519 = vsel %vm380, %v3481, 0
      %v3522 = vsel %vm380, %v3482, 0
      %v3525 = vsel %vm380, %v3483, 0
      %v3528 = vsel %vm380, %v3484, 0
      %v3531 = vsel %vm380, %v3485, 0
      %v3534 = vsel %vm380, %v3486, 0
      %v3537 = vsel %vm380, %v3487, 0
      %v3540 = vsel %vm380, %v3488, 0
      %v3543 = vsel %vm380, %v3489, 0
      %v3546 = vsel %vm380, %v3490, 0
      %v3549 = vsel %vm380, %v3491, 0
      %v3552 = vsel %vm380, %v3492, 0
      %v3555 = vsel %vm380, %v3493, 0
      %v3558 = vsel %vm380, %v3494, 0
      %v3561 = vsel %vm380, %v3495, 0
      %v3564 = vsel %vm380, %v3496, 0
      %v3567 = vsel %vm380, %v3497, 0
      %v3570 = vsel %vm380, %v3498, 0
      %v3573 = vsel %vm380, %v3499, 0
      %v3576 = vsel %vm380, %v3500, 0
      %v3579 = vsel %vm380, %v3501, 0
      %v3582 = vsel %vm380, %v3502, 0
      %v3585 = vsel %vm380, %v3503, 0
      %v3588 = vsel %vm380, %v3504, 0
      %v3591 = vsel %vm380, %v3505, 0
      %v3594 = vsel %vm380, %v3506, 0
      %v3597 = vsel %vm380, %v3507, 0
      %v3600 = vsel %vm380, %v3508, 0
      %v3603 = vsel %vm380, %v3509, 0
      %v3606 = vsel %vm380, %v3510, 0
      %v3609 = vsel %vm980, %v3511, 0
      %3611 = vmatprep.subr.mxu0 0.0
      %3612 = vmatpush1.msra.mxu0 %v3609
      %3613 = vmatprep.subr.mxu0 0.0
      %3614 = vmatpush1.msra.mxu0 0.0
      %3615 = vmatprep.subr.mxu0 0.0
      %3616 = vmatpush1.msra.mxu0 0.0
      %3617 = vmatprep.subr.mxu0 0.0
      %3618 = vmatpush1.msra.mxu0 0.0
      %3619 = vmatprep.subr.mxu0 0.0
      %3620 = vmatpush1.msra.mxu0 0.0
      %3621 = vmatprep.subr.mxu0 0.0
      %3622 = vmatpush1.msra.mxu0 0.0
      %3623 = vmatprep.subr.mxu0 0.0
      %3624 = vmatpush1.msra.mxu0 0.0
      %3625 = vmatprep.subr.mxu0 0.0
      %3626 = vmatpush1.msra.mxu0 0.0
      %3627 = vmatprep.subr.mxu0 0.0
      %3628 = vmatpush1.msra.mxu0 0.0
      %3629 = vmatprep.subr.mxu0 0.0
      %3630 = vmatpush1.msra.mxu0 0.0
      %3631 = vmatprep.subr.mxu0 0.0
      %3632 = vmatpush1.msra.mxu0 0.0
      %3633 = vmatprep.subr.mxu0 0.0
      %3634 = vmatpush1.msra.mxu0 0.0
      %3635 = vmatprep.subr.mxu0 0.0
      %3636 = vmatpush1.msra.mxu0 0.0
      %3637 = vmatprep.subr.mxu0 0.0
      %3638 = vmatpush1.msra.mxu0 0.0
      %3639 = vmatprep.subr.mxu0 0.0
      %3640 = vmatpush1.msra.mxu0 0.0
      %3641 = vmatprep.subr.mxu0 0.0
      %3642 = vmatpush1.msra.mxu0 0.0
      %3643 = vmatprep.subr.mxu0 0.0
      %3644 = vmatpush1.msra.mxu0 0.0
      %3645 = vmatprep.subr.mxu0 0.0
      %3646 = vmatpush1.msra.mxu0 0.0
      %3647 = vmatprep.subr.mxu0 0.0
      %3648 = vmatpush1.msra.mxu0 0.0
      %3649 = vmatprep.subr.mxu0 0.0
      %3650 = vmatpush1.msra.mxu0 0.0
      %3651 = vmatprep.subr.mxu0 0.0
      %3652 = vmatpush1.msra.mxu0 0.0
      %3653 = vmatprep.subr.mxu0 0.0
      %3654 = vmatpush1.msra.mxu0 0.0
      %3655 = vmatprep.subr.mxu0 0.0
      %3656 = vmatpush1.msra.mxu0 0.0
      %3657 = vmatprep.subr.mxu0 0.0
      %3658 = vmatpush1.msra.mxu0 0.0
      %3659 = vmatprep.subr.mxu0 0.0
      %3660 = vmatpush1.msra.mxu0 0.0
      %3661 = vmatprep.subr.mxu0 0.0
      %3662 = vmatpush1.msra.mxu0 0.0
      %3663 = vmatprep.subr.mxu0 0.0
      %3664 = vmatpush1.msra.mxu0 0.0
      %3665 = vmatprep.subr.mxu0 0.0
      %3666 = vmatpush1.msra.mxu0 0.0
      %3667 = vmatprep.subr.mxu0 0.0
      %3668 = vmatpush1.msra.mxu0 0.0
      %3669 = vmatprep.subr.mxu0 0.0
      %3670 = vmatpush1.msra.mxu0 0.0
      %3671 = vmatprep.subr.mxu0 0.0
      %3672 = vmatpush1.msra.mxu0 0.0
      %3673 = vmatprep.subr.mxu0 0.0
      %3674 = vmatpush1.msra.mxu0 0.0
      %3675 = vmatprep.mubr.f32.mxu0 0.0
      %3676 = vmatmul.mubr.f32.gmra.mrb[0].mxu0 %v3513
      %v3677 = vpop.f32.mrb[0].mxu0
      %v3678 = vadd.f32 0.0, %v3677
      %v3679 = vpop.f32.mrb[0].mxu0
      %3680 = vmatprep.mubr.f32.mxu0 0.0
      %3681 = vmatmul.mubr.f32.gmra.mrb[0].mxu0 %v3516
      %v3682 = vpop.f32.mrb[0].mxu0
      %v3683 = vadd.f32 0.0, %v3682
      %v3684 = vpop.f32.mrb[0].mxu0
      %3685 = vmatprep.mubr.f32.mxu0 0.0
      %3686 = vmatmul.mubr.f32.gmra.mrb[0].mxu0 %v3519
      %v3687 = vpop.f32.mrb[0].mxu0
      %v3688 = vadd.f32 0.0, %v3687
      %v3689 = vpop.f32.mrb[0].mxu0
      %3690 = vmatprep.mubr.f32.mxu0 0.0
      %3691 = vmatmul.mubr.f32.gmra.mrb[0].mxu0 %v3522
      %v3692 = vpop.f32.mrb[0].mxu0
      %v3693 = vadd.f32 0.0, %v3692
      %v3694 = vpop.f32.mrb[0].mxu0
      %3695 = vmatprep.mubr.f32.mxu0 0.0
      %3696 = vmatmul.mubr.f32.gmra.mrb[0].mxu0 %v3525
      %v3697 = vpop.f32.mrb[0].mxu0
      %v3698 = vadd.f32 0.0, %v3697
      %v3699 = vpop.f32.mrb[0].mxu0
      %3700 = vmatprep.mubr.f32.mxu0 0.0
      %3701 = vmatmul.mubr.f32.gmra.mrb[0].mxu0 %v3528
      %v3702 = vpop.f32.mrb[0].mxu0
      %v3703 = vadd.f32 0.0, %v3702
      %v3704 = vpop.f32.mrb[0].mxu0
      %3705 = vmatprep.mubr.f32.mxu0 0.0
      %3706 = vmatmul.mubr.f32.gmra.mrb[0].mxu0 %v3531
      %v3707 = vpop.f32.mrb[0].mxu0
      %v3708 = vadd.f32 0.0, %v3707
      %v3709 = vpop.f32.mrb[0].mxu0
      %3710 = vmatprep.mubr.f32.mxu0 0.0
      %3711 = vmatmul.mubr.f32.gmra.mrb[0].mxu0 %v3534
      %v3712 = vpop.f32.mrb[0].mxu0
      %v3713 = vadd.f32 0.0, %v3712
      %v3714 = vpop.f32.mrb[0].mxu0
      %3715 = vmatprep.mubr.f32.mxu0 0.0
      %3716 = vmatmul.mubr.f32.gmra.mrb[0].mxu0 %v3537
      %v3717 = vpop.f32.mrb[0].mxu0
      %v3718 = vadd.f32 0.0, %v3717
      %v3719 = vpop.f32.mrb[0].mxu0
      %3720 = vmatprep.mubr.f32.mxu0 0.0
      %3721 = vmatmul.mubr.f32.gmra.mrb[0].mxu0 %v3540
      %v3722 = vpop.f32.mrb[0].mxu0
      %v3723 = vadd.f32 0.0, %v3722
      %v3724 = vpop.f32.mrb[0].mxu0
      %3725 = vmatprep.mubr.f32.mxu0 0.0
      %3726 = vmatmul.mubr.f32.gmra.mrb[0].mxu0 %v3543
      %v3727 = vpop.f32.mrb[0].mxu0
      %v3728 = vadd.f32 0.0, %v3727
      %v3729 = vpop.f32.mrb[0].mxu0
      %3730 = vmatprep.mubr.f32.mxu0 0.0
      %3731 = vmatmul.mubr.f32.gmra.mrb[0].mxu0 %v3546
      %v3732 = vpop.f32.mrb[0].mxu0
      %v3733 = vadd.f32 0.0, %v3732
      %v3734 = vpop.f32.mrb[0].mxu0
      %3735 = vmatprep.mubr.f32.mxu0 0.0
      %3736 = vmatmul.mubr.f32.gmra.mrb[0].mxu0 %v3549
      %v3737 = vpop.f32.mrb[0].mxu0
      %v3738 = vadd.f32 0.0, %v3737
      %v3739 = vpop.f32.mrb[0].mxu0
      %3740 = vmatprep.mubr.f32.mxu0 0.0
      %3741 = vmatmul.mubr.f32.gmra.mrb[0].mxu0 %v3552
      %v3742 = vpop.f32.mrb[0].mxu0
      %v3743 = vadd.f32 0.0, %v3742
      %v3744 = vpop.f32.mrb[0].mxu0
      %3745 = vmatprep.mubr.f32.mxu0 0.0
      %3746 = vmatmul.mubr.f32.gmra.mrb[0].mxu0 %v3555
      %v3747 = vpop.f32.mrb[0].mxu0
      %v3748 = vadd.f32 0.0, %v3747
      %v3749 = vpop.f32.mrb[0].mxu0
      %3750 = vmatprep.mubr.f32.mxu0 0.0
      %3751 = vmatmul.mubr.f32.gmra.mrb[0].mxu0 %v3558
      %v3752 = vpop.f32.mrb[0].mxu0
      %v3753 = vadd.f32 0.0, %v3752
      %v3754 = vpop.f32.mrb[0].mxu0
      %3755 = vmatprep.mubr.f32.mxu0 0.0
      %3756 = vmatmul.mubr.f32.gmra.mrb[0].mxu0 %v3561
      %v3757 = vpop.f32.mrb[0].mxu0
      %v3758 = vadd.f32 0.0, %v3757
      %v3759 = vpop.f32.mrb[0].mxu0
      %3760 = vmatprep.mubr.f32.mxu0 0.0
      %3761 = vmatmul.mubr.f32.gmra.mrb[0].mxu0 %v3564
      %v3762 = vpop.f32.mrb[0].mxu0
      %v3763 = vadd.f32 0.0, %v3762
      %v3764 = vpop.f32.mrb[0].mxu0
      %3765 = vmatprep.mubr.f32.mxu0 0.0
      %3766 = vmatmul.mubr.f32.gmra.mrb[0].mxu0 %v3567
      %v3767 = vpop.f32.mrb[0].mxu0
      %v3768 = vadd.f32 0.0, %v3767
      %v3769 = vpop.f32.mrb[0].mxu0
      %3770 = vmatprep.mubr.f32.mxu0 0.0
      %3771 = vmatmul.mubr.f32.gmra.mrb[0].mxu0 %v3570
      %v3772 = vpop.f32.mrb[0].mxu0
      %v3773 = vadd.f32 0.0, %v3772
      %v3774 = vpop.f32.mrb[0].mxu0
      %3775 = vmatprep.mubr.f32.mxu0 0.0
      %3776 = vmatmul.mubr.f32.gmra.mrb[0].mxu0 %v3573
      %v3777 = vpop.f32.mrb[0].mxu0
      %v3778 = vadd.f32 0.0, %v3777
      %v3779 = vpop.f32.mrb[0].mxu0
      %3780 = vmatprep.mubr.f32.mxu0 0.0
      %3781 = vmatmul.mubr.f32.gmra.mrb[0].mxu0 %v3576
      %v3782 = vpop.f32.mrb[0].mxu0
      %v3783 = vadd.f32 0.0, %v3782
      %v3784 = vpop.f32.mrb[0].mxu0
      %3785 = vmatprep.mubr.f32.mxu0 0.0
      %3786 = vmatmul.mubr.f32.gmra.mrb[0].mxu0 %v3579
      %v3787 = vpop.f32.mrb[0].mxu0
      %v3788 = vadd.f32 0.0, %v3787
      %v3789 = vpop.f32.mrb[0].mxu0
      %3790 = vmatprep.mubr.f32.mxu0 0.0
      %3791 = vmatmul.mubr.f32.gmra.mrb[0].mxu0 %v3582
      %v3792 = vpop.f32.mrb[0].mxu0
      %v3793 = vadd.f32 0.0, %v3792
      %v3794 = vpop.f32.mrb[0].mxu0
      %3795 = vmatprep.mubr.f32.mxu0 0.0
      %3796 = vmatmul.mubr.f32.gmra.mrb[0].mxu0 %v3585
      %v3797 = vpop.f32.mrb[0].mxu0
      %v3798 = vadd.f32 0.0, %v3797
      %v3799 = vpop.f32.mrb[0].mxu0
      %3800 = vmatprep.mubr.f32.mxu0 0.0
      %3801 = vmatmul.mubr.f32.gmra.mrb[0].mxu0 %v3588
      %v3802 = vpop.f32.mrb[0].mxu0
      %v3803 = vadd.f32 0.0, %v3802
      %v3804 = vpop.f32.mrb[0].mxu0
      %3805 = vmatprep.mubr.f32.mxu0 0.0
      %3806 = vmatmul.mubr.f32.gmra.mrb[0].mxu0 %v3591
      %v3807 = vpop.f32.mrb[0].mxu0
      %v3808 = vadd.f32 0.0, %v3807
      %v3809 = vpop.f32.mrb[0].mxu0
      %3810 = vmatprep.mubr.f32.mxu0 0.0
      %3811 = vmatmul.mubr.f32.gmra.mrb[0].mxu0 %v3594
      %v3812 = vpop.f32.mrb[0].mxu0
      %v3813 = vadd.f32 0.0, %v3812
      %v3814 = vpop.f32.mrb[0].mxu0
      %3815 = vmatprep.mubr.f32.mxu0 0.0
      %3816 = vmatmul.mubr.f32.gmra.mrb[0].mxu0 %v3597
      %v3817 = vpop.f32.mrb[0].mxu0
      %v3818 = vadd.f32 0.0, %v3817
      %v3819 = vpop.f32.mrb[0].mxu0
      %3820 = vmatprep.mubr.f32.mxu0 0.0
      %3821 = vmatmul.mubr.f32.gmra.mrb[0].mxu0 %v3600
      %v3822 = vpop.f32.mrb[0].mxu0
      %v3823 = vadd.f32 0.0, %v3822
      %v3824 = vpop.f32.mrb[0].mxu0
      %3825 = vmatprep.mubr.f32.mxu0 0.0
      %3826 = vmatmul.mubr.f32.gmra.mrb[0].mxu0 %v3603
      %v3827 = vpop.f32.mrb[0].mxu0
      %v3828 = vadd.f32 0.0, %v3827
      %v3829 = vpop.f32.mrb[0].mxu0
      %3830 = vmatprep.mubr.f32.mxu0 0.0
      %3831 = vmatmul.mubr.f32.gmra.mrb[0].mxu0 %v3606
      %v3832 = vpop.f32.mrb[0].mxu0
      %v3833 = vadd.f32 0.0, %v3832
      %v3834 = vpop.f32.mrb[0].mxu0
      %3835 = vdwg.mxu0
      %v3836 = vadd.f32 %v3447, %v3678
      %v3837 = vadd.f32 %v3448, %v3683
      %v3838 = vadd.f32 %v3449, %v3688
      %v3839 = vadd.f32 %v3450, %v3693
      %v3840 = vadd.f32 %v3451, %v3698
      %v3841 = vadd.f32 %v3452, %v3703
      %v3842 = vadd.f32 %v3453, %v3708
      %v3843 = vadd.f32 %v3454, %v3713
      %v3844 = vadd.f32 %v3455, %v3718
      %v3845 = vadd.f32 %v3456, %v3723
      %v3846 = vadd.f32 %v3457, %v3728
      %v3847 = vadd.f32 %v3458, %v3733
      %v3848 = vadd.f32 %v3459, %v3738
      %v3849 = vadd.f32 %v3460, %v3743
      %v3850 = vadd.f32 %v3461, %v3748
      %v3851 = vadd.f32 %v3462, %v3753
      %v3852 = vadd.f32 %v3463, %v3758
      %v3853 = vadd.f32 %v3464, %v3763
      %v3854 = vadd.f32 %v3465, %v3768
      %v3855 = vadd.f32 %v3466, %v3773
      %v3856 = vadd.f32 %v3467, %v3778
      %v3857 = vadd.f32 %v3468, %v3783
      %v3858 = vadd.f32 %v3469, %v3788
      %v3859 = vadd.f32 %v3470, %v3793
      %v3860 = vadd.f32 %v3471, %v3798
      %v3861 = vadd.f32 %v3472, %v3803
      %v3862 = vadd.f32 %v3473, %v3808
      %v3863 = vadd.f32 %v3474, %v3813
      %v3864 = vadd.f32 %v3475, %v3818
      %v3865 = vadd.f32 %v3476, %v3823
      %v3866 = vadd.f32 %v3477, %v3828
      %v3867 = vadd.f32 %v3478, %v3833
      %v3868 = vld [vmem:[%s3089 + $0x9] sm:$0xff]
      %v3869 = vld [vmem:[%s3089 + $0x11] sm:$0xff]
      %v3870 = vld [vmem:[%s3089 + $0x29] sm:$0xff]
      %v3871 = vld [vmem:[%s3089 + $0x31] sm:$0xff]
      %v3872 = vld [vmem:[%s3089 + $0x49] sm:$0xff]
      %v3873 = vld [vmem:[%s3089 + $0x51] sm:$0xff]
      %v3874 = vld [vmem:[%s3089 + $0x69] sm:$0xff]
      %v3875 = vld [vmem:[%s3089 + $0x71] sm:$0xff]
      %v3876 = vld [vmem:[%s3089 + $0x89] sm:$0xff]
      %v3877 = vld [vmem:[%s3089 + $0x91] sm:$0xff]
      %v3878 = vld [vmem:[%s3089 + $0xa9] sm:$0xff]
      %v3879 = vld [vmem:[%s3089 + $0xb1] sm:$0xff]
      %v3880 = vld [vmem:[%s3089 + $0xc9] sm:$0xff]
      %v3881 = vld [vmem:[%s3089 + $0xd1] sm:$0xff]
      %v3882 = vld [vmem:[%s3089 + $0xe9] sm:$0xff]
      %v3883 = vld [vmem:[%s3089 + $0xf1] sm:$0xff]
      %v3884 = vld [vmem:[%s3089 + $0x109] sm:$0xff]
      %v3885 = vld [vmem:[%s3089 + $0x111] sm:$0xff]
      %v3886 = vld [vmem:[%s3089 + $0x129] sm:$0xff]
      %v3887 = vld [vmem:[%s3089 + $0x131] sm:$0xff]
      %v3888 = vld [vmem:[%s3089 + $0x149] sm:$0xff]
      %v3889 = vld [vmem:[%s3089 + $0x151] sm:$0xff]
      %v3890 = vld [vmem:[%s3089 + $0x169] sm:$0xff]
      %v3891 = vld [vmem:[%s3089 + $0x171] sm:$0xff]
      %v3892 = vld [vmem:[%s3089 + $0x189] sm:$0xff]
      %v3893 = vld [vmem:[%s3089 + $0x191] sm:$0xff]
      %v3894 = vld [vmem:[%s3089 + $0x1a9] sm:$0xff]
      %v3895 = vld [vmem:[%s3089 + $0x1b1] sm:$0xff]
      %v3896 = vld [vmem:[%s3089 + $0x1c9] sm:$0xff]
      %v3897 = vld [vmem:[%s3089 + $0x1d1] sm:$0xff]
      %v3898 = vld [vmem:[%s3089 + $0x1e9] sm:$0xff]
      %v3899 = vld [vmem:[%s3089 + $0x1f1] sm:$0xff]
      %v3900 = vld [vmem:[%s3 + $0x20] sm:$0xf]
      %v3902 = vsel %vm380, %v3868, 0
      %v3905 = vsel %vm380, %v3869, 0
      %v3908 = vsel %vm380, %v3870, 0
      %v3911 = vsel %vm380, %v3871, 0
      %v3914 = vsel %vm380, %v3872, 0
      %v3917 = vsel %vm380, %v3873, 0
      %v3920 = vsel %vm380, %v3874, 0
      %v3923 = vsel %vm380, %v3875, 0
      %v3926 = vsel %vm380, %v3876, 0
      %v3929 = vsel %vm380, %v3877, 0
      %v3932 = vsel %vm380, %v3878, 0
      %v3935 = vsel %vm380, %v3879, 0
      %v3938 = vsel %vm380, %v3880, 0
      %v3941 = vsel %vm380, %v3881, 0
      %v3944 = vsel %vm380, %v3882, 0
      %v3947 = vsel %vm380, %v3883, 0
      %v3950 = vsel %vm380, %v3884, 0
      %v3953 = vsel %vm380, %v3885, 0
      %v3956 = vsel %vm380, %v3886, 0
      %v3959 = vsel %vm380, %v3887, 0
      %v3962 = vsel %vm380, %v3888, 0
      %v3965 = vsel %vm380, %v3889, 0
      %v3968 = vsel %vm380, %v3890, 0
      %v3971 = vsel %vm380, %v3891, 0
      %v3974 = vsel %vm380, %v3892, 0
      %v3977 = vsel %vm380, %v3893, 0
      %v3980 = vsel %vm380, %v3894, 0
      %v3983 = vsel %vm380, %v3895, 0
      %v3986 = vsel %vm380, %v3896, 0
      %v3989 = vsel %vm380, %v3897, 0
      %v3992 = vsel %vm380, %v3898, 0
      %v3995 = vsel %vm380, %v3899, 0
      %v3998 = vsel %vm980, %v3900, 0
      %4000 = vmatprep.subr.mxu0 0.0
      %4001 = vmatpush1.msra.mxu0 %v3998
      %4002 = vmatprep.subr.mxu0 0.0
      %4003 = vmatpush1.msra.mxu0 0.0
      %4004 = vmatprep.subr.mxu0 0.0
      %4005 = vmatpush1.msra.mxu0 0.0
      %4006 = vmatprep.subr.mxu0 0.0
      %4007 = vmatpush1.msra.mxu0 0.0
      %4008 = vmatprep.subr.mxu0 0.0
      %4009 = vmatpush1.msra.mxu0 0.0
      %4010 = vmatprep.subr.mxu0 0.0
      %4011 = vmatpush1.msra.mxu0 0.0
      %4012 = vmatprep.subr.mxu0 0.0
      %4013 = vmatpush1.msra.mxu0 0.0
      %4014 = vmatprep.subr.mxu0 0.0
      %4015 = vmatpush1.msra.mxu0 0.0
      %4016 = vmatprep.subr.mxu0 0.0
      %4017 = vmatpush1.msra.mxu0 0.0
      %4018 = vmatprep.subr.mxu0 0.0
      %4019 = vmatpush1.msra.mxu0 0.0
      %4020 = vmatprep.subr.mxu0 0.0
      %4021 = vmatpush1.msra.mxu0 0.0
      %4022 = vmatprep.subr.mxu0 0.0
      %4023 = vmatpush1.msra.mxu0 0.0
      %4024 = vmatprep.subr.mxu0 0.0
      %4025 = vmatpush1.msra.mxu0 0.0
      %4026 = vmatprep.subr.mxu0 0.0
      %4027 = vmatpush1.msra.mxu0 0.0
      %4028 = vmatprep.subr.mxu0 0.0
      %4029 = vmatpush1.msra.mxu0 0.0
      %4030 = vmatprep.subr.mxu0 0.0
      %4031 = vmatpush1.msra.mxu0 0.0
      %4032 = vmatprep.subr.mxu0 0.0
      %4033 = vmatpush1.msra.mxu0 0.0
      %4034 = vmatprep.subr.mxu0 0.0
      %4035 = vmatpush1.msra.mxu0 0.0
      %4036 = vmatprep.subr.mxu0 0.0
      %4037 = vmatpush1.msra.mxu0 0.0
      %4038 = vmatprep.subr.mxu0 0.0
      %4039 = vmatpush1.msra.mxu0 0.0
      %4040 = vmatprep.subr.mxu0 0.0
      %4041 = vmatpush1.msra.mxu0 0.0
      %4042 = vmatprep.subr.mxu0 0.0
      %4043 = vmatpush1.msra.mxu0 0.0
      %4044 = vmatprep.subr.mxu0 0.0
      %4045 = vmatpush1.msra.mxu0 0.0
      %4046 = vmatprep.subr.mxu0 0.0
      %4047 = vmatpush1.msra.mxu0 0.0
      %4048 = vmatprep.subr.mxu0 0.0
      %4049 = vmatpush1.msra.mxu0 0.0
      %4050 = vmatprep.subr.mxu0 0.0
      %4051 = vmatpush1.msra.mxu0 0.0
      %4052 = vmatprep.subr.mxu0 0.0
      %4053 = vmatpush1.msra.mxu0 0.0
      %4054 = vmatprep.subr.mxu0 0.0
      %4055 = vmatpush1.msra.mxu0 0.0
      %4056 = vmatprep.subr.mxu0 0.0
      %4057 = vmatpush1.msra.mxu0 0.0
      %4058 = vmatprep.subr.mxu0 0.0
      %4059 = vmatpush1.msra.mxu0 0.0
      %4060 = vmatprep.subr.mxu0 0.0
      %4061 = vmatpush1.msra.mxu0 0.0
      %4062 = vmatprep.subr.mxu0 0.0
      %4063 = vmatpush1.msra.mxu0 0.0
      %4064 = vmatprep.mubr.f32.mxu0 0.0
      %4065 = vmatmul.mubr.f32.gmra.mrb[0].mxu0 %v3902
      %v4066 = vpop.f32.mrb[0].mxu0
      %v4067 = vadd.f32 0.0, %v4066
      %v4068 = vpop.f32.mrb[0].mxu0
      %4069 = vmatprep.mubr.f32.mxu0 0.0
      %4070 = vmatmul.mubr.f32.gmra.mrb[0].mxu0 %v3905
      %v4071 = vpop.f32.mrb[0].mxu0
      %v4072 = vadd.f32 0.0, %v4071
      %v4073 = vpop.f32.mrb[0].mxu0
      %4074 = vmatprep.mubr.f32.mxu0 0.0
      %4075 = vmatmul.mubr.f32.gmra.mrb[0].mxu0 %v3908
      %v4076 = vpop.f32.mrb[0].mxu0
      %v4077 = vadd.f32 0.0, %v4076
      %v4078 = vpop.f32.mrb[0].mxu0
      %4079 = vmatprep.mubr.f32.mxu0 0.0
      %4080 = vmatmul.mubr.f32.gmra.mrb[0].mxu0 %v3911
      %v4081 = vpop.f32.mrb[0].mxu0
      %v4082 = vadd.f32 0.0, %v4081
      %v4083 = vpop.f32.mrb[0].mxu0
      %4084 = vmatprep.mubr.f32.mxu0 0.0
      %4085 = vmatmul.mubr.f32.gmra.mrb[0].mxu0 %v3914
      %v4086 = vpop.f32.mrb[0].mxu0
      %v4087 = vadd.f32 0.0, %v4086
      %v4088 = vpop.f32.mrb[0].mxu0
      %4089 = vmatprep.mubr.f32.mxu0 0.0
      %4090 = vmatmul.mubr.f32.gmra.mrb[0].mxu0 %v3917
      %v4091 = vpop.f32.mrb[0].mxu0
      %v4092 = vadd.f32 0.0, %v4091
      %v4093 = vpop.f32.mrb[0].mxu0
      %4094 = vmatprep.mubr.f32.mxu0 0.0
      %4095 = vmatmul.mubr.f32.gmra.mrb[0].mxu0 %v3920
      %v4096 = vpop.f32.mrb[0].mxu0
      %v4097 = vadd.f32 0.0, %v4096
      %v4098 = vpop.f32.mrb[0].mxu0
      %4099 = vmatprep.mubr.f32.mxu0 0.0
      %4100 = vmatmul.mubr.f32.gmra.mrb[0].mxu0 %v3923
      %v4101 = vpop.f32.mrb[0].mxu0
      %v4102 = vadd.f32 0.0, %v4101
      %v4103 = vpop.f32.mrb[0].mxu0
      %4104 = vmatprep.mubr.f32.mxu0 0.0
      %4105 = vmatmul.mubr.f32.gmra.mrb[0].mxu0 %v3926
      %v4106 = vpop.f32.mrb[0].mxu0
      %v4107 = vadd.f32 0.0, %v4106
      %v4108 = vpop.f32.mrb[0].mxu0
      %4109 = vmatprep.mubr.f32.mxu0 0.0
      %4110 = vmatmul.mubr.f32.gmra.mrb[0].mxu0 %v3929
      %v4111 = vpop.f32.mrb[0].mxu0
      %v4112 = vadd.f32 0.0, %v4111
      %v4113 = vpop.f32.mrb[0].mxu0
      %4114 = vmatprep.mubr.f32.mxu0 0.0
      %4115 = vmatmul.mubr.f32.gmra.mrb[0].mxu0 %v3932
      %v4116 = vpop.f32.mrb[0].mxu0
      %v4117 = vadd.f32 0.0, %v4116
      %v4118 = vpop.f32.mrb[0].mxu0
      %4119 = vmatprep.mubr.f32.mxu0 0.0
      %4120 = vmatmul.mubr.f32.gmra.mrb[0].mxu0 %v3935
      %v4121 = vpop.f32.mrb[0].mxu0
      %v4122 = vadd.f32 0.0, %v4121
      %v4123 = vpop.f32.mrb[0].mxu0
      %4124 = vmatprep.mubr.f32.mxu0 0.0
      %4125 = vmatmul.mubr.f32.gmra.mrb[0].mxu0 %v3938
      %v4126 = vpop.f32.mrb[0].mxu0
      %v4127 = vadd.f32 0.0, %v4126
      %v4128 = vpop.f32.mrb[0].mxu0
      %4129 = vmatprep.mubr.f32.mxu0 0.0
      %4130 = vmatmul.mubr.f32.gmra.mrb[0].mxu0 %v3941
      %v4131 = vpop.f32.mrb[0].mxu0
      %v4132 = vadd.f32 0.0, %v4131
      %v4133 = vpop.f32.mrb[0].mxu0
      %4134 = vmatprep.mubr.f32.mxu0 0.0
      %4135 = vmatmul.mubr.f32.gmra.mrb[0].mxu0 %v3944
      %v4136 = vpop.f32.mrb[0].mxu0
      %v4137 = vadd.f32 0.0, %v4136
      %v4138 = vpop.f32.mrb[0].mxu0
      %4139 = vmatprep.mubr.f32.mxu0 0.0
      %4140 = vmatmul.mubr.f32.gmra.mrb[0].mxu0 %v3947
      %v4141 = vpop.f32.mrb[0].mxu0
      %v4142 = vadd.f32 0.0, %v4141
      %v4143 = vpop.f32.mrb[0].mxu0
      %4144 = vmatprep.mubr.f32.mxu0 0.0
      %4145 = vmatmul.mubr.f32.gmra.mrb[0].mxu0 %v3950
      %v4146 = vpop.f32.mrb[0].mxu0
      %v4147 = vadd.f32 0.0, %v4146
      %v4148 = vpop.f32.mrb[0].mxu0
      %4149 = vmatprep.mubr.f32.mxu0 0.0
      %4150 = vmatmul.mubr.f32.gmra.mrb[0].mxu0 %v3953
      %v4151 = vpop.f32.mrb[0].mxu0
      %v4152 = vadd.f32 0.0, %v4151
      %v4153 = vpop.f32.mrb[0].mxu0
      %4154 = vmatprep.mubr.f32.mxu0 0.0
      %4155 = vmatmul.mubr.f32.gmra.mrb[0].mxu0 %v3956
      %v4156 = vpop.f32.mrb[0].mxu0
      %v4157 = vadd.f32 0.0, %v4156
      %v4158 = vpop.f32.mrb[0].mxu0
      %4159 = vmatprep.mubr.f32.mxu0 0.0
      %4160 = vmatmul.mubr.f32.gmra.mrb[0].mxu0 %v3959
      %v4161 = vpop.f32.mrb[0].mxu0
      %v4162 = vadd.f32 0.0, %v4161
      %v4163 = vpop.f32.mrb[0].mxu0
      %4164 = vmatprep.mubr.f32.mxu0 0.0
      %4165 = vmatmul.mubr.f32.gmra.mrb[0].mxu0 %v3962
      %v4166 = vpop.f32.mrb[0].mxu0
      %v4167 = vadd.f32 0.0, %v4166
      %v4168 = vpop.f32.mrb[0].mxu0
      %4169 = vmatprep.mubr.f32.mxu0 0.0
      %4170 = vmatmul.mubr.f32.gmra.mrb[0].mxu0 %v3965
      %v4171 = vpop.f32.mrb[0].mxu0
      %v4172 = vadd.f32 0.0, %v4171
      %v4173 = vpop.f32.mrb[0].mxu0
      %4174 = vmatprep.mubr.f32.mxu0 0.0
      %4175 = vmatmul.mubr.f32.gmra.mrb[0].mxu0 %v3968
      %v4176 = vpop.f32.mrb[0].mxu0
      %v4177 = vadd.f32 0.0, %v4176
      %v4178 = vpop.f32.mrb[0].mxu0
      %4179 = vmatprep.mubr.f32.mxu0 0.0
      %4180 = vmatmul.mubr.f32.gmra.mrb[0].mxu0 %v3971
      %v4181 = vpop.f32.mrb[0].mxu0
      %v4182 = vadd.f32 0.0, %v4181
      %v4183 = vpop.f32.mrb[0].mxu0
      %4184 = vmatprep.mubr.f32.mxu0 0.0
      %4185 = vmatmul.mubr.f32.gmra.mrb[0].mxu0 %v3974
      %v4186 = vpop.f32.mrb[0].mxu0
      %v4187 = vadd.f32 0.0, %v4186
      %v4188 = vpop.f32.mrb[0].mxu0
      %4189 = vmatprep.mubr.f32.mxu0 0.0
      %4190 = vmatmul.mubr.f32.gmra.mrb[0].mxu0 %v3977
      %v4191 = vpop.f32.mrb[0].mxu0
      %v4192 = vadd.f32 0.0, %v4191
      %v4193 = vpop.f32.mrb[0].mxu0
      %4194 = vmatprep.mubr.f32.mxu0 0.0
      %4195 = vmatmul.mubr.f32.gmra.mrb[0].mxu0 %v3980
      %v4196 = vpop.f32.mrb[0].mxu0
      %v4197 = vadd.f32 0.0, %v4196
      %v4198 = vpop.f32.mrb[0].mxu0
      %4199 = vmatprep.mubr.f32.mxu0 0.0
      %4200 = vmatmul.mubr.f32.gmra.mrb[0].mxu0 %v3983
      %v4201 = vpop.f32.mrb[0].mxu0
      %v4202 = vadd.f32 0.0, %v4201
      %v4203 = vpop.f32.mrb[0].mxu0
      %4204 = vmatprep.mubr.f32.mxu0 0.0
      %4205 = vmatmul.mubr.f32.gmra.mrb[0].mxu0 %v3986
      %v4206 = vpop.f32.mrb[0].mxu0
      %v4207 = vadd.f32 0.0, %v4206
      %v4208 = vpop.f32.mrb[0].mxu0
      %4209 = vmatprep.mubr.f32.mxu0 0.0
      %4210 = vmatmul.mubr.f32.gmra.mrb[0].mxu0 %v3989
      %v4211 = vpop.f32.mrb[0].mxu0
      %v4212 = vadd.f32 0.0, %v4211
      %v4213 = vpop.f32.mrb[0].mxu0
      %4214 = vmatprep.mubr.f32.mxu0 0.0
      %4215 = vmatmul.mubr.f32.gmra.mrb[0].mxu0 %v3992
      %v4216 = vpop.f32.mrb[0].mxu0
      %v4217 = vadd.f32 0.0, %v4216
      %v4218 = vpop.f32.mrb[0].mxu0
      %4219 = vmatprep.mubr.f32.mxu0 0.0
      %4220 = vmatmul.mubr.f32.gmra.mrb[0].mxu0 %v3995
      %v4221 = vpop.f32.mrb[0].mxu0
      %v4222 = vadd.f32 0.0, %v4221
      %v4223 = vpop.f32.mrb[0].mxu0
      %4224 = vdwg.mxu0
      %v4225 = vadd.f32 %v3836, %v4067
      %v4226 = vadd.f32 %v3837, %v4072
      %v4227 = vadd.f32 %v3838, %v4077
      %v4228 = vadd.f32 %v3839, %v4082
      %v4229 = vadd.f32 %v3840, %v4087
      %v4230 = vadd.f32 %v3841, %v4092
      %v4231 = vadd.f32 %v3842, %v4097
      %v4232 = vadd.f32 %v3843, %v4102
      %v4233 = vadd.f32 %v3844, %v4107
      %v4234 = vadd.f32 %v3845, %v4112
      %v4235 = vadd.f32 %v3846, %v4117
      %v4236 = vadd.f32 %v3847, %v4122
      %v4237 = vadd.f32 %v3848, %v4127
      %v4238 = vadd.f32 %v3849, %v4132
      %v4239 = vadd.f32 %v3850, %v4137
      %v4240 = vadd.f32 %v3851, %v4142
      %v4241 = vadd.f32 %v3852, %v4147
      %v4242 = vadd.f32 %v3853, %v4152
      %v4243 = vadd.f32 %v3854, %v4157
      %v4244 = vadd.f32 %v3855, %v4162
      %v4245 = vadd.f32 %v3856, %v4167
      %v4246 = vadd.f32 %v3857, %v4172
      %v4247 = vadd.f32 %v3858, %v4177
      %v4248 = vadd.f32 %v3859, %v4182
      %v4249 = vadd.f32 %v3860, %v4187
      %v4250 = vadd.f32 %v3861, %v4192
      %v4251 = vadd.f32 %v3862, %v4197
      %v4252 = vadd.f32 %v3863, %v4202
      %v4253 = vadd.f32 %v3864, %v4207
      %v4254 = vadd.f32 %v3865, %v4212
      %v4255 = vadd.f32 %v3866, %v4217
      %v4256 = vadd.f32 %v3867, %v4222
      %v4257 = vld [vmem:[#allocation3 + $0x7] sm:$0xff]
      %v4258 = vld [vmem:[#allocation3 + $0xf] sm:$0xff]
      %v4259 = vld [vmem:[#allocation3 + $0x27] sm:$0xff]
      %v4260 = vld [vmem:[#allocation3 + $0x2f] sm:$0xff]
      %v4261 = vld [vmem:[#allocation3 + $0x47] sm:$0xff]
      %v4262 = vld [vmem:[#allocation3 + $0x4f] sm:$0xff]
      %v4263 = vld [vmem:[#allocation3 + $0x67] sm:$0xff]
      %v4264 = vld [vmem:[#allocation3 + $0x6f] sm:$0xff]
      %v4265 = vld [vmem:[#allocation3 + $0x87] sm:$0xff]
      %v4266 = vld [vmem:[#allocation3 + $0x8f] sm:$0xff]
      %v4267 = vld [vmem:[#allocation3 + $0xa7] sm:$0xff]
      %v4268 = vld [vmem:[#allocation3 + $0xaf] sm:$0xff]
      %v4269 = vld [vmem:[#allocation3 + $0xc7] sm:$0xff]
      %v4270 = vld [vmem:[#allocation3 + $0xcf] sm:$0xff]
      %v4271 = vld [vmem:[#allocation3 + $0xe7] sm:$0xff]
      %v4272 = vld [vmem:[#allocation3 + $0xef] sm:$0xff]
      %v4273 = vld [vmem:[#allocation3 + $0x107] sm:$0xff]
      %v4274 = vld [vmem:[#allocation3 + $0x10f] sm:$0xff]
      %v4275 = vld [vmem:[#allocation3 + $0x127] sm:$0xff]
      %v4276 = vld [vmem:[#allocation3 + $0x12f] sm:$0xff]
      %v4277 = vld [vmem:[#allocation3 + $0x147] sm:$0xff]
      %v4278 = vld [vmem:[#allocation3 + $0x14f] sm:$0xff]
      %v4279 = vld [vmem:[#allocation3 + $0x167] sm:$0xff]
      %v4280 = vld [vmem:[#allocation3 + $0x16f] sm:$0xff]
      %v4281 = vld [vmem:[#allocation3 + $0x187] sm:$0xff]
      %v4282 = vld [vmem:[#allocation3 + $0x18f] sm:$0xff]
      %v4283 = vld [vmem:[#allocation3 + $0x1a7] sm:$0xff]
      %v4284 = vld [vmem:[#allocation3 + $0x1af] sm:$0xff]
      %v4285 = vld [vmem:[#allocation3 + $0x1c7] sm:$0xff]
      %v4286 = vld [vmem:[#allocation3 + $0x1cf] sm:$0xff]
      %v4287 = vld [vmem:[#allocation3 + $0x1e7] sm:$0xff]
      %v4288 = vld [vmem:[#allocation3 + $0x1ef] sm:$0xff]
      %v4289 = vld [vmem:[%s4] sm:$0xf]
      %v4291 = vsel %vm380, %v4257, 0
      %v4294 = vsel %vm380, %v4258, 0
      %v4297 = vsel %vm380, %v4259, 0
      %v4300 = vsel %vm380, %v4260, 0
      %v4303 = vsel %vm380, %v4261, 0
      %v4306 = vsel %vm380, %v4262, 0
      %v4309 = vsel %vm380, %v4263, 0
      %v4312 = vsel %vm380, %v4264, 0
      %v4315 = vsel %vm380, %v4265, 0
      %v4318 = vsel %vm380, %v4266, 0
      %v4321 = vsel %vm380, %v4267, 0
      %v4324 = vsel %vm380, %v4268, 0
      %v4327 = vsel %vm380, %v4269, 0
      %v4330 = vsel %vm380, %v4270, 0
      %v4333 = vsel %vm380, %v4271, 0
      %v4336 = vsel %vm380, %v4272, 0
      %v4339 = vsel %vm380, %v4273, 0
      %v4342 = vsel %vm380, %v4274, 0
      %v4345 = vsel %vm380, %v4275, 0
      %v4348 = vsel %vm380, %v4276, 0
      %v4351 = vsel %vm380, %v4277, 0
      %v4354 = vsel %vm380, %v4278, 0
      %v4357 = vsel %vm380, %v4279, 0
      %v4360 = vsel %vm380, %v4280, 0
      %v4363 = vsel %vm380, %v4281, 0
      %v4366 = vsel %vm380, %v4282, 0
      %v4369 = vsel %vm380, %v4283, 0
      %v4372 = vsel %vm380, %v4284, 0
      %v4375 = vsel %vm380, %v4285, 0
      %v4378 = vsel %vm380, %v4286, 0
      %v4381 = vsel %vm380, %v4287, 0
      %v4384 = vsel %vm380, %v4288, 0
      %v4387 = vsel %vm980, %v4289, 0
      %4389 = vmatprep.subr.mxu0 0.0
      %4390 = vmatpush1.msra.mxu0 %v4387
      %4391 = vmatprep.subr.mxu0 0.0
      %4392 = vmatpush1.msra.mxu0 0.0
      %4393 = vmatprep.subr.mxu0 0.0
      %4394 = vmatpush1.msra.mxu0 0.0
      %4395 = vmatprep.subr.mxu0 0.0
      %4396 = vmatpush1.msra.mxu0 0.0
      %4397 = vmatprep.subr.mxu0 0.0
      %4398 = vmatpush1.msra.mxu0 0.0
      %4399 = vmatprep.subr.mxu0 0.0
      %4400 = vmatpush1.msra.mxu0 0.0
      %4401 = vmatprep.subr.mxu0 0.0
      %4402 = vmatpush1.msra.mxu0 0.0
      %4403 = vmatprep.subr.mxu0 0.0
      %4404 = vmatpush1.msra.mxu0 0.0
      %4405 = vmatprep.subr.mxu0 0.0
      %4406 = vmatpush1.msra.mxu0 0.0
      %4407 = vmatprep.subr.mxu0 0.0
      %4408 = vmatpush1.msra.mxu0 0.0
      %4409 = vmatprep.subr.mxu0 0.0
      %4410 = vmatpush1.msra.mxu0 0.0
      %4411 = vmatprep.subr.mxu0 0.0
      %4412 = vmatpush1.msra.mxu0 0.0
      %4413 = vmatprep.subr.mxu0 0.0
      %4414 = vmatpush1.msra.mxu0 0.0
      %4415 = vmatprep.subr.mxu0 0.0
      %4416 = vmatpush1.msra.mxu0 0.0
      %4417 = vmatprep.subr.mxu0 0.0
      %4418 = vmatpush1.msra.mxu0 0.0
      %4419 = vmatprep.subr.mxu0 0.0
      %4420 = vmatpush1.msra.mxu0 0.0
      %4421 = vmatprep.subr.mxu0 0.0
      %4422 = vmatpush1.msra.mxu0 0.0
      %4423 = vmatprep.subr.mxu0 0.0
      %4424 = vmatpush1.msra.mxu0 0.0
      %4425 = vmatprep.subr.mxu0 0.0
      %4426 = vmatpush1.msra.mxu0 0.0
      %4427 = vmatprep.subr.mxu0 0.0
      %4428 = vmatpush1.msra.mxu0 0.0
      %4429 = vmatprep.subr.mxu0 0.0
      %4430 = vmatpush1.msra.mxu0 0.0
      %4431 = vmatprep.subr.mxu0 0.0
      %4432 = vmatpush1.msra.mxu0 0.0
      %4433 = vmatprep.subr.mxu0 0.0
      %4434 = vmatpush1.msra.mxu0 0.0
      %4435 = vmatprep.subr.mxu0 0.0
      %4436 = vmatpush1.msra.mxu0 0.0
      %4437 = vmatprep.subr.mxu0 0.0
      %4438 = vmatpush1.msra.mxu0 0.0
      %4439 = vmatprep.subr.mxu0 0.0
      %4440 = vmatpush1.msra.mxu0 0.0
      %4441 = vmatprep.subr.mxu0 0.0
      %4442 = vmatpush1.msra.mxu0 0.0
      %4443 = vmatprep.subr.mxu0 0.0
      %4444 = vmatpush1.msra.mxu0 0.0
      %4445 = vmatprep.subr.mxu0 0.0
      %4446 = vmatpush1.msra.mxu0 0.0
      %4447 = vmatprep.subr.mxu0 0.0
      %4448 = vmatpush1.msra.mxu0 0.0
      %4449 = vmatprep.subr.mxu0 0.0
      %4450 = vmatpush1.msra.mxu0 0.0
      %4451 = vmatprep.subr.mxu0 0.0
      %4452 = vmatpush1.msra.mxu0 0.0
      %4453 = vmatprep.mubr.f32.mxu0 0.0
      %4454 = vmatmul.mubr.f32.gmra.mrb[0].mxu0 %v4291
      %v4455 = vpop.f32.mrb[0].mxu0
      %v4456 = vadd.f32 0.0, %v4455
      %v4457 = vpop.f32.mrb[0].mxu0
      %4458 = vmatprep.mubr.f32.mxu0 0.0
      %4459 = vmatmul.mubr.f32.gmra.mrb[0].mxu0 %v4294
      %v4460 = vpop.f32.mrb[0].mxu0
      %v4461 = vadd.f32 0.0, %v4460
      %v4462 = vpop.f32.mrb[0].mxu0
      %4463 = vmatprep.mubr.f32.mxu0 0.0
      %4464 = vmatmul.mubr.f32.gmra.mrb[0].mxu0 %v4297
      %v4465 = vpop.f32.mrb[0].mxu0
      %v4466 = vadd.f32 0.0, %v4465
      %v4467 = vpop.f32.mrb[0].mxu0
      %4468 = vmatprep.mubr.f32.mxu0 0.0
      %4469 = vmatmul.mubr.f32.gmra.mrb[0].mxu0 %v4300
      %v4470 = vpop.f32.mrb[0].mxu0
      %v4471 = vadd.f32 0.0, %v4470
      %v4472 = vpop.f32.mrb[0].mxu0
      %4473 = vmatprep.mubr.f32.mxu0 0.0
      %4474 = vmatmul.mubr.f32.gmra.mrb[0].mxu0 %v4303
      %v4475 = vpop.f32.mrb[0].mxu0
      %v4476 = vadd.f32 0.0, %v4475
      %v4477 = vpop.f32.mrb[0].mxu0
      %4478 = vmatprep.mubr.f32.mxu0 0.0
      %4479 = vmatmul.mubr.f32.gmra.mrb[0].mxu0 %v4306
      %v4480 = vpop.f32.mrb[0].mxu0
      %v4481 = vadd.f32 0.0, %v4480
      %v4482 = vpop.f32.mrb[0].mxu0
      %4483 = vmatprep.mubr.f32.mxu0 0.0
      %4484 = vmatmul.mubr.f32.gmra.mrb[0].mxu0 %v4309
      %v4485 = vpop.f32.mrb[0].mxu0
      %v4486 = vadd.f32 0.0, %v4485
      %v4487 = vpop.f32.mrb[0].mxu0
      %4488 = vmatprep.mubr.f32.mxu0 0.0
      %4489 = vmatmul.mubr.f32.gmra.mrb[0].mxu0 %v4312
      %v4490 = vpop.f32.mrb[0].mxu0
      %v4491 = vadd.f32 0.0, %v4490
      %v4492 = vpop.f32.mrb[0].mxu0
      %4493 = vmatprep.mubr.f32.mxu0 0.0
      %4494 = vmatmul.mubr.f32.gmra.mrb[0].mxu0 %v4315
      %v4495 = vpop.f32.mrb[0].mxu0
      %v4496 = vadd.f32 0.0, %v4495
      %v4497 = vpop.f32.mrb[0].mxu0
      %4498 = vmatprep.mubr.f32.mxu0 0.0
      %4499 = vmatmul.mubr.f32.gmra.mrb[0].mxu0 %v4318
      %v4500 = vpop.f32.mrb[0].mxu0
      %v4501 = vadd.f32 0.0, %v4500
      %v4502 = vpop.f32.mrb[0].mxu0
      %4503 = vmatprep.mubr.f32.mxu0 0.0
      %4504 = vmatmul.mubr.f32.gmra.mrb[0].mxu0 %v4321
      %v4505 = vpop.f32.mrb[0].mxu0
      %v4506 = vadd.f32 0.0, %v4505
      %v4507 = vpop.f32.mrb[0].mxu0
      %4508 = vmatprep.mubr.f32.mxu0 0.0
      %4509 = vmatmul.mubr.f32.gmra.mrb[0].mxu0 %v4324
      %v4510 = vpop.f32.mrb[0].mxu0
      %v4511 = vadd.f32 0.0, %v4510
      %v4512 = vpop.f32.mrb[0].mxu0
      %4513 = vmatprep.mubr.f32.mxu0 0.0
      %4514 = vmatmul.mubr.f32.gmra.mrb[0].mxu0 %v4327
      %v4515 = vpop.f32.mrb[0].mxu0
      %v4516 = vadd.f32 0.0, %v4515
      %v4517 = vpop.f32.mrb[0].mxu0
      %4518 = vmatprep.mubr.f32.mxu0 0.0
      %4519 = vmatmul.mubr.f32.gmra.mrb[0].mxu0 %v4330
      %v4520 = vpop.f32.mrb[0].mxu0
      %v4521 = vadd.f32 0.0, %v4520
      %v4522 = vpop.f32.mrb[0].mxu0
      %4523 = vmatprep.mubr.f32.mxu0 0.0
      %4524 = vmatmul.mubr.f32.gmra.mrb[0].mxu0 %v4333
      %v4525 = vpop.f32.mrb[0].mxu0
      %v4526 = vadd.f32 0.0, %v4525
      %v4527 = vpop.f32.mrb[0].mxu0
      %4528 = vmatprep.mubr.f32.mxu0 0.0
      %4529 = vmatmul.mubr.f32.gmra.mrb[0].mxu0 %v4336
      %v4530 = vpop.f32.mrb[0].mxu0
      %v4531 = vadd.f32 0.0, %v4530
      %v4532 = vpop.f32.mrb[0].mxu0
      %4533 = vmatprep.mubr.f32.mxu0 0.0
      %4534 = vmatmul.mubr.f32.gmra.mrb[0].mxu0 %v4339
      %v4535 = vpop.f32.mrb[0].mxu0
      %v4536 = vadd.f32 0.0, %v4535
      %v4537 = vpop.f32.mrb[0].mxu0
      %4538 = vmatprep.mubr.f32.mxu0 0.0
      %4539 = vmatmul.mubr.f32.gmra.mrb[0].mxu0 %v4342
      %v4540 = vpop.f32.mrb[0].mxu0
      %v4541 = vadd.f32 0.0, %v4540
      %v4542 = vpop.f32.mrb[0].mxu0
      %4543 = vmatprep.mubr.f32.mxu0 0.0
      %4544 = vmatmul.mubr.f32.gmra.mrb[0].mxu0 %v4345
      %v4545 = vpop.f32.mrb[0].mxu0
      %v4546 = vadd.f32 0.0, %v4545
      %v4547 = vpop.f32.mrb[0].mxu0
      %4548 = vmatprep.mubr.f32.mxu0 0.0
      %4549 = vmatmul.mubr.f32.gmra.mrb[0].mxu0 %v4348
      %v4550 = vpop.f32.mrb[0].mxu0
      %v4551 = vadd.f32 0.0, %v4550
      %v4552 = vpop.f32.mrb[0].mxu0
      %4553 = vmatprep.mubr.f32.mxu0 0.0
      %4554 = vmatmul.mubr.f32.gmra.mrb[0].mxu0 %v4351
      %v4555 = vpop.f32.mrb[0].mxu0
      %v4556 = vadd.f32 0.0, %v4555
      %v4557 = vpop.f32.mrb[0].mxu0
      %4558 = vmatprep.mubr.f32.mxu0 0.0
      %4559 = vmatmul.mubr.f32.gmra.mrb[0].mxu0 %v4354
      %v4560 = vpop.f32.mrb[0].mxu0
      %v4561 = vadd.f32 0.0, %v4560
      %v4562 = vpop.f32.mrb[0].mxu0
      %4563 = vmatprep.mubr.f32.mxu0 0.0
      %4564 = vmatmul.mubr.f32.gmra.mrb[0].mxu0 %v4357
      %v4565 = vpop.f32.mrb[0].mxu0
      %v4566 = vadd.f32 0.0, %v4565
      %v4567 = vpop.f32.mrb[0].mxu0
      %4568 = vmatprep.mubr.f32.mxu0 0.0
      %4569 = vmatmul.mubr.f32.gmra.mrb[0].mxu0 %v4360
      %v4570 = vpop.f32.mrb[0].mxu0
      %v4571 = vadd.f32 0.0, %v4570
      %v4572 = vpop.f32.mrb[0].mxu0
      %4573 = vmatprep.mubr.f32.mxu0 0.0
      %4574 = vmatmul.mubr.f32.gmra.mrb[0].mxu0 %v4363
      %v4575 = vpop.f32.mrb[0].mxu0
      %v4576 = vadd.f32 0.0, %v4575
      %v4577 = vpop.f32.mrb[0].mxu0
      %4578 = vmatprep.mubr.f32.mxu0 0.0
      %4579 = vmatmul.mubr.f32.gmra.mrb[0].mxu0 %v4366
      %v4580 = vpop.f32.mrb[0].mxu0
      %v4581 = vadd.f32 0.0, %v4580
      %v4582 = vpop.f32.mrb[0].mxu0
      %4583 = vmatprep.mubr.f32.mxu0 0.0
      %4584 = vmatmul.mubr.f32.gmra.mrb[0].mxu0 %v4369
      %v4585 = vpop.f32.mrb[0].mxu0
      %v4586 = vadd.f32 0.0, %v4585
      %v4587 = vpop.f32.mrb[0].mxu0
      %4588 = vmatprep.mubr.f32.mxu0 0.0
      %4589 = vmatmul.mubr.f32.gmra.mrb[0].mxu0 %v4372
      %v4590 = vpop.f32.mrb[0].mxu0
      %v4591 = vadd.f32 0.0, %v4590
      %v4592 = vpop.f32.mrb[0].mxu0
      %4593 = vmatprep.mubr.f32.mxu0 0.0
      %4594 = vmatmul.mubr.f32.gmra.mrb[0].mxu0 %v4375
      %v4595 = vpop.f32.mrb[0].mxu0
      %v4596 = vadd.f32 0.0, %v4595
      %v4597 = vpop.f32.mrb[0].mxu0
      %4598 = vmatprep.mubr.f32.mxu0 0.0
      %4599 = vmatmul.mubr.f32.gmra.mrb[0].mxu0 %v4378
      %v4600 = vpop.f32.mrb[0].mxu0
      %v4601 = vadd.f32 0.0, %v4600
      %v4602 = vpop.f32.mrb[0].mxu0
      %4603 = vmatprep.mubr.f32.mxu0 0.0
      %4604 = vmatmul.mubr.f32.gmra.mrb[0].mxu0 %v4381
      %v4605 = vpop.f32.mrb[0].mxu0
      %v4606 = vadd.f32 0.0, %v4605
      %v4607 = vpop.f32.mrb[0].mxu0
      %4608 = vmatprep.mubr.f32.mxu0 0.0
      %4609 = vmatmul.mubr.f32.gmra.mrb[0].mxu0 %v4384
      %v4610 = vpop.f32.mrb[0].mxu0
      %v4611 = vadd.f32 0.0, %v4610
      %v4612 = vpop.f32.mrb[0].mxu0
      %4613 = vdwg.mxu0
      %v4614 = vadd.f32 %v4225, %v4456
      %v4615 = vadd.f32 %v4226, %v4461
      %v4616 = vadd.f32 %v4227, %v4466
      %v4617 = vadd.f32 %v4228, %v4471
      %v4618 = vadd.f32 %v4229, %v4476
      %v4619 = vadd.f32 %v4230, %v4481
      %v4620 = vadd.f32 %v4231, %v4486
      %v4621 = vadd.f32 %v4232, %v4491
      %v4622 = vadd.f32 %v4233, %v4496
      %v4623 = vadd.f32 %v4234, %v4501
      %v4624 = vadd.f32 %v4235, %v4506
      %v4625 = vadd.f32 %v4236, %v4511
      %v4626 = vadd.f32 %v4237, %v4516
      %v4627 = vadd.f32 %v4238, %v4521
      %v4628 = vadd.f32 %v4239, %v4526
      %v4629 = vadd.f32 %v4240, %v4531
      %v4630 = vadd.f32 %v4241, %v4536
      %v4631 = vadd.f32 %v4242, %v4541
      %v4632 = vadd.f32 %v4243, %v4546
      %v4633 = vadd.f32 %v4244, %v4551
      %v4634 = vadd.f32 %v4245, %v4556
      %v4635 = vadd.f32 %v4246, %v4561
      %v4636 = vadd.f32 %v4247, %v4566
      %v4637 = vadd.f32 %v4248, %v4571
      %v4638 = vadd.f32 %v4249, %v4576
      %v4639 = vadd.f32 %v4250, %v4581
      %v4640 = vadd.f32 %v4251, %v4586
      %v4641 = vadd.f32 %v4252, %v4591
      %v4642 = vadd.f32 %v4253, %v4596
      %v4643 = vadd.f32 %v4254, %v4601
      %v4644 = vadd.f32 %v4255, %v4606
      %v4645 = vadd.f32 %v4256, %v4611
      %v4646 = vld [vmem:[#allocation3 + $0x8] sm:$0xff]
      %v4647 = vld [vmem:[#allocation3 + $0x10] sm:$0xff]
      %v4648 = vld [vmem:[#allocation3 + $0x28] sm:$0xff]
      %v4649 = vld [vmem:[#allocation3 + $0x30] sm:$0xff]
      %v4650 = vld [vmem:[#allocation3 + $0x48] sm:$0xff]
      %v4651 = vld [vmem:[#allocation3 + $0x50] sm:$0xff]
      %v4652 = vld [vmem:[#allocation3 + $0x68] sm:$0xff]
      %v4653 = vld [vmem:[#allocation3 + $0x70] sm:$0xff]
      %v4654 = vld [vmem:[#allocation3 + $0x88] sm:$0xff]
      %v4655 = vld [vmem:[#allocation3 + $0x90] sm:$0xff]
      %v4656 = vld [vmem:[#allocation3 + $0xa8] sm:$0xff]
      %v4657 = vld [vmem:[#allocation3 + $0xb0] sm:$0xff]
      %v4658 = vld [vmem:[#allocation3 + $0xc8] sm:$0xff]
      %v4659 = vld [vmem:[#allocation3 + $0xd0] sm:$0xff]
      %v4660 = vld [vmem:[#allocation3 + $0xe8] sm:$0xff]
      %v4661 = vld [vmem:[#allocation3 + $0xf0] sm:$0xff]
      %v4662 = vld [vmem:[#allocation3 + $0x108] sm:$0xff]
      %v4663 = vld [vmem:[#allocation3 + $0x110] sm:$0xff]
      %v4664 = vld [vmem:[#allocation3 + $0x128] sm:$0xff]
      %v4665 = vld [vmem:[#allocation3 + $0x130] sm:$0xff]
      %v4666 = vld [vmem:[#allocation3 + $0x148] sm:$0xff]
      %v4667 = vld [vmem:[#allocation3 + $0x150] sm:$0xff]
      %v4668 = vld [vmem:[#allocation3 + $0x168] sm:$0xff]
      %v4669 = vld [vmem:[#allocation3 + $0x170] sm:$0xff]
      %v4670 = vld [vmem:[#allocation3 + $0x188] sm:$0xff]
      %v4671 = vld [vmem:[#allocation3 + $0x190] sm:$0xff]
      %v4672 = vld [vmem:[#allocation3 + $0x1a8] sm:$0xff]
      %v4673 = vld [vmem:[#allocation3 + $0x1b0] sm:$0xff]
      %v4674 = vld [vmem:[#allocation3 + $0x1c8] sm:$0xff]
      %v4675 = vld [vmem:[#allocation3 + $0x1d0] sm:$0xff]
      %v4676 = vld [vmem:[#allocation3 + $0x1e8] sm:$0xff]
      %v4677 = vld [vmem:[#allocation3 + $0x1f0] sm:$0xff]
      %v4678 = vld [vmem:[%s4 + $0x4] sm:$0xf]
      %v4680 = vsel %vm380, %v4646, 0
      %v4683 = vsel %vm380, %v4647, 0
      %v4686 = vsel %vm380, %v4648, 0
      %v4689 = vsel %vm380, %v4649, 0
      %v4692 = vsel %vm380, %v4650, 0
      %v4695 = vsel %vm380, %v4651, 0
      %v4698 = vsel %vm380, %v4652, 0
      %v4701 = vsel %vm380, %v4653, 0
      %v4704 = vsel %vm380, %v4654, 0
      %v4707 = vsel %vm380, %v4655, 0
      %v4710 = vsel %vm380, %v4656, 0
      %v4713 = vsel %vm380, %v4657, 0
      %v4716 = vsel %vm380, %v4658, 0
      %v4719 = vsel %vm380, %v4659, 0
      %v4722 = vsel %vm380, %v4660, 0
      %v4725 = vsel %vm380, %v4661, 0
      %v4728 = vsel %vm380, %v4662, 0
      %v4731 = vsel %vm380, %v4663, 0
      %v4734 = vsel %vm380, %v4664, 0
      %v4737 = vsel %vm380, %v4665, 0
      %v4740 = vsel %vm380, %v4666, 0
      %v4743 = vsel %vm380, %v4667, 0
      %v4746 = vsel %vm380, %v4668, 0
      %v4749 = vsel %vm380, %v4669, 0
      %v4752 = vsel %vm380, %v4670, 0
      %v4755 = vsel %vm380, %v4671, 0
      %v4758 = vsel %vm380, %v4672, 0
      %v4761 = vsel %vm380, %v4673, 0
      %v4764 = vsel %vm380, %v4674, 0
      %v4767 = vsel %vm380, %v4675, 0
      %v4770 = vsel %vm380, %v4676, 0
      %v4773 = vsel %vm380, %v4677, 0
      %v4776 = vsel %vm980, %v4678, 0
      %4778 = vmatprep.subr.mxu0 0.0
      %4779 = vmatpush1.msra.mxu0 %v4776
      %4780 = vmatprep.subr.mxu0 0.0
      %4781 = vmatpush1.msra.mxu0 0.0
      %4782 = vmatprep.subr.mxu0 0.0
      %4783 = vmatpush1.msra.mxu0 0.0
      %4784 = vmatprep.subr.mxu0 0.0
      %4785 = vmatpush1.msra.mxu0 0.0
      %4786 = vmatprep.subr.mxu0 0.0
      %4787 = vmatpush1.msra.mxu0 0.0
      %4788 = vmatprep.subr.mxu0 0.0
      %4789 = vmatpush1.msra.mxu0 0.0
      %4790 = vmatprep.subr.mxu0 0.0
      %4791 = vmatpush1.msra.mxu0 0.0
      %4792 = vmatprep.subr.mxu0 0.0
      %4793 = vmatpush1.msra.mxu0 0.0
      %4794 = vmatprep.subr.mxu0 0.0
      %4795 = vmatpush1.msra.mxu0 0.0
      %4796 = vmatprep.subr.mxu0 0.0
      %4797 = vmatpush1.msra.mxu0 0.0
      %4798 = vmatprep.subr.mxu0 0.0
      %4799 = vmatpush1.msra.mxu0 0.0
      %4800 = vmatprep.subr.mxu0 0.0
      %4801 = vmatpush1.msra.mxu0 0.0
      %4802 = vmatprep.subr.mxu0 0.0
      %4803 = vmatpush1.msra.mxu0 0.0
      %4804 = vmatprep.subr.mxu0 0.0
      %4805 = vmatpush1.msra.mxu0 0.0
      %4806 = vmatprep.subr.mxu0 0.0
      %4807 = vmatpush1.msra.mxu0 0.0
      %4808 = vmatprep.subr.mxu0 0.0
      %4809 = vmatpush1.msra.mxu0 0.0
      %4810 = vmatprep.subr.mxu0 0.0
      %4811 = vmatpush1.msra.mxu0 0.0
      %4812 = vmatprep.subr.mxu0 0.0
      %4813 = vmatpush1.msra.mxu0 0.0
      %4814 = vmatprep.subr.mxu0 0.0
      %4815 = vmatpush1.msra.mxu0 0.0
      %4816 = vmatprep.subr.mxu0 0.0
      %4817 = vmatpush1.msra.mxu0 0.0
      %4818 = vmatprep.subr.mxu0 0.0
      %4819 = vmatpush1.msra.mxu0 0.0
      %4820 = vmatprep.subr.mxu0 0.0
      %4821 = vmatpush1.msra.mxu0 0.0
      %4822 = vmatprep.subr.mxu0 0.0
      %4823 = vmatpush1.msra.mxu0 0.0
      %4824 = vmatprep.subr.mxu0 0.0
      %4825 = vmatpush1.msra.mxu0 0.0
      %4826 = vmatprep.subr.mxu0 0.0
      %4827 = vmatpush1.msra.mxu0 0.0
      %4828 = vmatprep.subr.mxu0 0.0
      %4829 = vmatpush1.msra.mxu0 0.0
      %4830 = vmatprep.subr.mxu0 0.0
      %4831 = vmatpush1.msra.mxu0 0.0
      %4832 = vmatprep.subr.mxu0 0.0
      %4833 = vmatpush1.msra.mxu0 0.0
      %4834 = vmatprep.subr.mxu0 0.0
      %4835 = vmatpush1.msra.mxu0 0.0
      %4836 = vmatprep.subr.mxu0 0.0
      %4837 = vmatpush1.msra.mxu0 0.0
      %4838 = vmatprep.subr.mxu0 0.0
      %4839 = vmatpush1.msra.mxu0 0.0
      %4840 = vmatprep.subr.mxu0 0.0
      %4841 = vmatpush1.msra.mxu0 0.0
      %4842 = vmatprep.mubr.f32.mxu0 0.0
      %4843 = vmatmul.mubr.f32.gmra.mrb[0].mxu0 %v4680
      %v4844 = vpop.f32.mrb[0].mxu0
      %v4845 = vadd.f32 0.0, %v4844
      %v4846 = vpop.f32.mrb[0].mxu0
      %4847 = vmatprep.mubr.f32.mxu0 0.0
      %4848 = vmatmul.mubr.f32.gmra.mrb[0].mxu0 %v4683
      %v4849 = vpop.f32.mrb[0].mxu0
      %v4850 = vadd.f32 0.0, %v4849
      %v4851 = vpop.f32.mrb[0].mxu0
      %4852 = vmatprep.mubr.f32.mxu0 0.0
      %4853 = vmatmul.mubr.f32.gmra.mrb[0].mxu0 %v4686
      %v4854 = vpop.f32.mrb[0].mxu0
      %v4855 = vadd.f32 0.0, %v4854
      %v4856 = vpop.f32.mrb[0].mxu0
      %4857 = vmatprep.mubr.f32.mxu0 0.0
      %4858 = vmatmul.mubr.f32.gmra.mrb[0].mxu0 %v4689
      %v4859 = vpop.f32.mrb[0].mxu0
      %v4860 = vadd.f32 0.0, %v4859
      %v4861 = vpop.f32.mrb[0].mxu0
      %4862 = vmatprep.mubr.f32.mxu0 0.0
      %4863 = vmatmul.mubr.f32.gmra.mrb[0].mxu0 %v4692
      %v4864 = vpop.f32.mrb[0].mxu0
      %v4865 = vadd.f32 0.0, %v4864
      %v4866 = vpop.f32.mrb[0].mxu0
      %4867 = vmatprep.mubr.f32.mxu0 0.0
      %4868 = vmatmul.mubr.f32.gmra.mrb[0].mxu0 %v4695
      %v4869 = vpop.f32.mrb[0].mxu0
      %v4870 = vadd.f32 0.0, %v4869
      %v4871 = vpop.f32.mrb[0].mxu0
      %4872 = vmatprep.mubr.f32.mxu0 0.0
      %4873 = vmatmul.mubr.f32.gmra.mrb[0].mxu0 %v4698
      %v4874 = vpop.f32.mrb[0].mxu0
      %v4875 = vadd.f32 0.0, %v4874
      %v4876 = vpop.f32.mrb[0].mxu0
      %4877 = vmatprep.mubr.f32.mxu0 0.0
      %4878 = vmatmul.mubr.f32.gmra.mrb[0].mxu0 %v4701
      %v4879 = vpop.f32.mrb[0].mxu0
      %v4880 = vadd.f32 0.0, %v4879
      %v4881 = vpop.f32.mrb[0].mxu0
      %4882 = vmatprep.mubr.f32.mxu0 0.0
      %4883 = vmatmul.mubr.f32.gmra.mrb[0].mxu0 %v4704
      %v4884 = vpop.f32.mrb[0].mxu0
      %v4885 = vadd.f32 0.0, %v4884
      %v4886 = vpop.f32.mrb[0].mxu0
      %4887 = vmatprep.mubr.f32.mxu0 0.0
      %4888 = vmatmul.mubr.f32.gmra.mrb[0].mxu0 %v4707
      %v4889 = vpop.f32.mrb[0].mxu0
      %v4890 = vadd.f32 0.0, %v4889
      %v4891 = vpop.f32.mrb[0].mxu0
      %4892 = vmatprep.mubr.f32.mxu0 0.0
      %4893 = vmatmul.mubr.f32.gmra.mrb[0].mxu0 %v4710
      %v4894 = vpop.f32.mrb[0].mxu0
      %v4895 = vadd.f32 0.0, %v4894
      %v4896 = vpop.f32.mrb[0].mxu0
      %4897 = vmatprep.mubr.f32.mxu0 0.0
      %4898 = vmatmul.mubr.f32.gmra.mrb[0].mxu0 %v4713
      %v4899 = vpop.f32.mrb[0].mxu0
      %v4900 = vadd.f32 0.0, %v4899
      %v4901 = vpop.f32.mrb[0].mxu0
      %4902 = vmatprep.mubr.f32.mxu0 0.0
      %4903 = vmatmul.mubr.f32.gmra.mrb[0].mxu0 %v4716
      %v4904 = vpop.f32.mrb[0].mxu0
      %v4905 = vadd.f32 0.0, %v4904
      %v4906 = vpop.f32.mrb[0].mxu0
      %4907 = vmatprep.mubr.f32.mxu0 0.0
      %4908 = vmatmul.mubr.f32.gmra.mrb[0].mxu0 %v4719
      %v4909 = vpop.f32.mrb[0].mxu0
      %v4910 = vadd.f32 0.0, %v4909
      %v4911 = vpop.f32.mrb[0].mxu0
      %4912 = vmatprep.mubr.f32.mxu0 0.0
      %4913 = vmatmul.mubr.f32.gmra.mrb[0].mxu0 %v4722
      %v4914 = vpop.f32.mrb[0].mxu0
      %v4915 = vadd.f32 0.0, %v4914
      %v4916 = vpop.f32.mrb[0].mxu0
      %4917 = vmatprep.mubr.f32.mxu0 0.0
      %4918 = vmatmul.mubr.f32.gmra.mrb[0].mxu0 %v4725
      %v4919 = vpop.f32.mrb[0].mxu0
      %v4920 = vadd.f32 0.0, %v4919
      %v4921 = vpop.f32.mrb[0].mxu0
      %4922 = vmatprep.mubr.f32.mxu0 0.0
      %4923 = vmatmul.mubr.f32.gmra.mrb[0].mxu0 %v4728
      %v4924 = vpop.f32.mrb[0].mxu0
      %v4925 = vadd.f32 0.0, %v4924
      %v4926 = vpop.f32.mrb[0].mxu0
      %4927 = vmatprep.mubr.f32.mxu0 0.0
      %4928 = vmatmul.mubr.f32.gmra.mrb[0].mxu0 %v4731
      %v4929 = vpop.f32.mrb[0].mxu0
      %v4930 = vadd.f32 0.0, %v4929
      %v4931 = vpop.f32.mrb[0].mxu0
      %4932 = vmatprep.mubr.f32.mxu0 0.0
      %4933 = vmatmul.mubr.f32.gmra.mrb[0].mxu0 %v4734
      %v4934 = vpop.f32.mrb[0].mxu0
      %v4935 = vadd.f32 0.0, %v4934
      %v4936 = vpop.f32.mrb[0].mxu0
      %4937 = vmatprep.mubr.f32.mxu0 0.0
      %4938 = vmatmul.mubr.f32.gmra.mrb[0].mxu0 %v4737
      %v4939 = vpop.f32.mrb[0].mxu0
      %v4940 = vadd.f32 0.0, %v4939
      %v4941 = vpop.f32.mrb[0].mxu0
      %4942 = vmatprep.mubr.f32.mxu0 0.0
      %4943 = vmatmul.mubr.f32.gmra.mrb[0].mxu0 %v4740
      %v4944 = vpop.f32.mrb[0].mxu0
      %v4945 = vadd.f32 0.0, %v4944
      %v4946 = vpop.f32.mrb[0].mxu0
      %4947 = vmatprep.mubr.f32.mxu0 0.0
      %4948 = vmatmul.mubr.f32.gmra.mrb[0].mxu0 %v4743
      %v4949 = vpop.f32.mrb[0].mxu0
      %v4950 = vadd.f32 0.0, %v4949
      %v4951 = vpop.f32.mrb[0].mxu0
      %4952 = vmatprep.mubr.f32.mxu0 0.0
      %4953 = vmatmul.mubr.f32.gmra.mrb[0].mxu0 %v4746
      %v4954 = vpop.f32.mrb[0].mxu0
      %v4955 = vadd.f32 0.0, %v4954
      %v4956 = vpop.f32.mrb[0].mxu0
      %4957 = vmatprep.mubr.f32.mxu0 0.0
      %4958 = vmatmul.mubr.f32.gmra.mrb[0].mxu0 %v4749
      %v4959 = vpop.f32.mrb[0].mxu0
      %v4960 = vadd.f32 0.0, %v4959
      %v4961 = vpop.f32.mrb[0].mxu0
      %4962 = vmatprep.mubr.f32.mxu0 0.0
      %4963 = vmatmul.mubr.f32.gmra.mrb[0].mxu0 %v4752
      %v4964 = vpop.f32.mrb[0].mxu0
      %v4965 = vadd.f32 0.0, %v4964
      %v4966 = vpop.f32.mrb[0].mxu0
      %4967 = vmatprep.mubr.f32.mxu0 0.0
      %4968 = vmatmul.mubr.f32.gmra.mrb[0].mxu0 %v4755
      %v4969 = vpop.f32.mrb[0].mxu0
      %v4970 = vadd.f32 0.0, %v4969
      %v4971 = vpop.f32.mrb[0].mxu0
      %4972 = vmatprep.mubr.f32.mxu0 0.0
      %4973 = vmatmul.mubr.f32.gmra.mrb[0].mxu0 %v4758
      %v4974 = vpop.f32.mrb[0].mxu0
      %v4975 = vadd.f32 0.0, %v4974
      %v4976 = vpop.f32.mrb[0].mxu0
      %4977 = vmatprep.mubr.f32.mxu0 0.0
      %4978 = vmatmul.mubr.f32.gmra.mrb[0].mxu0 %v4761
      %v4979 = vpop.f32.mrb[0].mxu0
      %v4980 = vadd.f32 0.0, %v4979
      %v4981 = vpop.f32.mrb[0].mxu0
      %4982 = vmatprep.mubr.f32.mxu0 0.0
      %4983 = vmatmul.mubr.f32.gmra.mrb[0].mxu0 %v4764
      %v4984 = vpop.f32.mrb[0].mxu0
      %v4985 = vadd.f32 0.0, %v4984
      %v4986 = vpop.f32.mrb[0].mxu0
      %4987 = vmatprep.mubr.f32.mxu0 0.0
      %4988 = vmatmul.mubr.f32.gmra.mrb[0].mxu0 %v4767
      %v4989 = vpop.f32.mrb[0].mxu0
      %v4990 = vadd.f32 0.0, %v4989
      %v4991 = vpop.f32.mrb[0].mxu0
      %4992 = vmatprep.mubr.f32.mxu0 0.0
      %4993 = vmatmul.mubr.f32.gmra.mrb[0].mxu0 %v4770
      %v4994 = vpop.f32.mrb[0].mxu0
      %v4995 = vadd.f32 0.0, %v4994
      %v4996 = vpop.f32.mrb[0].mxu0
      %4997 = vmatprep.mubr.f32.mxu0 0.0
      %4998 = vmatmul.mubr.f32.gmra.mrb[0].mxu0 %v4773
      %v4999 = vpop.f32.mrb[0].mxu0
      %v5000 = vadd.f32 0.0, %v4999
      %v5001 = vpop.f32.mrb[0].mxu0
      %5002 = vdwg.mxu0
      %v5003 = vadd.f32 %v4614, %v4845
      %v5004 = vadd.f32 %v4615, %v4850
      %v5005 = vadd.f32 %v4616, %v4855
      %v5006 = vadd.f32 %v4617, %v4860
      %v5007 = vadd.f32 %v4618, %v4865
      %v5008 = vadd.f32 %v4619, %v4870
      %v5009 = vadd.f32 %v4620, %v4875
      %v5010 = vadd.f32 %v4621, %v4880
      %v5011 = vadd.f32 %v4622, %v4885
      %v5012 = vadd.f32 %v4623, %v4890
      %v5013 = vadd.f32 %v4624, %v4895
      %v5014 = vadd.f32 %v4625, %v4900
      %v5015 = vadd.f32 %v4626, %v4905
      %v5016 = vadd.f32 %v4627, %v4910
      %v5017 = vadd.f32 %v4628, %v4915
      %v5018 = vadd.f32 %v4629, %v4920
      %v5019 = vadd.f32 %v4630, %v4925
      %v5020 = vadd.f32 %v4631, %v4930
      %v5021 = vadd.f32 %v4632, %v4935
      %v5022 = vadd.f32 %v4633, %v4940
      %v5023 = vadd.f32 %v4634, %v4945
      %v5024 = vadd.f32 %v4635, %v4950
      %v5025 = vadd.f32 %v4636, %v4955
      %v5026 = vadd.f32 %v4637, %v4960
      %v5027 = vadd.f32 %v4638, %v4965
      %v5028 = vadd.f32 %v4639, %v4970
      %v5029 = vadd.f32 %v4640, %v4975
      %v5030 = vadd.f32 %v4641, %v4980
      %v5031 = vadd.f32 %v4642, %v4985
      %v5032 = vadd.f32 %v4643, %v4990
      %v5033 = vadd.f32 %v4644, %v4995
      %v5034 = vadd.f32 %v4645, %v5000
      %v5035 = vld [vmem:[#allocation3 + $0x9] sm:$0xff]
      %v5036 = vld [vmem:[#allocation3 + $0x11] sm:$0xff]
      %v5037 = vld [vmem:[#allocation3 + $0x29] sm:$0xff]
      %v5038 = vld [vmem:[#allocation3 + $0x31] sm:$0xff]
      %v5039 = vld [vmem:[#allocation3 + $0x49] sm:$0xff]
      %v5040 = vld [vmem:[#allocation3 + $0x51] sm:$0xff]
      %v5041 = vld [vmem:[#allocation3 + $0x69] sm:$0xff]
      %v5042 = vld [vmem:[#allocation3 + $0x71] sm:$0xff]
      %v5043 = vld [vmem:[#allocation3 + $0x89] sm:$0xff]
      %v5044 = vld [vmem:[#allocation3 + $0x91] sm:$0xff]
      %v5045 = vld [vmem:[#allocation3 + $0xa9] sm:$0xff]
      %v5046 = vld [vmem:[#allocation3 + $0xb1] sm:$0xff]
      %v5047 = vld [vmem:[#allocation3 + $0xc9] sm:$0xff]
      %v5048 = vld [vmem:[#allocation3 + $0xd1] sm:$0xff]
      %v5049 = vld [vmem:[#allocation3 + $0xe9] sm:$0xff]
      %v5050 = vld [vmem:[#allocation3 + $0xf1] sm:$0xff]
      %v5051 = vld [vmem:[#allocation3 + $0x109] sm:$0xff]
      %v5052 = vld [vmem:[#allocation3 + $0x111] sm:$0xff]
      %v5053 = vld [vmem:[#allocation3 + $0x129] sm:$0xff]
      %v5054 = vld [vmem:[#allocation3 + $0x131] sm:$0xff]
      %v5055 = vld [vmem:[#allocation3 + $0x149] sm:$0xff]
      %v5056 = vld [vmem:[#allocation3 + $0x151] sm:$0xff]
      %v5057 = vld [vmem:[#allocation3 + $0x169] sm:$0xff]
      %v5058 = vld [vmem:[#allocation3 + $0x171] sm:$0xff]
      %v5059 = vld [vmem:[#allocation3 + $0x189] sm:$0xff]
      %v5060 = vld [vmem:[#allocation3 + $0x191] sm:$0xff]
      %v5061 = vld [vmem:[#allocation3 + $0x1a9] sm:$0xff]
      %v5062 = vld [vmem:[#allocation3 + $0x1b1] sm:$0xff]
      %v5063 = vld [vmem:[#allocation3 + $0x1c9] sm:$0xff]
      %v5064 = vld [vmem:[#allocation3 + $0x1d1] sm:$0xff]
      %v5065 = vld [vmem:[#allocation3 + $0x1e9] sm:$0xff]
      %v5066 = vld [vmem:[#allocation3 + $0x1f1] sm:$0xff]
      %v5067 = vld [vmem:[%s4 + $0x8] sm:$0xf]
      %v5069 = vsel %vm380, %v5035, 0
      %v5072 = vsel %vm380, %v5036, 0
      %v5075 = vsel %vm380, %v5037, 0
      %v5078 = vsel %vm380, %v5038, 0
      %v5081 = vsel %vm380, %v5039, 0
      %v5084 = vsel %vm380, %v5040, 0
      %v5087 = vsel %vm380, %v5041, 0
      %v5090 = vsel %vm380, %v5042, 0
      %v5093 = vsel %vm380, %v5043, 0
      %v5096 = vsel %vm380, %v5044, 0
      %v5099 = vsel %vm380, %v5045, 0
      %v5102 = vsel %vm380, %v5046, 0
      %v5105 = vsel %vm380, %v5047, 0
      %v5108 = vsel %vm380, %v5048, 0
      %v5111 = vsel %vm380, %v5049, 0
      %v5114 = vsel %vm380, %v5050, 0
      %v5117 = vsel %vm380, %v5051, 0
      %v5120 = vsel %vm380, %v5052, 0
      %v5123 = vsel %vm380, %v5053, 0
      %v5126 = vsel %vm380, %v5054, 0
      %v5129 = vsel %vm380, %v5055, 0
      %v5132 = vsel %vm380, %v5056, 0
      %v5135 = vsel %vm380, %v5057, 0
      %v5138 = vsel %vm380, %v5058, 0
      %v5141 = vsel %vm380, %v5059, 0
      %v5144 = vsel %vm380, %v5060, 0
      %v5147 = vsel %vm380, %v5061, 0
      %v5150 = vsel %vm380, %v5062, 0
      %v5153 = vsel %vm380, %v5063, 0
      %v5156 = vsel %vm380, %v5064, 0
      %v5159 = vsel %vm380, %v5065, 0
      %v5162 = vsel %vm380, %v5066, 0
      %v5165 = vsel %vm980, %v5067, 0
      %5167 = vmatprep.subr.mxu0 0.0
      %5168 = vmatpush1.msra.mxu0 %v5165
      %5169 = vmatprep.subr.mxu0 0.0
      %5170 = vmatpush1.msra.mxu0 0.0
      %5171 = vmatprep.subr.mxu0 0.0
      %5172 = vmatpush1.msra.mxu0 0.0
      %5173 = vmatprep.subr.mxu0 0.0
      %5174 = vmatpush1.msra.mxu0 0.0
      %5175 = vmatprep.subr.mxu0 0.0
      %5176 = vmatpush1.msra.mxu0 0.0
      %5177 = vmatprep.subr.mxu0 0.0
      %5178 = vmatpush1.msra.mxu0 0.0
      %5179 = vmatprep.subr.mxu0 0.0
      %5180 = vmatpush1.msra.mxu0 0.0
      %5181 = vmatprep.subr.mxu0 0.0
      %5182 = vmatpush1.msra.mxu0 0.0
      %5183 = vmatprep.subr.mxu0 0.0
      %5184 = vmatpush1.msra.mxu0 0.0
      %5185 = vmatprep.subr.mxu0 0.0
      %5186 = vmatpush1.msra.mxu0 0.0
      %5187 = vmatprep.subr.mxu0 0.0
      %5188 = vmatpush1.msra.mxu0 0.0
      %5189 = vmatprep.subr.mxu0 0.0
      %5190 = vmatpush1.msra.mxu0 0.0
      %5191 = vmatprep.subr.mxu0 0.0
      %5192 = vmatpush1.msra.mxu0 0.0
      %5193 = vmatprep.subr.mxu0 0.0
      %5194 = vmatpush1.msra.mxu0 0.0
      %5195 = vmatprep.subr.mxu0 0.0
      %5196 = vmatpush1.msra.mxu0 0.0
      %5197 = vmatprep.subr.mxu0 0.0
      %5198 = vmatpush1.msra.mxu0 0.0
      %5199 = vmatprep.subr.mxu0 0.0
      %5200 = vmatpush1.msra.mxu0 0.0
      %5201 = vmatprep.subr.mxu0 0.0
      %5202 = vmatpush1.msra.mxu0 0.0
      %5203 = vmatprep.subr.mxu0 0.0
      %5204 = vmatpush1.msra.mxu0 0.0
      %5205 = vmatprep.subr.mxu0 0.0
      %5206 = vmatpush1.msra.mxu0 0.0
      %5207 = vmatprep.subr.mxu0 0.0
      %5208 = vmatpush1.msra.mxu0 0.0
      %5209 = vmatprep.subr.mxu0 0.0
      %5210 = vmatpush1.msra.mxu0 0.0
      %5211 = vmatprep.subr.mxu0 0.0
      %5212 = vmatpush1.msra.mxu0 0.0
      %5213 = vmatprep.subr.mxu0 0.0
      %5214 = vmatpush1.msra.mxu0 0.0
      %5215 = vmatprep.subr.mxu0 0.0
      %5216 = vmatpush1.msra.mxu0 0.0
      %5217 = vmatprep.subr.mxu0 0.0
      %5218 = vmatpush1.msra.mxu0 0.0
      %5219 = vmatprep.subr.mxu0 0.0
      %5220 = vmatpush1.msra.mxu0 0.0
      %5221 = vmatprep.subr.mxu0 0.0
      %5222 = vmatpush1.msra.mxu0 0.0
      %5223 = vmatprep.subr.mxu0 0.0
      %5224 = vmatpush1.msra.mxu0 0.0
      %5225 = vmatprep.subr.mxu0 0.0
      %5226 = vmatpush1.msra.mxu0 0.0
      %5227 = vmatprep.subr.mxu0 0.0
      %5228 = vmatpush1.msra.mxu0 0.0
      %5229 = vmatprep.subr.mxu0 0.0
      %5230 = vmatpush1.msra.mxu0 0.0
      %5231 = vmatprep.mubr.f32.mxu0 0.0
      %5232 = vmatmul.mubr.f32.gmra.mrb[0].mxu0 %v5069
      %v5233 = vpop.f32.mrb[0].mxu0
      %v5234 = vadd.f32 0.0, %v5233
      %v5235 = vpop.f32.mrb[0].mxu0
      %5236 = vmatprep.mubr.f32.mxu0 0.0
      %5237 = vmatmul.mubr.f32.gmra.mrb[0].mxu0 %v5072
      %v5238 = vpop.f32.mrb[0].mxu0
      %v5239 = vadd.f32 0.0, %v5238
      %v5240 = vpop.f32.mrb[0].mxu0
      %5241 = vmatprep.mubr.f32.mxu0 0.0
      %5242 = vmatmul.mubr.f32.gmra.mrb[0].mxu0 %v5075
      %v5243 = vpop.f32.mrb[0].mxu0
      %v5244 = vadd.f32 0.0, %v5243
      %v5245 = vpop.f32.mrb[0].mxu0
      %5246 = vmatprep.mubr.f32.mxu0 0.0
      %5247 = vmatmul.mubr.f32.gmra.mrb[0].mxu0 %v5078
      %v5248 = vpop.f32.mrb[0].mxu0
      %v5249 = vadd.f32 0.0, %v5248
      %v5250 = vpop.f32.mrb[0].mxu0
      %5251 = vmatprep.mubr.f32.mxu0 0.0
      %5252 = vmatmul.mubr.f32.gmra.mrb[0].mxu0 %v5081
      %v5253 = vpop.f32.mrb[0].mxu0
      %v5254 = vadd.f32 0.0, %v5253
      %v5255 = vpop.f32.mrb[0].mxu0
      %5256 = vmatprep.mubr.f32.mxu0 0.0
      %5257 = vmatmul.mubr.f32.gmra.mrb[0].mxu0 %v5084
      %v5258 = vpop.f32.mrb[0].mxu0
      %v5259 = vadd.f32 0.0, %v5258
      %v5260 = vpop.f32.mrb[0].mxu0
      %5261 = vmatprep.mubr.f32.mxu0 0.0
      %5262 = vmatmul.mubr.f32.gmra.mrb[0].mxu0 %v5087
      %v5263 = vpop.f32.mrb[0].mxu0
      %v5264 = vadd.f32 0.0, %v5263
      %v5265 = vpop.f32.mrb[0].mxu0
      %5266 = vmatprep.mubr.f32.mxu0 0.0
      %5267 = vmatmul.mubr.f32.gmra.mrb[0].mxu0 %v5090
      %v5268 = vpop.f32.mrb[0].mxu0
      %v5269 = vadd.f32 0.0, %v5268
      %v5270 = vpop.f32.mrb[0].mxu0
      %5271 = vmatprep.mubr.f32.mxu0 0.0
      %5272 = vmatmul.mubr.f32.gmra.mrb[0].mxu0 %v5093
      %v5273 = vpop.f32.mrb[0].mxu0
      %v5274 = vadd.f32 0.0, %v5273
      %v5275 = vpop.f32.mrb[0].mxu0
      %5276 = vmatprep.mubr.f32.mxu0 0.0
      %5277 = vmatmul.mubr.f32.gmra.mrb[0].mxu0 %v5096
      %v5278 = vpop.f32.mrb[0].mxu0
      %v5279 = vadd.f32 0.0, %v5278
      %v5280 = vpop.f32.mrb[0].mxu0
      %5281 = vmatprep.mubr.f32.mxu0 0.0
      %5282 = vmatmul.mubr.f32.gmra.mrb[0].mxu0 %v5099
      %v5283 = vpop.f32.mrb[0].mxu0
      %v5284 = vadd.f32 0.0, %v5283
      %v5285 = vpop.f32.mrb[0].mxu0
      %5286 = vmatprep.mubr.f32.mxu0 0.0
      %5287 = vmatmul.mubr.f32.gmra.mrb[0].mxu0 %v5102
      %v5288 = vpop.f32.mrb[0].mxu0
      %v5289 = vadd.f32 0.0, %v5288
      %v5290 = vpop.f32.mrb[0].mxu0
      %5291 = vmatprep.mubr.f32.mxu0 0.0
      %5292 = vmatmul.mubr.f32.gmra.mrb[0].mxu0 %v5105
      %v5293 = vpop.f32.mrb[0].mxu0
      %v5294 = vadd.f32 0.0, %v5293
      %v5295 = vpop.f32.mrb[0].mxu0
      %5296 = vmatprep.mubr.f32.mxu0 0.0
      %5297 = vmatmul.mubr.f32.gmra.mrb[0].mxu0 %v5108
      %v5298 = vpop.f32.mrb[0].mxu0
      %v5299 = vadd.f32 0.0, %v5298
      %v5300 = vpop.f32.mrb[0].mxu0
      %5301 = vmatprep.mubr.f32.mxu0 0.0
      %5302 = vmatmul.mubr.f32.gmra.mrb[0].mxu0 %v5111
      %v5303 = vpop.f32.mrb[0].mxu0
      %v5304 = vadd.f32 0.0, %v5303
      %v5305 = vpop.f32.mrb[0].mxu0
      %5306 = vmatprep.mubr.f32.mxu0 0.0
      %5307 = vmatmul.mubr.f32.gmra.mrb[0].mxu0 %v5114
      %v5308 = vpop.f32.mrb[0].mxu0
      %v5309 = vadd.f32 0.0, %v5308
      %v5310 = vpop.f32.mrb[0].mxu0
      %5311 = vmatprep.mubr.f32.mxu0 0.0
      %5312 = vmatmul.mubr.f32.gmra.mrb[0].mxu0 %v5117
      %v5313 = vpop.f32.mrb[0].mxu0
      %v5314 = vadd.f32 0.0, %v5313
      %v5315 = vpop.f32.mrb[0].mxu0
      %5316 = vmatprep.mubr.f32.mxu0 0.0
      %5317 = vmatmul.mubr.f32.gmra.mrb[0].mxu0 %v5120
      %v5318 = vpop.f32.mrb[0].mxu0
      %v5319 = vadd.f32 0.0, %v5318
      %v5320 = vpop.f32.mrb[0].mxu0
      %5321 = vmatprep.mubr.f32.mxu0 0.0
      %5322 = vmatmul.mubr.f32.gmra.mrb[0].mxu0 %v5123
      %v5323 = vpop.f32.mrb[0].mxu0
      %v5324 = vadd.f32 0.0, %v5323
      %v5325 = vpop.f32.mrb[0].mxu0
      %5326 = vmatprep.mubr.f32.mxu0 0.0
      %5327 = vmatmul.mubr.f32.gmra.mrb[0].mxu0 %v5126
      %v5328 = vpop.f32.mrb[0].mxu0
      %v5329 = vadd.f32 0.0, %v5328
      %v5330 = vpop.f32.mrb[0].mxu0
      %5331 = vmatprep.mubr.f32.mxu0 0.0
      %5332 = vmatmul.mubr.f32.gmra.mrb[0].mxu0 %v5129
      %v5333 = vpop.f32.mrb[0].mxu0
      %v5334 = vadd.f32 0.0, %v5333
      %v5335 = vpop.f32.mrb[0].mxu0
      %5336 = vmatprep.mubr.f32.mxu0 0.0
      %5337 = vmatmul.mubr.f32.gmra.mrb[0].mxu0 %v5132
      %v5338 = vpop.f32.mrb[0].mxu0
      %v5339 = vadd.f32 0.0, %v5338
      %v5340 = vpop.f32.mrb[0].mxu0
      %5341 = vmatprep.mubr.f32.mxu0 0.0
      %5342 = vmatmul.mubr.f32.gmra.mrb[0].mxu0 %v5135
      %v5343 = vpop.f32.mrb[0].mxu0
      %v5344 = vadd.f32 0.0, %v5343
      %v5345 = vpop.f32.mrb[0].mxu0
      %5346 = vmatprep.mubr.f32.mxu0 0.0
      %5347 = vmatmul.mubr.f32.gmra.mrb[0].mxu0 %v5138
      %v5348 = vpop.f32.mrb[0].mxu0
      %v5349 = vadd.f32 0.0, %v5348
      %v5350 = vpop.f32.mrb[0].mxu0
      %5351 = vmatprep.mubr.f32.mxu0 0.0
      %5352 = vmatmul.mubr.f32.gmra.mrb[0].mxu0 %v5141
      %v5353 = vpop.f32.mrb[0].mxu0
      %v5354 = vadd.f32 0.0, %v5353
      %v5355 = vpop.f32.mrb[0].mxu0
      %5356 = vmatprep.mubr.f32.mxu0 0.0
      %5357 = vmatmul.mubr.f32.gmra.mrb[0].mxu0 %v5144
      %v5358 = vpop.f32.mrb[0].mxu0
      %v5359 = vadd.f32 0.0, %v5358
      %v5360 = vpop.f32.mrb[0].mxu0
      %5361 = vmatprep.mubr.f32.mxu0 0.0
      %5362 = vmatmul.mubr.f32.gmra.mrb[0].mxu0 %v5147
      %v5363 = vpop.f32.mrb[0].mxu0
      %v5364 = vadd.f32 0.0, %v5363
      %v5365 = vpop.f32.mrb[0].mxu0
      %5366 = vmatprep.mubr.f32.mxu0 0.0
      %5367 = vmatmul.mubr.f32.gmra.mrb[0].mxu0 %v5150
      %v5368 = vpop.f32.mrb[0].mxu0
      %v5369 = vadd.f32 0.0, %v5368
      %v5370 = vpop.f32.mrb[0].mxu0
      %5371 = vmatprep.mubr.f32.mxu0 0.0
      %5372 = vmatmul.mubr.f32.gmra.mrb[0].mxu0 %v5153
      %v5373 = vpop.f32.mrb[0].mxu0
      %v5374 = vadd.f32 0.0, %v5373
      %v5375 = vpop.f32.mrb[0].mxu0
      %5376 = vmatprep.mubr.f32.mxu0 0.0
      %5377 = vmatmul.mubr.f32.gmra.mrb[0].mxu0 %v5156
      %v5378 = vpop.f32.mrb[0].mxu0
      %v5379 = vadd.f32 0.0, %v5378
      %v5380 = vpop.f32.mrb[0].mxu0
      %5381 = vmatprep.mubr.f32.mxu0 0.0
      %5382 = vmatmul.mubr.f32.gmra.mrb[0].mxu0 %v5159
      %v5383 = vpop.f32.mrb[0].mxu0
      %v5384 = vadd.f32 0.0, %v5383
      %v5385 = vpop.f32.mrb[0].mxu0
      %5386 = vmatprep.mubr.f32.mxu0 0.0
      %5387 = vmatmul.mubr.f32.gmra.mrb[0].mxu0 %v5162
      %v5388 = vpop.f32.mrb[0].mxu0
      %v5389 = vadd.f32 0.0, %v5388
      %v5390 = vpop.f32.mrb[0].mxu0
      %5391 = vdwg.mxu0
      %v5392 = vadd.f32 %v5003, %v5234
      %v5393 = vadd.f32 %v5004, %v5239
      %v5394 = vadd.f32 %v5005, %v5244
      %v5395 = vadd.f32 %v5006, %v5249
      %v5396 = vadd.f32 %v5007, %v5254
      %v5397 = vadd.f32 %v5008, %v5259
      %v5398 = vadd.f32 %v5009, %v5264
      %v5399 = vadd.f32 %v5010, %v5269
      %v5400 = vadd.f32 %v5011, %v5274
      %v5401 = vadd.f32 %v5012, %v5279
      %v5402 = vadd.f32 %v5013, %v5284
      %v5403 = vadd.f32 %v5014, %v5289
      %v5404 = vadd.f32 %v5015, %v5294
      %v5405 = vadd.f32 %v5016, %v5299
      %v5406 = vadd.f32 %v5017, %v5304
      %v5407 = vadd.f32 %v5018, %v5309
      %v5408 = vadd.f32 %v5019, %v5314
      %v5409 = vadd.f32 %v5020, %v5319
      %v5410 = vadd.f32 %v5021, %v5324
      %v5411 = vadd.f32 %v5022, %v5329
      %v5412 = vadd.f32 %v5023, %v5334
      %v5413 = vadd.f32 %v5024, %v5339
      %v5414 = vadd.f32 %v5025, %v5344
      %v5415 = vadd.f32 %v5026, %v5349
      %v5416 = vadd.f32 %v5027, %v5354
      %v5417 = vadd.f32 %v5028, %v5359
      %v5418 = vadd.f32 %v5029, %v5364
      %v5419 = vadd.f32 %v5030, %v5369
      %v5420 = vadd.f32 %v5031, %v5374
      %v5421 = vadd.f32 %v5032, %v5379
      %v5422 = vadd.f32 %v5033, %v5384
      %v5423 = vadd.f32 %v5034, %v5389
      %v5424 = vld [vmem:[%s433 + $0x7] sm:$0xff]
      %v5425 = vld [vmem:[%s433 + $0xf] sm:$0xff]
      %v5426 = vld [vmem:[%s433 + $0x27] sm:$0xff]
      %v5427 = vld [vmem:[%s433 + $0x2f] sm:$0xff]
      %v5428 = vld [vmem:[%s433 + $0x47] sm:$0xff]
      %v5429 = vld [vmem:[%s433 + $0x4f] sm:$0xff]
      %v5430 = vld [vmem:[%s433 + $0x67] sm:$0xff]
      %v5431 = vld [vmem:[%s433 + $0x6f] sm:$0xff]
      %v5432 = vld [vmem:[%s433 + $0x87] sm:$0xff]
      %v5433 = vld [vmem:[%s433 + $0x8f] sm:$0xff]
      %v5434 = vld [vmem:[%s433 + $0xa7] sm:$0xff]
      %v5435 = vld [vmem:[%s433 + $0xaf] sm:$0xff]
      %v5436 = vld [vmem:[%s433 + $0xc7] sm:$0xff]
      %v5437 = vld [vmem:[%s433 + $0xcf] sm:$0xff]
      %v5438 = vld [vmem:[%s433 + $0xe7] sm:$0xff]
      %v5439 = vld [vmem:[%s433 + $0xef] sm:$0xff]
      %v5440 = vld [vmem:[%s433 + $0x107] sm:$0xff]
      %v5441 = vld [vmem:[%s433 + $0x10f] sm:$0xff]
      %v5442 = vld [vmem:[%s433 + $0x127] sm:$0xff]
      %v5443 = vld [vmem:[%s433 + $0x12f] sm:$0xff]
      %v5444 = vld [vmem:[%s433 + $0x147] sm:$0xff]
      %v5445 = vld [vmem:[%s433 + $0x14f] sm:$0xff]
      %v5446 = vld [vmem:[%s433 + $0x167] sm:$0xff]
      %v5447 = vld [vmem:[%s433 + $0x16f] sm:$0xff]
      %v5448 = vld [vmem:[%s433 + $0x187] sm:$0xff]
      %v5449 = vld [vmem:[%s433 + $0x18f] sm:$0xff]
      %v5450 = vld [vmem:[%s433 + $0x1a7] sm:$0xff]
      %v5451 = vld [vmem:[%s433 + $0x1af] sm:$0xff]
      %v5452 = vld [vmem:[%s433 + $0x1c7] sm:$0xff]
      %v5453 = vld [vmem:[%s433 + $0x1cf] sm:$0xff]
      %v5454 = vld [vmem:[%s433 + $0x1e7] sm:$0xff]
      %v5455 = vld [vmem:[%s433 + $0x1ef] sm:$0xff]
      %v5456 = vld [vmem:[%s4 + $0xc] sm:$0xf]
      %v5458 = vsel %vm380, %v5424, 0
      %v5461 = vsel %vm380, %v5425, 0
      %v5464 = vsel %vm380, %v5426, 0
      %v5467 = vsel %vm380, %v5427, 0
      %v5470 = vsel %vm380, %v5428, 0
      %v5473 = vsel %vm380, %v5429, 0
      %v5476 = vsel %vm380, %v5430, 0
      %v5479 = vsel %vm380, %v5431, 0
      %v5482 = vsel %vm380, %v5432, 0
      %v5485 = vsel %vm380, %v5433, 0
      %v5488 = vsel %vm380, %v5434, 0
      %v5491 = vsel %vm380, %v5435, 0
      %v5494 = vsel %vm380, %v5436, 0
      %v5497 = vsel %vm380, %v5437, 0
      %v5500 = vsel %vm380, %v5438, 0
      %v5503 = vsel %vm380, %v5439, 0
      %v5506 = vsel %vm380, %v5440, 0
      %v5509 = vsel %vm380, %v5441, 0
      %v5512 = vsel %vm380, %v5442, 0
      %v5515 = vsel %vm380, %v5443, 0
      %v5518 = vsel %vm380, %v5444, 0
      %v5521 = vsel %vm380, %v5445, 0
      %v5524 = vsel %vm380, %v5446, 0
      %v5527 = vsel %vm380, %v5447, 0
      %v5530 = vsel %vm380, %v5448, 0
      %v5533 = vsel %vm380, %v5449, 0
      %v5536 = vsel %vm380, %v5450, 0
      %v5539 = vsel %vm380, %v5451, 0
      %v5542 = vsel %vm380, %v5452, 0
      %v5545 = vsel %vm380, %v5453, 0
      %v5548 = vsel %vm380, %v5454, 0
      %v5551 = vsel %vm380, %v5455, 0
      %v5554 = vsel %vm980, %v5456, 0
      %5556 = vmatprep.subr.mxu0 0.0
      %5557 = vmatpush1.msra.mxu0 %v5554
      %5558 = vmatprep.subr.mxu0 0.0
      %5559 = vmatpush1.msra.mxu0 0.0
      %5560 = vmatprep.subr.mxu0 0.0
      %5561 = vmatpush1.msra.mxu0 0.0
      %5562 = vmatprep.subr.mxu0 0.0
      %5563 = vmatpush1.msra.mxu0 0.0
      %5564 = vmatprep.subr.mxu0 0.0
      %5565 = vmatpush1.msra.mxu0 0.0
      %5566 = vmatprep.subr.mxu0 0.0
      %5567 = vmatpush1.msra.mxu0 0.0
      %5568 = vmatprep.subr.mxu0 0.0
      %5569 = vmatpush1.msra.mxu0 0.0
      %5570 = vmatprep.subr.mxu0 0.0
      %5571 = vmatpush1.msra.mxu0 0.0
      %5572 = vmatprep.subr.mxu0 0.0
      %5573 = vmatpush1.msra.mxu0 0.0
      %5574 = vmatprep.subr.mxu0 0.0
      %5575 = vmatpush1.msra.mxu0 0.0
      %5576 = vmatprep.subr.mxu0 0.0
      %5577 = vmatpush1.msra.mxu0 0.0
      %5578 = vmatprep.subr.mxu0 0.0
      %5579 = vmatpush1.msra.mxu0 0.0
      %5580 = vmatprep.subr.mxu0 0.0
      %5581 = vmatpush1.msra.mxu0 0.0
      %5582 = vmatprep.subr.mxu0 0.0
      %5583 = vmatpush1.msra.mxu0 0.0
      %5584 = vmatprep.subr.mxu0 0.0
      %5585 = vmatpush1.msra.mxu0 0.0
      %5586 = vmatprep.subr.mxu0 0.0
      %5587 = vmatpush1.msra.mxu0 0.0
      %5588 = vmatprep.subr.mxu0 0.0
      %5589 = vmatpush1.msra.mxu0 0.0
      %5590 = vmatprep.subr.mxu0 0.0
      %5591 = vmatpush1.msra.mxu0 0.0
      %5592 = vmatprep.subr.mxu0 0.0
      %5593 = vmatpush1.msra.mxu0 0.0
      %5594 = vmatprep.subr.mxu0 0.0
      %5595 = vmatpush1.msra.mxu0 0.0
      %5596 = vmatprep.subr.mxu0 0.0
      %5597 = vmatpush1.msra.mxu0 0.0
      %5598 = vmatprep.subr.mxu0 0.0
      %5599 = vmatpush1.msra.mxu0 0.0
      %5600 = vmatprep.subr.mxu0 0.0
      %5601 = vmatpush1.msra.mxu0 0.0
      %5602 = vmatprep.subr.mxu0 0.0
      %5603 = vmatpush1.msra.mxu0 0.0
      %5604 = vmatprep.subr.mxu0 0.0
      %5605 = vmatpush1.msra.mxu0 0.0
      %5606 = vmatprep.subr.mxu0 0.0
      %5607 = vmatpush1.msra.mxu0 0.0
      %5608 = vmatprep.subr.mxu0 0.0
      %5609 = vmatpush1.msra.mxu0 0.0
      %5610 = vmatprep.subr.mxu0 0.0
      %5611 = vmatpush1.msra.mxu0 0.0
      %5612 = vmatprep.subr.mxu0 0.0
      %5613 = vmatpush1.msra.mxu0 0.0
      %5614 = vmatprep.subr.mxu0 0.0
      %5615 = vmatpush1.msra.mxu0 0.0
      %5616 = vmatprep.subr.mxu0 0.0
      %5617 = vmatpush1.msra.mxu0 0.0
      %5618 = vmatprep.subr.mxu0 0.0
      %5619 = vmatpush1.msra.mxu0 0.0
      %5620 = vmatprep.mubr.f32.mxu0 0.0
      %5621 = vmatmul.mubr.f32.gmra.mrb[0].mxu0 %v5458
      %v5622 = vpop.f32.mrb[0].mxu0
      %v5623 = vadd.f32 0.0, %v5622
      %v5624 = vpop.f32.mrb[0].mxu0
      %5625 = vmatprep.mubr.f32.mxu0 0.0
      %5626 = vmatmul.mubr.f32.gmra.mrb[0].mxu0 %v5461
      %v5627 = vpop.f32.mrb[0].mxu0
      %v5628 = vadd.f32 0.0, %v5627
      %v5629 = vpop.f32.mrb[0].mxu0
      %5630 = vmatprep.mubr.f32.mxu0 0.0
      %5631 = vmatmul.mubr.f32.gmra.mrb[0].mxu0 %v5464
      %v5632 = vpop.f32.mrb[0].mxu0
      %v5633 = vadd.f32 0.0, %v5632
      %v5634 = vpop.f32.mrb[0].mxu0
      %5635 = vmatprep.mubr.f32.mxu0 0.0
      %5636 = vmatmul.mubr.f32.gmra.mrb[0].mxu0 %v5467
      %v5637 = vpop.f32.mrb[0].mxu0
      %v5638 = vadd.f32 0.0, %v5637
      %v5639 = vpop.f32.mrb[0].mxu0
      %5640 = vmatprep.mubr.f32.mxu0 0.0
      %5641 = vmatmul.mubr.f32.gmra.mrb[0].mxu0 %v5470
      %v5642 = vpop.f32.mrb[0].mxu0
      %v5643 = vadd.f32 0.0, %v5642
      %v5644 = vpop.f32.mrb[0].mxu0
      %5645 = vmatprep.mubr.f32.mxu0 0.0
      %5646 = vmatmul.mubr.f32.gmra.mrb[0].mxu0 %v5473
      %v5647 = vpop.f32.mrb[0].mxu0
      %v5648 = vadd.f32 0.0, %v5647
      %v5649 = vpop.f32.mrb[0].mxu0
      %5650 = vmatprep.mubr.f32.mxu0 0.0
      %5651 = vmatmul.mubr.f32.gmra.mrb[0].mxu0 %v5476
      %v5652 = vpop.f32.mrb[0].mxu0
      %v5653 = vadd.f32 0.0, %v5652
      %v5654 = vpop.f32.mrb[0].mxu0
      %5655 = vmatprep.mubr.f32.mxu0 0.0
      %5656 = vmatmul.mubr.f32.gmra.mrb[0].mxu0 %v5479
      %v5657 = vpop.f32.mrb[0].mxu0
      %v5658 = vadd.f32 0.0, %v5657
      %v5659 = vpop.f32.mrb[0].mxu0
      %5660 = vmatprep.mubr.f32.mxu0 0.0
      %5661 = vmatmul.mubr.f32.gmra.mrb[0].mxu0 %v5482
      %v5662 = vpop.f32.mrb[0].mxu0
      %v5663 = vadd.f32 0.0, %v5662
      %v5664 = vpop.f32.mrb[0].mxu0
      %5665 = vmatprep.mubr.f32.mxu0 0.0
      %5666 = vmatmul.mubr.f32.gmra.mrb[0].mxu0 %v5485
      %v5667 = vpop.f32.mrb[0].mxu0
      %v5668 = vadd.f32 0.0, %v5667
      %v5669 = vpop.f32.mrb[0].mxu0
      %5670 = vmatprep.mubr.f32.mxu0 0.0
      %5671 = vmatmul.mubr.f32.gmra.mrb[0].mxu0 %v5488
      %v5672 = vpop.f32.mrb[0].mxu0
      %v5673 = vadd.f32 0.0, %v5672
      %v5674 = vpop.f32.mrb[0].mxu0
      %5675 = vmatprep.mubr.f32.mxu0 0.0
      %5676 = vmatmul.mubr.f32.gmra.mrb[0].mxu0 %v5491
      %v5677 = vpop.f32.mrb[0].mxu0
      %v5678 = vadd.f32 0.0, %v5677
      %v5679 = vpop.f32.mrb[0].mxu0
      %5680 = vmatprep.mubr.f32.mxu0 0.0
      %5681 = vmatmul.mubr.f32.gmra.mrb[0].mxu0 %v5494
      %v5682 = vpop.f32.mrb[0].mxu0
      %v5683 = vadd.f32 0.0, %v5682
      %v5684 = vpop.f32.mrb[0].mxu0
      %5685 = vmatprep.mubr.f32.mxu0 0.0
      %5686 = vmatmul.mubr.f32.gmra.mrb[0].mxu0 %v5497
      %v5687 = vpop.f32.mrb[0].mxu0
      %v5688 = vadd.f32 0.0, %v5687
      %v5689 = vpop.f32.mrb[0].mxu0
      %5690 = vmatprep.mubr.f32.mxu0 0.0
      %5691 = vmatmul.mubr.f32.gmra.mrb[0].mxu0 %v5500
      %v5692 = vpop.f32.mrb[0].mxu0
      %v5693 = vadd.f32 0.0, %v5692
      %v5694 = vpop.f32.mrb[0].mxu0
      %5695 = vmatprep.mubr.f32.mxu0 0.0
      %5696 = vmatmul.mubr.f32.gmra.mrb[0].mxu0 %v5503
      %v5697 = vpop.f32.mrb[0].mxu0
      %v5698 = vadd.f32 0.0, %v5697
      %v5699 = vpop.f32.mrb[0].mxu0
      %5700 = vmatprep.mubr.f32.mxu0 0.0
      %5701 = vmatmul.mubr.f32.gmra.mrb[0].mxu0 %v5506
      %v5702 = vpop.f32.mrb[0].mxu0
      %v5703 = vadd.f32 0.0, %v5702
      %v5704 = vpop.f32.mrb[0].mxu0
      %5705 = vmatprep.mubr.f32.mxu0 0.0
      %5706 = vmatmul.mubr.f32.gmra.mrb[0].mxu0 %v5509
      %v5707 = vpop.f32.mrb[0].mxu0
      %v5708 = vadd.f32 0.0, %v5707
      %v5709 = vpop.f32.mrb[0].mxu0
      %5710 = vmatprep.mubr.f32.mxu0 0.0
      %5711 = vmatmul.mubr.f32.gmra.mrb[0].mxu0 %v5512
      %v5712 = vpop.f32.mrb[0].mxu0
      %v5713 = vadd.f32 0.0, %v5712
      %v5714 = vpop.f32.mrb[0].mxu0
      %5715 = vmatprep.mubr.f32.mxu0 0.0
      %5716 = vmatmul.mubr.f32.gmra.mrb[0].mxu0 %v5515
      %v5717 = vpop.f32.mrb[0].mxu0
      %v5718 = vadd.f32 0.0, %v5717
      %v5719 = vpop.f32.mrb[0].mxu0
      %5720 = vmatprep.mubr.f32.mxu0 0.0
      %5721 = vmatmul.mubr.f32.gmra.mrb[0].mxu0 %v5518
      %v5722 = vpop.f32.mrb[0].mxu0
      %v5723 = vadd.f32 0.0, %v5722
      %v5724 = vpop.f32.mrb[0].mxu0
      %5725 = vmatprep.mubr.f32.mxu0 0.0
      %5726 = vmatmul.mubr.f32.gmra.mrb[0].mxu0 %v5521
      %v5727 = vpop.f32.mrb[0].mxu0
      %v5728 = vadd.f32 0.0, %v5727
      %v5729 = vpop.f32.mrb[0].mxu0
      %5730 = vmatprep.mubr.f32.mxu0 0.0
      %5731 = vmatmul.mubr.f32.gmra.mrb[0].mxu0 %v5524
      %v5732 = vpop.f32.mrb[0].mxu0
      %v5733 = vadd.f32 0.0, %v5732
      %v5734 = vpop.f32.mrb[0].mxu0
      %5735 = vmatprep.mubr.f32.mxu0 0.0
      %5736 = vmatmul.mubr.f32.gmra.mrb[0].mxu0 %v5527
      %v5737 = vpop.f32.mrb[0].mxu0
      %v5738 = vadd.f32 0.0, %v5737
      %v5739 = vpop.f32.mrb[0].mxu0
      %5740 = vmatprep.mubr.f32.mxu0 0.0
      %5741 = vmatmul.mubr.f32.gmra.mrb[0].mxu0 %v5530
      %v5742 = vpop.f32.mrb[0].mxu0
      %v5743 = vadd.f32 0.0, %v5742
      %v5744 = vpop.f32.mrb[0].mxu0
      %5745 = vmatprep.mubr.f32.mxu0 0.0
      %5746 = vmatmul.mubr.f32.gmra.mrb[0].mxu0 %v5533
      %v5747 = vpop.f32.mrb[0].mxu0
      %v5748 = vadd.f32 0.0, %v5747
      %v5749 = vpop.f32.mrb[0].mxu0
      %5750 = vmatprep.mubr.f32.mxu0 0.0
      %5751 = vmatmul.mubr.f32.gmra.mrb[0].mxu0 %v5536
      %v5752 = vpop.f32.mrb[0].mxu0
      %v5753 = vadd.f32 0.0, %v5752
      %v5754 = vpop.f32.mrb[0].mxu0
      %5755 = vmatprep.mubr.f32.mxu0 0.0
      %5756 = vmatmul.mubr.f32.gmra.mrb[0].mxu0 %v5539
      %v5757 = vpop.f32.mrb[0].mxu0
      %v5758 = vadd.f32 0.0, %v5757
      %v5759 = vpop.f32.mrb[0].mxu0
      %5760 = vmatprep.mubr.f32.mxu0 0.0
      %5761 = vmatmul.mubr.f32.gmra.mrb[0].mxu0 %v5542
      %v5762 = vpop.f32.mrb[0].mxu0
      %v5763 = vadd.f32 0.0, %v5762
      %v5764 = vpop.f32.mrb[0].mxu0
      %5765 = vmatprep.mubr.f32.mxu0 0.0
      %5766 = vmatmul.mubr.f32.gmra.mrb[0].mxu0 %v5545
      %v5767 = vpop.f32.mrb[0].mxu0
      %v5768 = vadd.f32 0.0, %v5767
      %v5769 = vpop.f32.mrb[0].mxu0
      %5770 = vmatprep.mubr.f32.mxu0 0.0
      %5771 = vmatmul.mubr.f32.gmra.mrb[0].mxu0 %v5548
      %v5772 = vpop.f32.mrb[0].mxu0
      %v5773 = vadd.f32 0.0, %v5772
      %v5774 = vpop.f32.mrb[0].mxu0
      %5775 = vmatprep.mubr.f32.mxu0 0.0
      %5776 = vmatmul.mubr.f32.gmra.mrb[0].mxu0 %v5551
      %v5777 = vpop.f32.mrb[0].mxu0
      %v5778 = vadd.f32 0.0, %v5777
      %v5779 = vpop.f32.mrb[0].mxu0
      %5780 = vdwg.mxu0
      %v5781 = vadd.f32 %v5392, %v5623
      %v5782 = vadd.f32 %v5393, %v5628
      %v5783 = vadd.f32 %v5394, %v5633
      %v5784 = vadd.f32 %v5395, %v5638
      %v5785 = vadd.f32 %v5396, %v5643
      %v5786 = vadd.f32 %v5397, %v5648
      %v5787 = vadd.f32 %v5398, %v5653
      %v5788 = vadd.f32 %v5399, %v5658
      %v5789 = vadd.f32 %v5400, %v5663
      %v5790 = vadd.f32 %v5401, %v5668
      %v5791 = vadd.f32 %v5402, %v5673
      %v5792 = vadd.f32 %v5403, %v5678
      %v5793 = vadd.f32 %v5404, %v5683
      %v5794 = vadd.f32 %v5405, %v5688
      %v5795 = vadd.f32 %v5406, %v5693
      %v5796 = vadd.f32 %v5407, %v5698
      %v5797 = vadd.f32 %v5408, %v5703
      %v5798 = vadd.f32 %v5409, %v5708
      %v5799 = vadd.f32 %v5410, %v5713
      %v5800 = vadd.f32 %v5411, %v5718
      %v5801 = vadd.f32 %v5412, %v5723
      %v5802 = vadd.f32 %v5413, %v5728
      %v5803 = vadd.f32 %v5414, %v5733
      %v5804 = vadd.f32 %v5415, %v5738
      %v5805 = vadd.f32 %v5416, %v5743
      %v5806 = vadd.f32 %v5417, %v5748
      %v5807 = vadd.f32 %v5418, %v5753
      %v5808 = vadd.f32 %v5419, %v5758
      %v5809 = vadd.f32 %v5420, %v5763
      %v5810 = vadd.f32 %v5421, %v5768
      %v5811 = vadd.f32 %v5422, %v5773
      %v5812 = vadd.f32 %v5423, %v5778
      %v5813 = vld [vmem:[%s433 + $0x8] sm:$0xff]
      %v5814 = vld [vmem:[%s433 + $0x10] sm:$0xff]
      %v5815 = vld [vmem:[%s433 + $0x28] sm:$0xff]
      %v5816 = vld [vmem:[%s433 + $0x30] sm:$0xff]
      %v5817 = vld [vmem:[%s433 + $0x48] sm:$0xff]
      %v5818 = vld [vmem:[%s433 + $0x50] sm:$0xff]
      %v5819 = vld [vmem:[%s433 + $0x68] sm:$0xff]
      %v5820 = vld [vmem:[%s433 + $0x70] sm:$0xff]
      %v5821 = vld [vmem:[%s433 + $0x88] sm:$0xff]
      %v5822 = vld [vmem:[%s433 + $0x90] sm:$0xff]
      %v5823 = vld [vmem:[%s433 + $0xa8] sm:$0xff]
      %v5824 = vld [vmem:[%s433 + $0xb0] sm:$0xff]
      %v5825 = vld [vmem:[%s433 + $0xc8] sm:$0xff]
      %v5826 = vld [vmem:[%s433 + $0xd0] sm:$0xff]
      %v5827 = vld [vmem:[%s433 + $0xe8] sm:$0xff]
      %v5828 = vld [vmem:[%s433 + $0xf0] sm:$0xff]
      %v5829 = vld [vmem:[%s433 + $0x108] sm:$0xff]
      %v5830 = vld [vmem:[%s433 + $0x110] sm:$0xff]
      %v5831 = vld [vmem:[%s433 + $0x128] sm:$0xff]
      %v5832 = vld [vmem:[%s433 + $0x130] sm:$0xff]
      %v5833 = vld [vmem:[%s433 + $0x148] sm:$0xff]
      %v5834 = vld [vmem:[%s433 + $0x150] sm:$0xff]
      %v5835 = vld [vmem:[%s433 + $0x168] sm:$0xff]
      %v5836 = vld [vmem:[%s433 + $0x170] sm:$0xff]
      %v5837 = vld [vmem:[%s433 + $0x188] sm:$0xff]
      %v5838 = vld [vmem:[%s433 + $0x190] sm:$0xff]
      %v5839 = vld [vmem:[%s433 + $0x1a8] sm:$0xff]
      %v5840 = vld [vmem:[%s433 + $0x1b0] sm:$0xff]
      %v5841 = vld [vmem:[%s433 + $0x1c8] sm:$0xff]
      %v5842 = vld [vmem:[%s433 + $0x1d0] sm:$0xff]
      %v5843 = vld [vmem:[%s433 + $0x1e8] sm:$0xff]
      %v5844 = vld [vmem:[%s433 + $0x1f0] sm:$0xff]
      %v5845 = vld [vmem:[%s4 + $0x10] sm:$0xf]
      %v5847 = vsel %vm380, %v5813, 0
      %v5850 = vsel %vm380, %v5814, 0
      %v5853 = vsel %vm380, %v5815, 0
      %v5856 = vsel %vm380, %v5816, 0
      %v5859 = vsel %vm380, %v5817, 0
      %v5862 = vsel %vm380, %v5818, 0
      %v5865 = vsel %vm380, %v5819, 0
      %v5868 = vsel %vm380, %v5820, 0
      %v5871 = vsel %vm380, %v5821, 0
      %v5874 = vsel %vm380, %v5822, 0
      %v5877 = vsel %vm380, %v5823, 0
      %v5880 = vsel %vm380, %v5824, 0
      %v5883 = vsel %vm380, %v5825, 0
      %v5886 = vsel %vm380, %v5826, 0
      %v5889 = vsel %vm380, %v5827, 0
      %v5892 = vsel %vm380, %v5828, 0
      %v5895 = vsel %vm380, %v5829, 0
      %v5898 = vsel %vm380, %v5830, 0
      %v5901 = vsel %vm380, %v5831, 0
      %v5904 = vsel %vm380, %v5832, 0
      %v5907 = vsel %vm380, %v5833, 0
      %v5910 = vsel %vm380, %v5834, 0
      %v5913 = vsel %vm380, %v5835, 0
      %v5916 = vsel %vm380, %v5836, 0
      %v5919 = vsel %vm380, %v5837, 0
      %v5922 = vsel %vm380, %v5838, 0
      %v5925 = vsel %vm380, %v5839, 0
      %v5928 = vsel %vm380, %v5840, 0
      %v5931 = vsel %vm380, %v5841, 0
      %v5934 = vsel %vm380, %v5842, 0
      %v5937 = vsel %vm380, %v5843, 0
      %v5940 = vsel %vm380, %v5844, 0
      %v5943 = vsel %vm980, %v5845, 0
      %5945 = vmatprep.subr.mxu0 0.0
      %5946 = vmatpush1.msra.mxu0 %v5943
      %5947 = vmatprep.subr.mxu0 0.0
      %5948 = vmatpush1.msra.mxu0 0.0
      %5949 = vmatprep.subr.mxu0 0.0
      %5950 = vmatpush1.msra.mxu0 0.0
      %5951 = vmatprep.subr.mxu0 0.0
      %5952 = vmatpush1.msra.mxu0 0.0
      %5953 = vmatprep.subr.mxu0 0.0
      %5954 = vmatpush1.msra.mxu0 0.0
      %5955 = vmatprep.subr.mxu0 0.0
      %5956 = vmatpush1.msra.mxu0 0.0
      %5957 = vmatprep.subr.mxu0 0.0
      %5958 = vmatpush1.msra.mxu0 0.0
      %5959 = vmatprep.subr.mxu0 0.0
      %5960 = vmatpush1.msra.mxu0 0.0
      %5961 = vmatprep.subr.mxu0 0.0
      %5962 = vmatpush1.msra.mxu0 0.0
      %5963 = vmatprep.subr.mxu0 0.0
      %5964 = vmatpush1.msra.mxu0 0.0
      %5965 = vmatprep.subr.mxu0 0.0
      %5966 = vmatpush1.msra.mxu0 0.0
      %5967 = vmatprep.subr.mxu0 0.0
      %5968 = vmatpush1.msra.mxu0 0.0
      %5969 = vmatprep.subr.mxu0 0.0
      %5970 = vmatpush1.msra.mxu0 0.0
      %5971 = vmatprep.subr.mxu0 0.0
      %5972 = vmatpush1.msra.mxu0 0.0
      %5973 = vmatprep.subr.mxu0 0.0
      %5974 = vmatpush1.msra.mxu0 0.0
      %5975 = vmatprep.subr.mxu0 0.0
      %5976 = vmatpush1.msra.mxu0 0.0
      %5977 = vmatprep.subr.mxu0 0.0
      %5978 = vmatpush1.msra.mxu0 0.0
      %5979 = vmatprep.subr.mxu0 0.0
      %5980 = vmatpush1.msra.mxu0 0.0
      %5981 = vmatprep.subr.mxu0 0.0
      %5982 = vmatpush1.msra.mxu0 0.0
      %5983 = vmatprep.subr.mxu0 0.0
      %5984 = vmatpush1.msra.mxu0 0.0
      %5985 = vmatprep.subr.mxu0 0.0
      %5986 = vmatpush1.msra.mxu0 0.0
      %5987 = vmatprep.subr.mxu0 0.0
      %5988 = vmatpush1.msra.mxu0 0.0
      %5989 = vmatprep.subr.mxu0 0.0
      %5990 = vmatpush1.msra.mxu0 0.0
      %5991 = vmatprep.subr.mxu0 0.0
      %5992 = vmatpush1.msra.mxu0 0.0
      %5993 = vmatprep.subr.mxu0 0.0
      %5994 = vmatpush1.msra.mxu0 0.0
      %5995 = vmatprep.subr.mxu0 0.0
      %5996 = vmatpush1.msra.mxu0 0.0
      %5997 = vmatprep.subr.mxu0 0.0
      %5998 = vmatpush1.msra.mxu0 0.0
      %5999 = vmatprep.subr.mxu0 0.0
      %6000 = vmatpush1.msra.mxu0 0.0
      %6001 = vmatprep.subr.mxu0 0.0
      %6002 = vmatpush1.msra.mxu0 0.0
      %6003 = vmatprep.subr.mxu0 0.0
      %6004 = vmatpush1.msra.mxu0 0.0
      %6005 = vmatprep.subr.mxu0 0.0
      %6006 = vmatpush1.msra.mxu0 0.0
      %6007 = vmatprep.subr.mxu0 0.0
      %6008 = vmatpush1.msra.mxu0 0.0
      %6009 = vmatprep.mubr.f32.mxu0 0.0
      %6010 = vmatmul.mubr.f32.gmra.mrb[0].mxu0 %v5847
      %v6011 = vpop.f32.mrb[0].mxu0
      %v6012 = vadd.f32 0.0, %v6011
      %v6013 = vpop.f32.mrb[0].mxu0
      %6014 = vmatprep.mubr.f32.mxu0 0.0
      %6015 = vmatmul.mubr.f32.gmra.mrb[0].mxu0 %v5850
      %v6016 = vpop.f32.mrb[0].mxu0
      %v6017 = vadd.f32 0.0, %v6016
      %v6018 = vpop.f32.mrb[0].mxu0
      %6019 = vmatprep.mubr.f32.mxu0 0.0
      %6020 = vmatmul.mubr.f32.gmra.mrb[0].mxu0 %v5853
      %v6021 = vpop.f32.mrb[0].mxu0
      %v6022 = vadd.f32 0.0, %v6021
      %v6023 = vpop.f32.mrb[0].mxu0
      %6024 = vmatprep.mubr.f32.mxu0 0.0
      %6025 = vmatmul.mubr.f32.gmra.mrb[0].mxu0 %v5856
      %v6026 = vpop.f32.mrb[0].mxu0
      %v6027 = vadd.f32 0.0, %v6026
      %v6028 = vpop.f32.mrb[0].mxu0
      %6029 = vmatprep.mubr.f32.mxu0 0.0
      %6030 = vmatmul.mubr.f32.gmra.mrb[0].mxu0 %v5859
      %v6031 = vpop.f32.mrb[0].mxu0
      %v6032 = vadd.f32 0.0, %v6031
      %v6033 = vpop.f32.mrb[0].mxu0
      %6034 = vmatprep.mubr.f32.mxu0 0.0
      %6035 = vmatmul.mubr.f32.gmra.mrb[0].mxu0 %v5862
      %v6036 = vpop.f32.mrb[0].mxu0
      %v6037 = vadd.f32 0.0, %v6036
      %v6038 = vpop.f32.mrb[0].mxu0
      %6039 = vmatprep.mubr.f32.mxu0 0.0
      %6040 = vmatmul.mubr.f32.gmra.mrb[0].mxu0 %v5865
      %v6041 = vpop.f32.mrb[0].mxu0
      %v6042 = vadd.f32 0.0, %v6041
      %v6043 = vpop.f32.mrb[0].mxu0
      %6044 = vmatprep.mubr.f32.mxu0 0.0
      %6045 = vmatmul.mubr.f32.gmra.mrb[0].mxu0 %v5868
      %v6046 = vpop.f32.mrb[0].mxu0
      %v6047 = vadd.f32 0.0, %v6046
      %v6048 = vpop.f32.mrb[0].mxu0
      %6049 = vmatprep.mubr.f32.mxu0 0.0
      %6050 = vmatmul.mubr.f32.gmra.mrb[0].mxu0 %v5871
      %v6051 = vpop.f32.mrb[0].mxu0
      %v6052 = vadd.f32 0.0, %v6051
      %v6053 = vpop.f32.mrb[0].mxu0
      %6054 = vmatprep.mubr.f32.mxu0 0.0
      %6055 = vmatmul.mubr.f32.gmra.mrb[0].mxu0 %v5874
      %v6056 = vpop.f32.mrb[0].mxu0
      %v6057 = vadd.f32 0.0, %v6056
      %v6058 = vpop.f32.mrb[0].mxu0
      %6059 = vmatprep.mubr.f32.mxu0 0.0
      %6060 = vmatmul.mubr.f32.gmra.mrb[0].mxu0 %v5877
      %v6061 = vpop.f32.mrb[0].mxu0
      %v6062 = vadd.f32 0.0, %v6061
      %v6063 = vpop.f32.mrb[0].mxu0
      %6064 = vmatprep.mubr.f32.mxu0 0.0
      %6065 = vmatmul.mubr.f32.gmra.mrb[0].mxu0 %v5880
      %v6066 = vpop.f32.mrb[0].mxu0
      %v6067 = vadd.f32 0.0, %v6066
      %v6068 = vpop.f32.mrb[0].mxu0
      %6069 = vmatprep.mubr.f32.mxu0 0.0
      %6070 = vmatmul.mubr.f32.gmra.mrb[0].mxu0 %v5883
      %v6071 = vpop.f32.mrb[0].mxu0
      %v6072 = vadd.f32 0.0, %v6071
      %v6073 = vpop.f32.mrb[0].mxu0
      %6074 = vmatprep.mubr.f32.mxu0 0.0
      %6075 = vmatmul.mubr.f32.gmra.mrb[0].mxu0 %v5886
      %v6076 = vpop.f32.mrb[0].mxu0
      %v6077 = vadd.f32 0.0, %v6076
      %v6078 = vpop.f32.mrb[0].mxu0
      %6079 = vmatprep.mubr.f32.mxu0 0.0
      %6080 = vmatmul.mubr.f32.gmra.mrb[0].mxu0 %v5889
      %v6081 = vpop.f32.mrb[0].mxu0
      %v6082 = vadd.f32 0.0, %v6081
      %v6083 = vpop.f32.mrb[0].mxu0
      %6084 = vmatprep.mubr.f32.mxu0 0.0
      %6085 = vmatmul.mubr.f32.gmra.mrb[0].mxu0 %v5892
      %v6086 = vpop.f32.mrb[0].mxu0
      %v6087 = vadd.f32 0.0, %v6086
      %v6088 = vpop.f32.mrb[0].mxu0
      %6089 = vmatprep.mubr.f32.mxu0 0.0
      %6090 = vmatmul.mubr.f32.gmra.mrb[0].mxu0 %v5895
      %v6091 = vpop.f32.mrb[0].mxu0
      %v6092 = vadd.f32 0.0, %v6091
      %v6093 = vpop.f32.mrb[0].mxu0
      %6094 = vmatprep.mubr.f32.mxu0 0.0
      %6095 = vmatmul.mubr.f32.gmra.mrb[0].mxu0 %v5898
      %v6096 = vpop.f32.mrb[0].mxu0
      %v6097 = vadd.f32 0.0, %v6096
      %v6098 = vpop.f32.mrb[0].mxu0
      %6099 = vmatprep.mubr.f32.mxu0 0.0
      %6100 = vmatmul.mubr.f32.gmra.mrb[0].mxu0 %v5901
      %v6101 = vpop.f32.mrb[0].mxu0
      %v6102 = vadd.f32 0.0, %v6101
      %v6103 = vpop.f32.mrb[0].mxu0
      %6104 = vmatprep.mubr.f32.mxu0 0.0
      %6105 = vmatmul.mubr.f32.gmra.mrb[0].mxu0 %v5904
      %v6106 = vpop.f32.mrb[0].mxu0
      %v6107 = vadd.f32 0.0, %v6106
      %v6108 = vpop.f32.mrb[0].mxu0
      %6109 = vmatprep.mubr.f32.mxu0 0.0
      %6110 = vmatmul.mubr.f32.gmra.mrb[0].mxu0 %v5907
      %v6111 = vpop.f32.mrb[0].mxu0
      %v6112 = vadd.f32 0.0, %v6111
      %v6113 = vpop.f32.mrb[0].mxu0
      %6114 = vmatprep.mubr.f32.mxu0 0.0
      %6115 = vmatmul.mubr.f32.gmra.mrb[0].mxu0 %v5910
      %v6116 = vpop.f32.mrb[0].mxu0
      %v6117 = vadd.f32 0.0, %v6116
      %v6118 = vpop.f32.mrb[0].mxu0
      %6119 = vmatprep.mubr.f32.mxu0 0.0
      %6120 = vmatmul.mubr.f32.gmra.mrb[0].mxu0 %v5913
      %v6121 = vpop.f32.mrb[0].mxu0
      %v6122 = vadd.f32 0.0, %v6121
      %v6123 = vpop.f32.mrb[0].mxu0
      %6124 = vmatprep.mubr.f32.mxu0 0.0
      %6125 = vmatmul.mubr.f32.gmra.mrb[0].mxu0 %v5916
      %v6126 = vpop.f32.mrb[0].mxu0
      %v6127 = vadd.f32 0.0, %v6126
      %v6128 = vpop.f32.mrb[0].mxu0
      %6129 = vmatprep.mubr.f32.mxu0 0.0
      %6130 = vmatmul.mubr.f32.gmra.mrb[0].mxu0 %v5919
      %v6131 = vpop.f32.mrb[0].mxu0
      %v6132 = vadd.f32 0.0, %v6131
      %v6133 = vpop.f32.mrb[0].mxu0
      %6134 = vmatprep.mubr.f32.mxu0 0.0
      %6135 = vmatmul.mubr.f32.gmra.mrb[0].mxu0 %v5922
      %v6136 = vpop.f32.mrb[0].mxu0
      %v6137 = vadd.f32 0.0, %v6136
      %v6138 = vpop.f32.mrb[0].mxu0
      %6139 = vmatprep.mubr.f32.mxu0 0.0
      %6140 = vmatmul.mubr.f32.gmra.mrb[0].mxu0 %v5925
      %v6141 = vpop.f32.mrb[0].mxu0
      %v6142 = vadd.f32 0.0, %v6141
      %v6143 = vpop.f32.mrb[0].mxu0
      %6144 = vmatprep.mubr.f32.mxu0 0.0
      %6145 = vmatmul.mubr.f32.gmra.mrb[0].mxu0 %v5928
      %v6146 = vpop.f32.mrb[0].mxu0
      %v6147 = vadd.f32 0.0, %v6146
      %v6148 = vpop.f32.mrb[0].mxu0
      %6149 = vmatprep.mubr.f32.mxu0 0.0
      %6150 = vmatmul.mubr.f32.gmra.mrb[0].mxu0 %v5931
      %v6151 = vpop.f32.mrb[0].mxu0
      %v6152 = vadd.f32 0.0, %v6151
      %v6153 = vpop.f32.mrb[0].mxu0
      %6154 = vmatprep.mubr.f32.mxu0 0.0
      %6155 = vmatmul.mubr.f32.gmra.mrb[0].mxu0 %v5934
      %v6156 = vpop.f32.mrb[0].mxu0
      %v6157 = vadd.f32 0.0, %v6156
      %v6158 = vpop.f32.mrb[0].mxu0
      %6159 = vmatprep.mubr.f32.mxu0 0.0
      %6160 = vmatmul.mubr.f32.gmra.mrb[0].mxu0 %v5937
      %v6161 = vpop.f32.mrb[0].mxu0
      %v6162 = vadd.f32 0.0, %v6161
      %v6163 = vpop.f32.mrb[0].mxu0
      %6164 = vmatprep.mubr.f32.mxu0 0.0
      %6165 = vmatmul.mubr.f32.gmra.mrb[0].mxu0 %v5940
      %v6166 = vpop.f32.mrb[0].mxu0
      %v6167 = vadd.f32 0.0, %v6166
      %v6168 = vpop.f32.mrb[0].mxu0
      %6169 = vdwg.mxu0
      %v6170 = vadd.f32 %v5781, %v6012
      %v6171 = vadd.f32 %v5782, %v6017
      %v6172 = vadd.f32 %v5783, %v6022
      %v6173 = vadd.f32 %v5784, %v6027
      %v6174 = vadd.f32 %v5785, %v6032
      %v6175 = vadd.f32 %v5786, %v6037
      %v6176 = vadd.f32 %v5787, %v6042
      %v6177 = vadd.f32 %v5788, %v6047
      %v6178 = vadd.f32 %v5789, %v6052
      %v6179 = vadd.f32 %v5790, %v6057
      %v6180 = vadd.f32 %v5791, %v6062
      %v6181 = vadd.f32 %v5792, %v6067
      %v6182 = vadd.f32 %v5793, %v6072
      %v6183 = vadd.f32 %v5794, %v6077
      %v6184 = vadd.f32 %v5795, %v6082
      %v6185 = vadd.f32 %v5796, %v6087
      %v6186 = vadd.f32 %v5797, %v6092
      %v6187 = vadd.f32 %v5798, %v6097
      %v6188 = vadd.f32 %v5799, %v6102
      %v6189 = vadd.f32 %v5800, %v6107
      %v6190 = vadd.f32 %v5801, %v6112
      %v6191 = vadd.f32 %v5802, %v6117
      %v6192 = vadd.f32 %v5803, %v6122
      %v6193 = vadd.f32 %v5804, %v6127
      %v6194 = vadd.f32 %v5805, %v6132
      %v6195 = vadd.f32 %v5806, %v6137
      %v6196 = vadd.f32 %v5807, %v6142
      %v6197 = vadd.f32 %v5808, %v6147
      %v6198 = vadd.f32 %v5809, %v6152
      %v6199 = vadd.f32 %v5810, %v6157
      %v6200 = vadd.f32 %v5811, %v6162
      %v6201 = vadd.f32 %v5812, %v6167
      %v6202 = vld [vmem:[%s433 + $0x9] sm:$0xff]
      %v6203 = vld [vmem:[%s433 + $0x11] sm:$0xff]
      %v6204 = vld [vmem:[%s433 + $0x29] sm:$0xff]
      %v6205 = vld [vmem:[%s433 + $0x31] sm:$0xff]
      %v6206 = vld [vmem:[%s433 + $0x49] sm:$0xff]
      %v6207 = vld [vmem:[%s433 + $0x51] sm:$0xff]
      %v6208 = vld [vmem:[%s433 + $0x69] sm:$0xff]
      %v6209 = vld [vmem:[%s433 + $0x71] sm:$0xff]
      %v6210 = vld [vmem:[%s433 + $0x89] sm:$0xff]
      %v6211 = vld [vmem:[%s433 + $0x91] sm:$0xff]
      %v6212 = vld [vmem:[%s433 + $0xa9] sm:$0xff]
      %v6213 = vld [vmem:[%s433 + $0xb1] sm:$0xff]
      %v6214 = vld [vmem:[%s433 + $0xc9] sm:$0xff]
      %v6215 = vld [vmem:[%s433 + $0xd1] sm:$0xff]
      %v6216 = vld [vmem:[%s433 + $0xe9] sm:$0xff]
      %v6217 = vld [vmem:[%s433 + $0xf1] sm:$0xff]
      %v6218 = vld [vmem:[%s433 + $0x109] sm:$0xff]
      %v6219 = vld [vmem:[%s433 + $0x111] sm:$0xff]
      %v6220 = vld [vmem:[%s433 + $0x129] sm:$0xff]
      %v6221 = vld [vmem:[%s433 + $0x131] sm:$0xff]
      %v6222 = vld [vmem:[%s433 + $0x149] sm:$0xff]
      %v6223 = vld [vmem:[%s433 + $0x151] sm:$0xff]
      %v6224 = vld [vmem:[%s433 + $0x169] sm:$0xff]
      %v6225 = vld [vmem:[%s433 + $0x171] sm:$0xff]
      %v6226 = vld [vmem:[%s433 + $0x189] sm:$0xff]
      %v6227 = vld [vmem:[%s433 + $0x191] sm:$0xff]
      %v6228 = vld [vmem:[%s433 + $0x1a9] sm:$0xff]
      %v6229 = vld [vmem:[%s433 + $0x1b1] sm:$0xff]
      %v6230 = vld [vmem:[%s433 + $0x1c9] sm:$0xff]
      %v6231 = vld [vmem:[%s433 + $0x1d1] sm:$0xff]
      %v6232 = vld [vmem:[%s433 + $0x1e9] sm:$0xff]
      %v6233 = vld [vmem:[%s433 + $0x1f1] sm:$0xff]
      %v6234 = vld [vmem:[%s4 + $0x14] sm:$0xf]
      %v6236 = vsel %vm380, %v6202, 0
      %v6239 = vsel %vm380, %v6203, 0
      %v6242 = vsel %vm380, %v6204, 0
      %v6245 = vsel %vm380, %v6205, 0
      %v6248 = vsel %vm380, %v6206, 0
      %v6251 = vsel %vm380, %v6207, 0
      %v6254 = vsel %vm380, %v6208, 0
      %v6257 = vsel %vm380, %v6209, 0
      %v6260 = vsel %vm380, %v6210, 0
      %v6263 = vsel %vm380, %v6211, 0
      %v6266 = vsel %vm380, %v6212, 0
      %v6269 = vsel %vm380, %v6213, 0
      %v6272 = vsel %vm380, %v6214, 0
      %v6275 = vsel %vm380, %v6215, 0
      %v6278 = vsel %vm380, %v6216, 0
      %v6281 = vsel %vm380, %v6217, 0
      %v6284 = vsel %vm380, %v6218, 0
      %v6287 = vsel %vm380, %v6219, 0
      %v6290 = vsel %vm380, %v6220, 0
      %v6293 = vsel %vm380, %v6221, 0
      %v6296 = vsel %vm380, %v6222, 0
      %v6299 = vsel %vm380, %v6223, 0
      %v6302 = vsel %vm380, %v6224, 0
      %v6305 = vsel %vm380, %v6225, 0
      %v6308 = vsel %vm380, %v6226, 0
      %v6311 = vsel %vm380, %v6227, 0
      %v6314 = vsel %vm380, %v6228, 0
      %v6317 = vsel %vm380, %v6229, 0
      %v6320 = vsel %vm380, %v6230, 0
      %v6323 = vsel %vm380, %v6231, 0
      %v6326 = vsel %vm380, %v6232, 0
      %v6329 = vsel %vm380, %v6233, 0
      %v6332 = vsel %vm980, %v6234, 0
      %6334 = vmatprep.subr.mxu0 0.0
      %6335 = vmatpush1.msra.mxu0 %v6332
      %6336 = vmatprep.subr.mxu0 0.0
      %6337 = vmatpush1.msra.mxu0 0.0
      %6338 = vmatprep.subr.mxu0 0.0
      %6339 = vmatpush1.msra.mxu0 0.0
      %6340 = vmatprep.subr.mxu0 0.0
      %6341 = vmatpush1.msra.mxu0 0.0
      %6342 = vmatprep.subr.mxu0 0.0
      %6343 = vmatpush1.msra.mxu0 0.0
      %6344 = vmatprep.subr.mxu0 0.0
      %6345 = vmatpush1.msra.mxu0 0.0
      %6346 = vmatprep.subr.mxu0 0.0
      %6347 = vmatpush1.msra.mxu0 0.0
      %6348 = vmatprep.subr.mxu0 0.0
      %6349 = vmatpush1.msra.mxu0 0.0
      %6350 = vmatprep.subr.mxu0 0.0
      %6351 = vmatpush1.msra.mxu0 0.0
      %6352 = vmatprep.subr.mxu0 0.0
      %6353 = vmatpush1.msra.mxu0 0.0
      %6354 = vmatprep.subr.mxu0 0.0
      %6355 = vmatpush1.msra.mxu0 0.0
      %6356 = vmatprep.subr.mxu0 0.0
      %6357 = vmatpush1.msra.mxu0 0.0
      %6358 = vmatprep.subr.mxu0 0.0
      %6359 = vmatpush1.msra.mxu0 0.0
      %6360 = vmatprep.subr.mxu0 0.0
      %6361 = vmatpush1.msra.mxu0 0.0
      %6362 = vmatprep.subr.mxu0 0.0
      %6363 = vmatpush1.msra.mxu0 0.0
      %6364 = vmatprep.subr.mxu0 0.0
      %6365 = vmatpush1.msra.mxu0 0.0
      %6366 = vmatprep.subr.mxu0 0.0
      %6367 = vmatpush1.msra.mxu0 0.0
      %6368 = vmatprep.subr.mxu0 0.0
      %6369 = vmatpush1.msra.mxu0 0.0
      %6370 = vmatprep.subr.mxu0 0.0
      %6371 = vmatpush1.msra.mxu0 0.0
      %6372 = vmatprep.subr.mxu0 0.0
      %6373 = vmatpush1.msra.mxu0 0.0
      %6374 = vmatprep.subr.mxu0 0.0
      %6375 = vmatpush1.msra.mxu0 0.0
      %6376 = vmatprep.subr.mxu0 0.0
      %6377 = vmatpush1.msra.mxu0 0.0
      %6378 = vmatprep.subr.mxu0 0.0
      %6379 = vmatpush1.msra.mxu0 0.0
      %6380 = vmatprep.subr.mxu0 0.0
      %6381 = vmatpush1.msra.mxu0 0.0
      %6382 = vmatprep.subr.mxu0 0.0
      %6383 = vmatpush1.msra.mxu0 0.0
      %6384 = vmatprep.subr.mxu0 0.0
      %6385 = vmatpush1.msra.mxu0 0.0
      %6386 = vmatprep.subr.mxu0 0.0
      %6387 = vmatpush1.msra.mxu0 0.0
      %6388 = vmatprep.subr.mxu0 0.0
      %6389 = vmatpush1.msra.mxu0 0.0
      %6390 = vmatprep.subr.mxu0 0.0
      %6391 = vmatpush1.msra.mxu0 0.0
      %6392 = vmatprep.subr.mxu0 0.0
      %6393 = vmatpush1.msra.mxu0 0.0
      %6394 = vmatprep.subr.mxu0 0.0
      %6395 = vmatpush1.msra.mxu0 0.0
      %6396 = vmatprep.subr.mxu0 0.0
      %6397 = vmatpush1.msra.mxu0 0.0
      %6398 = vmatprep.mubr.f32.mxu0 0.0
      %6399 = vmatmul.mubr.f32.gmra.mrb[0].mxu0 %v6236
      %v6400 = vpop.f32.mrb[0].mxu0
      %v6401 = vadd.f32 0.0, %v6400
      %v6402 = vpop.f32.mrb[0].mxu0
      %6403 = vmatprep.mubr.f32.mxu0 0.0
      %6404 = vmatmul.mubr.f32.gmra.mrb[0].mxu0 %v6239
      %v6405 = vpop.f32.mrb[0].mxu0
      %v6406 = vadd.f32 0.0, %v6405
      %v6407 = vpop.f32.mrb[0].mxu0
      %6408 = vmatprep.mubr.f32.mxu0 0.0
      %6409 = vmatmul.mubr.f32.gmra.mrb[0].mxu0 %v6242
      %v6410 = vpop.f32.mrb[0].mxu0
      %v6411 = vadd.f32 0.0, %v6410
      %v6412 = vpop.f32.mrb[0].mxu0
      %6413 = vmatprep.mubr.f32.mxu0 0.0
      %6414 = vmatmul.mubr.f32.gmra.mrb[0].mxu0 %v6245
      %v6415 = vpop.f32.mrb[0].mxu0
      %v6416 = vadd.f32 0.0, %v6415
      %v6417 = vpop.f32.mrb[0].mxu0
      %6418 = vmatprep.mubr.f32.mxu0 0.0
      %6419 = vmatmul.mubr.f32.gmra.mrb[0].mxu0 %v6248
      %v6420 = vpop.f32.mrb[0].mxu0
      %v6421 = vadd.f32 0.0, %v6420
      %v6422 = vpop.f32.mrb[0].mxu0
      %6423 = vmatprep.mubr.f32.mxu0 0.0
      %6424 = vmatmul.mubr.f32.gmra.mrb[0].mxu0 %v6251
      %v6425 = vpop.f32.mrb[0].mxu0
      %v6426 = vadd.f32 0.0, %v6425
      %v6427 = vpop.f32.mrb[0].mxu0
      %6428 = vmatprep.mubr.f32.mxu0 0.0
      %6429 = vmatmul.mubr.f32.gmra.mrb[0].mxu0 %v6254
      %v6430 = vpop.f32.mrb[0].mxu0
      %v6431 = vadd.f32 0.0, %v6430
      %v6432 = vpop.f32.mrb[0].mxu0
      %6433 = vmatprep.mubr.f32.mxu0 0.0
      %6434 = vmatmul.mubr.f32.gmra.mrb[0].mxu0 %v6257
      %v6435 = vpop.f32.mrb[0].mxu0
      %v6436 = vadd.f32 0.0, %v6435
      %v6437 = vpop.f32.mrb[0].mxu0
      %6438 = vmatprep.mubr.f32.mxu0 0.0
      %6439 = vmatmul.mubr.f32.gmra.mrb[0].mxu0 %v6260
      %v6440 = vpop.f32.mrb[0].mxu0
      %v6441 = vadd.f32 0.0, %v6440
      %v6442 = vpop.f32.mrb[0].mxu0
      %6443 = vmatprep.mubr.f32.mxu0 0.0
      %6444 = vmatmul.mubr.f32.gmra.mrb[0].mxu0 %v6263
      %v6445 = vpop.f32.mrb[0].mxu0
      %v6446 = vadd.f32 0.0, %v6445
      %v6447 = vpop.f32.mrb[0].mxu0
      %6448 = vmatprep.mubr.f32.mxu0 0.0
      %6449 = vmatmul.mubr.f32.gmra.mrb[0].mxu0 %v6266
      %v6450 = vpop.f32.mrb[0].mxu0
      %v6451 = vadd.f32 0.0, %v6450
      %v6452 = vpop.f32.mrb[0].mxu0
      %6453 = vmatprep.mubr.f32.mxu0 0.0
      %6454 = vmatmul.mubr.f32.gmra.mrb[0].mxu0 %v6269
      %v6455 = vpop.f32.mrb[0].mxu0
      %v6456 = vadd.f32 0.0, %v6455
      %v6457 = vpop.f32.mrb[0].mxu0
      %6458 = vmatprep.mubr.f32.mxu0 0.0
      %6459 = vmatmul.mubr.f32.gmra.mrb[0].mxu0 %v6272
      %v6460 = vpop.f32.mrb[0].mxu0
      %v6461 = vadd.f32 0.0, %v6460
      %v6462 = vpop.f32.mrb[0].mxu0
      %6463 = vmatprep.mubr.f32.mxu0 0.0
      %6464 = vmatmul.mubr.f32.gmra.mrb[0].mxu0 %v6275
      %v6465 = vpop.f32.mrb[0].mxu0
      %v6466 = vadd.f32 0.0, %v6465
      %v6467 = vpop.f32.mrb[0].mxu0
      %6468 = vmatprep.mubr.f32.mxu0 0.0
      %6469 = vmatmul.mubr.f32.gmra.mrb[0].mxu0 %v6278
      %v6470 = vpop.f32.mrb[0].mxu0
      %v6471 = vadd.f32 0.0, %v6470
      %v6472 = vpop.f32.mrb[0].mxu0
      %6473 = vmatprep.mubr.f32.mxu0 0.0
      %6474 = vmatmul.mubr.f32.gmra.mrb[0].mxu0 %v6281
      %v6475 = vpop.f32.mrb[0].mxu0
      %v6476 = vadd.f32 0.0, %v6475
      %v6477 = vpop.f32.mrb[0].mxu0
      %6478 = vmatprep.mubr.f32.mxu0 0.0
      %6479 = vmatmul.mubr.f32.gmra.mrb[0].mxu0 %v6284
      %v6480 = vpop.f32.mrb[0].mxu0
      %v6481 = vadd.f32 0.0, %v6480
      %v6482 = vpop.f32.mrb[0].mxu0
      %6483 = vmatprep.mubr.f32.mxu0 0.0
      %6484 = vmatmul.mubr.f32.gmra.mrb[0].mxu0 %v6287
      %v6485 = vpop.f32.mrb[0].mxu0
      %v6486 = vadd.f32 0.0, %v6485
      %v6487 = vpop.f32.mrb[0].mxu0
      %6488 = vmatprep.mubr.f32.mxu0 0.0
      %6489 = vmatmul.mubr.f32.gmra.mrb[0].mxu0 %v6290
      %v6490 = vpop.f32.mrb[0].mxu0
      %v6491 = vadd.f32 0.0, %v6490
      %v6492 = vpop.f32.mrb[0].mxu0
      %6493 = vmatprep.mubr.f32.mxu0 0.0
      %6494 = vmatmul.mubr.f32.gmra.mrb[0].mxu0 %v6293
      %v6495 = vpop.f32.mrb[0].mxu0
      %v6496 = vadd.f32 0.0, %v6495
      %v6497 = vpop.f32.mrb[0].mxu0
      %6498 = vmatprep.mubr.f32.mxu0 0.0
      %6499 = vmatmul.mubr.f32.gmra.mrb[0].mxu0 %v6296
      %v6500 = vpop.f32.mrb[0].mxu0
      %v6501 = vadd.f32 0.0, %v6500
      %v6502 = vpop.f32.mrb[0].mxu0
      %6503 = vmatprep.mubr.f32.mxu0 0.0
      %6504 = vmatmul.mubr.f32.gmra.mrb[0].mxu0 %v6299
      %v6505 = vpop.f32.mrb[0].mxu0
      %v6506 = vadd.f32 0.0, %v6505
      %v6507 = vpop.f32.mrb[0].mxu0
      %6508 = vmatprep.mubr.f32.mxu0 0.0
      %6509 = vmatmul.mubr.f32.gmra.mrb[0].mxu0 %v6302
      %v6510 = vpop.f32.mrb[0].mxu0
      %v6511 = vadd.f32 0.0, %v6510
      %v6512 = vpop.f32.mrb[0].mxu0
      %6513 = vmatprep.mubr.f32.mxu0 0.0
      %6514 = vmatmul.mubr.f32.gmra.mrb[0].mxu0 %v6305
      %v6515 = vpop.f32.mrb[0].mxu0
      %v6516 = vadd.f32 0.0, %v6515
      %v6517 = vpop.f32.mrb[0].mxu0
      %6518 = vmatprep.mubr.f32.mxu0 0.0
      %6519 = vmatmul.mubr.f32.gmra.mrb[0].mxu0 %v6308
      %v6520 = vpop.f32.mrb[0].mxu0
      %v6521 = vadd.f32 0.0, %v6520
      %v6522 = vpop.f32.mrb[0].mxu0
      %6523 = vmatprep.mubr.f32.mxu0 0.0
      %6524 = vmatmul.mubr.f32.gmra.mrb[0].mxu0 %v6311
      %v6525 = vpop.f32.mrb[0].mxu0
      %v6526 = vadd.f32 0.0, %v6525
      %v6527 = vpop.f32.mrb[0].mxu0
      %6528 = vmatprep.mubr.f32.mxu0 0.0
      %6529 = vmatmul.mubr.f32.gmra.mrb[0].mxu0 %v6314
      %v6530 = vpop.f32.mrb[0].mxu0
      %v6531 = vadd.f32 0.0, %v6530
      %v6532 = vpop.f32.mrb[0].mxu0
      %6533 = vmatprep.mubr.f32.mxu0 0.0
      %6534 = vmatmul.mubr.f32.gmra.mrb[0].mxu0 %v6317
      %v6535 = vpop.f32.mrb[0].mxu0
      %v6536 = vadd.f32 0.0, %v6535
      %v6537 = vpop.f32.mrb[0].mxu0
      %6538 = vmatprep.mubr.f32.mxu0 0.0
      %6539 = vmatmul.mubr.f32.gmra.mrb[0].mxu0 %v6320
      %v6540 = vpop.f32.mrb[0].mxu0
      %v6541 = vadd.f32 0.0, %v6540
      %v6542 = vpop.f32.mrb[0].mxu0
      %6543 = vmatprep.mubr.f32.mxu0 0.0
      %6544 = vmatmul.mubr.f32.gmra.mrb[0].mxu0 %v6323
      %v6545 = vpop.f32.mrb[0].mxu0
      %v6546 = vadd.f32 0.0, %v6545
      %v6547 = vpop.f32.mrb[0].mxu0
      %6548 = vmatprep.mubr.f32.mxu0 0.0
      %6549 = vmatmul.mubr.f32.gmra.mrb[0].mxu0 %v6326
      %v6550 = vpop.f32.mrb[0].mxu0
      %v6551 = vadd.f32 0.0, %v6550
      %v6552 = vpop.f32.mrb[0].mxu0
      %6553 = vmatprep.mubr.f32.mxu0 0.0
      %6554 = vmatmul.mubr.f32.gmra.mrb[0].mxu0 %v6329
      %v6555 = vpop.f32.mrb[0].mxu0
      %v6556 = vadd.f32 0.0, %v6555
      %v6557 = vpop.f32.mrb[0].mxu0
      %6558 = vdwg.mxu0
      %v6559 = vadd.f32 %v6170, %v6401
      %v6560 = vadd.f32 %v6171, %v6406
      %v6561 = vadd.f32 %v6172, %v6411
      %v6562 = vadd.f32 %v6173, %v6416
      %v6563 = vadd.f32 %v6174, %v6421
      %v6564 = vadd.f32 %v6175, %v6426
      %v6565 = vadd.f32 %v6176, %v6431
      %v6566 = vadd.f32 %v6177, %v6436
      %v6567 = vadd.f32 %v6178, %v6441
      %v6568 = vadd.f32 %v6179, %v6446
      %v6569 = vadd.f32 %v6180, %v6451
      %v6570 = vadd.f32 %v6181, %v6456
      %v6571 = vadd.f32 %v6182, %v6461
      %v6572 = vadd.f32 %v6183, %v6466
      %v6573 = vadd.f32 %v6184, %v6471
      %v6574 = vadd.f32 %v6185, %v6476
      %v6575 = vadd.f32 %v6186, %v6481
      %v6576 = vadd.f32 %v6187, %v6486
      %v6577 = vadd.f32 %v6188, %v6491
      %v6578 = vadd.f32 %v6189, %v6496
      %v6579 = vadd.f32 %v6190, %v6501
      %v6580 = vadd.f32 %v6191, %v6506
      %v6581 = vadd.f32 %v6192, %v6511
      %v6582 = vadd.f32 %v6193, %v6516
      %v6583 = vadd.f32 %v6194, %v6521
      %v6584 = vadd.f32 %v6195, %v6526
      %v6585 = vadd.f32 %v6196, %v6531
      %v6586 = vadd.f32 %v6197, %v6536
      %v6587 = vadd.f32 %v6198, %v6541
      %v6588 = vadd.f32 %v6199, %v6546
      %v6589 = vadd.f32 %v6200, %v6551
      %v6590 = vadd.f32 %v6201, %v6556
      %s6591 = scalar_lea.vmem [#allocation3], 64
      %v6592 = vld [vmem:[%s6591 + $0x7] sm:$0xff]
      %v6593 = vld [vmem:[%s6591 + $0xf] sm:$0xff]
      %v6594 = vld [vmem:[%s6591 + $0x27] sm:$0xff]
      %v6595 = vld [vmem:[%s6591 + $0x2f] sm:$0xff]
      %v6596 = vld [vmem:[%s6591 + $0x47] sm:$0xff]
      %v6597 = vld [vmem:[%s6591 + $0x4f] sm:$0xff]
      %v6598 = vld [vmem:[%s6591 + $0x67] sm:$0xff]
      %v6599 = vld [vmem:[%s6591 + $0x6f] sm:$0xff]
      %v6600 = vld [vmem:[%s6591 + $0x87] sm:$0xff]
      %v6601 = vld [vmem:[%s6591 + $0x8f] sm:$0xff]
      %v6602 = vld [vmem:[%s6591 + $0xa7] sm:$0xff]
      %v6603 = vld [vmem:[%s6591 + $0xaf] sm:$0xff]
      %v6604 = vld [vmem:[%s6591 + $0xc7] sm:$0xff]
      %v6605 = vld [vmem:[%s6591 + $0xcf] sm:$0xff]
      %v6606 = vld [vmem:[%s6591 + $0xe7] sm:$0xff]
      %v6607 = vld [vmem:[%s6591 + $0xef] sm:$0xff]
      %v6608 = vld [vmem:[%s6591 + $0x107] sm:$0xff]
      %v6609 = vld [vmem:[%s6591 + $0x10f] sm:$0xff]
      %v6610 = vld [vmem:[%s6591 + $0x127] sm:$0xff]
      %v6611 = vld [vmem:[%s6591 + $0x12f] sm:$0xff]
      %v6612 = vld [vmem:[%s6591 + $0x147] sm:$0xff]
      %v6613 = vld [vmem:[%s6591 + $0x14f] sm:$0xff]
      %v6614 = vld [vmem:[%s6591 + $0x167] sm:$0xff]
      %v6615 = vld [vmem:[%s6591 + $0x16f] sm:$0xff]
      %v6616 = vld [vmem:[%s6591 + $0x187] sm:$0xff]
      %v6617 = vld [vmem:[%s6591 + $0x18f] sm:$0xff]
      %v6618 = vld [vmem:[%s6591 + $0x1a7] sm:$0xff]
      %v6619 = vld [vmem:[%s6591 + $0x1af] sm:$0xff]
      %v6620 = vld [vmem:[%s6591 + $0x1c7] sm:$0xff]
      %v6621 = vld [vmem:[%s6591 + $0x1cf] sm:$0xff]
      %v6622 = vld [vmem:[%s6591 + $0x1e7] sm:$0xff]
      %v6623 = vld [vmem:[%s6591 + $0x1ef] sm:$0xff]
      %v6624 = vld [vmem:[%s4 + $0x18] sm:$0xf]
      %v6626 = vsel %vm380, %v6592, 0
      %v6629 = vsel %vm380, %v6593, 0
      %v6632 = vsel %vm380, %v6594, 0
      %v6635 = vsel %vm380, %v6595, 0
      %v6638 = vsel %vm380, %v6596, 0
      %v6641 = vsel %vm380, %v6597, 0
      %v6644 = vsel %vm380, %v6598, 0
      %v6647 = vsel %vm380, %v6599, 0
      %v6650 = vsel %vm380, %v6600, 0
      %v6653 = vsel %vm380, %v6601, 0
      %v6656 = vsel %vm380, %v6602, 0
      %v6659 = vsel %vm380, %v6603, 0
      %v6662 = vsel %vm380, %v6604, 0
      %v6665 = vsel %vm380, %v6605, 0
      %v6668 = vsel %vm380, %v6606, 0
      %v6671 = vsel %vm380, %v6607, 0
      %v6674 = vsel %vm380, %v6608, 0
      %v6677 = vsel %vm380, %v6609, 0
      %v6680 = vsel %vm380, %v6610, 0
      %v6683 = vsel %vm380, %v6611, 0
      %v6686 = vsel %vm380, %v6612, 0
      %v6689 = vsel %vm380, %v6613, 0
      %v6692 = vsel %vm380, %v6614, 0
      %v6695 = vsel %vm380, %v6615, 0
      %v6698 = vsel %vm380, %v6616, 0
      %v6701 = vsel %vm380, %v6617, 0
      %v6704 = vsel %vm380, %v6618, 0
      %v6707 = vsel %vm380, %v6619, 0
      %v6710 = vsel %vm380, %v6620, 0
      %v6713 = vsel %vm380, %v6621, 0
      %v6716 = vsel %vm380, %v6622, 0
      %v6719 = vsel %vm380, %v6623, 0
      %v6722 = vsel %vm980, %v6624, 0
      %6724 = vmatprep.subr.mxu0 0.0
      %6725 = vmatpush1.msra.mxu0 %v6722
      %6726 = vmatprep.subr.mxu0 0.0
      %6727 = vmatpush1.msra.mxu0 0.0
      %6728 = vmatprep.subr.mxu0 0.0
      %6729 = vmatpush1.msra.mxu0 0.0
      %6730 = vmatprep.subr.mxu0 0.0
      %6731 = vmatpush1.msra.mxu0 0.0
      %6732 = vmatprep.subr.mxu0 0.0
      %6733 = vmatpush1.msra.mxu0 0.0
      %6734 = vmatprep.subr.mxu0 0.0
      %6735 = vmatpush1.msra.mxu0 0.0
      %6736 = vmatprep.subr.mxu0 0.0
      %6737 = vmatpush1.msra.mxu0 0.0
      %6738 = vmatprep.subr.mxu0 0.0
      %6739 = vmatpush1.msra.mxu0 0.0
      %6740 = vmatprep.subr.mxu0 0.0
      %6741 = vmatpush1.msra.mxu0 0.0
      %6742 = vmatprep.subr.mxu0 0.0
      %6743 = vmatpush1.msra.mxu0 0.0
      %6744 = vmatprep.subr.mxu0 0.0
      %6745 = vmatpush1.msra.mxu0 0.0
      %6746 = vmatprep.subr.mxu0 0.0
      %6747 = vmatpush1.msra.mxu0 0.0
      %6748 = vmatprep.subr.mxu0 0.0
      %6749 = vmatpush1.msra.mxu0 0.0
      %6750 = vmatprep.subr.mxu0 0.0
      %6751 = vmatpush1.msra.mxu0 0.0
      %6752 = vmatprep.subr.mxu0 0.0
      %6753 = vmatpush1.msra.mxu0 0.0
      %6754 = vmatprep.subr.mxu0 0.0
      %6755 = vmatpush1.msra.mxu0 0.0
      %6756 = vmatprep.subr.mxu0 0.0
      %6757 = vmatpush1.msra.mxu0 0.0
      %6758 = vmatprep.subr.mxu0 0.0
      %6759 = vmatpush1.msra.mxu0 0.0
      %6760 = vmatprep.subr.mxu0 0.0
      %6761 = vmatpush1.msra.mxu0 0.0
      %6762 = vmatprep.subr.mxu0 0.0
      %6763 = vmatpush1.msra.mxu0 0.0
      %6764 = vmatprep.subr.mxu0 0.0
      %6765 = vmatpush1.msra.mxu0 0.0
      %6766 = vmatprep.subr.mxu0 0.0
      %6767 = vmatpush1.msra.mxu0 0.0
      %6768 = vmatprep.subr.mxu0 0.0
      %6769 = vmatpush1.msra.mxu0 0.0
      %6770 = vmatprep.subr.mxu0 0.0
      %6771 = vmatpush1.msra.mxu0 0.0
      %6772 = vmatprep.subr.mxu0 0.0
      %6773 = vmatpush1.msra.mxu0 0.0
      %6774 = vmatprep.subr.mxu0 0.0
      %6775 = vmatpush1.msra.mxu0 0.0
      %6776 = vmatprep.subr.mxu0 0.0
      %6777 = vmatpush1.msra.mxu0 0.0
      %6778 = vmatprep.subr.mxu0 0.0
      %6779 = vmatpush1.msra.mxu0 0.0
      %6780 = vmatprep.subr.mxu0 0.0
      %6781 = vmatpush1.msra.mxu0 0.0
      %6782 = vmatprep.subr.mxu0 0.0
      %6783 = vmatpush1.msra.mxu0 0.0
      %6784 = vmatprep.subr.mxu0 0.0
      %6785 = vmatpush1.msra.mxu0 0.0
      %6786 = vmatprep.subr.mxu0 0.0
      %6787 = vmatpush1.msra.mxu0 0.0
      %6788 = vmatprep.mubr.f32.mxu0 0.0
      %6789 = vmatmul.mubr.f32.gmra.mrb[0].mxu0 %v6626
      %v6790 = vpop.f32.mrb[0].mxu0
      %v6791 = vadd.f32 0.0, %v6790
      %v6792 = vpop.f32.mrb[0].mxu0
      %6793 = vmatprep.mubr.f32.mxu0 0.0
      %6794 = vmatmul.mubr.f32.gmra.mrb[0].mxu0 %v6629
      %v6795 = vpop.f32.mrb[0].mxu0
      %v6796 = vadd.f32 0.0, %v6795
      %v6797 = vpop.f32.mrb[0].mxu0
      %6798 = vmatprep.mubr.f32.mxu0 0.0
      %6799 = vmatmul.mubr.f32.gmra.mrb[0].mxu0 %v6632
      %v6800 = vpop.f32.mrb[0].mxu0
      %v6801 = vadd.f32 0.0, %v6800
      %v6802 = vpop.f32.mrb[0].mxu0
      %6803 = vmatprep.mubr.f32.mxu0 0.0
      %6804 = vmatmul.mubr.f32.gmra.mrb[0].mxu0 %v6635
      %v6805 = vpop.f32.mrb[0].mxu0
      %v6806 = vadd.f32 0.0, %v6805
      %v6807 = vpop.f32.mrb[0].mxu0
      %6808 = vmatprep.mubr.f32.mxu0 0.0
      %6809 = vmatmul.mubr.f32.gmra.mrb[0].mxu0 %v6638
      %v6810 = vpop.f32.mrb[0].mxu0
      %v6811 = vadd.f32 0.0, %v6810
      %v6812 = vpop.f32.mrb[0].mxu0
      %6813 = vmatprep.mubr.f32.mxu0 0.0
      %6814 = vmatmul.mubr.f32.gmra.mrb[0].mxu0 %v6641
      %v6815 = vpop.f32.mrb[0].mxu0
      %v6816 = vadd.f32 0.0, %v6815
      %v6817 = vpop.f32.mrb[0].mxu0
      %6818 = vmatprep.mubr.f32.mxu0 0.0
      %6819 = vmatmul.mubr.f32.gmra.mrb[0].mxu0 %v6644
      %v6820 = vpop.f32.mrb[0].mxu0
      %v6821 = vadd.f32 0.0, %v6820
      %v6822 = vpop.f32.mrb[0].mxu0
      %6823 = vmatprep.mubr.f32.mxu0 0.0
      %6824 = vmatmul.mubr.f32.gmra.mrb[0].mxu0 %v6647
      %v6825 = vpop.f32.mrb[0].mxu0
      %v6826 = vadd.f32 0.0, %v6825
      %v6827 = vpop.f32.mrb[0].mxu0
      %6828 = vmatprep.mubr.f32.mxu0 0.0
      %6829 = vmatmul.mubr.f32.gmra.mrb[0].mxu0 %v6650
      %v6830 = vpop.f32.mrb[0].mxu0
      %v6831 = vadd.f32 0.0, %v6830
      %v6832 = vpop.f32.mrb[0].mxu0
      %6833 = vmatprep.mubr.f32.mxu0 0.0
      %6834 = vmatmul.mubr.f32.gmra.mrb[0].mxu0 %v6653
      %v6835 = vpop.f32.mrb[0].mxu0
      %v6836 = vadd.f32 0.0, %v6835
      %v6837 = vpop.f32.mrb[0].mxu0
      %6838 = vmatprep.mubr.f32.mxu0 0.0
      %6839 = vmatmul.mubr.f32.gmra.mrb[0].mxu0 %v6656
      %v6840 = vpop.f32.mrb[0].mxu0
      %v6841 = vadd.f32 0.0, %v6840
      %v6842 = vpop.f32.mrb[0].mxu0
      %6843 = vmatprep.mubr.f32.mxu0 0.0
      %6844 = vmatmul.mubr.f32.gmra.mrb[0].mxu0 %v6659
      %v6845 = vpop.f32.mrb[0].mxu0
      %v6846 = vadd.f32 0.0, %v6845
      %v6847 = vpop.f32.mrb[0].mxu0
      %6848 = vmatprep.mubr.f32.mxu0 0.0
      %6849 = vmatmul.mubr.f32.gmra.mrb[0].mxu0 %v6662
      %v6850 = vpop.f32.mrb[0].mxu0
      %v6851 = vadd.f32 0.0, %v6850
      %v6852 = vpop.f32.mrb[0].mxu0
      %6853 = vmatprep.mubr.f32.mxu0 0.0
      %6854 = vmatmul.mubr.f32.gmra.mrb[0].mxu0 %v6665
      %v6855 = vpop.f32.mrb[0].mxu0
      %v6856 = vadd.f32 0.0, %v6855
      %v6857 = vpop.f32.mrb[0].mxu0
      %6858 = vmatprep.mubr.f32.mxu0 0.0
      %6859 = vmatmul.mubr.f32.gmra.mrb[0].mxu0 %v6668
      %v6860 = vpop.f32.mrb[0].mxu0
      %v6861 = vadd.f32 0.0, %v6860
      %v6862 = vpop.f32.mrb[0].mxu0
      %6863 = vmatprep.mubr.f32.mxu0 0.0
      %6864 = vmatmul.mubr.f32.gmra.mrb[0].mxu0 %v6671
      %v6865 = vpop.f32.mrb[0].mxu0
      %v6866 = vadd.f32 0.0, %v6865
      %v6867 = vpop.f32.mrb[0].mxu0
      %6868 = vmatprep.mubr.f32.mxu0 0.0
      %6869 = vmatmul.mubr.f32.gmra.mrb[0].mxu0 %v6674
      %v6870 = vpop.f32.mrb[0].mxu0
      %v6871 = vadd.f32 0.0, %v6870
      %v6872 = vpop.f32.mrb[0].mxu0
      %6873 = vmatprep.mubr.f32.mxu0 0.0
      %6874 = vmatmul.mubr.f32.gmra.mrb[0].mxu0 %v6677
      %v6875 = vpop.f32.mrb[0].mxu0
      %v6876 = vadd.f32 0.0, %v6875
      %v6877 = vpop.f32.mrb[0].mxu0
      %6878 = vmatprep.mubr.f32.mxu0 0.0
      %6879 = vmatmul.mubr.f32.gmra.mrb[0].mxu0 %v6680
      %v6880 = vpop.f32.mrb[0].mxu0
      %v6881 = vadd.f32 0.0, %v6880
      %v6882 = vpop.f32.mrb[0].mxu0
      %6883 = vmatprep.mubr.f32.mxu0 0.0
      %6884 = vmatmul.mubr.f32.gmra.mrb[0].mxu0 %v6683
      %v6885 = vpop.f32.mrb[0].mxu0
      %v6886 = vadd.f32 0.0, %v6885
      %v6887 = vpop.f32.mrb[0].mxu0
      %6888 = vmatprep.mubr.f32.mxu0 0.0
      %6889 = vmatmul.mubr.f32.gmra.mrb[0].mxu0 %v6686
      %v6890 = vpop.f32.mrb[0].mxu0
      %v6891 = vadd.f32 0.0, %v6890
      %v6892 = vpop.f32.mrb[0].mxu0
      %6893 = vmatprep.mubr.f32.mxu0 0.0
      %6894 = vmatmul.mubr.f32.gmra.mrb[0].mxu0 %v6689
      %v6895 = vpop.f32.mrb[0].mxu0
      %v6896 = vadd.f32 0.0, %v6895
      %v6897 = vpop.f32.mrb[0].mxu0
      %6898 = vmatprep.mubr.f32.mxu0 0.0
      %6899 = vmatmul.mubr.f32.gmra.mrb[0].mxu0 %v6692
      %v6900 = vpop.f32.mrb[0].mxu0
      %v6901 = vadd.f32 0.0, %v6900
      %v6902 = vpop.f32.mrb[0].mxu0
      %6903 = vmatprep.mubr.f32.mxu0 0.0
      %6904 = vmatmul.mubr.f32.gmra.mrb[0].mxu0 %v6695
      %v6905 = vpop.f32.mrb[0].mxu0
      %v6906 = vadd.f32 0.0, %v6905
      %v6907 = vpop.f32.mrb[0].mxu0
      %6908 = vmatprep.mubr.f32.mxu0 0.0
      %6909 = vmatmul.mubr.f32.gmra.mrb[0].mxu0 %v6698
      %v6910 = vpop.f32.mrb[0].mxu0
      %v6911 = vadd.f32 0.0, %v6910
      %v6912 = vpop.f32.mrb[0].mxu0
      %6913 = vmatprep.mubr.f32.mxu0 0.0
      %6914 = vmatmul.mubr.f32.gmra.mrb[0].mxu0 %v6701
      %v6915 = vpop.f32.mrb[0].mxu0
      %v6916 = vadd.f32 0.0, %v6915
      %v6917 = vpop.f32.mrb[0].mxu0
      %6918 = vmatprep.mubr.f32.mxu0 0.0
      %6919 = vmatmul.mubr.f32.gmra.mrb[0].mxu0 %v6704
      %v6920 = vpop.f32.mrb[0].mxu0
      %v6921 = vadd.f32 0.0, %v6920
      %v6922 = vpop.f32.mrb[0].mxu0
      %6923 = vmatprep.mubr.f32.mxu0 0.0
      %6924 = vmatmul.mubr.f32.gmra.mrb[0].mxu0 %v6707
      %v6925 = vpop.f32.mrb[0].mxu0
      %v6926 = vadd.f32 0.0, %v6925
      %v6927 = vpop.f32.mrb[0].mxu0
      %6928 = vmatprep.mubr.f32.mxu0 0.0
      %6929 = vmatmul.mubr.f32.gmra.mrb[0].mxu0 %v6710
      %v6930 = vpop.f32.mrb[0].mxu0
      %v6931 = vadd.f32 0.0, %v6930
      %v6932 = vpop.f32.mrb[0].mxu0
      %6933 = vmatprep.mubr.f32.mxu0 0.0
      %6934 = vmatmul.mubr.f32.gmra.mrb[0].mxu0 %v6713
      %v6935 = vpop.f32.mrb[0].mxu0
      %v6936 = vadd.f32 0.0, %v6935
      %v6937 = vpop.f32.mrb[0].mxu0
      %6938 = vmatprep.mubr.f32.mxu0 0.0
      %6939 = vmatmul.mubr.f32.gmra.mrb[0].mxu0 %v6716
      %v6940 = vpop.f32.mrb[0].mxu0
      %v6941 = vadd.f32 0.0, %v6940
      %v6942 = vpop.f32.mrb[0].mxu0
      %6943 = vmatprep.mubr.f32.mxu0 0.0
      %6944 = vmatmul.mubr.f32.gmra.mrb[0].mxu0 %v6719
      %v6945 = vpop.f32.mrb[0].mxu0
      %v6946 = vadd.f32 0.0, %v6945
      %v6947 = vpop.f32.mrb[0].mxu0
      %6948 = vdwg.mxu0
      %v6949 = vadd.f32 %v6559, %v6791
      %v6950 = vadd.f32 %v6560, %v6796
      %v6951 = vadd.f32 %v6561, %v6801
      %v6952 = vadd.f32 %v6562, %v6806
      %v6953 = vadd.f32 %v6563, %v6811
      %v6954 = vadd.f32 %v6564, %v6816
      %v6955 = vadd.f32 %v6565, %v6821
      %v6956 = vadd.f32 %v6566, %v6826
      %v6957 = vadd.f32 %v6567, %v6831
      %v6958 = vadd.f32 %v6568, %v6836
      %v6959 = vadd.f32 %v6569, %v6841
      %v6960 = vadd.f32 %v6570, %v6846
      %v6961 = vadd.f32 %v6571, %v6851
      %v6962 = vadd.f32 %v6572, %v6856
      %v6963 = vadd.f32 %v6573, %v6861
      %v6964 = vadd.f32 %v6574, %v6866
      %v6965 = vadd.f32 %v6575, %v6871
      %v6966 = vadd.f32 %v6576, %v6876
      %v6967 = vadd.f32 %v6577, %v6881
      %v6968 = vadd.f32 %v6578, %v6886
      %v6969 = vadd.f32 %v6579, %v6891
      %v6970 = vadd.f32 %v6580, %v6896
      %v6971 = vadd.f32 %v6581, %v6901
      %v6972 = vadd.f32 %v6582, %v6906
      %v6973 = vadd.f32 %v6583, %v6911
      %v6974 = vadd.f32 %v6584, %v6916
      %v6975 = vadd.f32 %v6585, %v6921
      %v6976 = vadd.f32 %v6586, %v6926
      %v6977 = vadd.f32 %v6587, %v6931
      %v6978 = vadd.f32 %v6588, %v6936
      %v6979 = vadd.f32 %v6589, %v6941
      %v6980 = vadd.f32 %v6590, %v6946
      %v6981 = vld [vmem:[%s6591 + $0x8] sm:$0xff]
      %v6982 = vld [vmem:[%s6591 + $0x10] sm:$0xff]
      %v6983 = vld [vmem:[%s6591 + $0x28] sm:$0xff]
      %v6984 = vld [vmem:[%s6591 + $0x30] sm:$0xff]
      %v6985 = vld [vmem:[%s6591 + $0x48] sm:$0xff]
      %v6986 = vld [vmem:[%s6591 + $0x50] sm:$0xff]
      %v6987 = vld [vmem:[%s6591 + $0x68] sm:$0xff]
      %v6988 = vld [vmem:[%s6591 + $0x70] sm:$0xff]
      %v6989 = vld [vmem:[%s6591 + $0x88] sm:$0xff]
      %v6990 = vld [vmem:[%s6591 + $0x90] sm:$0xff]
      %v6991 = vld [vmem:[%s6591 + $0xa8] sm:$0xff]
      %v6992 = vld [vmem:[%s6591 + $0xb0] sm:$0xff]
      %v6993 = vld [vmem:[%s6591 + $0xc8] sm:$0xff]
      %v6994 = vld [vmem:[%s6591 + $0xd0] sm:$0xff]
      %v6995 = vld [vmem:[%s6591 + $0xe8] sm:$0xff]
      %v6996 = vld [vmem:[%s6591 + $0xf0] sm:$0xff]
      %v6997 = vld [vmem:[%s6591 + $0x108] sm:$0xff]
      %v6998 = vld [vmem:[%s6591 + $0x110] sm:$0xff]
      %v6999 = vld [vmem:[%s6591 + $0x128] sm:$0xff]
      %v7000 = vld [vmem:[%s6591 + $0x130] sm:$0xff]
      %v7001 = vld [vmem:[%s6591 + $0x148] sm:$0xff]
      %v7002 = vld [vmem:[%s6591 + $0x150] sm:$0xff]
      %v7003 = vld [vmem:[%s6591 + $0x168] sm:$0xff]
      %v7004 = vld [vmem:[%s6591 + $0x170] sm:$0xff]
      %v7005 = vld [vmem:[%s6591 + $0x188] sm:$0xff]
      %v7006 = vld [vmem:[%s6591 + $0x190] sm:$0xff]
      %v7007 = vld [vmem:[%s6591 + $0x1a8] sm:$0xff]
      %v7008 = vld [vmem:[%s6591 + $0x1b0] sm:$0xff]
      %v7009 = vld [vmem:[%s6591 + $0x1c8] sm:$0xff]
      %v7010 = vld [vmem:[%s6591 + $0x1d0] sm:$0xff]
      %v7011 = vld [vmem:[%s6591 + $0x1e8] sm:$0xff]
      %v7012 = vld [vmem:[%s6591 + $0x1f0] sm:$0xff]
      %v7013 = vld [vmem:[%s4 + $0x1c] sm:$0xf]
      %v7015 = vsel %vm380, %v6981, 0
      %v7018 = vsel %vm380, %v6982, 0
      %v7021 = vsel %vm380, %v6983, 0
      %v7024 = vsel %vm380, %v6984, 0
      %v7027 = vsel %vm380, %v6985, 0
      %v7030 = vsel %vm380, %v6986, 0
      %v7033 = vsel %vm380, %v6987, 0
      %v7036 = vsel %vm380, %v6988, 0
      %v7039 = vsel %vm380, %v6989, 0
      %v7042 = vsel %vm380, %v6990, 0
      %v7045 = vsel %vm380, %v6991, 0
      %v7048 = vsel %vm380, %v6992, 0
      %v7051 = vsel %vm380, %v6993, 0
      %v7054 = vsel %vm380, %v6994, 0
      %v7057 = vsel %vm380, %v6995, 0
      %v7060 = vsel %vm380, %v6996, 0
      %v7063 = vsel %vm380, %v6997, 0
      %v7066 = vsel %vm380, %v6998, 0
      %v7069 = vsel %vm380, %v6999, 0
      %v7072 = vsel %vm380, %v7000, 0
      %v7075 = vsel %vm380, %v7001, 0
      %v7078 = vsel %vm380, %v7002, 0
      %v7081 = vsel %vm380, %v7003, 0
      %v7084 = vsel %vm380, %v7004, 0
      %v7087 = vsel %vm380, %v7005, 0
      %v7090 = vsel %vm380, %v7006, 0
      %v7093 = vsel %vm380, %v7007, 0
      %v7096 = vsel %vm380, %v7008, 0
      %v7099 = vsel %vm380, %v7009, 0
      %v7102 = vsel %vm380, %v7010, 0
      %v7105 = vsel %vm380, %v7011, 0
      %v7108 = vsel %vm380, %v7012, 0
      %v7111 = vsel %vm980, %v7013, 0
      %7113 = vmatprep.subr.mxu0 0.0
      %7114 = vmatpush1.msra.mxu0 %v7111
      %7115 = vmatprep.subr.mxu0 0.0
      %7116 = vmatpush1.msra.mxu0 0.0
      %7117 = vmatprep.subr.mxu0 0.0
      %7118 = vmatpush1.msra.mxu0 0.0
      %7119 = vmatprep.subr.mxu0 0.0
      %7120 = vmatpush1.msra.mxu0 0.0
      %7121 = vmatprep.subr.mxu0 0.0
      %7122 = vmatpush1.msra.mxu0 0.0
      %7123 = vmatprep.subr.mxu0 0.0
      %7124 = vmatpush1.msra.mxu0 0.0
      %7125 = vmatprep.subr.mxu0 0.0
      %7126 = vmatpush1.msra.mxu0 0.0
      %7127 = vmatprep.subr.mxu0 0.0
      %7128 = vmatpush1.msra.mxu0 0.0
      %7129 = vmatprep.subr.mxu0 0.0
      %7130 = vmatpush1.msra.mxu0 0.0
      %7131 = vmatprep.subr.mxu0 0.0
      %7132 = vmatpush1.msra.mxu0 0.0
      %7133 = vmatprep.subr.mxu0 0.0
      %7134 = vmatpush1.msra.mxu0 0.0
      %7135 = vmatprep.subr.mxu0 0.0
      %7136 = vmatpush1.msra.mxu0 0.0
      %7137 = vmatprep.subr.mxu0 0.0
      %7138 = vmatpush1.msra.mxu0 0.0
      %7139 = vmatprep.subr.mxu0 0.0
      %7140 = vmatpush1.msra.mxu0 0.0
      %7141 = vmatprep.subr.mxu0 0.0
      %7142 = vmatpush1.msra.mxu0 0.0
      %7143 = vmatprep.subr.mxu0 0.0
      %7144 = vmatpush1.msra.mxu0 0.0
      %7145 = vmatprep.subr.mxu0 0.0
      %7146 = vmatpush1.msra.mxu0 0.0
      %7147 = vmatprep.subr.mxu0 0.0
      %7148 = vmatpush1.msra.mxu0 0.0
      %7149 = vmatprep.subr.mxu0 0.0
      %7150 = vmatpush1.msra.mxu0 0.0
      %7151 = vmatprep.subr.mxu0 0.0
      %7152 = vmatpush1.msra.mxu0 0.0
      %7153 = vmatprep.subr.mxu0 0.0
      %7154 = vmatpush1.msra.mxu0 0.0
      %7155 = vmatprep.subr.mxu0 0.0
      %7156 = vmatpush1.msra.mxu0 0.0
      %7157 = vmatprep.subr.mxu0 0.0
      %7158 = vmatpush1.msra.mxu0 0.0
      %7159 = vmatprep.subr.mxu0 0.0
      %7160 = vmatpush1.msra.mxu0 0.0
      %7161 = vmatprep.subr.mxu0 0.0
      %7162 = vmatpush1.msra.mxu0 0.0
      %7163 = vmatprep.subr.mxu0 0.0
      %7164 = vmatpush1.msra.mxu0 0.0
      %7165 = vmatprep.subr.mxu0 0.0
      %7166 = vmatpush1.msra.mxu0 0.0
      %7167 = vmatprep.subr.mxu0 0.0
      %7168 = vmatpush1.msra.mxu0 0.0
      %7169 = vmatprep.subr.mxu0 0.0
      %7170 = vmatpush1.msra.mxu0 0.0
      %7171 = vmatprep.subr.mxu0 0.0
      %7172 = vmatpush1.msra.mxu0 0.0
      %7173 = vmatprep.subr.mxu0 0.0
      %7174 = vmatpush1.msra.mxu0 0.0
      %7175 = vmatprep.subr.mxu0 0.0
      %7176 = vmatpush1.msra.mxu0 0.0
      %7177 = vmatprep.mubr.f32.mxu0 0.0
      %7178 = vmatmul.mubr.f32.gmra.mrb[0].mxu0 %v7015
      %v7179 = vpop.f32.mrb[0].mxu0
      %v7180 = vadd.f32 0.0, %v7179
      %v7181 = vpop.f32.mrb[0].mxu0
      %7182 = vmatprep.mubr.f32.mxu0 0.0
      %7183 = vmatmul.mubr.f32.gmra.mrb[0].mxu0 %v7018
      %v7184 = vpop.f32.mrb[0].mxu0
      %v7185 = vadd.f32 0.0, %v7184
      %v7186 = vpop.f32.mrb[0].mxu0
      %7187 = vmatprep.mubr.f32.mxu0 0.0
      %7188 = vmatmul.mubr.f32.gmra.mrb[0].mxu0 %v7021
      %v7189 = vpop.f32.mrb[0].mxu0
      %v7190 = vadd.f32 0.0, %v7189
      %v7191 = vpop.f32.mrb[0].mxu0
      %7192 = vmatprep.mubr.f32.mxu0 0.0
      %7193 = vmatmul.mubr.f32.gmra.mrb[0].mxu0 %v7024
      %v7194 = vpop.f32.mrb[0].mxu0
      %v7195 = vadd.f32 0.0, %v7194
      %v7196 = vpop.f32.mrb[0].mxu0
      %7197 = vmatprep.mubr.f32.mxu0 0.0
      %7198 = vmatmul.mubr.f32.gmra.mrb[0].mxu0 %v7027
      %v7199 = vpop.f32.mrb[0].mxu0
      %v7200 = vadd.f32 0.0, %v7199
      %v7201 = vpop.f32.mrb[0].mxu0
      %7202 = vmatprep.mubr.f32.mxu0 0.0
      %7203 = vmatmul.mubr.f32.gmra.mrb[0].mxu0 %v7030
      %v7204 = vpop.f32.mrb[0].mxu0
      %v7205 = vadd.f32 0.0, %v7204
      %v7206 = vpop.f32.mrb[0].mxu0
      %7207 = vmatprep.mubr.f32.mxu0 0.0
      %7208 = vmatmul.mubr.f32.gmra.mrb[0].mxu0 %v7033
      %v7209 = vpop.f32.mrb[0].mxu0
      %v7210 = vadd.f32 0.0, %v7209
      %v7211 = vpop.f32.mrb[0].mxu0
      %7212 = vmatprep.mubr.f32.mxu0 0.0
      %7213 = vmatmul.mubr.f32.gmra.mrb[0].mxu0 %v7036
      %v7214 = vpop.f32.mrb[0].mxu0
      %v7215 = vadd.f32 0.0, %v7214
      %v7216 = vpop.f32.mrb[0].mxu0
      %7217 = vmatprep.mubr.f32.mxu0 0.0
      %7218 = vmatmul.mubr.f32.gmra.mrb[0].mxu0 %v7039
      %v7219 = vpop.f32.mrb[0].mxu0
      %v7220 = vadd.f32 0.0, %v7219
      %v7221 = vpop.f32.mrb[0].mxu0
      %7222 = vmatprep.mubr.f32.mxu0 0.0
      %7223 = vmatmul.mubr.f32.gmra.mrb[0].mxu0 %v7042
      %v7224 = vpop.f32.mrb[0].mxu0
      %v7225 = vadd.f32 0.0, %v7224
      %v7226 = vpop.f32.mrb[0].mxu0
      %7227 = vmatprep.mubr.f32.mxu0 0.0
      %7228 = vmatmul.mubr.f32.gmra.mrb[0].mxu0 %v7045
      %v7229 = vpop.f32.mrb[0].mxu0
      %v7230 = vadd.f32 0.0, %v7229
      %v7231 = vpop.f32.mrb[0].mxu0
      %7232 = vmatprep.mubr.f32.mxu0 0.0
      %7233 = vmatmul.mubr.f32.gmra.mrb[0].mxu0 %v7048
      %v7234 = vpop.f32.mrb[0].mxu0
      %v7235 = vadd.f32 0.0, %v7234
      %v7236 = vpop.f32.mrb[0].mxu0
      %7237 = vmatprep.mubr.f32.mxu0 0.0
      %7238 = vmatmul.mubr.f32.gmra.mrb[0].mxu0 %v7051
      %v7239 = vpop.f32.mrb[0].mxu0
      %v7240 = vadd.f32 0.0, %v7239
      %v7241 = vpop.f32.mrb[0].mxu0
      %7242 = vmatprep.mubr.f32.mxu0 0.0
      %7243 = vmatmul.mubr.f32.gmra.mrb[0].mxu0 %v7054
      %v7244 = vpop.f32.mrb[0].mxu0
      %v7245 = vadd.f32 0.0, %v7244
      %v7246 = vpop.f32.mrb[0].mxu0
      %7247 = vmatprep.mubr.f32.mxu0 0.0
      %7248 = vmatmul.mubr.f32.gmra.mrb[0].mxu0 %v7057
      %v7249 = vpop.f32.mrb[0].mxu0
      %v7250 = vadd.f32 0.0, %v7249
      %v7251 = vpop.f32.mrb[0].mxu0
      %7252 = vmatprep.mubr.f32.mxu0 0.0
      %7253 = vmatmul.mubr.f32.gmra.mrb[0].mxu0 %v7060
      %v7254 = vpop.f32.mrb[0].mxu0
      %v7255 = vadd.f32 0.0, %v7254
      %v7256 = vpop.f32.mrb[0].mxu0
      %7257 = vmatprep.mubr.f32.mxu0 0.0
      %7258 = vmatmul.mubr.f32.gmra.mrb[0].mxu0 %v7063
      %v7259 = vpop.f32.mrb[0].mxu0
      %v7260 = vadd.f32 0.0, %v7259
      %v7261 = vpop.f32.mrb[0].mxu0
      %7262 = vmatprep.mubr.f32.mxu0 0.0
      %7263 = vmatmul.mubr.f32.gmra.mrb[0].mxu0 %v7066
      %v7264 = vpop.f32.mrb[0].mxu0
      %v7265 = vadd.f32 0.0, %v7264
      %v7266 = vpop.f32.mrb[0].mxu0
      %7267 = vmatprep.mubr.f32.mxu0 0.0
      %7268 = vmatmul.mubr.f32.gmra.mrb[0].mxu0 %v7069
      %v7269 = vpop.f32.mrb[0].mxu0
      %v7270 = vadd.f32 0.0, %v7269
      %v7271 = vpop.f32.mrb[0].mxu0
      %7272 = vmatprep.mubr.f32.mxu0 0.0
      %7273 = vmatmul.mubr.f32.gmra.mrb[0].mxu0 %v7072
      %v7274 = vpop.f32.mrb[0].mxu0
      %v7275 = vadd.f32 0.0, %v7274
      %v7276 = vpop.f32.mrb[0].mxu0
      %7277 = vmatprep.mubr.f32.mxu0 0.0
      %7278 = vmatmul.mubr.f32.gmra.mrb[0].mxu0 %v7075
      %v7279 = vpop.f32.mrb[0].mxu0
      %v7280 = vadd.f32 0.0, %v7279
      %v7281 = vpop.f32.mrb[0].mxu0
      %7282 = vmatprep.mubr.f32.mxu0 0.0
      %7283 = vmatmul.mubr.f32.gmra.mrb[0].mxu0 %v7078
      %v7284 = vpop.f32.mrb[0].mxu0
      %v7285 = vadd.f32 0.0, %v7284
      %v7286 = vpop.f32.mrb[0].mxu0
      %7287 = vmatprep.mubr.f32.mxu0 0.0
      %7288 = vmatmul.mubr.f32.gmra.mrb[0].mxu0 %v7081
      %v7289 = vpop.f32.mrb[0].mxu0
      %v7290 = vadd.f32 0.0, %v7289
      %v7291 = vpop.f32.mrb[0].mxu0
      %7292 = vmatprep.mubr.f32.mxu0 0.0
      %7293 = vmatmul.mubr.f32.gmra.mrb[0].mxu0 %v7084
      %v7294 = vpop.f32.mrb[0].mxu0
      %v7295 = vadd.f32 0.0, %v7294
      %v7296 = vpop.f32.mrb[0].mxu0
      %7297 = vmatprep.mubr.f32.mxu0 0.0
      %7298 = vmatmul.mubr.f32.gmra.mrb[0].mxu0 %v7087
      %v7299 = vpop.f32.mrb[0].mxu0
      %v7300 = vadd.f32 0.0, %v7299
      %v7301 = vpop.f32.mrb[0].mxu0
      %7302 = vmatprep.mubr.f32.mxu0 0.0
      %7303 = vmatmul.mubr.f32.gmra.mrb[0].mxu0 %v7090
      %v7304 = vpop.f32.mrb[0].mxu0
      %v7305 = vadd.f32 0.0, %v7304
      %v7306 = vpop.f32.mrb[0].mxu0
      %7307 = vmatprep.mubr.f32.mxu0 0.0
      %7308 = vmatmul.mubr.f32.gmra.mrb[0].mxu0 %v7093
      %v7309 = vpop.f32.mrb[0].mxu0
      %v7310 = vadd.f32 0.0, %v7309
      %v7311 = vpop.f32.mrb[0].mxu0
      %7312 = vmatprep.mubr.f32.mxu0 0.0
      %7313 = vmatmul.mubr.f32.gmra.mrb[0].mxu0 %v7096
      %v7314 = vpop.f32.mrb[0].mxu0
      %v7315 = vadd.f32 0.0, %v7314
      %v7316 = vpop.f32.mrb[0].mxu0
      %7317 = vmatprep.mubr.f32.mxu0 0.0
      %7318 = vmatmul.mubr.f32.gmra.mrb[0].mxu0 %v7099
      %v7319 = vpop.f32.mrb[0].mxu0
      %v7320 = vadd.f32 0.0, %v7319
      %v7321 = vpop.f32.mrb[0].mxu0
      %7322 = vmatprep.mubr.f32.mxu0 0.0
      %7323 = vmatmul.mubr.f32.gmra.mrb[0].mxu0 %v7102
      %v7324 = vpop.f32.mrb[0].mxu0
      %v7325 = vadd.f32 0.0, %v7324
      %v7326 = vpop.f32.mrb[0].mxu0
      %7327 = vmatprep.mubr.f32.mxu0 0.0
      %7328 = vmatmul.mubr.f32.gmra.mrb[0].mxu0 %v7105
      %v7329 = vpop.f32.mrb[0].mxu0
      %v7330 = vadd.f32 0.0, %v7329
      %v7331 = vpop.f32.mrb[0].mxu0
      %7332 = vmatprep.mubr.f32.mxu0 0.0
      %7333 = vmatmul.mubr.f32.gmra.mrb[0].mxu0 %v7108
      %v7334 = vpop.f32.mrb[0].mxu0
      %v7335 = vadd.f32 0.0, %v7334
      %v7336 = vpop.f32.mrb[0].mxu0
      %7337 = vdwg.mxu0
      %v7338 = vadd.f32 %v6949, %v7180
      %v7339 = vadd.f32 %v6950, %v7185
      %v7340 = vadd.f32 %v6951, %v7190
      %v7341 = vadd.f32 %v6952, %v7195
      %v7342 = vadd.f32 %v6953, %v7200
      %v7343 = vadd.f32 %v6954, %v7205
      %v7344 = vadd.f32 %v6955, %v7210
      %v7345 = vadd.f32 %v6956, %v7215
      %v7346 = vadd.f32 %v6957, %v7220
      %v7347 = vadd.f32 %v6958, %v7225
      %v7348 = vadd.f32 %v6959, %v7230
      %v7349 = vadd.f32 %v6960, %v7235
      %v7350 = vadd.f32 %v6961, %v7240
      %v7351 = vadd.f32 %v6962, %v7245
      %v7352 = vadd.f32 %v6963, %v7250
      %v7353 = vadd.f32 %v6964, %v7255
      %v7354 = vadd.f32 %v6965, %v7260
      %v7355 = vadd.f32 %v6966, %v7265
      %v7356 = vadd.f32 %v6967, %v7270
      %v7357 = vadd.f32 %v6968, %v7275
      %v7358 = vadd.f32 %v6969, %v7280
      %v7359 = vadd.f32 %v6970, %v7285
      %v7360 = vadd.f32 %v6971, %v7290
      %v7361 = vadd.f32 %v6972, %v7295
      %v7362 = vadd.f32 %v6973, %v7300
      %v7363 = vadd.f32 %v6974, %v7305
      %v7364 = vadd.f32 %v6975, %v7310
      %v7365 = vadd.f32 %v6976, %v7315
      %v7366 = vadd.f32 %v6977, %v7320
      %v7367 = vadd.f32 %v6978, %v7325
      %v7368 = vadd.f32 %v6979, %v7330
      %v7369 = vadd.f32 %v6980, %v7335
      %v7370 = vld [vmem:[%s6591 + $0x9] sm:$0xff]
      %v7371 = vld [vmem:[%s6591 + $0x11] sm:$0xff]
      %v7372 = vld [vmem:[%s6591 + $0x29] sm:$0xff]
      %v7373 = vld [vmem:[%s6591 + $0x31] sm:$0xff]
      %v7374 = vld [vmem:[%s6591 + $0x49] sm:$0xff]
      %v7375 = vld [vmem:[%s6591 + $0x51] sm:$0xff]
      %v7376 = vld [vmem:[%s6591 + $0x69] sm:$0xff]
      %v7377 = vld [vmem:[%s6591 + $0x71] sm:$0xff]
      %v7378 = vld [vmem:[%s6591 + $0x89] sm:$0xff]
      %v7379 = vld [vmem:[%s6591 + $0x91] sm:$0xff]
      %v7380 = vld [vmem:[%s6591 + $0xa9] sm:$0xff]
      %v7381 = vld [vmem:[%s6591 + $0xb1] sm:$0xff]
      %v7382 = vld [vmem:[%s6591 + $0xc9] sm:$0xff]
      %v7383 = vld [vmem:[%s6591 + $0xd1] sm:$0xff]
      %v7384 = vld [vmem:[%s6591 + $0xe9] sm:$0xff]
      %v7385 = vld [vmem:[%s6591 + $0xf1] sm:$0xff]
      %v7386 = vld [vmem:[%s6591 + $0x109] sm:$0xff]
      %v7387 = vld [vmem:[%s6591 + $0x111] sm:$0xff]
      %v7388 = vld [vmem:[%s6591 + $0x129] sm:$0xff]
      %v7389 = vld [vmem:[%s6591 + $0x131] sm:$0xff]
      %v7390 = vld [vmem:[%s6591 + $0x149] sm:$0xff]
      %v7391 = vld [vmem:[%s6591 + $0x151] sm:$0xff]
      %v7392 = vld [vmem:[%s6591 + $0x169] sm:$0xff]
      %v7393 = vld [vmem:[%s6591 + $0x171] sm:$0xff]
      %v7394 = vld [vmem:[%s6591 + $0x189] sm:$0xff]
      %v7395 = vld [vmem:[%s6591 + $0x191] sm:$0xff]
      %v7396 = vld [vmem:[%s6591 + $0x1a9] sm:$0xff]
      %v7397 = vld [vmem:[%s6591 + $0x1b1] sm:$0xff]
      %v7398 = vld [vmem:[%s6591 + $0x1c9] sm:$0xff]
      %v7399 = vld [vmem:[%s6591 + $0x1d1] sm:$0xff]
      %v7400 = vld [vmem:[%s6591 + $0x1e9] sm:$0xff]
      %v7401 = vld [vmem:[%s6591 + $0x1f1] sm:$0xff]
      %v7402 = vld [vmem:[%s4 + $0x20] sm:$0xf]
      %v7404 = vsel %vm380, %v7370, 0
      %v7407 = vsel %vm380, %v7371, 0
      %v7410 = vsel %vm380, %v7372, 0
      %v7413 = vsel %vm380, %v7373, 0
      %v7416 = vsel %vm380, %v7374, 0
      %v7419 = vsel %vm380, %v7375, 0
      %v7422 = vsel %vm380, %v7376, 0
      %v7425 = vsel %vm380, %v7377, 0
      %v7428 = vsel %vm380, %v7378, 0
      %v7431 = vsel %vm380, %v7379, 0
      %v7434 = vsel %vm380, %v7380, 0
      %v7437 = vsel %vm380, %v7381, 0
      %v7440 = vsel %vm380, %v7382, 0
      %v7443 = vsel %vm380, %v7383, 0
      %v7446 = vsel %vm380, %v7384, 0
      %v7449 = vsel %vm380, %v7385, 0
      %v7452 = vsel %vm380, %v7386, 0
      %v7455 = vsel %vm380, %v7387, 0
      %v7458 = vsel %vm380, %v7388, 0
      %v7461 = vsel %vm380, %v7389, 0
      %v7464 = vsel %vm380, %v7390, 0
      %v7467 = vsel %vm380, %v7391, 0
      %v7470 = vsel %vm380, %v7392, 0
      %v7473 = vsel %vm380, %v7393, 0
      %v7476 = vsel %vm380, %v7394, 0
      %v7479 = vsel %vm380, %v7395, 0
      %v7482 = vsel %vm380, %v7396, 0
      %v7485 = vsel %vm380, %v7397, 0
      %v7488 = vsel %vm380, %v7398, 0
      %v7491 = vsel %vm380, %v7399, 0
      %v7494 = vsel %vm380, %v7400, 0
      %v7497 = vsel %vm380, %v7401, 0
      %v7500 = vsel %vm980, %v7402, 0
      %7502 = vmatprep.subr.mxu0 0.0
      %7503 = vmatpush1.msra.mxu0 %v7500
      %7504 = vmatprep.subr.mxu0 0.0
      %7505 = vmatpush1.msra.mxu0 0.0
      %7506 = vmatprep.subr.mxu0 0.0
      %7507 = vmatpush1.msra.mxu0 0.0
      %7508 = vmatprep.subr.mxu0 0.0
      %7509 = vmatpush1.msra.mxu0 0.0
      %7510 = vmatprep.subr.mxu0 0.0
      %7511 = vmatpush1.msra.mxu0 0.0
      %7512 = vmatprep.subr.mxu0 0.0
      %7513 = vmatpush1.msra.mxu0 0.0
      %7514 = vmatprep.subr.mxu0 0.0
      %7515 = vmatpush1.msra.mxu0 0.0
      %7516 = vmatprep.subr.mxu0 0.0
      %7517 = vmatpush1.msra.mxu0 0.0
      %7518 = vmatprep.subr.mxu0 0.0
      %7519 = vmatpush1.msra.mxu0 0.0
      %7520 = vmatprep.subr.mxu0 0.0
      %7521 = vmatpush1.msra.mxu0 0.0
      %7522 = vmatprep.subr.mxu0 0.0
      %7523 = vmatpush1.msra.mxu0 0.0
      %7524 = vmatprep.subr.mxu0 0.0
      %7525 = vmatpush1.msra.mxu0 0.0
      %7526 = vmatprep.subr.mxu0 0.0
      %7527 = vmatpush1.msra.mxu0 0.0
      %7528 = vmatprep.subr.mxu0 0.0
      %7529 = vmatpush1.msra.mxu0 0.0
      %7530 = vmatprep.subr.mxu0 0.0
      %7531 = vmatpush1.msra.mxu0 0.0
      %7532 = vmatprep.subr.mxu0 0.0
      %7533 = vmatpush1.msra.mxu0 0.0
      %7534 = vmatprep.subr.mxu0 0.0
      %7535 = vmatpush1.msra.mxu0 0.0
      %7536 = vmatprep.subr.mxu0 0.0
      %7537 = vmatpush1.msra.mxu0 0.0
      %7538 = vmatprep.subr.mxu0 0.0
      %7539 = vmatpush1.msra.mxu0 0.0
      %7540 = vmatprep.subr.mxu0 0.0
      %7541 = vmatpush1.msra.mxu0 0.0
      %7542 = vmatprep.subr.mxu0 0.0
      %7543 = vmatpush1.msra.mxu0 0.0
      %7544 = vmatprep.subr.mxu0 0.0
      %7545 = vmatpush1.msra.mxu0 0.0
      %7546 = vmatprep.subr.mxu0 0.0
      %7547 = vmatpush1.msra.mxu0 0.0
      %7548 = vmatprep.subr.mxu0 0.0
      %7549 = vmatpush1.msra.mxu0 0.0
      %7550 = vmatprep.subr.mxu0 0.0
      %7551 = vmatpush1.msra.mxu0 0.0
      %7552 = vmatprep.subr.mxu0 0.0
      %7553 = vmatpush1.msra.mxu0 0.0
      %7554 = vmatprep.subr.mxu0 0.0
      %7555 = vmatpush1.msra.mxu0 0.0
      %7556 = vmatprep.subr.mxu0 0.0
      %7557 = vmatpush1.msra.mxu0 0.0
      %7558 = vmatprep.subr.mxu0 0.0
      %7559 = vmatpush1.msra.mxu0 0.0
      %7560 = vmatprep.subr.mxu0 0.0
      %7561 = vmatpush1.msra.mxu0 0.0
      %7562 = vmatprep.subr.mxu0 0.0
      %7563 = vmatpush1.msra.mxu0 0.0
      %7564 = vmatprep.subr.mxu0 0.0
      %7565 = vmatpush1.msra.mxu0 0.0
      %7566 = vmatprep.mubr.f32.mxu0 0.0
      %7567 = vmatmul.mubr.f32.gmra.mrb[0].mxu0 %v7404
      %v7568 = vpop.f32.mrb[0].mxu0
      %v7569 = vadd.f32 0.0, %v7568
      %v7570 = vpop.f32.mrb[0].mxu0
      %7571 = vmatprep.mubr.f32.mxu0 0.0
      %7572 = vmatmul.mubr.f32.gmra.mrb[0].mxu0 %v7407
      %v7573 = vpop.f32.mrb[0].mxu0
      %v7574 = vadd.f32 0.0, %v7573
      %v7575 = vpop.f32.mrb[0].mxu0
      %7576 = vmatprep.mubr.f32.mxu0 0.0
      %7577 = vmatmul.mubr.f32.gmra.mrb[0].mxu0 %v7410
      %v7578 = vpop.f32.mrb[0].mxu0
      %v7579 = vadd.f32 0.0, %v7578
      %v7580 = vpop.f32.mrb[0].mxu0
      %7581 = vmatprep.mubr.f32.mxu0 0.0
      %7582 = vmatmul.mubr.f32.gmra.mrb[0].mxu0 %v7413
      %v7583 = vpop.f32.mrb[0].mxu0
      %v7584 = vadd.f32 0.0, %v7583
      %v7585 = vpop.f32.mrb[0].mxu0
      %7586 = vmatprep.mubr.f32.mxu0 0.0
      %7587 = vmatmul.mubr.f32.gmra.mrb[0].mxu0 %v7416
      %v7588 = vpop.f32.mrb[0].mxu0
      %v7589 = vadd.f32 0.0, %v7588
      %v7590 = vpop.f32.mrb[0].mxu0
      %7591 = vmatprep.mubr.f32.mxu0 0.0
      %7592 = vmatmul.mubr.f32.gmra.mrb[0].mxu0 %v7419
      %v7593 = vpop.f32.mrb[0].mxu0
      %v7594 = vadd.f32 0.0, %v7593
      %v7595 = vpop.f32.mrb[0].mxu0
      %7596 = vmatprep.mubr.f32.mxu0 0.0
      %7597 = vmatmul.mubr.f32.gmra.mrb[0].mxu0 %v7422
      %v7598 = vpop.f32.mrb[0].mxu0
      %v7599 = vadd.f32 0.0, %v7598
      %v7600 = vpop.f32.mrb[0].mxu0
      %7601 = vmatprep.mubr.f32.mxu0 0.0
      %7602 = vmatmul.mubr.f32.gmra.mrb[0].mxu0 %v7425
      %v7603 = vpop.f32.mrb[0].mxu0
      %v7604 = vadd.f32 0.0, %v7603
      %v7605 = vpop.f32.mrb[0].mxu0
      %7606 = vmatprep.mubr.f32.mxu0 0.0
      %7607 = vmatmul.mubr.f32.gmra.mrb[0].mxu0 %v7428
      %v7608 = vpop.f32.mrb[0].mxu0
      %v7609 = vadd.f32 0.0, %v7608
      %v7610 = vpop.f32.mrb[0].mxu0
      %7611 = vmatprep.mubr.f32.mxu0 0.0
      %7612 = vmatmul.mubr.f32.gmra.mrb[0].mxu0 %v7431
      %v7613 = vpop.f32.mrb[0].mxu0
      %v7614 = vadd.f32 0.0, %v7613
      %v7615 = vpop.f32.mrb[0].mxu0
      %7616 = vmatprep.mubr.f32.mxu0 0.0
      %7617 = vmatmul.mubr.f32.gmra.mrb[0].mxu0 %v7434
      %v7618 = vpop.f32.mrb[0].mxu0
      %v7619 = vadd.f32 0.0, %v7618
      %v7620 = vpop.f32.mrb[0].mxu0
      %7621 = vmatprep.mubr.f32.mxu0 0.0
      %7622 = vmatmul.mubr.f32.gmra.mrb[0].mxu0 %v7437
      %v7623 = vpop.f32.mrb[0].mxu0
      %v7624 = vadd.f32 0.0, %v7623
      %v7625 = vpop.f32.mrb[0].mxu0
      %7626 = vmatprep.mubr.f32.mxu0 0.0
      %7627 = vmatmul.mubr.f32.gmra.mrb[0].mxu0 %v7440
      %v7628 = vpop.f32.mrb[0].mxu0
      %v7629 = vadd.f32 0.0, %v7628
      %v7630 = vpop.f32.mrb[0].mxu0
      %7631 = vmatprep.mubr.f32.mxu0 0.0
      %7632 = vmatmul.mubr.f32.gmra.mrb[0].mxu0 %v7443
      %v7633 = vpop.f32.mrb[0].mxu0
      %v7634 = vadd.f32 0.0, %v7633
      %v7635 = vpop.f32.mrb[0].mxu0
      %7636 = vmatprep.mubr.f32.mxu0 0.0
      %7637 = vmatmul.mubr.f32.gmra.mrb[0].mxu0 %v7446
      %v7638 = vpop.f32.mrb[0].mxu0
      %v7639 = vadd.f32 0.0, %v7638
      %v7640 = vpop.f32.mrb[0].mxu0
      %7641 = vmatprep.mubr.f32.mxu0 0.0
      %7642 = vmatmul.mubr.f32.gmra.mrb[0].mxu0 %v7449
      %v7643 = vpop.f32.mrb[0].mxu0
      %v7644 = vadd.f32 0.0, %v7643
      %v7645 = vpop.f32.mrb[0].mxu0
      %7646 = vmatprep.mubr.f32.mxu0 0.0
      %7647 = vmatmul.mubr.f32.gmra.mrb[0].mxu0 %v7452
      %v7648 = vpop.f32.mrb[0].mxu0
      %v7649 = vadd.f32 0.0, %v7648
      %v7650 = vpop.f32.mrb[0].mxu0
      %7651 = vmatprep.mubr.f32.mxu0 0.0
      %7652 = vmatmul.mubr.f32.gmra.mrb[0].mxu0 %v7455
      %v7653 = vpop.f32.mrb[0].mxu0
      %v7654 = vadd.f32 0.0, %v7653
      %v7655 = vpop.f32.mrb[0].mxu0
      %7656 = vmatprep.mubr.f32.mxu0 0.0
      %7657 = vmatmul.mubr.f32.gmra.mrb[0].mxu0 %v7458
      %v7658 = vpop.f32.mrb[0].mxu0
      %v7659 = vadd.f32 0.0, %v7658
      %v7660 = vpop.f32.mrb[0].mxu0
      %7661 = vmatprep.mubr.f32.mxu0 0.0
      %7662 = vmatmul.mubr.f32.gmra.mrb[0].mxu0 %v7461
      %v7663 = vpop.f32.mrb[0].mxu0
      %v7664 = vadd.f32 0.0, %v7663
      %v7665 = vpop.f32.mrb[0].mxu0
      %7666 = vmatprep.mubr.f32.mxu0 0.0
      %7667 = vmatmul.mubr.f32.gmra.mrb[0].mxu0 %v7464
      %v7668 = vpop.f32.mrb[0].mxu0
      %v7669 = vadd.f32 0.0, %v7668
      %v7670 = vpop.f32.mrb[0].mxu0
      %7671 = vmatprep.mubr.f32.mxu0 0.0
      %7672 = vmatmul.mubr.f32.gmra.mrb[0].mxu0 %v7467
      %v7673 = vpop.f32.mrb[0].mxu0
      %v7674 = vadd.f32 0.0, %v7673
      %v7675 = vpop.f32.mrb[0].mxu0
      %7676 = vmatprep.mubr.f32.mxu0 0.0
      %7677 = vmatmul.mubr.f32.gmra.mrb[0].mxu0 %v7470
      %v7678 = vpop.f32.mrb[0].mxu0
      %v7679 = vadd.f32 0.0, %v7678
      %v7680 = vpop.f32.mrb[0].mxu0
      %7681 = vmatprep.mubr.f32.mxu0 0.0
      %7682 = vmatmul.mubr.f32.gmra.mrb[0].mxu0 %v7473
      %v7683 = vpop.f32.mrb[0].mxu0
      %v7684 = vadd.f32 0.0, %v7683
      %v7685 = vpop.f32.mrb[0].mxu0
      %7686 = vmatprep.mubr.f32.mxu0 0.0
      %7687 = vmatmul.mubr.f32.gmra.mrb[0].mxu0 %v7476
      %v7688 = vpop.f32.mrb[0].mxu0
      %v7689 = vadd.f32 0.0, %v7688
      %v7690 = vpop.f32.mrb[0].mxu0
      %7691 = vmatprep.mubr.f32.mxu0 0.0
      %7692 = vmatmul.mubr.f32.gmra.mrb[0].mxu0 %v7479
      %v7693 = vpop.f32.mrb[0].mxu0
      %v7694 = vadd.f32 0.0, %v7693
      %v7695 = vpop.f32.mrb[0].mxu0
      %7696 = vmatprep.mubr.f32.mxu0 0.0
      %7697 = vmatmul.mubr.f32.gmra.mrb[0].mxu0 %v7482
      %v7698 = vpop.f32.mrb[0].mxu0
      %v7699 = vadd.f32 0.0, %v7698
      %v7700 = vpop.f32.mrb[0].mxu0
      %7701 = vmatprep.mubr.f32.mxu0 0.0
      %7702 = vmatmul.mubr.f32.gmra.mrb[0].mxu0 %v7485
      %v7703 = vpop.f32.mrb[0].mxu0
      %v7704 = vadd.f32 0.0, %v7703
      %v7705 = vpop.f32.mrb[0].mxu0
      %7706 = vmatprep.mubr.f32.mxu0 0.0
      %7707 = vmatmul.mubr.f32.gmra.mrb[0].mxu0 %v7488
      %v7708 = vpop.f32.mrb[0].mxu0
      %v7709 = vadd.f32 0.0, %v7708
      %v7710 = vpop.f32.mrb[0].mxu0
      %7711 = vmatprep.mubr.f32.mxu0 0.0
      %7712 = vmatmul.mubr.f32.gmra.mrb[0].mxu0 %v7491
      %v7713 = vpop.f32.mrb[0].mxu0
      %v7714 = vadd.f32 0.0, %v7713
      %v7715 = vpop.f32.mrb[0].mxu0
      %7716 = vmatprep.mubr.f32.mxu0 0.0
      %7717 = vmatmul.mubr.f32.gmra.mrb[0].mxu0 %v7494
      %v7718 = vpop.f32.mrb[0].mxu0
      %v7719 = vadd.f32 0.0, %v7718
      %v7720 = vpop.f32.mrb[0].mxu0
      %7721 = vmatprep.mubr.f32.mxu0 0.0
      %7722 = vmatmul.mubr.f32.gmra.mrb[0].mxu0 %v7497
      %v7723 = vpop.f32.mrb[0].mxu0
      %v7724 = vadd.f32 0.0, %v7723
      %v7725 = vpop.f32.mrb[0].mxu0
      %7726 = vdwg.mxu0
      %v7727 = vadd.f32 %v7338, %v7569
      %v7728 = vadd.f32 %v7339, %v7574
      %v7729 = vadd.f32 %v7340, %v7579
      %v7730 = vadd.f32 %v7341, %v7584
      %v7731 = vadd.f32 %v7342, %v7589
      %v7732 = vadd.f32 %v7343, %v7594
      %v7733 = vadd.f32 %v7344, %v7599
      %v7734 = vadd.f32 %v7345, %v7604
      %v7735 = vadd.f32 %v7346, %v7609
      %v7736 = vadd.f32 %v7347, %v7614
      %v7737 = vadd.f32 %v7348, %v7619
      %v7738 = vadd.f32 %v7349, %v7624
      %v7739 = vadd.f32 %v7350, %v7629
      %v7740 = vadd.f32 %v7351, %v7634
      %v7741 = vadd.f32 %v7352, %v7639
      %v7742 = vadd.f32 %v7353, %v7644
      %v7743 = vadd.f32 %v7354, %v7649
      %v7744 = vadd.f32 %v7355, %v7654
      %v7745 = vadd.f32 %v7356, %v7659
      %v7746 = vadd.f32 %v7357, %v7664
      %v7747 = vadd.f32 %v7358, %v7669
      %v7748 = vadd.f32 %v7359, %v7674
      %v7749 = vadd.f32 %v7360, %v7679
      %v7750 = vadd.f32 %v7361, %v7684
      %v7751 = vadd.f32 %v7362, %v7689
      %v7752 = vadd.f32 %v7363, %v7694
      %v7753 = vadd.f32 %v7364, %v7699
      %v7754 = vadd.f32 %v7365, %v7704
      %v7755 = vadd.f32 %v7366, %v7709
      %v7756 = vadd.f32 %v7367, %v7714
      %v7757 = vadd.f32 %v7368, %v7719
      %v7758 = vadd.f32 %v7369, %v7724
      %v7759 = vld [vmem:[%s5] sm:$0x1]
      %v7760 = vld [vmem:[%s6] sm:$0x1]
      %v7761 = vsel %vm380, %v7727, 0.0
      %v7762 = vsel %vm380, %v7728, 0.0
      %v7763 = vadd.f32 %v7761, %v7762
      %v7764 = vsel %vm380, %v7729, 0.0
      %v7765 = vadd.f32 %v7763, %v7764
      %v7766 = vsel %vm380, %v7730, 0.0
      %v7767 = vadd.f32 %v7765, %v7766
      %v7768 = vsel %vm380, %v7731, 0.0
      %v7769 = vadd.f32 %v7767, %v7768
      %v7770 = vsel %vm380, %v7732, 0.0
      %v7771 = vadd.f32 %v7769, %v7770
      %v7772 = vsel %vm380, %v7733, 0.0
      %v7773 = vadd.f32 %v7771, %v7772
      %v7774 = vsel %vm380, %v7734, 0.0
      %v7775 = vadd.f32 %v7773, %v7774
      %v7776 = vsel %vm380, %v7735, 0.0
      %v7777 = vadd.f32 %v7775, %v7776
      %v7778 = vsel %vm380, %v7736, 0.0
      %v7779 = vadd.f32 %v7777, %v7778
      %v7780 = vsel %vm380, %v7737, 0.0
      %v7781 = vadd.f32 %v7779, %v7780
      %v7782 = vsel %vm380, %v7738, 0.0
      %v7783 = vadd.f32 %v7781, %v7782
      %v7784 = vsel %vm380, %v7739, 0.0
      %v7785 = vadd.f32 %v7783, %v7784
      %v7786 = vsel %vm380, %v7740, 0.0
      %v7787 = vadd.f32 %v7785, %v7786
      %v7788 = vsel %vm380, %v7741, 0.0
      %v7789 = vadd.f32 %v7787, %v7788
      %v7790 = vsel %vm380, %v7742, 0.0
      %v7791 = vadd.f32 %v7789, %v7790
      %v7792 = vsel %vm380, %v7743, 0.0
      %v7793 = vadd.f32 %v7791, %v7792
      %v7794 = vsel %vm380, %v7744, 0.0
      %v7795 = vadd.f32 %v7793, %v7794
      %v7796 = vsel %vm380, %v7745, 0.0
      %v7797 = vadd.f32 %v7795, %v7796
      %v7798 = vsel %vm380, %v7746, 0.0
      %v7799 = vadd.f32 %v7797, %v7798
      %v7800 = vsel %vm380, %v7747, 0.0
      %v7801 = vadd.f32 %v7799, %v7800
      %v7802 = vsel %vm380, %v7748, 0.0
      %v7803 = vadd.f32 %v7801, %v7802
      %v7804 = vsel %vm380, %v7749, 0.0
      %v7805 = vadd.f32 %v7803, %v7804
      %v7806 = vsel %vm380, %v7750, 0.0
      %v7807 = vadd.f32 %v7805, %v7806
      %v7808 = vsel %vm380, %v7751, 0.0
      %v7809 = vadd.f32 %v7807, %v7808
      %v7810 = vsel %vm380, %v7752, 0.0
      %v7811 = vadd.f32 %v7809, %v7810
      %v7812 = vsel %vm380, %v7753, 0.0
      %v7813 = vadd.f32 %v7811, %v7812
      %v7814 = vsel %vm380, %v7754, 0.0
      %v7815 = vadd.f32 %v7813, %v7814
      %v7816 = vsel %vm380, %v7755, 0.0
      %v7817 = vadd.f32 %v7815, %v7816
      %v7818 = vsel %vm380, %v7756, 0.0
      %v7819 = vadd.f32 %v7817, %v7818
      %v7820 = vsel %vm380, %v7757, 0.0
      %v7821 = vadd.f32 %v7819, %v7820
      %v7822 = vsel %vm380, %v7758, 0.0
      %v7823 = vadd.f32 %v7821, %v7822
      %v7824 = vrot.slane %v7823, 4
      %v7825 = vadd.f32 %v7823, %v7824
      %v7826 = vrot.slane %v7825, 2
      %v7827 = vadd.f32 %v7825, %v7826
      %v7828 = vrot.slane %v7827, 1
      %v7829 = vadd.f32 %v7827, %v7828
      %v7830 = vmul.f32 %v7727, %v7727
      %v7831 = vmul.f32 %v7728, %v7728
      %v7832 = vmul.f32 %v7729, %v7729
      %v7833 = vmul.f32 %v7730, %v7730
      %v7834 = vmul.f32 %v7731, %v7731
      %v7835 = vmul.f32 %v7732, %v7732
      %v7836 = vmul.f32 %v7733, %v7733
      %v7837 = vmul.f32 %v7734, %v7734
      %v7838 = vmul.f32 %v7735, %v7735
      %v7839 = vmul.f32 %v7736, %v7736
      %v7840 = vmul.f32 %v7737, %v7737
      %v7841 = vmul.f32 %v7738, %v7738
      %v7842 = vmul.f32 %v7739, %v7739
      %v7843 = vmul.f32 %v7740, %v7740
      %v7844 = vmul.f32 %v7741, %v7741
      %v7845 = vmul.f32 %v7742, %v7742
      %v7846 = vmul.f32 %v7743, %v7743
      %v7847 = vmul.f32 %v7744, %v7744
      %v7848 = vmul.f32 %v7745, %v7745
      %v7849 = vmul.f32 %v7746, %v7746
      %v7850 = vmul.f32 %v7747, %v7747
      %v7851 = vmul.f32 %v7748, %v7748
      %v7852 = vmul.f32 %v7749, %v7749
      %v7853 = vmul.f32 %v7750, %v7750
      %v7854 = vmul.f32 %v7751, %v7751
      %v7855 = vmul.f32 %v7752, %v7752
      %v7856 = vmul.f32 %v7753, %v7753
      %v7857 = vmul.f32 %v7754, %v7754
      %v7858 = vmul.f32 %v7755, %v7755
      %v7859 = vmul.f32 %v7756, %v7756
      %v7860 = vmul.f32 %v7757, %v7757
      %v7861 = vmul.f32 %v7758, %v7758
      %v7862 = vsel %vm380, %v7830, 0.0
      %v7863 = vsel %vm380, %v7831, 0.0
      %v7864 = vadd.f32 %v7862, %v7863
      %v7865 = vsel %vm380, %v7832, 0.0
      %v7866 = vadd.f32 %v7864, %v7865
      %v7867 = vsel %vm380, %v7833, 0.0
      %v7868 = vadd.f32 %v7866, %v7867
      %v7869 = vsel %vm380, %v7834, 0.0
      %v7870 = vadd.f32 %v7868, %v7869
      %v7871 = vsel %vm380, %v7835, 0.0
      %v7872 = vadd.f32 %v7870, %v7871
      %v7873 = vsel %vm380, %v7836, 0.0
      %v7874 = vadd.f32 %v7872, %v7873
      %v7875 = vsel %vm380, %v7837, 0.0
      %v7876 = vadd.f32 %v7874, %v7875
      %v7877 = vsel %vm380, %v7838, 0.0
      %v7878 = vadd.f32 %v7876, %v7877
      %v7879 = vsel %vm380, %v7839, 0.0
      %v7880 = vadd.f32 %v7878, %v7879
      %v7881 = vsel %vm380, %v7840, 0.0
      %v7882 = vadd.f32 %v7880, %v7881
      %v7883 = vsel %vm380, %v7841, 0.0
      %v7884 = vadd.f32 %v7882, %v7883
      %v7885 = vsel %vm380, %v7842, 0.0
      %v7886 = vadd.f32 %v7884, %v7885
      %v7887 = vsel %vm380, %v7843, 0.0
      %v7888 = vadd.f32 %v7886, %v7887
      %v7889 = vsel %vm380, %v7844, 0.0
      %v7890 = vadd.f32 %v7888, %v7889
      %v7891 = vsel %vm380, %v7845, 0.0
      %v7892 = vadd.f32 %v7890, %v7891
      %v7893 = vsel %vm380, %v7846, 0.0
      %v7894 = vadd.f32 %v7892, %v7893
      %v7895 = vsel %vm380, %v7847, 0.0
      %v7896 = vadd.f32 %v7894, %v7895
      %v7897 = vsel %vm380, %v7848, 0.0
      %v7898 = vadd.f32 %v7896, %v7897
      %v7899 = vsel %vm380, %v7849, 0.0
      %v7900 = vadd.f32 %v7898, %v7899
      %v7901 = vsel %vm380, %v7850, 0.0
      %v7902 = vadd.f32 %v7900, %v7901
      %v7903 = vsel %vm380, %v7851, 0.0
      %v7904 = vadd.f32 %v7902, %v7903
      %v7905 = vsel %vm380, %v7852, 0.0
      %v7906 = vadd.f32 %v7904, %v7905
      %v7907 = vsel %vm380, %v7853, 0.0
      %v7908 = vadd.f32 %v7906, %v7907
      %v7909 = vsel %vm380, %v7854, 0.0
      %v7910 = vadd.f32 %v7908, %v7909
      %v7911 = vsel %vm380, %v7855, 0.0
      %v7912 = vadd.f32 %v7910, %v7911
      %v7913 = vsel %vm380, %v7856, 0.0
      %v7914 = vadd.f32 %v7912, %v7913
      %v7915 = vsel %vm380, %v7857, 0.0
      %v7916 = vadd.f32 %v7914, %v7915
      %v7917 = vsel %vm380, %v7858, 0.0
      %v7918 = vadd.f32 %v7916, %v7917
      %v7919 = vsel %vm380, %v7859, 0.0
      %v7920 = vadd.f32 %v7918, %v7919
      %v7921 = vsel %vm380, %v7860, 0.0
      %v7922 = vadd.f32 %v7920, %v7921
      %v7923 = vsel %vm380, %v7861, 0.0
      %v7924 = vadd.f32 %v7922, %v7923
      %v7925 = vrot.slane %v7924, 4
      %v7926 = vadd.f32 %v7924, %v7925
      %v7927 = vrot.slane %v7926, 2
      %v7928 = vadd.f32 %v7926, %v7927
      %v7929 = vrot.slane %v7928, 1
      %v7930 = vadd.f32 %v7928, %v7929
      %v7931 = vmul.f32 %v7829, 0.00390625
      %v7932 = vmul.f32 %v7930, 0.00390625
      %v7933 = vmul.f32 %v7931, %v7931
      %v7934 = vsub.f32 %v7932, %v7933
      %v7935 = vmax.f32 %v7934, 0.0
      %v7936 = vsub.f32 %v7727, %v7931
      %v7937 = vsub.f32 %v7728, %v7931
      %v7938 = vsub.f32 %v7729, %v7931
      %v7939 = vsub.f32 %v7730, %v7931
      %v7940 = vsub.f32 %v7731, %v7931
      %v7941 = vsub.f32 %v7732, %v7931
      %v7942 = vsub.f32 %v7733, %v7931
      %v7943 = vsub.f32 %v7734, %v7931
      %v7944 = vsub.f32 %v7735, %v7931
      %v7945 = vsub.f32 %v7736, %v7931
      %v7946 = vsub.f32 %v7737, %v7931
      %v7947 = vsub.f32 %v7738, %v7931
      %v7948 = vsub.f32 %v7739, %v7931
      %v7949 = vsub.f32 %v7740, %v7931
      %v7950 = vsub.f32 %v7741, %v7931
      %v7951 = vsub.f32 %v7742, %v7931
      %v7952 = vsub.f32 %v7743, %v7931
      %v7953 = vsub.f32 %v7744, %v7931
      %v7954 = vsub.f32 %v7745, %v7931
      %v7955 = vsub.f32 %v7746, %v7931
      %v7956 = vsub.f32 %v7747, %v7931
      %v7957 = vsub.f32 %v7748, %v7931
      %v7958 = vsub.f32 %v7749, %v7931
      %v7959 = vsub.f32 %v7750, %v7931
      %v7960 = vsub.f32 %v7751, %v7931
      %v7961 = vsub.f32 %v7752, %v7931
      %v7962 = vsub.f32 %v7753, %v7931
      %v7963 = vsub.f32 %v7754, %v7931
      %v7964 = vsub.f32 %v7755, %v7931
      %v7965 = vsub.f32 %v7756, %v7931
      %v7966 = vsub.f32 %v7757, %v7931
      %v7967 = vsub.f32 %v7758, %v7931
      %v7968 = vadd.f32 %v7935, 1e-05
      %v7969 = vrsqrt.pop %v7968
      %v7970 = vmul.f32 %v7936, %v7969
      %v7971 = vmul.f32 %v7937, %v7969
      %v7972 = vmul.f32 %v7938, %v7969
      %v7973 = vmul.f32 %v7939, %v7969
      %v7974 = vmul.f32 %v7940, %v7969
      %v7975 = vmul.f32 %v7941, %v7969
      %v7976 = vmul.f32 %v7942, %v7969
      %v7977 = vmul.f32 %v7943, %v7969
      %v7978 = vmul.f32 %v7944, %v7969
      %v7979 = vmul.f32 %v7945, %v7969
      %v7980 = vmul.f32 %v7946, %v7969
      %v7981 = vmul.f32 %v7947, %v7969
      %v7982 = vmul.f32 %v7948, %v7969
      %v7983 = vmul.f32 %v7949, %v7969
      %v7984 = vmul.f32 %v7950, %v7969
      %v7985 = vmul.f32 %v7951, %v7969
      %v7986 = vmul.f32 %v7952, %v7969
      %v7987 = vmul.f32 %v7953, %v7969
      %v7988 = vmul.f32 %v7954, %v7969
      %v7989 = vmul.f32 %v7955, %v7969
      %v7990 = vmul.f32 %v7956, %v7969
      %v7991 = vmul.f32 %v7957, %v7969
      %v7992 = vmul.f32 %v7958, %v7969
      %v7993 = vmul.f32 %v7959, %v7969
      %v7994 = vmul.f32 %v7960, %v7969
      %v7995 = vmul.f32 %v7961, %v7969
      %v7996 = vmul.f32 %v7962, %v7969
      %v7997 = vmul.f32 %v7963, %v7969
      %v7998 = vmul.f32 %v7964, %v7969
      %v7999 = vmul.f32 %v7965, %v7969
      %v8000 = vmul.f32 %v7966, %v7969
      %v8001 = vmul.f32 %v7967, %v7969
      %v8003 = vlaneseq
      %v8004 = vshrl.u32 %v8003, 7
      %v8005 = vsub.s32 0, %v8004
      %v8006 = vrot.slane %v7759, %v8005
      %v8008 = vmul.f32 %v7970, %v8006
      %v8009 = vmul.f32 %v7971, %v8006
      %v8010 = vmul.f32 %v7972, %v8006
      %v8011 = vmul.f32 %v7973, %v8006
      %v8012 = vmul.f32 %v7974, %v8006
      %v8013 = vmul.f32 %v7975, %v8006
      %v8014 = vmul.f32 %v7976, %v8006
      %v8015 = vmul.f32 %v7977, %v8006
      %v8016 = vmul.f32 %v7978, %v8006
      %v8017 = vmul.f32 %v7979, %v8006
      %v8018 = vmul.f32 %v7980, %v8006
      %v8019 = vmul.f32 %v7981, %v8006
      %v8020 = vmul.f32 %v7982, %v8006
      %v8021 = vmul.f32 %v7983, %v8006
      %v8022 = vmul.f32 %v7984, %v8006
      %v8023 = vmul.f32 %v7985, %v8006
      %v8024 = vmul.f32 %v7986, %v8006
      %v8025 = vmul.f32 %v7987, %v8006
      %v8026 = vmul.f32 %v7988, %v8006
      %v8027 = vmul.f32 %v7989, %v8006
      %v8028 = vmul.f32 %v7990, %v8006
      %v8029 = vmul.f32 %v7991, %v8006
      %v8030 = vmul.f32 %v7992, %v8006
      %v8031 = vmul.f32 %v7993, %v8006
      %v8032 = vmul.f32 %v7994, %v8006
      %v8033 = vmul.f32 %v7995, %v8006
      %v8034 = vmul.f32 %v7996, %v8006
      %v8035 = vmul.f32 %v7997, %v8006
      %v8036 = vmul.f32 %v7998, %v8006
      %v8037 = vmul.f32 %v7999, %v8006
      %v8038 = vmul.f32 %v8000, %v8006
      %v8039 = vmul.f32 %v8001, %v8006
      %v8041 = vlaneseq
      %v8042 = vshrl.u32 %v8041, 7
      %v8043 = vsub.s32 0, %v8042
      %v8044 = vrot.slane %v7760, %v8043
      %v8046 = vadd.f32 %v8008, %v8044
      %v8047 = vadd.f32 %v8009, %v8044
      %v8048 = vadd.f32 %v8010, %v8044
      %v8049 = vadd.f32 %v8011, %v8044
      %v8050 = vadd.f32 %v8012, %v8044
      %v8051 = vadd.f32 %v8013, %v8044
      %v8052 = vadd.f32 %v8014, %v8044
      %v8053 = vadd.f32 %v8015, %v8044
      %v8054 = vadd.f32 %v8016, %v8044
      %v8055 = vadd.f32 %v8017, %v8044
      %v8056 = vadd.f32 %v8018, %v8044
      %v8057 = vadd.f32 %v8019, %v8044
      %v8058 = vadd.f32 %v8020, %v8044
      %v8059 = vadd.f32 %v8021, %v8044
      %v8060 = vadd.f32 %v8022, %v8044
      %v8061 = vadd.f32 %v8023, %v8044
      %v8062 = vadd.f32 %v8024, %v8044
      %v8063 = vadd.f32 %v8025, %v8044
      %v8064 = vadd.f32 %v8026, %v8044
      %v8065 = vadd.f32 %v8027, %v8044
      %v8066 = vadd.f32 %v8028, %v8044
      %v8067 = vadd.f32 %v8029, %v8044
      %v8068 = vadd.f32 %v8030, %v8044
      %v8069 = vadd.f32 %v8031, %v8044
      %v8070 = vadd.f32 %v8032, %v8044
      %v8071 = vadd.f32 %v8033, %v8044
      %v8072 = vadd.f32 %v8034, %v8044
      %v8073 = vadd.f32 %v8035, %v8044
      %v8074 = vadd.f32 %v8036, %v8044
      %v8075 = vadd.f32 %v8037, %v8044
      %v8076 = vadd.f32 %v8038, %v8044
      %v8077 = vadd.f32 %v8039, %v8044
      %vm8078 = vcmp.ge.f32.partialorder %v8046, 0.0
      %vm8079 = vcmp.ge.f32.partialorder %v8047, 0.0
      %vm8080 = vcmp.ge.f32.partialorder %v8048, 0.0
      %vm8081 = vcmp.ge.f32.partialorder %v8049, 0.0
      %vm8082 = vcmp.ge.f32.partialorder %v8050, 0.0
      %vm8083 = vcmp.ge.f32.partialorder %v8051, 0.0
      %vm8084 = vcmp.ge.f32.partialorder %v8052, 0.0
      %vm8085 = vcmp.ge.f32.partialorder %v8053, 0.0
      %vm8086 = vcmp.ge.f32.partialorder %v8054, 0.0
      %vm8087 = vcmp.ge.f32.partialorder %v8055, 0.0
      %vm8088 = vcmp.ge.f32.partialorder %v8056, 0.0
      %vm8089 = vcmp.ge.f32.partialorder %v8057, 0.0
      %vm8090 = vcmp.ge.f32.partialorder %v8058, 0.0
      %vm8091 = vcmp.ge.f32.partialorder %v8059, 0.0
      %vm8092 = vcmp.ge.f32.partialorder %v8060, 0.0
      %vm8093 = vcmp.ge.f32.partialorder %v8061, 0.0
      %vm8094 = vcmp.ge.f32.partialorder %v8062, 0.0
      %vm8095 = vcmp.ge.f32.partialorder %v8063, 0.0
      %vm8096 = vcmp.ge.f32.partialorder %v8064, 0.0
      %vm8097 = vcmp.ge.f32.partialorder %v8065, 0.0
      %vm8098 = vcmp.ge.f32.partialorder %v8066, 0.0
      %vm8099 = vcmp.ge.f32.partialorder %v8067, 0.0
      %vm8100 = vcmp.ge.f32.partialorder %v8068, 0.0
      %vm8101 = vcmp.ge.f32.partialorder %v8069, 0.0
      %vm8102 = vcmp.ge.f32.partialorder %v8070, 0.0
      %vm8103 = vcmp.ge.f32.partialorder %v8071, 0.0
      %vm8104 = vcmp.ge.f32.partialorder %v8072, 0.0
      %vm8105 = vcmp.ge.f32.partialorder %v8073, 0.0
      %vm8106 = vcmp.ge.f32.partialorder %v8074, 0.0
      %vm8107 = vcmp.ge.f32.partialorder %v8075, 0.0
      %vm8108 = vcmp.ge.f32.partialorder %v8076, 0.0
      %vm8109 = vcmp.ge.f32.partialorder %v8077, 0.0
      %v8110 = vmul.f32 %v8046, 0.01
      %v8111 = vmul.f32 %v8047, 0.01
      %v8112 = vmul.f32 %v8048, 0.01
      %v8113 = vmul.f32 %v8049, 0.01
      %v8114 = vmul.f32 %v8050, 0.01
      %v8115 = vmul.f32 %v8051, 0.01
      %v8116 = vmul.f32 %v8052, 0.01
      %v8117 = vmul.f32 %v8053, 0.01
      %v8118 = vmul.f32 %v8054, 0.01
      %v8119 = vmul.f32 %v8055, 0.01
      %v8120 = vmul.f32 %v8056, 0.01
      %v8121 = vmul.f32 %v8057, 0.01
      %v8122 = vmul.f32 %v8058, 0.01
      %v8123 = vmul.f32 %v8059, 0.01
      %v8124 = vmul.f32 %v8060, 0.01
      %v8125 = vmul.f32 %v8061, 0.01
      %v8126 = vmul.f32 %v8062, 0.01
      %v8127 = vmul.f32 %v8063, 0.01
      %v8128 = vmul.f32 %v8064, 0.01
      %v8129 = vmul.f32 %v8065, 0.01
      %v8130 = vmul.f32 %v8066, 0.01
      %v8131 = vmul.f32 %v8067, 0.01
      %v8132 = vmul.f32 %v8068, 0.01
      %v8133 = vmul.f32 %v8069, 0.01
      %v8134 = vmul.f32 %v8070, 0.01
      %v8135 = vmul.f32 %v8071, 0.01
      %v8136 = vmul.f32 %v8072, 0.01
      %v8137 = vmul.f32 %v8073, 0.01
      %v8138 = vmul.f32 %v8074, 0.01
      %v8139 = vmul.f32 %v8075, 0.01
      %v8140 = vmul.f32 %v8076, 0.01
      %v8141 = vmul.f32 %v8077, 0.01
      %v8142 = vsel %vm8078, %v8046, %v8110
      %v8143 = vsel %vm8079, %v8047, %v8111
      %v8144 = vsel %vm8080, %v8048, %v8112
      %v8145 = vsel %vm8081, %v8049, %v8113
      %v8146 = vsel %vm8082, %v8050, %v8114
      %v8147 = vsel %vm8083, %v8051, %v8115
      %v8148 = vsel %vm8084, %v8052, %v8116
      %v8149 = vsel %vm8085, %v8053, %v8117
      %v8150 = vsel %vm8086, %v8054, %v8118
      %v8151 = vsel %vm8087, %v8055, %v8119
      %v8152 = vsel %vm8088, %v8056, %v8120
      %v8153 = vsel %vm8089, %v8057, %v8121
      %v8154 = vsel %vm8090, %v8058, %v8122
      %v8155 = vsel %vm8091, %v8059, %v8123
      %v8156 = vsel %vm8092, %v8060, %v8124
      %v8157 = vsel %vm8093, %v8061, %v8125
      %v8158 = vsel %vm8094, %v8062, %v8126
      %v8159 = vsel %vm8095, %v8063, %v8127
      %v8160 = vsel %vm8096, %v8064, %v8128
      %v8161 = vsel %vm8097, %v8065, %v8129
      %v8162 = vsel %vm8098, %v8066, %v8130
      %v8163 = vsel %vm8099, %v8067, %v8131
      %v8164 = vsel %vm8100, %v8068, %v8132
      %v8165 = vsel %vm8101, %v8069, %v8133
      %v8166 = vsel %vm8102, %v8070, %v8134
      %v8167 = vsel %vm8103, %v8071, %v8135
      %v8168 = vsel %vm8104, %v8072, %v8136
      %v8169 = vsel %vm8105, %v8073, %v8137
      %v8170 = vsel %vm8106, %v8074, %v8138
      %v8171 = vsel %vm8107, %v8075, %v8139
      %v8172 = vsel %vm8108, %v8076, %v8140
      %v8173 = vsel %vm8109, %v8077, %v8141
      %8174 = vst.msk [vmem:[%s390 + $0x8] sm:$0xff] %vm380, %v8142
      %8175 = vst.msk [vmem:[%s390 + $0x10] sm:$0xff] %vm380, %v8143
      %8176 = vst.msk [vmem:[%s390 + $0x28] sm:$0xff] %vm380, %v8144
      %8177 = vst.msk [vmem:[%s390 + $0x30] sm:$0xff] %vm380, %v8145
      %8178 = vst.msk [vmem:[%s390 + $0x48] sm:$0xff] %vm380, %v8146
      %8179 = vst.msk [vmem:[%s390 + $0x50] sm:$0xff] %vm380, %v8147
      %8180 = vst.msk [vmem:[%s390 + $0x68] sm:$0xff] %vm380, %v8148
      %8181 = vst.msk [vmem:[%s390 + $0x70] sm:$0xff] %vm380, %v8149
      %8182 = vst.msk [vmem:[%s390 + $0x88] sm:$0xff] %vm380, %v8150
      %8183 = vst.msk [vmem:[%s390 + $0x90] sm:$0xff] %vm380, %v8151
      %8184 = vst.msk [vmem:[%s390 + $0xa8] sm:$0xff] %vm380, %v8152
      %8185 = vst.msk [vmem:[%s390 + $0xb0] sm:$0xff] %vm380, %v8153
      %8186 = vst.msk [vmem:[%s390 + $0xc8] sm:$0xff] %vm380, %v8154
      %8187 = vst.msk [vmem:[%s390 + $0xd0] sm:$0xff] %vm380, %v8155
      %8188 = vst.msk [vmem:[%s390 + $0xe8] sm:$0xff] %vm380, %v8156
      %8189 = vst.msk [vmem:[%s390 + $0xf0] sm:$0xff] %vm380, %v8157
      %8190 = vst.msk [vmem:[%s390 + $0x108] sm:$0xff] %vm380, %v8158
      %8191 = vst.msk [vmem:[%s390 + $0x110] sm:$0xff] %vm380, %v8159
      %8192 = vst.msk [vmem:[%s390 + $0x128] sm:$0xff] %vm380, %v8160
      %8193 = vst.msk [vmem:[%s390 + $0x130] sm:$0xff] %vm380, %v8161
      %8194 = vst.msk [vmem:[%s390 + $0x148] sm:$0xff] %vm380, %v8162
      %8195 = vst.msk [vmem:[%s390 + $0x150] sm:$0xff] %vm380, %v8163
      %8196 = vst.msk [vmem:[%s390 + $0x168] sm:$0xff] %vm380, %v8164
      %8197 = vst.msk [vmem:[%s390 + $0x170] sm:$0xff] %vm380, %v8165
      %8198 = vst.msk [vmem:[%s390 + $0x188] sm:$0xff] %vm380, %v8166
      %8199 = vst.msk [vmem:[%s390 + $0x190] sm:$0xff] %vm380, %v8167
      %8200 = vst.msk [vmem:[%s390 + $0x1a8] sm:$0xff] %vm380, %v8168
      %8201 = vst.msk [vmem:[%s390 + $0x1b0] sm:$0xff] %vm380, %v8169
      %8202 = vst.msk [vmem:[%s390 + $0x1c8] sm:$0xff] %vm380, %v8170
      %8203 = vst.msk [vmem:[%s390 + $0x1d0] sm:$0xff] %vm380, %v8171
      %8204 = vst.msk [vmem:[%s390 + $0x1e8] sm:$0xff] %vm380, %v8172
      %8205 = vst.msk [vmem:[%s390 + $0x1f0] sm:$0xff] %vm380, %v8173
      %v8206 = vld [vmem:[#allocation2 + $0x7] sm:$0xff]
      %v8207 = vld [vmem:[#allocation2 + $0xf] sm:$0xff]
      %v8208 = vld [vmem:[#allocation2 + $0x27] sm:$0xff]
      %v8209 = vld [vmem:[#allocation2 + $0x2f] sm:$0xff]
      %v8210 = vld [vmem:[#allocation2 + $0x47] sm:$0xff]
      %v8211 = vld [vmem:[#allocation2 + $0x4f] sm:$0xff]
      %v8212 = vld [vmem:[#allocation2 + $0x67] sm:$0xff]
      %v8213 = vld [vmem:[#allocation2 + $0x6f] sm:$0xff]
      %v8214 = vld [vmem:[#allocation2 + $0x87] sm:$0xff]
      %v8215 = vld [vmem:[#allocation2 + $0x8f] sm:$0xff]
      %v8216 = vld [vmem:[#allocation2 + $0xa7] sm:$0xff]
      %v8217 = vld [vmem:[#allocation2 + $0xaf] sm:$0xff]
      %v8218 = vld [vmem:[#allocation2 + $0xc7] sm:$0xff]
      %v8219 = vld [vmem:[#allocation2 + $0xcf] sm:$0xff]
      %v8220 = vld [vmem:[#allocation2 + $0xe7] sm:$0xff]
      %v8221 = vld [vmem:[#allocation2 + $0xef] sm:$0xff]
      %v8222 = vld [vmem:[#allocation2 + $0x107] sm:$0xff]
      %v8223 = vld [vmem:[#allocation2 + $0x10f] sm:$0xff]
      %v8224 = vld [vmem:[#allocation2 + $0x127] sm:$0xff]
      %v8225 = vld [vmem:[#allocation2 + $0x12f] sm:$0xff]
      %v8226 = vld [vmem:[#allocation2 + $0x147] sm:$0xff]
      %v8227 = vld [vmem:[#allocation2 + $0x14f] sm:$0xff]
      %v8228 = vld [vmem:[#allocation2 + $0x167] sm:$0xff]
      %v8229 = vld [vmem:[#allocation2 + $0x16f] sm:$0xff]
      %v8230 = vld [vmem:[#allocation2 + $0x187] sm:$0xff]
      %v8231 = vld [vmem:[#allocation2 + $0x18f] sm:$0xff]
      %v8232 = vld [vmem:[#allocation2 + $0x1a7] sm:$0xff]
      %v8233 = vld [vmem:[#allocation2 + $0x1af] sm:$0xff]
      %v8234 = vld [vmem:[#allocation2 + $0x1c7] sm:$0xff]
      %v8235 = vld [vmem:[#allocation2 + $0x1cf] sm:$0xff]
      %v8236 = vld [vmem:[#allocation2 + $0x1e7] sm:$0xff]
      %v8237 = vld [vmem:[#allocation2 + $0x1ef] sm:$0xff]
      %v8238 = vld [vmem:[%s7] sm:$0xf]
      %v8239 = vld [vmem:[#allocation2 + $0x8] sm:$0xff]
      %v8240 = vld [vmem:[#allocation2 + $0x10] sm:$0xff]
      %v8241 = vld [vmem:[#allocation2 + $0x28] sm:$0xff]
      %v8242 = vld [vmem:[#allocation2 + $0x30] sm:$0xff]
      %v8243 = vld [vmem:[#allocation2 + $0x48] sm:$0xff]
      %v8244 = vld [vmem:[#allocation2 + $0x50] sm:$0xff]
      %v8245 = vld [vmem:[#allocation2 + $0x68] sm:$0xff]
      %v8246 = vld [vmem:[#allocation2 + $0x70] sm:$0xff]
      %v8247 = vld [vmem:[#allocation2 + $0x88] sm:$0xff]
      %v8248 = vld [vmem:[#allocation2 + $0x90] sm:$0xff]
      %v8249 = vld [vmem:[#allocation2 + $0xa8] sm:$0xff]
      %v8250 = vld [vmem:[#allocation2 + $0xb0] sm:$0xff]
      %v8251 = vld [vmem:[#allocation2 + $0xc8] sm:$0xff]
      %v8252 = vld [vmem:[#allocation2 + $0xd0] sm:$0xff]
      %v8253 = vld [vmem:[#allocation2 + $0xe8] sm:$0xff]
      %v8254 = vld [vmem:[#allocation2 + $0xf0] sm:$0xff]
      %v8255 = vld [vmem:[#allocation2 + $0x108] sm:$0xff]
      %v8256 = vld [vmem:[#allocation2 + $0x110] sm:$0xff]
      %v8257 = vld [vmem:[#allocation2 + $0x128] sm:$0xff]
      %v8258 = vld [vmem:[#allocation2 + $0x130] sm:$0xff]
      %v8259 = vld [vmem:[#allocation2 + $0x148] sm:$0xff]
      %v8260 = vld [vmem:[#allocation2 + $0x150] sm:$0xff]
      %v8261 = vld [vmem:[#allocation2 + $0x168] sm:$0xff]
      %v8262 = vld [vmem:[#allocation2 + $0x170] sm:$0xff]
      %v8263 = vld [vmem:[#allocation2 + $0x188] sm:$0xff]
      %v8264 = vld [vmem:[#allocation2 + $0x190] sm:$0xff]
      %v8265 = vld [vmem:[#allocation2 + $0x1a8] sm:$0xff]
      %v8266 = vld [vmem:[#allocation2 + $0x1b0] sm:$0xff]
      %v8267 = vld [vmem:[#allocation2 + $0x1c8] sm:$0xff]
      %v8268 = vld [vmem:[#allocation2 + $0x1d0] sm:$0xff]
      %v8269 = vld [vmem:[#allocation2 + $0x1e8] sm:$0xff]
      %v8270 = vld [vmem:[#allocation2 + $0x1f0] sm:$0xff]
      %v8271 = vld [vmem:[%s7 + $0x4] sm:$0xf]
      %v8273 = vsel %vm380, %v8239, 0
      %v8276 = vsel %vm380, %v8240, 0
      %v8279 = vsel %vm380, %v8241, 0
      %v8282 = vsel %vm380, %v8242, 0
      %v8285 = vsel %vm380, %v8243, 0
      %v8288 = vsel %vm380, %v8244, 0
      %v8291 = vsel %vm380, %v8245, 0
      %v8294 = vsel %vm380, %v8246, 0
      %v8297 = vsel %vm380, %v8247, 0
      %v8300 = vsel %vm380, %v8248, 0
      %v8303 = vsel %vm380, %v8249, 0
      %v8306 = vsel %vm380, %v8250, 0
      %v8309 = vsel %vm380, %v8251, 0
      %v8312 = vsel %vm380, %v8252, 0
      %v8315 = vsel %vm380, %v8253, 0
      %v8318 = vsel %vm380, %v8254, 0
      %v8321 = vsel %vm380, %v8255, 0
      %v8324 = vsel %vm380, %v8256, 0
      %v8327 = vsel %vm380, %v8257, 0
      %v8330 = vsel %vm380, %v8258, 0
      %v8333 = vsel %vm380, %v8259, 0
      %v8336 = vsel %vm380, %v8260, 0
      %v8339 = vsel %vm380, %v8261, 0
      %v8342 = vsel %vm380, %v8262, 0
      %v8345 = vsel %vm380, %v8263, 0
      %v8348 = vsel %vm380, %v8264, 0
      %v8351 = vsel %vm380, %v8265, 0
      %v8354 = vsel %vm380, %v8266, 0
      %v8357 = vsel %vm380, %v8267, 0
      %v8360 = vsel %vm380, %v8268, 0
      %v8363 = vsel %vm380, %v8269, 0
      %v8366 = vsel %vm380, %v8270, 0
      %v8369 = vsel %vm980, %v8271, 0
      %8371 = vmatprep.subr.mxu0 0.0
      %8372 = vmatpush1.msra.mxu0 %v8369
      %8373 = vmatprep.subr.mxu0 0.0
      %8374 = vmatpush1.msra.mxu0 0.0
      %8375 = vmatprep.subr.mxu0 0.0
      %8376 = vmatpush1.msra.mxu0 0.0
      %8377 = vmatprep.subr.mxu0 0.0
      %8378 = vmatpush1.msra.mxu0 0.0
      %8379 = vmatprep.subr.mxu0 0.0
      %8380 = vmatpush1.msra.mxu0 0.0
      %8381 = vmatprep.subr.mxu0 0.0
      %8382 = vmatpush1.msra.mxu0 0.0
      %8383 = vmatprep.subr.mxu0 0.0
      %8384 = vmatpush1.msra.mxu0 0.0
      %8385 = vmatprep.subr.mxu0 0.0
      %8386 = vmatpush1.msra.mxu0 0.0
      %8387 = vmatprep.subr.mxu0 0.0
      %8388 = vmatpush1.msra.mxu0 0.0
      %8389 = vmatprep.subr.mxu0 0.0
      %8390 = vmatpush1.msra.mxu0 0.0
      %8391 = vmatprep.subr.mxu0 0.0
      %8392 = vmatpush1.msra.mxu0 0.0
      %8393 = vmatprep.subr.mxu0 0.0
      %8394 = vmatpush1.msra.mxu0 0.0
      %8395 = vmatprep.subr.mxu0 0.0
      %8396 = vmatpush1.msra.mxu0 0.0
      %8397 = vmatprep.subr.mxu0 0.0
      %8398 = vmatpush1.msra.mxu0 0.0
      %8399 = vmatprep.subr.mxu0 0.0
      %8400 = vmatpush1.msra.mxu0 0.0
      %8401 = vmatprep.subr.mxu0 0.0
      %8402 = vmatpush1.msra.mxu0 0.0
      %8403 = vmatprep.subr.mxu0 0.0
      %8404 = vmatpush1.msra.mxu0 0.0
      %8405 = vmatprep.subr.mxu0 0.0
      %8406 = vmatpush1.msra.mxu0 0.0
      %8407 = vmatprep.subr.mxu0 0.0
      %8408 = vmatpush1.msra.mxu0 0.0
      %8409 = vmatprep.subr.mxu0 0.0
      %8410 = vmatpush1.msra.mxu0 0.0
      %8411 = vmatprep.subr.mxu0 0.0
      %8412 = vmatpush1.msra.mxu0 0.0
      %8413 = vmatprep.subr.mxu0 0.0
      %8414 = vmatpush1.msra.mxu0 0.0
      %8415 = vmatprep.subr.mxu0 0.0
      %8416 = vmatpush1.msra.mxu0 0.0
      %8417 = vmatprep.subr.mxu0 0.0
      %8418 = vmatpush1.msra.mxu0 0.0
      %8419 = vmatprep.subr.mxu0 0.0
      %8420 = vmatpush1.msra.mxu0 0.0
      %8421 = vmatprep.subr.mxu0 0.0
      %8422 = vmatpush1.msra.mxu0 0.0
      %8423 = vmatprep.subr.mxu0 0.0
      %8424 = vmatpush1.msra.mxu0 0.0
      %8425 = vmatprep.subr.mxu0 0.0
      %8426 = vmatpush1.msra.mxu0 0.0
      %8427 = vmatprep.subr.mxu0 0.0
      %8428 = vmatpush1.msra.mxu0 0.0
      %8429 = vmatprep.subr.mxu0 0.0
      %8430 = vmatpush1.msra.mxu0 0.0
      %8431 = vmatprep.subr.mxu0 0.0
      %8432 = vmatpush1.msra.mxu0 0.0
      %8433 = vmatprep.subr.mxu0 0.0
      %8434 = vmatpush1.msra.mxu0 0.0
      %8435 = vmatprep.mubr.f32.mxu0 0.0
      %8436 = vmatmul.mubr.f32.gmra.mrb[0].mxu0 %v8273
      %v8437 = vpop.f32.mrb[0].mxu0
      %v8438 = vadd.f32 0.0, %v8437
      %v8439 = vpop.f32.mrb[0].mxu0
      %8440 = vmatprep.mubr.f32.mxu0 0.0
      %8441 = vmatmul.mubr.f32.gmra.mrb[0].mxu0 %v8276
      %v8442 = vpop.f32.mrb[0].mxu0
      %v8443 = vadd.f32 0.0, %v8442
      %v8444 = vpop.f32.mrb[0].mxu0
      %8445 = vmatprep.mubr.f32.mxu0 0.0
      %8446 = vmatmul.mubr.f32.gmra.mrb[0].mxu0 %v8279
      %v8447 = vpop.f32.mrb[0].mxu0
      %v8448 = vadd.f32 0.0, %v8447
      %v8449 = vpop.f32.mrb[0].mxu0
      %8450 = vmatprep.mubr.f32.mxu0 0.0
      %8451 = vmatmul.mubr.f32.gmra.mrb[0].mxu0 %v8282
      %v8452 = vpop.f32.mrb[0].mxu0
      %v8453 = vadd.f32 0.0, %v8452
      %v8454 = vpop.f32.mrb[0].mxu0
      %8455 = vmatprep.mubr.f32.mxu0 0.0
      %8456 = vmatmul.mubr.f32.gmra.mrb[0].mxu0 %v8285
      %v8457 = vpop.f32.mrb[0].mxu0
      %v8458 = vadd.f32 0.0, %v8457
      %v8459 = vpop.f32.mrb[0].mxu0
      %8460 = vmatprep.mubr.f32.mxu0 0.0
      %8461 = vmatmul.mubr.f32.gmra.mrb[0].mxu0 %v8288
      %v8462 = vpop.f32.mrb[0].mxu0
      %v8463 = vadd.f32 0.0, %v8462
      %v8464 = vpop.f32.mrb[0].mxu0
      %8465 = vmatprep.mubr.f32.mxu0 0.0
      %8466 = vmatmul.mubr.f32.gmra.mrb[0].mxu0 %v8291
      %v8467 = vpop.f32.mrb[0].mxu0
      %v8468 = vadd.f32 0.0, %v8467
      %v8469 = vpop.f32.mrb[0].mxu0
      %8470 = vmatprep.mubr.f32.mxu0 0.0
      %8471 = vmatmul.mubr.f32.gmra.mrb[0].mxu0 %v8294
      %v8472 = vpop.f32.mrb[0].mxu0
      %v8473 = vadd.f32 0.0, %v8472
      %v8474 = vpop.f32.mrb[0].mxu0
      %8475 = vmatprep.mubr.f32.mxu0 0.0
      %8476 = vmatmul.mubr.f32.gmra.mrb[0].mxu0 %v8297
      %v8477 = vpop.f32.mrb[0].mxu0
      %v8478 = vadd.f32 0.0, %v8477
      %v8479 = vpop.f32.mrb[0].mxu0
      %8480 = vmatprep.mubr.f32.mxu0 0.0
      %8481 = vmatmul.mubr.f32.gmra.mrb[0].mxu0 %v8300
      %v8482 = vpop.f32.mrb[0].mxu0
      %v8483 = vadd.f32 0.0, %v8482
      %v8484 = vpop.f32.mrb[0].mxu0
      %8485 = vmatprep.mubr.f32.mxu0 0.0
      %8486 = vmatmul.mubr.f32.gmra.mrb[0].mxu0 %v8303
      %v8487 = vpop.f32.mrb[0].mxu0
      %v8488 = vadd.f32 0.0, %v8487
      %v8489 = vpop.f32.mrb[0].mxu0
      %8490 = vmatprep.mubr.f32.mxu0 0.0
      %8491 = vmatmul.mubr.f32.gmra.mrb[0].mxu0 %v8306
      %v8492 = vpop.f32.mrb[0].mxu0
      %v8493 = vadd.f32 0.0, %v8492
      %v8494 = vpop.f32.mrb[0].mxu0
      %8495 = vmatprep.mubr.f32.mxu0 0.0
      %8496 = vmatmul.mubr.f32.gmra.mrb[0].mxu0 %v8309
      %v8497 = vpop.f32.mrb[0].mxu0
      %v8498 = vadd.f32 0.0, %v8497
      %v8499 = vpop.f32.mrb[0].mxu0
      %8500 = vmatprep.mubr.f32.mxu0 0.0
      %8501 = vmatmul.mubr.f32.gmra.mrb[0].mxu0 %v8312
      %v8502 = vpop.f32.mrb[0].mxu0
      %v8503 = vadd.f32 0.0, %v8502
      %v8504 = vpop.f32.mrb[0].mxu0
      %8505 = vmatprep.mubr.f32.mxu0 0.0
      %8506 = vmatmul.mubr.f32.gmra.mrb[0].mxu0 %v8315
      %v8507 = vpop.f32.mrb[0].mxu0
      %v8508 = vadd.f32 0.0, %v8507
      %v8509 = vpop.f32.mrb[0].mxu0
      %8510 = vmatprep.mubr.f32.mxu0 0.0
      %8511 = vmatmul.mubr.f32.gmra.mrb[0].mxu0 %v8318
      %v8512 = vpop.f32.mrb[0].mxu0
      %v8513 = vadd.f32 0.0, %v8512
      %v8514 = vpop.f32.mrb[0].mxu0
      %8515 = vmatprep.mubr.f32.mxu0 0.0
      %8516 = vmatmul.mubr.f32.gmra.mrb[0].mxu0 %v8321
      %v8517 = vpop.f32.mrb[0].mxu0
      %v8518 = vadd.f32 0.0, %v8517
      %v8519 = vpop.f32.mrb[0].mxu0
      %8520 = vmatprep.mubr.f32.mxu0 0.0
      %8521 = vmatmul.mubr.f32.gmra.mrb[0].mxu0 %v8324
      %v8522 = vpop.f32.mrb[0].mxu0
      %v8523 = vadd.f32 0.0, %v8522
      %v8524 = vpop.f32.mrb[0].mxu0
      %8525 = vmatprep.mubr.f32.mxu0 0.0
      %8526 = vmatmul.mubr.f32.gmra.mrb[0].mxu0 %v8327
      %v8527 = vpop.f32.mrb[0].mxu0
      %v8528 = vadd.f32 0.0, %v8527
      %v8529 = vpop.f32.mrb[0].mxu0
      %8530 = vmatprep.mubr.f32.mxu0 0.0
      %8531 = vmatmul.mubr.f32.gmra.mrb[0].mxu0 %v8330
      %v8532 = vpop.f32.mrb[0].mxu0
      %v8533 = vadd.f32 0.0, %v8532
      %v8534 = vpop.f32.mrb[0].mxu0
      %8535 = vmatprep.mubr.f32.mxu0 0.0
      %8536 = vmatmul.mubr.f32.gmra.mrb[0].mxu0 %v8333
      %v8537 = vpop.f32.mrb[0].mxu0
      %v8538 = vadd.f32 0.0, %v8537
      %v8539 = vpop.f32.mrb[0].mxu0
      %8540 = vmatprep.mubr.f32.mxu0 0.0
      %8541 = vmatmul.mubr.f32.gmra.mrb[0].mxu0 %v8336
      %v8542 = vpop.f32.mrb[0].mxu0
      %v8543 = vadd.f32 0.0, %v8542
      %v8544 = vpop.f32.mrb[0].mxu0
      %8545 = vmatprep.mubr.f32.mxu0 0.0
      %8546 = vmatmul.mubr.f32.gmra.mrb[0].mxu0 %v8339
      %v8547 = vpop.f32.mrb[0].mxu0
      %v8548 = vadd.f32 0.0, %v8547
      %v8549 = vpop.f32.mrb[0].mxu0
      %8550 = vmatprep.mubr.f32.mxu0 0.0
      %8551 = vmatmul.mubr.f32.gmra.mrb[0].mxu0 %v8342
      %v8552 = vpop.f32.mrb[0].mxu0
      %v8553 = vadd.f32 0.0, %v8552
      %v8554 = vpop.f32.mrb[0].mxu0
      %8555 = vmatprep.mubr.f32.mxu0 0.0
      %8556 = vmatmul.mubr.f32.gmra.mrb[0].mxu0 %v8345
      %v8557 = vpop.f32.mrb[0].mxu0
      %v8558 = vadd.f32 0.0, %v8557
      %v8559 = vpop.f32.mrb[0].mxu0
      %8560 = vmatprep.mubr.f32.mxu0 0.0
      %8561 = vmatmul.mubr.f32.gmra.mrb[0].mxu0 %v8348
      %v8562 = vpop.f32.mrb[0].mxu0
      %v8563 = vadd.f32 0.0, %v8562
      %v8564 = vpop.f32.mrb[0].mxu0
      %8565 = vmatprep.mubr.f32.mxu0 0.0
      %8566 = vmatmul.mubr.f32.gmra.mrb[0].mxu0 %v8351
      %v8567 = vpop.f32.mrb[0].mxu0
      %v8568 = vadd.f32 0.0, %v8567
      %v8569 = vpop.f32.mrb[0].mxu0
      %8570 = vmatprep.mubr.f32.mxu0 0.0
      %8571 = vmatmul.mubr.f32.gmra.mrb[0].mxu0 %v8354
      %v8572 = vpop.f32.mrb[0].mxu0
      %v8573 = vadd.f32 0.0, %v8572
      %v8574 = vpop.f32.mrb[0].mxu0
      %8575 = vmatprep.mubr.f32.mxu0 0.0
      %8576 = vmatmul.mubr.f32.gmra.mrb[0].mxu0 %v8357
      %v8577 = vpop.f32.mrb[0].mxu0
      %v8578 = vadd.f32 0.0, %v8577
      %v8579 = vpop.f32.mrb[0].mxu0
      %8580 = vmatprep.mubr.f32.mxu0 0.0
      %8581 = vmatmul.mubr.f32.gmra.mrb[0].mxu0 %v8360
      %v8582 = vpop.f32.mrb[0].mxu0
      %v8583 = vadd.f32 0.0, %v8582
      %v8584 = vpop.f32.mrb[0].mxu0
      %8585 = vmatprep.mubr.f32.mxu0 0.0
      %8586 = vmatmul.mubr.f32.gmra.mrb[0].mxu0 %v8363
      %v8587 = vpop.f32.mrb[0].mxu0
      %v8588 = vadd.f32 0.0, %v8587
      %v8589 = vpop.f32.mrb[0].mxu0
      %8590 = vmatprep.mubr.f32.mxu0 0.0
      %8591 = vmatmul.mubr.f32.gmra.mrb[0].mxu0 %v8366
      %v8592 = vpop.f32.mrb[0].mxu0
      %v8593 = vadd.f32 0.0, %v8592
      %v8594 = vpop.f32.mrb[0].mxu0
      %8595 = vdwg.mxu0
      %v8597 = vsel %vm380, %v8206, 0
      %v8600 = vsel %vm380, %v8207, 0
      %v8603 = vsel %vm380, %v8208, 0
      %v8606 = vsel %vm380, %v8209, 0
      %v8609 = vsel %vm380, %v8210, 0
      %v8612 = vsel %vm380, %v8211, 0
      %v8615 = vsel %vm380, %v8212, 0
      %v8618 = vsel %vm380, %v8213, 0
      %v8621 = vsel %vm380, %v8214, 0
      %v8624 = vsel %vm380, %v8215, 0
      %v8627 = vsel %vm380, %v8216, 0
      %v8630 = vsel %vm380, %v8217, 0
      %v8633 = vsel %vm380, %v8218, 0
      %v8636 = vsel %vm380, %v8219, 0
      %v8639 = vsel %vm380, %v8220, 0
      %v8642 = vsel %vm380, %v8221, 0
      %v8645 = vsel %vm380, %v8222, 0
      %v8648 = vsel %vm380, %v8223, 0
      %v8651 = vsel %vm380, %v8224, 0
      %v8654 = vsel %vm380, %v8225, 0
      %v8657 = vsel %vm380, %v8226, 0
      %v8660 = vsel %vm380, %v8227, 0
      %v8663 = vsel %vm380, %v8228, 0
      %v8666 = vsel %vm380, %v8229, 0
      %v8669 = vsel %vm380, %v8230, 0
      %v8672 = vsel %vm380, %v8231, 0
      %v8675 = vsel %vm380, %v8232, 0
      %v8678 = vsel %vm380, %v8233, 0
      %v8681 = vsel %vm380, %v8234, 0
      %v8684 = vsel %vm380, %v8235, 0
      %v8687 = vsel %vm380, %v8236, 0
      %v8690 = vsel %vm380, %v8237, 0
      %v8693 = vsel %vm980, %v8238, 0
      %8695 = vmatprep.subr.mxu0 0.0
      %8696 = vmatpush1.msra.mxu0 %v8693
      %8697 = vmatprep.subr.mxu0 0.0
      %8698 = vmatpush1.msra.mxu0 0.0
      %8699 = vmatprep.subr.mxu0 0.0
      %8700 = vmatpush1.msra.mxu0 0.0
      %8701 = vmatprep.subr.mxu0 0.0
      %8702 = vmatpush1.msra.mxu0 0.0
      %8703 = vmatprep.subr.mxu0 0.0
      %8704 = vmatpush1.msra.mxu0 0.0
      %8705 = vmatprep.subr.mxu0 0.0
      %8706 = vmatpush1.msra.mxu0 0.0
      %8707 = vmatprep.subr.mxu0 0.0
      %8708 = vmatpush1.msra.mxu0 0.0
      %8709 = vmatprep.subr.mxu0 0.0
      %8710 = vmatpush1.msra.mxu0 0.0
      %8711 = vmatprep.subr.mxu0 0.0
      %8712 = vmatpush1.msra.mxu0 0.0
      %8713 = vmatprep.subr.mxu0 0.0
      %8714 = vmatpush1.msra.mxu0 0.0
      %8715 = vmatprep.subr.mxu0 0.0
      %8716 = vmatpush1.msra.mxu0 0.0
      %8717 = vmatprep.subr.mxu0 0.0
      %8718 = vmatpush1.msra.mxu0 0.0
      %8719 = vmatprep.subr.mxu0 0.0
      %8720 = vmatpush1.msra.mxu0 0.0
      %8721 = vmatprep.subr.mxu0 0.0
      %8722 = vmatpush1.msra.mxu0 0.0
      %8723 = vmatprep.subr.mxu0 0.0
      %8724 = vmatpush1.msra.mxu0 0.0
      %8725 = vmatprep.subr.mxu0 0.0
      %8726 = vmatpush1.msra.mxu0 0.0
      %8727 = vmatprep.subr.mxu0 0.0
      %8728 = vmatpush1.msra.mxu0 0.0
      %8729 = vmatprep.subr.mxu0 0.0
      %8730 = vmatpush1.msra.mxu0 0.0
      %8731 = vmatprep.subr.mxu0 0.0
      %8732 = vmatpush1.msra.mxu0 0.0
      %8733 = vmatprep.subr.mxu0 0.0
      %8734 = vmatpush1.msra.mxu0 0.0
      %8735 = vmatprep.subr.mxu0 0.0
      %8736 = vmatpush1.msra.mxu0 0.0
      %8737 = vmatprep.subr.mxu0 0.0
      %8738 = vmatpush1.msra.mxu0 0.0
      %8739 = vmatprep.subr.mxu0 0.0
      %8740 = vmatpush1.msra.mxu0 0.0
      %8741 = vmatprep.subr.mxu0 0.0
      %8742 = vmatpush1.msra.mxu0 0.0
      %8743 = vmatprep.subr.mxu0 0.0
      %8744 = vmatpush1.msra.mxu0 0.0
      %8745 = vmatprep.subr.mxu0 0.0
      %8746 = vmatpush1.msra.mxu0 0.0
      %8747 = vmatprep.subr.mxu0 0.0
      %8748 = vmatpush1.msra.mxu0 0.0
      %8749 = vmatprep.subr.mxu0 0.0
      %8750 = vmatpush1.msra.mxu0 0.0
      %8751 = vmatprep.subr.mxu0 0.0
      %8752 = vmatpush1.msra.mxu0 0.0
      %8753 = vmatprep.subr.mxu0 0.0
      %8754 = vmatpush1.msra.mxu0 0.0
      %8755 = vmatprep.subr.mxu0 0.0
      %8756 = vmatpush1.msra.mxu0 0.0
      %8757 = vmatprep.subr.mxu0 0.0
      %8758 = vmatpush1.msra.mxu0 0.0
      %8759 = vmatprep.mubr.f32.mxu0 0.0
      %8760 = vmatmul.mubr.f32.gmra.mrb[0].mxu0 %v8597
      %v8761 = vpop.f32.mrb[0].mxu0
      %v8762 = vadd.f32 %v8438, %v8761
      %v8763 = vpop.f32.mrb[0].mxu0
      %8764 = vmatprep.mubr.f32.mxu0 0.0
      %8765 = vmatmul.mubr.f32.gmra.mrb[0].mxu0 %v8600
      %v8766 = vpop.f32.mrb[0].mxu0
      %v8767 = vadd.f32 %v8443, %v8766
      %v8768 = vpop.f32.mrb[0].mxu0
      %8769 = vmatprep.mubr.f32.mxu0 0.0
      %8770 = vmatmul.mubr.f32.gmra.mrb[0].mxu0 %v8603
      %v8771 = vpop.f32.mrb[0].mxu0
      %v8772 = vadd.f32 %v8448, %v8771
      %v8773 = vpop.f32.mrb[0].mxu0
      %8774 = vmatprep.mubr.f32.mxu0 0.0
      %8775 = vmatmul.mubr.f32.gmra.mrb[0].mxu0 %v8606
      %v8776 = vpop.f32.mrb[0].mxu0
      %v8777 = vadd.f32 %v8453, %v8776
      %v8778 = vpop.f32.mrb[0].mxu0
      %8779 = vmatprep.mubr.f32.mxu0 0.0
      %8780 = vmatmul.mubr.f32.gmra.mrb[0].mxu0 %v8609
      %v8781 = vpop.f32.mrb[0].mxu0
      %v8782 = vadd.f32 %v8458, %v8781
      %v8783 = vpop.f32.mrb[0].mxu0
      %8784 = vmatprep.mubr.f32.mxu0 0.0
      %8785 = vmatmul.mubr.f32.gmra.mrb[0].mxu0 %v8612
      %v8786 = vpop.f32.mrb[0].mxu0
      %v8787 = vadd.f32 %v8463, %v8786
      %v8788 = vpop.f32.mrb[0].mxu0
      %8789 = vmatprep.mubr.f32.mxu0 0.0
      %8790 = vmatmul.mubr.f32.gmra.mrb[0].mxu0 %v8615
      %v8791 = vpop.f32.mrb[0].mxu0
      %v8792 = vadd.f32 %v8468, %v8791
      %v8793 = vpop.f32.mrb[0].mxu0
      %8794 = vmatprep.mubr.f32.mxu0 0.0
      %8795 = vmatmul.mubr.f32.gmra.mrb[0].mxu0 %v8618
      %v8796 = vpop.f32.mrb[0].mxu0
      %v8797 = vadd.f32 %v8473, %v8796
      %v8798 = vpop.f32.mrb[0].mxu0
      %8799 = vmatprep.mubr.f32.mxu0 0.0
      %8800 = vmatmul.mubr.f32.gmra.mrb[0].mxu0 %v8621
      %v8801 = vpop.f32.mrb[0].mxu0
      %v8802 = vadd.f32 %v8478, %v8801
      %v8803 = vpop.f32.mrb[0].mxu0
      %8804 = vmatprep.mubr.f32.mxu0 0.0
      %8805 = vmatmul.mubr.f32.gmra.mrb[0].mxu0 %v8624
      %v8806 = vpop.f32.mrb[0].mxu0
      %v8807 = vadd.f32 %v8483, %v8806
      %v8808 = vpop.f32.mrb[0].mxu0
      %8809 = vmatprep.mubr.f32.mxu0 0.0
      %8810 = vmatmul.mubr.f32.gmra.mrb[0].mxu0 %v8627
      %v8811 = vpop.f32.mrb[0].mxu0
      %v8812 = vadd.f32 %v8488, %v8811
      %v8813 = vpop.f32.mrb[0].mxu0
      %8814 = vmatprep.mubr.f32.mxu0 0.0
      %8815 = vmatmul.mubr.f32.gmra.mrb[0].mxu0 %v8630
      %v8816 = vpop.f32.mrb[0].mxu0
      %v8817 = vadd.f32 %v8493, %v8816
      %v8818 = vpop.f32.mrb[0].mxu0
      %8819 = vmatprep.mubr.f32.mxu0 0.0
      %8820 = vmatmul.mubr.f32.gmra.mrb[0].mxu0 %v8633
      %v8821 = vpop.f32.mrb[0].mxu0
      %v8822 = vadd.f32 %v8498, %v8821
      %v8823 = vpop.f32.mrb[0].mxu0
      %8824 = vmatprep.mubr.f32.mxu0 0.0
      %8825 = vmatmul.mubr.f32.gmra.mrb[0].mxu0 %v8636
      %v8826 = vpop.f32.mrb[0].mxu0
      %v8827 = vadd.f32 %v8503, %v8826
      %v8828 = vpop.f32.mrb[0].mxu0
      %8829 = vmatprep.mubr.f32.mxu0 0.0
      %8830 = vmatmul.mubr.f32.gmra.mrb[0].mxu0 %v8639
      %v8831 = vpop.f32.mrb[0].mxu0
      %v8832 = vadd.f32 %v8508, %v8831
      %v8833 = vpop.f32.mrb[0].mxu0
      %8834 = vmatprep.mubr.f32.mxu0 0.0
      %8835 = vmatmul.mubr.f32.gmra.mrb[0].mxu0 %v8642
      %v8836 = vpop.f32.mrb[0].mxu0
      %v8837 = vadd.f32 %v8513, %v8836
      %v8838 = vpop.f32.mrb[0].mxu0
      %8839 = vmatprep.mubr.f32.mxu0 0.0
      %8840 = vmatmul.mubr.f32.gmra.mrb[0].mxu0 %v8645
      %v8841 = vpop.f32.mrb[0].mxu0
      %v8842 = vadd.f32 %v8518, %v8841
      %v8843 = vpop.f32.mrb[0].mxu0
      %8844 = vmatprep.mubr.f32.mxu0 0.0
      %8845 = vmatmul.mubr.f32.gmra.mrb[0].mxu0 %v8648
      %v8846 = vpop.f32.mrb[0].mxu0
      %v8847 = vadd.f32 %v8523, %v8846
      %v8848 = vpop.f32.mrb[0].mxu0
      %8849 = vmatprep.mubr.f32.mxu0 0.0
      %8850 = vmatmul.mubr.f32.gmra.mrb[0].mxu0 %v8651
      %v8851 = vpop.f32.mrb[0].mxu0
      %v8852 = vadd.f32 %v8528, %v8851
      %v8853 = vpop.f32.mrb[0].mxu0
      %8854 = vmatprep.mubr.f32.mxu0 0.0
      %8855 = vmatmul.mubr.f32.gmra.mrb[0].mxu0 %v8654
      %v8856 = vpop.f32.mrb[0].mxu0
      %v8857 = vadd.f32 %v8533, %v8856
      %v8858 = vpop.f32.mrb[0].mxu0
      %8859 = vmatprep.mubr.f32.mxu0 0.0
      %8860 = vmatmul.mubr.f32.gmra.mrb[0].mxu0 %v8657
      %v8861 = vpop.f32.mrb[0].mxu0
      %v8862 = vadd.f32 %v8538, %v8861
      %v8863 = vpop.f32.mrb[0].mxu0
      %8864 = vmatprep.mubr.f32.mxu0 0.0
      %8865 = vmatmul.mubr.f32.gmra.mrb[0].mxu0 %v8660
      %v8866 = vpop.f32.mrb[0].mxu0
      %v8867 = vadd.f32 %v8543, %v8866
      %v8868 = vpop.f32.mrb[0].mxu0
      %8869 = vmatprep.mubr.f32.mxu0 0.0
      %8870 = vmatmul.mubr.f32.gmra.mrb[0].mxu0 %v8663
      %v8871 = vpop.f32.mrb[0].mxu0
      %v8872 = vadd.f32 %v8548, %v8871
      %v8873 = vpop.f32.mrb[0].mxu0
      %8874 = vmatprep.mubr.f32.mxu0 0.0
      %8875 = vmatmul.mubr.f32.gmra.mrb[0].mxu0 %v8666
      %v8876 = vpop.f32.mrb[0].mxu0
      %v8877 = vadd.f32 %v8553, %v8876
      %v8878 = vpop.f32.mrb[0].mxu0
      %8879 = vmatprep.mubr.f32.mxu0 0.0
      %8880 = vmatmul.mubr.f32.gmra.mrb[0].mxu0 %v8669
      %v8881 = vpop.f32.mrb[0].mxu0
      %v8882 = vadd.f32 %v8558, %v8881
      %v8883 = vpop.f32.mrb[0].mxu0
      %8884 = vmatprep.mubr.f32.mxu0 0.0
      %8885 = vmatmul.mubr.f32.gmra.mrb[0].mxu0 %v8672
      %v8886 = vpop.f32.mrb[0].mxu0
      %v8887 = vadd.f32 %v8563, %v8886
      %v8888 = vpop.f32.mrb[0].mxu0
      %8889 = vmatprep.mubr.f32.mxu0 0.0
      %8890 = vmatmul.mubr.f32.gmra.mrb[0].mxu0 %v8675
      %v8891 = vpop.f32.mrb[0].mxu0
      %v8892 = vadd.f32 %v8568, %v8891
      %v8893 = vpop.f32.mrb[0].mxu0
      %8894 = vmatprep.mubr.f32.mxu0 0.0
      %8895 = vmatmul.mubr.f32.gmra.mrb[0].mxu0 %v8678
      %v8896 = vpop.f32.mrb[0].mxu0
      %v8897 = vadd.f32 %v8573, %v8896
      %v8898 = vpop.f32.mrb[0].mxu0
      %8899 = vmatprep.mubr.f32.mxu0 0.0
      %8900 = vmatmul.mubr.f32.gmra.mrb[0].mxu0 %v8681
      %v8901 = vpop.f32.mrb[0].mxu0
      %v8902 = vadd.f32 %v8578, %v8901
      %v8903 = vpop.f32.mrb[0].mxu0
      %8904 = vmatprep.mubr.f32.mxu0 0.0
      %8905 = vmatmul.mubr.f32.gmra.mrb[0].mxu0 %v8684
      %v8906 = vpop.f32.mrb[0].mxu0
      %v8907 = vadd.f32 %v8583, %v8906
      %v8908 = vpop.f32.mrb[0].mxu0
      %8909 = vmatprep.mubr.f32.mxu0 0.0
      %8910 = vmatmul.mubr.f32.gmra.mrb[0].mxu0 %v8687
      %v8911 = vpop.f32.mrb[0].mxu0
      %v8912 = vadd.f32 %v8588, %v8911
      %v8913 = vpop.f32.mrb[0].mxu0
      %8914 = vmatprep.mubr.f32.mxu0 0.0
      %8915 = vmatmul.mubr.f32.gmra.mrb[0].mxu0 %v8690
      %v8916 = vpop.f32.mrb[0].mxu0
      %v8917 = vadd.f32 %v8593, %v8916
      %v8918 = vpop.f32.mrb[0].mxu0
      %8919 = vdwg.mxu0
      %v8920 = vld [vmem:[#allocation2 + $0x9] sm:$0xff]
      %v8921 = vld [vmem:[#allocation2 + $0x11] sm:$0xff]
      %v8922 = vld [vmem:[#allocation2 + $0x29] sm:$0xff]
      %v8923 = vld [vmem:[#allocation2 + $0x31] sm:$0xff]
      %v8924 = vld [vmem:[#allocation2 + $0x49] sm:$0xff]
      %v8925 = vld [vmem:[#allocation2 + $0x51] sm:$0xff]
      %v8926 = vld [vmem:[#allocation2 + $0x69] sm:$0xff]
      %v8927 = vld [vmem:[#allocation2 + $0x71] sm:$0xff]
      %v8928 = vld [vmem:[#allocation2 + $0x89] sm:$0xff]
      %v8929 = vld [vmem:[#allocation2 + $0x91] sm:$0xff]
      %v8930 = vld [vmem:[#allocation2 + $0xa9] sm:$0xff]
      %v8931 = vld [vmem:[#allocation2 + $0xb1] sm:$0xff]
      %v8932 = vld [vmem:[#allocation2 + $0xc9] sm:$0xff]
      %v8933 = vld [vmem:[#allocation2 + $0xd1] sm:$0xff]
      %v8934 = vld [vmem:[#allocation2 + $0xe9] sm:$0xff]
      %v8935 = vld [vmem:[#allocation2 + $0xf1] sm:$0xff]
      %v8936 = vld [vmem:[#allocation2 + $0x109] sm:$0xff]
      %v8937 = vld [vmem:[#allocation2 + $0x111] sm:$0xff]
      %v8938 = vld [vmem:[#allocation2 + $0x129] sm:$0xff]
      %v8939 = vld [vmem:[#allocation2 + $0x131] sm:$0xff]
      %v8940 = vld [vmem:[#allocation2 + $0x149] sm:$0xff]
      %v8941 = vld [vmem:[#allocation2 + $0x151] sm:$0xff]
      %v8942 = vld [vmem:[#allocation2 + $0x169] sm:$0xff]
      %v8943 = vld [vmem:[#allocation2 + $0x171] sm:$0xff]
      %v8944 = vld [vmem:[#allocation2 + $0x189] sm:$0xff]
      %v8945 = vld [vmem:[#allocation2 + $0x191] sm:$0xff]
      %v8946 = vld [vmem:[#allocation2 + $0x1a9] sm:$0xff]
      %v8947 = vld [vmem:[#allocation2 + $0x1b1] sm:$0xff]
      %v8948 = vld [vmem:[#allocation2 + $0x1c9] sm:$0xff]
      %v8949 = vld [vmem:[#allocation2 + $0x1d1] sm:$0xff]
      %v8950 = vld [vmem:[#allocation2 + $0x1e9] sm:$0xff]
      %v8951 = vld [vmem:[#allocation2 + $0x1f1] sm:$0xff]
      %v8952 = vld [vmem:[%s7 + $0x8] sm:$0xf]
      %v8954 = vsel %vm380, %v8920, 0
      %v8957 = vsel %vm380, %v8921, 0
      %v8960 = vsel %vm380, %v8922, 0
      %v8963 = vsel %vm380, %v8923, 0
      %v8966 = vsel %vm380, %v8924, 0
      %v8969 = vsel %vm380, %v8925, 0
      %v8972 = vsel %vm380, %v8926, 0
      %v8975 = vsel %vm380, %v8927, 0
      %v8978 = vsel %vm380, %v8928, 0
      %v8981 = vsel %vm380, %v8929, 0
      %v8984 = vsel %vm380, %v8930, 0
      %v8987 = vsel %vm380, %v8931, 0
      %v8990 = vsel %vm380, %v8932, 0
      %v8993 = vsel %vm380, %v8933, 0
      %v8996 = vsel %vm380, %v8934, 0
      %v8999 = vsel %vm380, %v8935, 0
      %v9002 = vsel %vm380, %v8936, 0
      %v9005 = vsel %vm380, %v8937, 0
      %v9008 = vsel %vm380, %v8938, 0
      %v9011 = vsel %vm380, %v8939, 0
      %v9014 = vsel %vm380, %v8940, 0
      %v9017 = vsel %vm380, %v8941, 0
      %v9020 = vsel %vm380, %v8942, 0
      %v9023 = vsel %vm380, %v8943, 0
      %v9026 = vsel %vm380, %v8944, 0
      %v9029 = vsel %vm380, %v8945, 0
      %v9032 = vsel %vm380, %v8946, 0
      %v9035 = vsel %vm380, %v8947, 0
      %v9038 = vsel %vm380, %v8948, 0
      %v9041 = vsel %vm380, %v8949, 0
      %v9044 = vsel %vm380, %v8950, 0
      %v9047 = vsel %vm380, %v8951, 0
      %v9050 = vsel %vm980, %v8952, 0
      %9052 = vmatprep.subr.mxu0 0.0
      %9053 = vmatpush1.msra.mxu0 %v9050
      %9054 = vmatprep.subr.mxu0 0.0
      %9055 = vmatpush1.msra.mxu0 0.0
      %9056 = vmatprep.subr.mxu0 0.0
      %9057 = vmatpush1.msra.mxu0 0.0
      %9058 = vmatprep.subr.mxu0 0.0
      %9059 = vmatpush1.msra.mxu0 0.0
      %9060 = vmatprep.subr.mxu0 0.0
      %9061 = vmatpush1.msra.mxu0 0.0
      %9062 = vmatprep.subr.mxu0 0.0
      %9063 = vmatpush1.msra.mxu0 0.0
      %9064 = vmatprep.subr.mxu0 0.0
      %9065 = vmatpush1.msra.mxu0 0.0
      %9066 = vmatprep.subr.mxu0 0.0
      %9067 = vmatpush1.msra.mxu0 0.0
      %9068 = vmatprep.subr.mxu0 0.0
      %9069 = vmatpush1.msra.mxu0 0.0
      %9070 = vmatprep.subr.mxu0 0.0
      %9071 = vmatpush1.msra.mxu0 0.0
      %9072 = vmatprep.subr.mxu0 0.0
      %9073 = vmatpush1.msra.mxu0 0.0
      %9074 = vmatprep.subr.mxu0 0.0
      %9075 = vmatpush1.msra.mxu0 0.0
      %9076 = vmatprep.subr.mxu0 0.0
      %9077 = vmatpush1.msra.mxu0 0.0
      %9078 = vmatprep.subr.mxu0 0.0
      %9079 = vmatpush1.msra.mxu0 0.0
      %9080 = vmatprep.subr.mxu0 0.0
      %9081 = vmatpush1.msra.mxu0 0.0
      %9082 = vmatprep.subr.mxu0 0.0
      %9083 = vmatpush1.msra.mxu0 0.0
      %9084 = vmatprep.subr.mxu0 0.0
      %9085 = vmatpush1.msra.mxu0 0.0
      %9086 = vmatprep.subr.mxu0 0.0
      %9087 = vmatpush1.msra.mxu0 0.0
      %9088 = vmatprep.subr.mxu0 0.0
      %9089 = vmatpush1.msra.mxu0 0.0
      %9090 = vmatprep.subr.mxu0 0.0
      %9091 = vmatpush1.msra.mxu0 0.0
      %9092 = vmatprep.subr.mxu0 0.0
      %9093 = vmatpush1.msra.mxu0 0.0
      %9094 = vmatprep.subr.mxu0 0.0
      %9095 = vmatpush1.msra.mxu0 0.0
      %9096 = vmatprep.subr.mxu0 0.0
      %9097 = vmatpush1.msra.mxu0 0.0
      %9098 = vmatprep.subr.mxu0 0.0
      %9099 = vmatpush1.msra.mxu0 0.0
      %9100 = vmatprep.subr.mxu0 0.0
      %9101 = vmatpush1.msra.mxu0 0.0
      %9102 = vmatprep.subr.mxu0 0.0
      %9103 = vmatpush1.msra.mxu0 0.0
      %9104 = vmatprep.subr.mxu0 0.0
      %9105 = vmatpush1.msra.mxu0 0.0
      %9106 = vmatprep.subr.mxu0 0.0
      %9107 = vmatpush1.msra.mxu0 0.0
      %9108 = vmatprep.subr.mxu0 0.0
      %9109 = vmatpush1.msra.mxu0 0.0
      %9110 = vmatprep.subr.mxu0 0.0
      %9111 = vmatpush1.msra.mxu0 0.0
      %9112 = vmatprep.subr.mxu0 0.0
      %9113 = vmatpush1.msra.mxu0 0.0
      %9114 = vmatprep.subr.mxu0 0.0
      %9115 = vmatpush1.msra.mxu0 0.0
      %9116 = vmatprep.mubr.f32.mxu0 0.0
      %9117 = vmatmul.mubr.f32.gmra.mrb[0].mxu0 %v8954
      %v9118 = vpop.f32.mrb[0].mxu0
      %v9119 = vadd.f32 0.0, %v9118
      %v9120 = vpop.f32.mrb[0].mxu0
      %9121 = vmatprep.mubr.f32.mxu0 0.0
      %9122 = vmatmul.mubr.f32.gmra.mrb[0].mxu0 %v8957
      %v9123 = vpop.f32.mrb[0].mxu0
      %v9124 = vadd.f32 0.0, %v9123
      %v9125 = vpop.f32.mrb[0].mxu0
      %9126 = vmatprep.mubr.f32.mxu0 0.0
      %9127 = vmatmul.mubr.f32.gmra.mrb[0].mxu0 %v8960
      %v9128 = vpop.f32.mrb[0].mxu0
      %v9129 = vadd.f32 0.0, %v9128
      %v9130 = vpop.f32.mrb[0].mxu0
      %9131 = vmatprep.mubr.f32.mxu0 0.0
      %9132 = vmatmul.mubr.f32.gmra.mrb[0].mxu0 %v8963
      %v9133 = vpop.f32.mrb[0].mxu0
      %v9134 = vadd.f32 0.0, %v9133
      %v9135 = vpop.f32.mrb[0].mxu0
      %9136 = vmatprep.mubr.f32.mxu0 0.0
      %9137 = vmatmul.mubr.f32.gmra.mrb[0].mxu0 %v8966
      %v9138 = vpop.f32.mrb[0].mxu0
      %v9139 = vadd.f32 0.0, %v9138
      %v9140 = vpop.f32.mrb[0].mxu0
      %9141 = vmatprep.mubr.f32.mxu0 0.0
      %9142 = vmatmul.mubr.f32.gmra.mrb[0].mxu0 %v8969
      %v9143 = vpop.f32.mrb[0].mxu0
      %v9144 = vadd.f32 0.0, %v9143
      %v9145 = vpop.f32.mrb[0].mxu0
      %9146 = vmatprep.mubr.f32.mxu0 0.0
      %9147 = vmatmul.mubr.f32.gmra.mrb[0].mxu0 %v8972
      %v9148 = vpop.f32.mrb[0].mxu0
      %v9149 = vadd.f32 0.0, %v9148
      %v9150 = vpop.f32.mrb[0].mxu0
      %9151 = vmatprep.mubr.f32.mxu0 0.0
      %9152 = vmatmul.mubr.f32.gmra.mrb[0].mxu0 %v8975
      %v9153 = vpop.f32.mrb[0].mxu0
      %v9154 = vadd.f32 0.0, %v9153
      %v9155 = vpop.f32.mrb[0].mxu0
      %9156 = vmatprep.mubr.f32.mxu0 0.0
      %9157 = vmatmul.mubr.f32.gmra.mrb[0].mxu0 %v8978
      %v9158 = vpop.f32.mrb[0].mxu0
      %v9159 = vadd.f32 0.0, %v9158
      %v9160 = vpop.f32.mrb[0].mxu0
      %9161 = vmatprep.mubr.f32.mxu0 0.0
      %9162 = vmatmul.mubr.f32.gmra.mrb[0].mxu0 %v8981
      %v9163 = vpop.f32.mrb[0].mxu0
      %v9164 = vadd.f32 0.0, %v9163
      %v9165 = vpop.f32.mrb[0].mxu0
      %9166 = vmatprep.mubr.f32.mxu0 0.0
      %9167 = vmatmul.mubr.f32.gmra.mrb[0].mxu0 %v8984
      %v9168 = vpop.f32.mrb[0].mxu0
      %v9169 = vadd.f32 0.0, %v9168
      %v9170 = vpop.f32.mrb[0].mxu0
      %9171 = vmatprep.mubr.f32.mxu0 0.0
      %9172 = vmatmul.mubr.f32.gmra.mrb[0].mxu0 %v8987
      %v9173 = vpop.f32.mrb[0].mxu0
      %v9174 = vadd.f32 0.0, %v9173
      %v9175 = vpop.f32.mrb[0].mxu0
      %9176 = vmatprep.mubr.f32.mxu0 0.0
      %9177 = vmatmul.mubr.f32.gmra.mrb[0].mxu0 %v8990
      %v9178 = vpop.f32.mrb[0].mxu0
      %v9179 = vadd.f32 0.0, %v9178
      %v9180 = vpop.f32.mrb[0].mxu0
      %9181 = vmatprep.mubr.f32.mxu0 0.0
      %9182 = vmatmul.mubr.f32.gmra.mrb[0].mxu0 %v8993
      %v9183 = vpop.f32.mrb[0].mxu0
      %v9184 = vadd.f32 0.0, %v9183
      %v9185 = vpop.f32.mrb[0].mxu0
      %9186 = vmatprep.mubr.f32.mxu0 0.0
      %9187 = vmatmul.mubr.f32.gmra.mrb[0].mxu0 %v8996
      %v9188 = vpop.f32.mrb[0].mxu0
      %v9189 = vadd.f32 0.0, %v9188
      %v9190 = vpop.f32.mrb[0].mxu0
      %9191 = vmatprep.mubr.f32.mxu0 0.0
      %9192 = vmatmul.mubr.f32.gmra.mrb[0].mxu0 %v8999
      %v9193 = vpop.f32.mrb[0].mxu0
      %v9194 = vadd.f32 0.0, %v9193
      %v9195 = vpop.f32.mrb[0].mxu0
      %9196 = vmatprep.mubr.f32.mxu0 0.0
      %9197 = vmatmul.mubr.f32.gmra.mrb[0].mxu0 %v9002
      %v9198 = vpop.f32.mrb[0].mxu0
      %v9199 = vadd.f32 0.0, %v9198
      %v9200 = vpop.f32.mrb[0].mxu0
      %9201 = vmatprep.mubr.f32.mxu0 0.0
      %9202 = vmatmul.mubr.f32.gmra.mrb[0].mxu0 %v9005
      %v9203 = vpop.f32.mrb[0].mxu0
      %v9204 = vadd.f32 0.0, %v9203
      %v9205 = vpop.f32.mrb[0].mxu0
      %9206 = vmatprep.mubr.f32.mxu0 0.0
      %9207 = vmatmul.mubr.f32.gmra.mrb[0].mxu0 %v9008
      %v9208 = vpop.f32.mrb[0].mxu0
      %v9209 = vadd.f32 0.0, %v9208
      %v9210 = vpop.f32.mrb[0].mxu0
      %9211 = vmatprep.mubr.f32.mxu0 0.0
      %9212 = vmatmul.mubr.f32.gmra.mrb[0].mxu0 %v9011
      %v9213 = vpop.f32.mrb[0].mxu0
      %v9214 = vadd.f32 0.0, %v9213
      %v9215 = vpop.f32.mrb[0].mxu0
      %9216 = vmatprep.mubr.f32.mxu0 0.0
      %9217 = vmatmul.mubr.f32.gmra.mrb[0].mxu0 %v9014
      %v9218 = vpop.f32.mrb[0].mxu0
      %v9219 = vadd.f32 0.0, %v9218
      %v9220 = vpop.f32.mrb[0].mxu0
      %9221 = vmatprep.mubr.f32.mxu0 0.0
      %9222 = vmatmul.mubr.f32.gmra.mrb[0].mxu0 %v9017
      %v9223 = vpop.f32.mrb[0].mxu0
      %v9224 = vadd.f32 0.0, %v9223
      %v9225 = vpop.f32.mrb[0].mxu0
      %9226 = vmatprep.mubr.f32.mxu0 0.0
      %9227 = vmatmul.mubr.f32.gmra.mrb[0].mxu0 %v9020
      %v9228 = vpop.f32.mrb[0].mxu0
      %v9229 = vadd.f32 0.0, %v9228
      %v9230 = vpop.f32.mrb[0].mxu0
      %9231 = vmatprep.mubr.f32.mxu0 0.0
      %9232 = vmatmul.mubr.f32.gmra.mrb[0].mxu0 %v9023
      %v9233 = vpop.f32.mrb[0].mxu0
      %v9234 = vadd.f32 0.0, %v9233
      %v9235 = vpop.f32.mrb[0].mxu0
      %9236 = vmatprep.mubr.f32.mxu0 0.0
      %9237 = vmatmul.mubr.f32.gmra.mrb[0].mxu0 %v9026
      %v9238 = vpop.f32.mrb[0].mxu0
      %v9239 = vadd.f32 0.0, %v9238
      %v9240 = vpop.f32.mrb[0].mxu0
      %9241 = vmatprep.mubr.f32.mxu0 0.0
      %9242 = vmatmul.mubr.f32.gmra.mrb[0].mxu0 %v9029
      %v9243 = vpop.f32.mrb[0].mxu0
      %v9244 = vadd.f32 0.0, %v9243
      %v9245 = vpop.f32.mrb[0].mxu0
      %9246 = vmatprep.mubr.f32.mxu0 0.0
      %9247 = vmatmul.mubr.f32.gmra.mrb[0].mxu0 %v9032
      %v9248 = vpop.f32.mrb[0].mxu0
      %v9249 = vadd.f32 0.0, %v9248
      %v9250 = vpop.f32.mrb[0].mxu0
      %9251 = vmatprep.mubr.f32.mxu0 0.0
      %9252 = vmatmul.mubr.f32.gmra.mrb[0].mxu0 %v9035
      %v9253 = vpop.f32.mrb[0].mxu0
      %v9254 = vadd.f32 0.0, %v9253
      %v9255 = vpop.f32.mrb[0].mxu0
      %9256 = vmatprep.mubr.f32.mxu0 0.0
      %9257 = vmatmul.mubr.f32.gmra.mrb[0].mxu0 %v9038
      %v9258 = vpop.f32.mrb[0].mxu0
      %v9259 = vadd.f32 0.0, %v9258
      %v9260 = vpop.f32.mrb[0].mxu0
      %9261 = vmatprep.mubr.f32.mxu0 0.0
      %9262 = vmatmul.mubr.f32.gmra.mrb[0].mxu0 %v9041
      %v9263 = vpop.f32.mrb[0].mxu0
      %v9264 = vadd.f32 0.0, %v9263
      %v9265 = vpop.f32.mrb[0].mxu0
      %9266 = vmatprep.mubr.f32.mxu0 0.0
      %9267 = vmatmul.mubr.f32.gmra.mrb[0].mxu0 %v9044
      %v9268 = vpop.f32.mrb[0].mxu0
      %v9269 = vadd.f32 0.0, %v9268
      %v9270 = vpop.f32.mrb[0].mxu0
      %9271 = vmatprep.mubr.f32.mxu0 0.0
      %9272 = vmatmul.mubr.f32.gmra.mrb[0].mxu0 %v9047
      %v9273 = vpop.f32.mrb[0].mxu0
      %v9274 = vadd.f32 0.0, %v9273
      %v9275 = vpop.f32.mrb[0].mxu0
      %9276 = vdwg.mxu0
      %v9277 = vadd.f32 %v8762, %v9119
      %v9278 = vadd.f32 %v8767, %v9124
      %v9279 = vadd.f32 %v8772, %v9129
      %v9280 = vadd.f32 %v8777, %v9134
      %v9281 = vadd.f32 %v8782, %v9139
      %v9282 = vadd.f32 %v8787, %v9144
      %v9283 = vadd.f32 %v8792, %v9149
      %v9284 = vadd.f32 %v8797, %v9154
      %v9285 = vadd.f32 %v8802, %v9159
      %v9286 = vadd.f32 %v8807, %v9164
      %v9287 = vadd.f32 %v8812, %v9169
      %v9288 = vadd.f32 %v8817, %v9174
      %v9289 = vadd.f32 %v8822, %v9179
      %v9290 = vadd.f32 %v8827, %v9184
      %v9291 = vadd.f32 %v8832, %v9189
      %v9292 = vadd.f32 %v8837, %v9194
      %v9293 = vadd.f32 %v8842, %v9199
      %v9294 = vadd.f32 %v8847, %v9204
      %v9295 = vadd.f32 %v8852, %v9209
      %v9296 = vadd.f32 %v8857, %v9214
      %v9297 = vadd.f32 %v8862, %v9219
      %v9298 = vadd.f32 %v8867, %v9224
      %v9299 = vadd.f32 %v8872, %v9229
      %v9300 = vadd.f32 %v8877, %v9234
      %v9301 = vadd.f32 %v8882, %v9239
      %v9302 = vadd.f32 %v8887, %v9244
      %v9303 = vadd.f32 %v8892, %v9249
      %v9304 = vadd.f32 %v8897, %v9254
      %v9305 = vadd.f32 %v8902, %v9259
      %v9306 = vadd.f32 %v8907, %v9264
      %v9307 = vadd.f32 %v8912, %v9269
      %v9308 = vadd.f32 %v8917, %v9274
      %v9309 = vld [vmem:[%s390 + $0x7] sm:$0xff]
      %v9310 = vld [vmem:[%s390 + $0xf] sm:$0xff]
      %v9311 = vld [vmem:[%s390 + $0x27] sm:$0xff]
      %v9312 = vld [vmem:[%s390 + $0x2f] sm:$0xff]
      %v9313 = vld [vmem:[%s390 + $0x47] sm:$0xff]
      %v9314 = vld [vmem:[%s390 + $0x4f] sm:$0xff]
      %v9315 = vld [vmem:[%s390 + $0x67] sm:$0xff]
      %v9316 = vld [vmem:[%s390 + $0x6f] sm:$0xff]
      %v9317 = vld [vmem:[%s390 + $0x87] sm:$0xff]
      %v9318 = vld [vmem:[%s390 + $0x8f] sm:$0xff]
      %v9319 = vld [vmem:[%s390 + $0xa7] sm:$0xff]
      %v9320 = vld [vmem:[%s390 + $0xaf] sm:$0xff]
      %v9321 = vld [vmem:[%s390 + $0xc7] sm:$0xff]
      %v9322 = vld [vmem:[%s390 + $0xcf] sm:$0xff]
      %v9323 = vld [vmem:[%s390 + $0xe7] sm:$0xff]
      %v9324 = vld [vmem:[%s390 + $0xef] sm:$0xff]
      %v9325 = vld [vmem:[%s390 + $0x107] sm:$0xff]
      %v9326 = vld [vmem:[%s390 + $0x10f] sm:$0xff]
      %v9327 = vld [vmem:[%s390 + $0x127] sm:$0xff]
      %v9328 = vld [vmem:[%s390 + $0x12f] sm:$0xff]
      %v9329 = vld [vmem:[%s390 + $0x147] sm:$0xff]
      %v9330 = vld [vmem:[%s390 + $0x14f] sm:$0xff]
      %v9331 = vld [vmem:[%s390 + $0x167] sm:$0xff]
      %v9332 = vld [vmem:[%s390 + $0x16f] sm:$0xff]
      %v9333 = vld [vmem:[%s390 + $0x187] sm:$0xff]
      %v9334 = vld [vmem:[%s390 + $0x18f] sm:$0xff]
      %v9335 = vld [vmem:[%s390 + $0x1a7] sm:$0xff]
      %v9336 = vld [vmem:[%s390 + $0x1af] sm:$0xff]
      %v9337 = vld [vmem:[%s390 + $0x1c7] sm:$0xff]
      %v9338 = vld [vmem:[%s390 + $0x1cf] sm:$0xff]
      %v9339 = vld [vmem:[%s390 + $0x1e7] sm:$0xff]
      %v9340 = vld [vmem:[%s390 + $0x1ef] sm:$0xff]
      %v9341 = vld [vmem:[%s7 + $0xc] sm:$0xf]
      %v9343 = vsel %vm380, %v9309, 0
      %v9346 = vsel %vm380, %v9310, 0
      %v9349 = vsel %vm380, %v9311, 0
      %v9352 = vsel %vm380, %v9312, 0
      %v9355 = vsel %vm380, %v9313, 0
      %v9358 = vsel %vm380, %v9314, 0
      %v9361 = vsel %vm380, %v9315, 0
      %v9364 = vsel %vm380, %v9316, 0
      %v9367 = vsel %vm380, %v9317, 0
      %v9370 = vsel %vm380, %v9318, 0
      %v9373 = vsel %vm380, %v9319, 0
      %v9376 = vsel %vm380, %v9320, 0
      %v9379 = vsel %vm380, %v9321, 0
      %v9382 = vsel %vm380, %v9322, 0
      %v9385 = vsel %vm380, %v9323, 0
      %v9388 = vsel %vm380, %v9324, 0
      %v9391 = vsel %vm380, %v9325, 0
      %v9394 = vsel %vm380, %v9326, 0
      %v9397 = vsel %vm380, %v9327, 0
      %v9400 = vsel %vm380, %v9328, 0
      %v9403 = vsel %vm380, %v9329, 0
      %v9406 = vsel %vm380, %v9330, 0
      %v9409 = vsel %vm380, %v9331, 0
      %v9412 = vsel %vm380, %v9332, 0
      %v9415 = vsel %vm380, %v9333, 0
      %v9418 = vsel %vm380, %v9334, 0
      %v9421 = vsel %vm380, %v9335, 0
      %v9424 = vsel %vm380, %v9336, 0
      %v9427 = vsel %vm380, %v9337, 0
      %v9430 = vsel %vm380, %v9338, 0
      %v9433 = vsel %vm380, %v9339, 0
      %v9436 = vsel %vm380, %v9340, 0
      %v9439 = vsel %vm980, %v9341, 0
      %9441 = vmatprep.subr.mxu0 0.0
      %9442 = vmatpush1.msra.mxu0 %v9439
      %9443 = vmatprep.subr.mxu0 0.0
      %9444 = vmatpush1.msra.mxu0 0.0
      %9445 = vmatprep.subr.mxu0 0.0
      %9446 = vmatpush1.msra.mxu0 0.0
      %9447 = vmatprep.subr.mxu0 0.0
      %9448 = vmatpush1.msra.mxu0 0.0
      %9449 = vmatprep.subr.mxu0 0.0
      %9450 = vmatpush1.msra.mxu0 0.0
      %9451 = vmatprep.subr.mxu0 0.0
      %9452 = vmatpush1.msra.mxu0 0.0
      %9453 = vmatprep.subr.mxu0 0.0
      %9454 = vmatpush1.msra.mxu0 0.0
      %9455 = vmatprep.subr.mxu0 0.0
      %9456 = vmatpush1.msra.mxu0 0.0
      %9457 = vmatprep.subr.mxu0 0.0
      %9458 = vmatpush1.msra.mxu0 0.0
      %9459 = vmatprep.subr.mxu0 0.0
      %9460 = vmatpush1.msra.mxu0 0.0
      %9461 = vmatprep.subr.mxu0 0.0
      %9462 = vmatpush1.msra.mxu0 0.0
      %9463 = vmatprep.subr.mxu0 0.0
      %9464 = vmatpush1.msra.mxu0 0.0
      %9465 = vmatprep.subr.mxu0 0.0
      %9466 = vmatpush1.msra.mxu0 0.0
      %9467 = vmatprep.subr.mxu0 0.0
      %9468 = vmatpush1.msra.mxu0 0.0
      %9469 = vmatprep.subr.mxu0 0.0
      %9470 = vmatpush1.msra.mxu0 0.0
      %9471 = vmatprep.subr.mxu0 0.0
      %9472 = vmatpush1.msra.mxu0 0.0
      %9473 = vmatprep.subr.mxu0 0.0
      %9474 = vmatpush1.msra.mxu0 0.0
      %9475 = vmatprep.subr.mxu0 0.0
      %9476 = vmatpush1.msra.mxu0 0.0
      %9477 = vmatprep.subr.mxu0 0.0
      %9478 = vmatpush1.msra.mxu0 0.0
      %9479 = vmatprep.subr.mxu0 0.0
      %9480 = vmatpush1.msra.mxu0 0.0
      %9481 = vmatprep.subr.mxu0 0.0
      %9482 = vmatpush1.msra.mxu0 0.0
      %9483 = vmatprep.subr.mxu0 0.0
      %9484 = vmatpush1.msra.mxu0 0.0
      %9485 = vmatprep.subr.mxu0 0.0
      %9486 = vmatpush1.msra.mxu0 0.0
      %9487 = vmatprep.subr.mxu0 0.0
      %9488 = vmatpush1.msra.mxu0 0.0
      %9489 = vmatprep.subr.mxu0 0.0
      %9490 = vmatpush1.msra.mxu0 0.0
      %9491 = vmatprep.subr.mxu0 0.0
      %9492 = vmatpush1.msra.mxu0 0.0
      %9493 = vmatprep.subr.mxu0 0.0
      %9494 = vmatpush1.msra.mxu0 0.0
      %9495 = vmatprep.subr.mxu0 0.0
      %9496 = vmatpush1.msra.mxu0 0.0
      %9497 = vmatprep.subr.mxu0 0.0
      %9498 = vmatpush1.msra.mxu0 0.0
      %9499 = vmatprep.subr.mxu0 0.0
      %9500 = vmatpush1.msra.mxu0 0.0
      %9501 = vmatprep.subr.mxu0 0.0
      %9502 = vmatpush1.msra.mxu0 0.0
      %9503 = vmatprep.subr.mxu0 0.0
      %9504 = vmatpush1.msra.mxu0 0.0
      %9505 = vmatprep.mubr.f32.mxu0 0.0
      %9506 = vmatmul.mubr.f32.gmra.mrb[0].mxu0 %v9343
      %v9507 = vpop.f32.mrb[0].mxu0
      %v9508 = vadd.f32 0.0, %v9507
      %v9509 = vpop.f32.mrb[0].mxu0
      %9510 = vmatprep.mubr.f32.mxu0 0.0
      %9511 = vmatmul.mubr.f32.gmra.mrb[0].mxu0 %v9346
      %v9512 = vpop.f32.mrb[0].mxu0
      %v9513 = vadd.f32 0.0, %v9512
      %v9514 = vpop.f32.mrb[0].mxu0
      %9515 = vmatprep.mubr.f32.mxu0 0.0
      %9516 = vmatmul.mubr.f32.gmra.mrb[0].mxu0 %v9349
      %v9517 = vpop.f32.mrb[0].mxu0
      %v9518 = vadd.f32 0.0, %v9517
      %v9519 = vpop.f32.mrb[0].mxu0
      %9520 = vmatprep.mubr.f32.mxu0 0.0
      %9521 = vmatmul.mubr.f32.gmra.mrb[0].mxu0 %v9352
      %v9522 = vpop.f32.mrb[0].mxu0
      %v9523 = vadd.f32 0.0, %v9522
      %v9524 = vpop.f32.mrb[0].mxu0
      %9525 = vmatprep.mubr.f32.mxu0 0.0
      %9526 = vmatmul.mubr.f32.gmra.mrb[0].mxu0 %v9355
      %v9527 = vpop.f32.mrb[0].mxu0
      %v9528 = vadd.f32 0.0, %v9527
      %v9529 = vpop.f32.mrb[0].mxu0
      %9530 = vmatprep.mubr.f32.mxu0 0.0
      %9531 = vmatmul.mubr.f32.gmra.mrb[0].mxu0 %v9358
      %v9532 = vpop.f32.mrb[0].mxu0
      %v9533 = vadd.f32 0.0, %v9532
      %v9534 = vpop.f32.mrb[0].mxu0
      %9535 = vmatprep.mubr.f32.mxu0 0.0
      %9536 = vmatmul.mubr.f32.gmra.mrb[0].mxu0 %v9361
      %v9537 = vpop.f32.mrb[0].mxu0
      %v9538 = vadd.f32 0.0, %v9537
      %v9539 = vpop.f32.mrb[0].mxu0
      %9540 = vmatprep.mubr.f32.mxu0 0.0
      %9541 = vmatmul.mubr.f32.gmra.mrb[0].mxu0 %v9364
      %v9542 = vpop.f32.mrb[0].mxu0
      %v9543 = vadd.f32 0.0, %v9542
      %v9544 = vpop.f32.mrb[0].mxu0
      %9545 = vmatprep.mubr.f32.mxu0 0.0
      %9546 = vmatmul.mubr.f32.gmra.mrb[0].mxu0 %v9367
      %v9547 = vpop.f32.mrb[0].mxu0
      %v9548 = vadd.f32 0.0, %v9547
      %v9549 = vpop.f32.mrb[0].mxu0
      %9550 = vmatprep.mubr.f32.mxu0 0.0
      %9551 = vmatmul.mubr.f32.gmra.mrb[0].mxu0 %v9370
      %v9552 = vpop.f32.mrb[0].mxu0
      %v9553 = vadd.f32 0.0, %v9552
      %v9554 = vpop.f32.mrb[0].mxu0
      %9555 = vmatprep.mubr.f32.mxu0 0.0
      %9556 = vmatmul.mubr.f32.gmra.mrb[0].mxu0 %v9373
      %v9557 = vpop.f32.mrb[0].mxu0
      %v9558 = vadd.f32 0.0, %v9557
      %v9559 = vpop.f32.mrb[0].mxu0
      %9560 = vmatprep.mubr.f32.mxu0 0.0
      %9561 = vmatmul.mubr.f32.gmra.mrb[0].mxu0 %v9376
      %v9562 = vpop.f32.mrb[0].mxu0
      %v9563 = vadd.f32 0.0, %v9562
      %v9564 = vpop.f32.mrb[0].mxu0
      %9565 = vmatprep.mubr.f32.mxu0 0.0
      %9566 = vmatmul.mubr.f32.gmra.mrb[0].mxu0 %v9379
      %v9567 = vpop.f32.mrb[0].mxu0
      %v9568 = vadd.f32 0.0, %v9567
      %v9569 = vpop.f32.mrb[0].mxu0
      %9570 = vmatprep.mubr.f32.mxu0 0.0
      %9571 = vmatmul.mubr.f32.gmra.mrb[0].mxu0 %v9382
      %v9572 = vpop.f32.mrb[0].mxu0
      %v9573 = vadd.f32 0.0, %v9572
      %v9574 = vpop.f32.mrb[0].mxu0
      %9575 = vmatprep.mubr.f32.mxu0 0.0
      %9576 = vmatmul.mubr.f32.gmra.mrb[0].mxu0 %v9385
      %v9577 = vpop.f32.mrb[0].mxu0
      %v9578 = vadd.f32 0.0, %v9577
      %v9579 = vpop.f32.mrb[0].mxu0
      %9580 = vmatprep.mubr.f32.mxu0 0.0
      %9581 = vmatmul.mubr.f32.gmra.mrb[0].mxu0 %v9388
      %v9582 = vpop.f32.mrb[0].mxu0
      %v9583 = vadd.f32 0.0, %v9582
      %v9584 = vpop.f32.mrb[0].mxu0
      %9585 = vmatprep.mubr.f32.mxu0 0.0
      %9586 = vmatmul.mubr.f32.gmra.mrb[0].mxu0 %v9391
      %v9587 = vpop.f32.mrb[0].mxu0
      %v9588 = vadd.f32 0.0, %v9587
      %v9589 = vpop.f32.mrb[0].mxu0
      %9590 = vmatprep.mubr.f32.mxu0 0.0
      %9591 = vmatmul.mubr.f32.gmra.mrb[0].mxu0 %v9394
      %v9592 = vpop.f32.mrb[0].mxu0
      %v9593 = vadd.f32 0.0, %v9592
      %v9594 = vpop.f32.mrb[0].mxu0
      %9595 = vmatprep.mubr.f32.mxu0 0.0
      %9596 = vmatmul.mubr.f32.gmra.mrb[0].mxu0 %v9397
      %v9597 = vpop.f32.mrb[0].mxu0
      %v9598 = vadd.f32 0.0, %v9597
      %v9599 = vpop.f32.mrb[0].mxu0
      %9600 = vmatprep.mubr.f32.mxu0 0.0
      %9601 = vmatmul.mubr.f32.gmra.mrb[0].mxu0 %v9400
      %v9602 = vpop.f32.mrb[0].mxu0
      %v9603 = vadd.f32 0.0, %v9602
      %v9604 = vpop.f32.mrb[0].mxu0
      %9605 = vmatprep.mubr.f32.mxu0 0.0
      %9606 = vmatmul.mubr.f32.gmra.mrb[0].mxu0 %v9403
      %v9607 = vpop.f32.mrb[0].mxu0
      %v9608 = vadd.f32 0.0, %v9607
      %v9609 = vpop.f32.mrb[0].mxu0
      %9610 = vmatprep.mubr.f32.mxu0 0.0
      %9611 = vmatmul.mubr.f32.gmra.mrb[0].mxu0 %v9406
      %v9612 = vpop.f32.mrb[0].mxu0
      %v9613 = vadd.f32 0.0, %v9612
      %v9614 = vpop.f32.mrb[0].mxu0
      %9615 = vmatprep.mubr.f32.mxu0 0.0
      %9616 = vmatmul.mubr.f32.gmra.mrb[0].mxu0 %v9409
      %v9617 = vpop.f32.mrb[0].mxu0
      %v9618 = vadd.f32 0.0, %v9617
      %v9619 = vpop.f32.mrb[0].mxu0
      %9620 = vmatprep.mubr.f32.mxu0 0.0
      %9621 = vmatmul.mubr.f32.gmra.mrb[0].mxu0 %v9412
      %v9622 = vpop.f32.mrb[0].mxu0
      %v9623 = vadd.f32 0.0, %v9622
      %v9624 = vpop.f32.mrb[0].mxu0
      %9625 = vmatprep.mubr.f32.mxu0 0.0
      %9626 = vmatmul.mubr.f32.gmra.mrb[0].mxu0 %v9415
      %v9627 = vpop.f32.mrb[0].mxu0
      %v9628 = vadd.f32 0.0, %v9627
      %v9629 = vpop.f32.mrb[0].mxu0
      %9630 = vmatprep.mubr.f32.mxu0 0.0
      %9631 = vmatmul.mubr.f32.gmra.mrb[0].mxu0 %v9418
      %v9632 = vpop.f32.mrb[0].mxu0
      %v9633 = vadd.f32 0.0, %v9632
      %v9634 = vpop.f32.mrb[0].mxu0
      %9635 = vmatprep.mubr.f32.mxu0 0.0
      %9636 = vmatmul.mubr.f32.gmra.mrb[0].mxu0 %v9421
      %v9637 = vpop.f32.mrb[0].mxu0
      %v9638 = vadd.f32 0.0, %v9637
      %v9639 = vpop.f32.mrb[0].mxu0
      %9640 = vmatprep.mubr.f32.mxu0 0.0
      %9641 = vmatmul.mubr.f32.gmra.mrb[0].mxu0 %v9424
      %v9642 = vpop.f32.mrb[0].mxu0
      %v9643 = vadd.f32 0.0, %v9642
      %v9644 = vpop.f32.mrb[0].mxu0
      %9645 = vmatprep.mubr.f32.mxu0 0.0
      %9646 = vmatmul.mubr.f32.gmra.mrb[0].mxu0 %v9427
      %v9647 = vpop.f32.mrb[0].mxu0
      %v9648 = vadd.f32 0.0, %v9647
      %v9649 = vpop.f32.mrb[0].mxu0
      %9650 = vmatprep.mubr.f32.mxu0 0.0
      %9651 = vmatmul.mubr.f32.gmra.mrb[0].mxu0 %v9430
      %v9652 = vpop.f32.mrb[0].mxu0
      %v9653 = vadd.f32 0.0, %v9652
      %v9654 = vpop.f32.mrb[0].mxu0
      %9655 = vmatprep.mubr.f32.mxu0 0.0
      %9656 = vmatmul.mubr.f32.gmra.mrb[0].mxu0 %v9433
      %v9657 = vpop.f32.mrb[0].mxu0
      %v9658 = vadd.f32 0.0, %v9657
      %v9659 = vpop.f32.mrb[0].mxu0
      %9660 = vmatprep.mubr.f32.mxu0 0.0
      %9661 = vmatmul.mubr.f32.gmra.mrb[0].mxu0 %v9436
      %v9662 = vpop.f32.mrb[0].mxu0
      %v9663 = vadd.f32 0.0, %v9662
      %v9664 = vpop.f32.mrb[0].mxu0
      %9665 = vdwg.mxu0
      %v9666 = vadd.f32 %v9277, %v9508
      %v9667 = vadd.f32 %v9278, %v9513
      %v9668 = vadd.f32 %v9279, %v9518
      %v9669 = vadd.f32 %v9280, %v9523
      %v9670 = vadd.f32 %v9281, %v9528
      %v9671 = vadd.f32 %v9282, %v9533
      %v9672 = vadd.f32 %v9283, %v9538
      %v9673 = vadd.f32 %v9284, %v9543
      %v9674 = vadd.f32 %v9285, %v9548
      %v9675 = vadd.f32 %v9286, %v9553
      %v9676 = vadd.f32 %v9287, %v9558
      %v9677 = vadd.f32 %v9288, %v9563
      %v9678 = vadd.f32 %v9289, %v9568
      %v9679 = vadd.f32 %v9290, %v9573
      %v9680 = vadd.f32 %v9291, %v9578
      %v9681 = vadd.f32 %v9292, %v9583
      %v9682 = vadd.f32 %v9293, %v9588
      %v9683 = vadd.f32 %v9294, %v9593
      %v9684 = vadd.f32 %v9295, %v9598
      %v9685 = vadd.f32 %v9296, %v9603
      %v9686 = vadd.f32 %v9297, %v9608
      %v9687 = vadd.f32 %v9298, %v9613
      %v9688 = vadd.f32 %v9299, %v9618
      %v9689 = vadd.f32 %v9300, %v9623
      %v9690 = vadd.f32 %v9301, %v9628
      %v9691 = vadd.f32 %v9302, %v9633
      %v9692 = vadd.f32 %v9303, %v9638
      %v9693 = vadd.f32 %v9304, %v9643
      %v9694 = vadd.f32 %v9305, %v9648
      %v9695 = vadd.f32 %v9306, %v9653
      %v9696 = vadd.f32 %v9307, %v9658
      %v9697 = vadd.f32 %v9308, %v9663
      %v9698 = vld [vmem:[%s390 + $0x8] sm:$0xff]
      %v9699 = vld [vmem:[%s390 + $0x10] sm:$0xff]
      %v9700 = vld [vmem:[%s390 + $0x28] sm:$0xff]
      %v9701 = vld [vmem:[%s390 + $0x30] sm:$0xff]
      %v9702 = vld [vmem:[%s390 + $0x48] sm:$0xff]
      %v9703 = vld [vmem:[%s390 + $0x50] sm:$0xff]
      %v9704 = vld [vmem:[%s390 + $0x68] sm:$0xff]
      %v9705 = vld [vmem:[%s390 + $0x70] sm:$0xff]
      %v9706 = vld [vmem:[%s390 + $0x88] sm:$0xff]
      %v9707 = vld [vmem:[%s390 + $0x90] sm:$0xff]
      %v9708 = vld [vmem:[%s390 + $0xa8] sm:$0xff]
      %v9709 = vld [vmem:[%s390 + $0xb0] sm:$0xff]
      %v9710 = vld [vmem:[%s390 + $0xc8] sm:$0xff]
      %v9711 = vld [vmem:[%s390 + $0xd0] sm:$0xff]
      %v9712 = vld [vmem:[%s390 + $0xe8] sm:$0xff]
      %v9713 = vld [vmem:[%s390 + $0xf0] sm:$0xff]
      %v9714 = vld [vmem:[%s390 + $0x108] sm:$0xff]
      %v9715 = vld [vmem:[%s390 + $0x110] sm:$0xff]
      %v9716 = vld [vmem:[%s390 + $0x128] sm:$0xff]
      %v9717 = vld [vmem:[%s390 + $0x130] sm:$0xff]
      %v9718 = vld [vmem:[%s390 + $0x148] sm:$0xff]
      %v9719 = vld [vmem:[%s390 + $0x150] sm:$0xff]
      %v9720 = vld [vmem:[%s390 + $0x168] sm:$0xff]
      %v9721 = vld [vmem:[%s390 + $0x170] sm:$0xff]
      %v9722 = vld [vmem:[%s390 + $0x188] sm:$0xff]
      %v9723 = vld [vmem:[%s390 + $0x190] sm:$0xff]
      %v9724 = vld [vmem:[%s390 + $0x1a8] sm:$0xff]
      %v9725 = vld [vmem:[%s390 + $0x1b0] sm:$0xff]
      %v9726 = vld [vmem:[%s390 + $0x1c8] sm:$0xff]
      %v9727 = vld [vmem:[%s390 + $0x1d0] sm:$0xff]
      %v9728 = vld [vmem:[%s390 + $0x1e8] sm:$0xff]
      %v9729 = vld [vmem:[%s390 + $0x1f0] sm:$0xff]
      %v9730 = vld [vmem:[%s7 + $0x10] sm:$0xf]
      %v9732 = vsel %vm380, %v9698, 0
      %v9735 = vsel %vm380, %v9699, 0
      %v9738 = vsel %vm380, %v9700, 0
      %v9741 = vsel %vm380, %v9701, 0
      %v9744 = vsel %vm380, %v9702, 0
      %v9747 = vsel %vm380, %v9703, 0
      %v9750 = vsel %vm380, %v9704, 0
      %v9753 = vsel %vm380, %v9705, 0
      %v9756 = vsel %vm380, %v9706, 0
      %v9759 = vsel %vm380, %v9707, 0
      %v9762 = vsel %vm380, %v9708, 0
      %v9765 = vsel %vm380, %v9709, 0
      %v9768 = vsel %vm380, %v9710, 0
      %v9771 = vsel %vm380, %v9711, 0
      %v9774 = vsel %vm380, %v9712, 0
      %v9777 = vsel %vm380, %v9713, 0
      %v9780 = vsel %vm380, %v9714, 0
      %v9783 = vsel %vm380, %v9715, 0
      %v9786 = vsel %vm380, %v9716, 0
      %v9789 = vsel %vm380, %v9717, 0
      %v9792 = vsel %vm380, %v9718, 0
      %v9795 = vsel %vm380, %v9719, 0
      %v9798 = vsel %vm380, %v9720, 0
      %v9801 = vsel %vm380, %v9721, 0
      %v9804 = vsel %vm380, %v9722, 0
      %v9807 = vsel %vm380, %v9723, 0
      %v9810 = vsel %vm380, %v9724, 0
      %v9813 = vsel %vm380, %v9725, 0
      %v9816 = vsel %vm380, %v9726, 0
      %v9819 = vsel %vm380, %v9727, 0
      %v9822 = vsel %vm380, %v9728, 0
      %v9825 = vsel %vm380, %v9729, 0
      %v9828 = vsel %vm980, %v9730, 0
      %9830 = vmatprep.subr.mxu0 0.0
      %9831 = vmatpush1.msra.mxu0 %v9828
      %9832 = vmatprep.subr.mxu0 0.0
      %9833 = vmatpush1.msra.mxu0 0.0
      %9834 = vmatprep.subr.mxu0 0.0
      %9835 = vmatpush1.msra.mxu0 0.0
      %9836 = vmatprep.subr.mxu0 0.0
      %9837 = vmatpush1.msra.mxu0 0.0
      %9838 = vmatprep.subr.mxu0 0.0
      %9839 = vmatpush1.msra.mxu0 0.0
      %9840 = vmatprep.subr.mxu0 0.0
      %9841 = vmatpush1.msra.mxu0 0.0
      %9842 = vmatprep.subr.mxu0 0.0
      %9843 = vmatpush1.msra.mxu0 0.0
      %9844 = vmatprep.subr.mxu0 0.0
      %9845 = vmatpush1.msra.mxu0 0.0
      %9846 = vmatprep.subr.mxu0 0.0
      %9847 = vmatpush1.msra.mxu0 0.0
      %9848 = vmatprep.subr.mxu0 0.0
      %9849 = vmatpush1.msra.mxu0 0.0
      %9850 = vmatprep.subr.mxu0 0.0
      %9851 = vmatpush1.msra.mxu0 0.0
      %9852 = vmatprep.subr.mxu0 0.0
      %9853 = vmatpush1.msra.mxu0 0.0
      %9854 = vmatprep.subr.mxu0 0.0
      %9855 = vmatpush1.msra.mxu0 0.0
      %9856 = vmatprep.subr.mxu0 0.0
      %9857 = vmatpush1.msra.mxu0 0.0
      %9858 = vmatprep.subr.mxu0 0.0
      %9859 = vmatpush1.msra.mxu0 0.0
      %9860 = vmatprep.subr.mxu0 0.0
      %9861 = vmatpush1.msra.mxu0 0.0
      %9862 = vmatprep.subr.mxu0 0.0
      %9863 = vmatpush1.msra.mxu0 0.0
      %9864 = vmatprep.subr.mxu0 0.0
      %9865 = vmatpush1.msra.mxu0 0.0
      %9866 = vmatprep.subr.mxu0 0.0
      %9867 = vmatpush1.msra.mxu0 0.0
      %9868 = vmatprep.subr.mxu0 0.0
      %9869 = vmatpush1.msra.mxu0 0.0
      %9870 = vmatprep.subr.mxu0 0.0
      %9871 = vmatpush1.msra.mxu0 0.0
      %9872 = vmatprep.subr.mxu0 0.0
      %9873 = vmatpush1.msra.mxu0 0.0
      %9874 = vmatprep.subr.mxu0 0.0
      %9875 = vmatpush1.msra.mxu0 0.0
      %9876 = vmatprep.subr.mxu0 0.0
      %9877 = vmatpush1.msra.mxu0 0.0
      %9878 = vmatprep.subr.mxu0 0.0
      %9879 = vmatpush1.msra.mxu0 0.0
      %9880 = vmatprep.subr.mxu0 0.0
      %9881 = vmatpush1.msra.mxu0 0.0
      %9882 = vmatprep.subr.mxu0 0.0
      %9883 = vmatpush1.msra.mxu0 0.0
      %9884 = vmatprep.subr.mxu0 0.0
      %9885 = vmatpush1.msra.mxu0 0.0
      %9886 = vmatprep.subr.mxu0 0.0
      %9887 = vmatpush1.msra.mxu0 0.0
      %9888 = vmatprep.subr.mxu0 0.0
      %9889 = vmatpush1.msra.mxu0 0.0
      %9890 = vmatprep.subr.mxu0 0.0
      %9891 = vmatpush1.msra.mxu0 0.0
      %9892 = vmatprep.subr.mxu0 0.0
      %9893 = vmatpush1.msra.mxu0 0.0
      %9894 = vmatprep.mubr.f32.mxu0 0.0
      %9895 = vmatmul.mubr.f32.gmra.mrb[0].mxu0 %v9732
      %v9896 = vpop.f32.mrb[0].mxu0
      %v9897 = vadd.f32 0.0, %v9896
      %v9898 = vpop.f32.mrb[0].mxu0
      %9899 = vmatprep.mubr.f32.mxu0 0.0
      %9900 = vmatmul.mubr.f32.gmra.mrb[0].mxu0 %v9735
      %v9901 = vpop.f32.mrb[0].mxu0
      %v9902 = vadd.f32 0.0, %v9901
      %v9903 = vpop.f32.mrb[0].mxu0
      %9904 = vmatprep.mubr.f32.mxu0 0.0
      %9905 = vmatmul.mubr.f32.gmra.mrb[0].mxu0 %v9738
      %v9906 = vpop.f32.mrb[0].mxu0
      %v9907 = vadd.f32 0.0, %v9906
      %v9908 = vpop.f32.mrb[0].mxu0
      %9909 = vmatprep.mubr.f32.mxu0 0.0
      %9910 = vmatmul.mubr.f32.gmra.mrb[0].mxu0 %v9741
      %v9911 = vpop.f32.mrb[0].mxu0
      %v9912 = vadd.f32 0.0, %v9911
      %v9913 = vpop.f32.mrb[0].mxu0
      %9914 = vmatprep.mubr.f32.mxu0 0.0
      %9915 = vmatmul.mubr.f32.gmra.mrb[0].mxu0 %v9744
      %v9916 = vpop.f32.mrb[0].mxu0
      %v9917 = vadd.f32 0.0, %v9916
      %v9918 = vpop.f32.mrb[0].mxu0
      %9919 = vmatprep.mubr.f32.mxu0 0.0
      %9920 = vmatmul.mubr.f32.gmra.mrb[0].mxu0 %v9747
      %v9921 = vpop.f32.mrb[0].mxu0
      %v9922 = vadd.f32 0.0, %v9921
      %v9923 = vpop.f32.mrb[0].mxu0
      %9924 = vmatprep.mubr.f32.mxu0 0.0
      %9925 = vmatmul.mubr.f32.gmra.mrb[0].mxu0 %v9750
      %v9926 = vpop.f32.mrb[0].mxu0
      %v9927 = vadd.f32 0.0, %v9926
      %v9928 = vpop.f32.mrb[0].mxu0
      %9929 = vmatprep.mubr.f32.mxu0 0.0
      %9930 = vmatmul.mubr.f32.gmra.mrb[0].mxu0 %v9753
      %v9931 = vpop.f32.mrb[0].mxu0
      %v9932 = vadd.f32 0.0, %v9931
      %v9933 = vpop.f32.mrb[0].mxu0
      %9934 = vmatprep.mubr.f32.mxu0 0.0
      %9935 = vmatmul.mubr.f32.gmra.mrb[0].mxu0 %v9756
      %v9936 = vpop.f32.mrb[0].mxu0
      %v9937 = vadd.f32 0.0, %v9936
      %v9938 = vpop.f32.mrb[0].mxu0
      %9939 = vmatprep.mubr.f32.mxu0 0.0
      %9940 = vmatmul.mubr.f32.gmra.mrb[0].mxu0 %v9759
      %v9941 = vpop.f32.mrb[0].mxu0
      %v9942 = vadd.f32 0.0, %v9941
      %v9943 = vpop.f32.mrb[0].mxu0
      %9944 = vmatprep.mubr.f32.mxu0 0.0
      %9945 = vmatmul.mubr.f32.gmra.mrb[0].mxu0 %v9762
      %v9946 = vpop.f32.mrb[0].mxu0
      %v9947 = vadd.f32 0.0, %v9946
      %v9948 = vpop.f32.mrb[0].mxu0
      %9949 = vmatprep.mubr.f32.mxu0 0.0
      %9950 = vmatmul.mubr.f32.gmra.mrb[0].mxu0 %v9765
      %v9951 = vpop.f32.mrb[0].mxu0
      %v9952 = vadd.f32 0.0, %v9951
      %v9953 = vpop.f32.mrb[0].mxu0
      %9954 = vmatprep.mubr.f32.mxu0 0.0
      %9955 = vmatmul.mubr.f32.gmra.mrb[0].mxu0 %v9768
      %v9956 = vpop.f32.mrb[0].mxu0
      %v9957 = vadd.f32 0.0, %v9956
      %v9958 = vpop.f32.mrb[0].mxu0
      %9959 = vmatprep.mubr.f32.mxu0 0.0
      %9960 = vmatmul.mubr.f32.gmra.mrb[0].mxu0 %v9771
      %v9961 = vpop.f32.mrb[0].mxu0
      %v9962 = vadd.f32 0.0, %v9961
      %v9963 = vpop.f32.mrb[0].mxu0
      %9964 = vmatprep.mubr.f32.mxu0 0.0
      %9965 = vmatmul.mubr.f32.gmra.mrb[0].mxu0 %v9774
      %v9966 = vpop.f32.mrb[0].mxu0
      %v9967 = vadd.f32 0.0, %v9966
      %v9968 = vpop.f32.mrb[0].mxu0
      %9969 = vmatprep.mubr.f32.mxu0 0.0
      %9970 = vmatmul.mubr.f32.gmra.mrb[0].mxu0 %v9777
      %v9971 = vpop.f32.mrb[0].mxu0
      %v9972 = vadd.f32 0.0, %v9971
      %v9973 = vpop.f32.mrb[0].mxu0
      %9974 = vmatprep.mubr.f32.mxu0 0.0
      %9975 = vmatmul.mubr.f32.gmra.mrb[0].mxu0 %v9780
      %v9976 = vpop.f32.mrb[0].mxu0
      %v9977 = vadd.f32 0.0, %v9976
      %v9978 = vpop.f32.mrb[0].mxu0
      %9979 = vmatprep.mubr.f32.mxu0 0.0
      %9980 = vmatmul.mubr.f32.gmra.mrb[0].mxu0 %v9783
      %v9981 = vpop.f32.mrb[0].mxu0
      %v9982 = vadd.f32 0.0, %v9981
      %v9983 = vpop.f32.mrb[0].mxu0
      %9984 = vmatprep.mubr.f32.mxu0 0.0
      %9985 = vmatmul.mubr.f32.gmra.mrb[0].mxu0 %v9786
      %v9986 = vpop.f32.mrb[0].mxu0
      %v9987 = vadd.f32 0.0, %v9986
      %v9988 = vpop.f32.mrb[0].mxu0
      %9989 = vmatprep.mubr.f32.mxu0 0.0
      %9990 = vmatmul.mubr.f32.gmra.mrb[0].mxu0 %v9789
      %v9991 = vpop.f32.mrb[0].mxu0
      %v9992 = vadd.f32 0.0, %v9991
      %v9993 = vpop.f32.mrb[0].mxu0
      %9994 = vmatprep.mubr.f32.mxu0 0.0
      %9995 = vmatmul.mubr.f32.gmra.mrb[0].mxu0 %v9792
      %v9996 = vpop.f32.mrb[0].mxu0
      %v9997 = vadd.f32 0.0, %v9996
      %v9998 = vpop.f32.mrb[0].mxu0
      %9999 = vmatprep.mubr.f32.mxu0 0.0
      %10000 = vmatmul.mubr.f32.gmra.mrb[0].mxu0 %v9795
      %v10001 = vpop.f32.mrb[0].mxu0
      %v10002 = vadd.f32 0.0, %v10001
      %v10003 = vpop.f32.mrb[0].mxu0
      %10004 = vmatprep.mubr.f32.mxu0 0.0
      %10005 = vmatmul.mubr.f32.gmra.mrb[0].mxu0 %v9798
      %v10006 = vpop.f32.mrb[0].mxu0
      %v10007 = vadd.f32 0.0, %v10006
      %v10008 = vpop.f32.mrb[0].mxu0
      %10009 = vmatprep.mubr.f32.mxu0 0.0
      %10010 = vmatmul.mubr.f32.gmra.mrb[0].mxu0 %v9801
      %v10011 = vpop.f32.mrb[0].mxu0
      %v10012 = vadd.f32 0.0, %v10011
      %v10013 = vpop.f32.mrb[0].mxu0
      %10014 = vmatprep.mubr.f32.mxu0 0.0
      %10015 = vmatmul.mubr.f32.gmra.mrb[0].mxu0 %v9804
      %v10016 = vpop.f32.mrb[0].mxu0
      %v10017 = vadd.f32 0.0, %v10016
      %v10018 = vpop.f32.mrb[0].mxu0
      %10019 = vmatprep.mubr.f32.mxu0 0.0
      %10020 = vmatmul.mubr.f32.gmra.mrb[0].mxu0 %v9807
      %v10021 = vpop.f32.mrb[0].mxu0
      %v10022 = vadd.f32 0.0, %v10021
      %v10023 = vpop.f32.mrb[0].mxu0
      %10024 = vmatprep.mubr.f32.mxu0 0.0
      %10025 = vmatmul.mubr.f32.gmra.mrb[0].mxu0 %v9810
      %v10026 = vpop.f32.mrb[0].mxu0
      %v10027 = vadd.f32 0.0, %v10026
      %v10028 = vpop.f32.mrb[0].mxu0
      %10029 = vmatprep.mubr.f32.mxu0 0.0
      %10030 = vmatmul.mubr.f32.gmra.mrb[0].mxu0 %v9813
      %v10031 = vpop.f32.mrb[0].mxu0
      %v10032 = vadd.f32 0.0, %v10031
      %v10033 = vpop.f32.mrb[0].mxu0
      %10034 = vmatprep.mubr.f32.mxu0 0.0
      %10035 = vmatmul.mubr.f32.gmra.mrb[0].mxu0 %v9816
      %v10036 = vpop.f32.mrb[0].mxu0
      %v10037 = vadd.f32 0.0, %v10036
      %v10038 = vpop.f32.mrb[0].mxu0
      %10039 = vmatprep.mubr.f32.mxu0 0.0
      %10040 = vmatmul.mubr.f32.gmra.mrb[0].mxu0 %v9819
      %v10041 = vpop.f32.mrb[0].mxu0
      %v10042 = vadd.f32 0.0, %v10041
      %v10043 = vpop.f32.mrb[0].mxu0
      %10044 = vmatprep.mubr.f32.mxu0 0.0
      %10045 = vmatmul.mubr.f32.gmra.mrb[0].mxu0 %v9822
      %v10046 = vpop.f32.mrb[0].mxu0
      %v10047 = vadd.f32 0.0, %v10046
      %v10048 = vpop.f32.mrb[0].mxu0
      %10049 = vmatprep.mubr.f32.mxu0 0.0
      %10050 = vmatmul.mubr.f32.gmra.mrb[0].mxu0 %v9825
      %v10051 = vpop.f32.mrb[0].mxu0
      %v10052 = vadd.f32 0.0, %v10051
      %v10053 = vpop.f32.mrb[0].mxu0
      %10054 = vdwg.mxu0
      %v10055 = vadd.f32 %v9666, %v9897
      %v10056 = vadd.f32 %v9667, %v9902
      %v10057 = vadd.f32 %v9668, %v9907
      %v10058 = vadd.f32 %v9669, %v9912
      %v10059 = vadd.f32 %v9670, %v9917
      %v10060 = vadd.f32 %v9671, %v9922
      %v10061 = vadd.f32 %v9672, %v9927
      %v10062 = vadd.f32 %v9673, %v9932
      %v10063 = vadd.f32 %v9674, %v9937
      %v10064 = vadd.f32 %v9675, %v9942
      %v10065 = vadd.f32 %v9676, %v9947
      %v10066 = vadd.f32 %v9677, %v9952
      %v10067 = vadd.f32 %v9678, %v9957
      %v10068 = vadd.f32 %v9679, %v9962
      %v10069 = vadd.f32 %v9680, %v9967
      %v10070 = vadd.f32 %v9681, %v9972
      %v10071 = vadd.f32 %v9682, %v9977
      %v10072 = vadd.f32 %v9683, %v9982
      %v10073 = vadd.f32 %v9684, %v9987
      %v10074 = vadd.f32 %v9685, %v9992
      %v10075 = vadd.f32 %v9686, %v9997
      %v10076 = vadd.f32 %v9687, %v10002
      %v10077 = vadd.f32 %v9688, %v10007
      %v10078 = vadd.f32 %v9689, %v10012
      %v10079 = vadd.f32 %v9690, %v10017
      %v10080 = vadd.f32 %v9691, %v10022
      %v10081 = vadd.f32 %v9692, %v10027
      %v10082 = vadd.f32 %v9693, %v10032
      %v10083 = vadd.f32 %v9694, %v10037
      %v10084 = vadd.f32 %v9695, %v10042
      %v10085 = vadd.f32 %v9696, %v10047
      %v10086 = vadd.f32 %v9697, %v10052
      %v10087 = vld [vmem:[%s390 + $0x9] sm:$0xff]
      %v10088 = vld [vmem:[%s390 + $0x11] sm:$0xff]
      %v10089 = vld [vmem:[%s390 + $0x29] sm:$0xff]
      %v10090 = vld [vmem:[%s390 + $0x31] sm:$0xff]
      %v10091 = vld [vmem:[%s390 + $0x49] sm:$0xff]
      %v10092 = vld [vmem:[%s390 + $0x51] sm:$0xff]
      %v10093 = vld [vmem:[%s390 + $0x69] sm:$0xff]
      %v10094 = vld [vmem:[%s390 + $0x71] sm:$0xff]
      %v10095 = vld [vmem:[%s390 + $0x89] sm:$0xff]
      %v10096 = vld [vmem:[%s390 + $0x91] sm:$0xff]
      %v10097 = vld [vmem:[%s390 + $0xa9] sm:$0xff]
      %v10098 = vld [vmem:[%s390 + $0xb1] sm:$0xff]
      %v10099 = vld [vmem:[%s390 + $0xc9] sm:$0xff]
      %v10100 = vld [vmem:[%s390 + $0xd1] sm:$0xff]
      %v10101 = vld [vmem:[%s390 + $0xe9] sm:$0xff]
      %v10102 = vld [vmem:[%s390 + $0xf1] sm:$0xff]
      %v10103 = vld [vmem:[%s390 + $0x109] sm:$0xff]
      %v10104 = vld [vmem:[%s390 + $0x111] sm:$0xff]
      %v10105 = vld [vmem:[%s390 + $0x129] sm:$0xff]
      %v10106 = vld [vmem:[%s390 + $0x131] sm:$0xff]
      %v10107 = vld [vmem:[%s390 + $0x149] sm:$0xff]
      %v10108 = vld [vmem:[%s390 + $0x151] sm:$0xff]
      %v10109 = vld [vmem:[%s390 + $0x169] sm:$0xff]
      %v10110 = vld [vmem:[%s390 + $0x171] sm:$0xff]
      %v10111 = vld [vmem:[%s390 + $0x189] sm:$0xff]
      %v10112 = vld [vmem:[%s390 + $0x191] sm:$0xff]
      %v10113 = vld [vmem:[%s390 + $0x1a9] sm:$0xff]
      %v10114 = vld [vmem:[%s390 + $0x1b1] sm:$0xff]
      %v10115 = vld [vmem:[%s390 + $0x1c9] sm:$0xff]
      %v10116 = vld [vmem:[%s390 + $0x1d1] sm:$0xff]
      %v10117 = vld [vmem:[%s390 + $0x1e9] sm:$0xff]
      %v10118 = vld [vmem:[%s390 + $0x1f1] sm:$0xff]
      %v10119 = vld [vmem:[%s7 + $0x14] sm:$0xf]
      %v10121 = vsel %vm380, %v10087, 0
      %v10124 = vsel %vm380, %v10088, 0
      %v10127 = vsel %vm380, %v10089, 0
      %v10130 = vsel %vm380, %v10090, 0
      %v10133 = vsel %vm380, %v10091, 0
      %v10136 = vsel %vm380, %v10092, 0
      %v10139 = vsel %vm380, %v10093, 0
      %v10142 = vsel %vm380, %v10094, 0
      %v10145 = vsel %vm380, %v10095, 0
      %v10148 = vsel %vm380, %v10096, 0
      %v10151 = vsel %vm380, %v10097, 0
      %v10154 = vsel %vm380, %v10098, 0
      %v10157 = vsel %vm380, %v10099, 0
      %v10160 = vsel %vm380, %v10100, 0
      %v10163 = vsel %vm380, %v10101, 0
      %v10166 = vsel %vm380, %v10102, 0
      %v10169 = vsel %vm380, %v10103, 0
      %v10172 = vsel %vm380, %v10104, 0
      %v10175 = vsel %vm380, %v10105, 0
      %v10178 = vsel %vm380, %v10106, 0
      %v10181 = vsel %vm380, %v10107, 0
      %v10184 = vsel %vm380, %v10108, 0
      %v10187 = vsel %vm380, %v10109, 0
      %v10190 = vsel %vm380, %v10110, 0
      %v10193 = vsel %vm380, %v10111, 0
      %v10196 = vsel %vm380, %v10112, 0
      %v10199 = vsel %vm380, %v10113, 0
      %v10202 = vsel %vm380, %v10114, 0
      %v10205 = vsel %vm380, %v10115, 0
      %v10208 = vsel %vm380, %v10116, 0
      %v10211 = vsel %vm380, %v10117, 0
      %v10214 = vsel %vm380, %v10118, 0
      %v10217 = vsel %vm980, %v10119, 0
      %10219 = vmatprep.subr.mxu0 0.0
      %10220 = vmatpush1.msra.mxu0 %v10217
      %10221 = vmatprep.subr.mxu0 0.0
      %10222 = vmatpush1.msra.mxu0 0.0
      %10223 = vmatprep.subr.mxu0 0.0
      %10224 = vmatpush1.msra.mxu0 0.0
      %10225 = vmatprep.subr.mxu0 0.0
      %10226 = vmatpush1.msra.mxu0 0.0
      %10227 = vmatprep.subr.mxu0 0.0
      %10228 = vmatpush1.msra.mxu0 0.0
      %10229 = vmatprep.subr.mxu0 0.0
      %10230 = vmatpush1.msra.mxu0 0.0
      %10231 = vmatprep.subr.mxu0 0.0
      %10232 = vmatpush1.msra.mxu0 0.0
      %10233 = vmatprep.subr.mxu0 0.0
      %10234 = vmatpush1.msra.mxu0 0.0
      %10235 = vmatprep.subr.mxu0 0.0
      %10236 = vmatpush1.msra.mxu0 0.0
      %10237 = vmatprep.subr.mxu0 0.0
      %10238 = vmatpush1.msra.mxu0 0.0
      %10239 = vmatprep.subr.mxu0 0.0
      %10240 = vmatpush1.msra.mxu0 0.0
      %10241 = vmatprep.subr.mxu0 0.0
      %10242 = vmatpush1.msra.mxu0 0.0
      %10243 = vmatprep.subr.mxu0 0.0
      %10244 = vmatpush1.msra.mxu0 0.0
      %10245 = vmatprep.subr.mxu0 0.0
      %10246 = vmatpush1.msra.mxu0 0.0
      %10247 = vmatprep.subr.mxu0 0.0
      %10248 = vmatpush1.msra.mxu0 0.0
      %10249 = vmatprep.subr.mxu0 0.0
      %10250 = vmatpush1.msra.mxu0 0.0
      %10251 = vmatprep.subr.mxu0 0.0
      %10252 = vmatpush1.msra.mxu0 0.0
      %10253 = vmatprep.subr.mxu0 0.0
      %10254 = vmatpush1.msra.mxu0 0.0
      %10255 = vmatprep.subr.mxu0 0.0
      %10256 = vmatpush1.msra.mxu0 0.0
      %10257 = vmatprep.subr.mxu0 0.0
      %10258 = vmatpush1.msra.mxu0 0.0
      %10259 = vmatprep.subr.mxu0 0.0
      %10260 = vmatpush1.msra.mxu0 0.0
      %10261 = vmatprep.subr.mxu0 0.0
      %10262 = vmatpush1.msra.mxu0 0.0
      %10263 = vmatprep.subr.mxu0 0.0
      %10264 = vmatpush1.msra.mxu0 0.0
      %10265 = vmatprep.subr.mxu0 0.0
      %10266 = vmatpush1.msra.mxu0 0.0
      %10267 = vmatprep.subr.mxu0 0.0
      %10268 = vmatpush1.msra.mxu0 0.0
      %10269 = vmatprep.subr.mxu0 0.0
      %10270 = vmatpush1.msra.mxu0 0.0
      %10271 = vmatprep.subr.mxu0 0.0
      %10272 = vmatpush1.msra.mxu0 0.0
      %10273 = vmatprep.subr.mxu0 0.0
      %10274 = vmatpush1.msra.mxu0 0.0
      %10275 = vmatprep.subr.mxu0 0.0
      %10276 = vmatpush1.msra.mxu0 0.0
      %10277 = vmatprep.subr.mxu0 0.0
      %10278 = vmatpush1.msra.mxu0 0.0
      %10279 = vmatprep.subr.mxu0 0.0
      %10280 = vmatpush1.msra.mxu0 0.0
      %10281 = vmatprep.subr.mxu0 0.0
      %10282 = vmatpush1.msra.mxu0 0.0
      %10283 = vmatprep.mubr.f32.mxu0 0.0
      %10284 = vmatmul.mubr.f32.gmra.mrb[0].mxu0 %v10121
      %v10285 = vpop.f32.mrb[0].mxu0
      %v10286 = vadd.f32 0.0, %v10285
      %v10287 = vpop.f32.mrb[0].mxu0
      %10288 = vmatprep.mubr.f32.mxu0 0.0
      %10289 = vmatmul.mubr.f32.gmra.mrb[0].mxu0 %v10124
      %v10290 = vpop.f32.mrb[0].mxu0
      %v10291 = vadd.f32 0.0, %v10290
      %v10292 = vpop.f32.mrb[0].mxu0
      %10293 = vmatprep.mubr.f32.mxu0 0.0
      %10294 = vmatmul.mubr.f32.gmra.mrb[0].mxu0 %v10127
      %v10295 = vpop.f32.mrb[0].mxu0
      %v10296 = vadd.f32 0.0, %v10295
      %v10297 = vpop.f32.mrb[0].mxu0
      %10298 = vmatprep.mubr.f32.mxu0 0.0
      %10299 = vmatmul.mubr.f32.gmra.mrb[0].mxu0 %v10130
      %v10300 = vpop.f32.mrb[0].mxu0
      %v10301 = vadd.f32 0.0, %v10300
      %v10302 = vpop.f32.mrb[0].mxu0
      %10303 = vmatprep.mubr.f32.mxu0 0.0
      %10304 = vmatmul.mubr.f32.gmra.mrb[0].mxu0 %v10133
      %v10305 = vpop.f32.mrb[0].mxu0
      %v10306 = vadd.f32 0.0, %v10305
      %v10307 = vpop.f32.mrb[0].mxu0
      %10308 = vmatprep.mubr.f32.mxu0 0.0
      %10309 = vmatmul.mubr.f32.gmra.mrb[0].mxu0 %v10136
      %v10310 = vpop.f32.mrb[0].mxu0
      %v10311 = vadd.f32 0.0, %v10310
      %v10312 = vpop.f32.mrb[0].mxu0
      %10313 = vmatprep.mubr.f32.mxu0 0.0
      %10314 = vmatmul.mubr.f32.gmra.mrb[0].mxu0 %v10139
      %v10315 = vpop.f32.mrb[0].mxu0
      %v10316 = vadd.f32 0.0, %v10315
      %v10317 = vpop.f32.mrb[0].mxu0
      %10318 = vmatprep.mubr.f32.mxu0 0.0
      %10319 = vmatmul.mubr.f32.gmra.mrb[0].mxu0 %v10142
      %v10320 = vpop.f32.mrb[0].mxu0
      %v10321 = vadd.f32 0.0, %v10320
      %v10322 = vpop.f32.mrb[0].mxu0
      %10323 = vmatprep.mubr.f32.mxu0 0.0
      %10324 = vmatmul.mubr.f32.gmra.mrb[0].mxu0 %v10145
      %v10325 = vpop.f32.mrb[0].mxu0
      %v10326 = vadd.f32 0.0, %v10325
      %v10327 = vpop.f32.mrb[0].mxu0
      %10328 = vmatprep.mubr.f32.mxu0 0.0
      %10329 = vmatmul.mubr.f32.gmra.mrb[0].mxu0 %v10148
      %v10330 = vpop.f32.mrb[0].mxu0
      %v10331 = vadd.f32 0.0, %v10330
      %v10332 = vpop.f32.mrb[0].mxu0
      %10333 = vmatprep.mubr.f32.mxu0 0.0
      %10334 = vmatmul.mubr.f32.gmra.mrb[0].mxu0 %v10151
      %v10335 = vpop.f32.mrb[0].mxu0
      %v10336 = vadd.f32 0.0, %v10335
      %v10337 = vpop.f32.mrb[0].mxu0
      %10338 = vmatprep.mubr.f32.mxu0 0.0
      %10339 = vmatmul.mubr.f32.gmra.mrb[0].mxu0 %v10154
      %v10340 = vpop.f32.mrb[0].mxu0
      %v10341 = vadd.f32 0.0, %v10340
      %v10342 = vpop.f32.mrb[0].mxu0
      %10343 = vmatprep.mubr.f32.mxu0 0.0
      %10344 = vmatmul.mubr.f32.gmra.mrb[0].mxu0 %v10157
      %v10345 = vpop.f32.mrb[0].mxu0
      %v10346 = vadd.f32 0.0, %v10345
      %v10347 = vpop.f32.mrb[0].mxu0
      %10348 = vmatprep.mubr.f32.mxu0 0.0
      %10349 = vmatmul.mubr.f32.gmra.mrb[0].mxu0 %v10160
      %v10350 = vpop.f32.mrb[0].mxu0
      %v10351 = vadd.f32 0.0, %v10350
      %v10352 = vpop.f32.mrb[0].mxu0
      %10353 = vmatprep.mubr.f32.mxu0 0.0
      %10354 = vmatmul.mubr.f32.gmra.mrb[0].mxu0 %v10163
      %v10355 = vpop.f32.mrb[0].mxu0
      %v10356 = vadd.f32 0.0, %v10355
      %v10357 = vpop.f32.mrb[0].mxu0
      %10358 = vmatprep.mubr.f32.mxu0 0.0
      %10359 = vmatmul.mubr.f32.gmra.mrb[0].mxu0 %v10166
      %v10360 = vpop.f32.mrb[0].mxu0
      %v10361 = vadd.f32 0.0, %v10360
      %v10362 = vpop.f32.mrb[0].mxu0
      %10363 = vmatprep.mubr.f32.mxu0 0.0
      %10364 = vmatmul.mubr.f32.gmra.mrb[0].mxu0 %v10169
      %v10365 = vpop.f32.mrb[0].mxu0
      %v10366 = vadd.f32 0.0, %v10365
      %v10367 = vpop.f32.mrb[0].mxu0
      %10368 = vmatprep.mubr.f32.mxu0 0.0
      %10369 = vmatmul.mubr.f32.gmra.mrb[0].mxu0 %v10172
      %v10370 = vpop.f32.mrb[0].mxu0
      %v10371 = vadd.f32 0.0, %v10370
      %v10372 = vpop.f32.mrb[0].mxu0
      %10373 = vmatprep.mubr.f32.mxu0 0.0
      %10374 = vmatmul.mubr.f32.gmra.mrb[0].mxu0 %v10175
      %v10375 = vpop.f32.mrb[0].mxu0
      %v10376 = vadd.f32 0.0, %v10375
      %v10377 = vpop.f32.mrb[0].mxu0
      %10378 = vmatprep.mubr.f32.mxu0 0.0
      %10379 = vmatmul.mubr.f32.gmra.mrb[0].mxu0 %v10178
      %v10380 = vpop.f32.mrb[0].mxu0
      %v10381 = vadd.f32 0.0, %v10380
      %v10382 = vpop.f32.mrb[0].mxu0
      %10383 = vmatprep.mubr.f32.mxu0 0.0
      %10384 = vmatmul.mubr.f32.gmra.mrb[0].mxu0 %v10181
      %v10385 = vpop.f32.mrb[0].mxu0
      %v10386 = vadd.f32 0.0, %v10385
      %v10387 = vpop.f32.mrb[0].mxu0
      %10388 = vmatprep.mubr.f32.mxu0 0.0
      %10389 = vmatmul.mubr.f32.gmra.mrb[0].mxu0 %v10184
      %v10390 = vpop.f32.mrb[0].mxu0
      %v10391 = vadd.f32 0.0, %v10390
      %v10392 = vpop.f32.mrb[0].mxu0
      %10393 = vmatprep.mubr.f32.mxu0 0.0
      %10394 = vmatmul.mubr.f32.gmra.mrb[0].mxu0 %v10187
      %v10395 = vpop.f32.mrb[0].mxu0
      %v10396 = vadd.f32 0.0, %v10395
      %v10397 = vpop.f32.mrb[0].mxu0
      %10398 = vmatprep.mubr.f32.mxu0 0.0
      %10399 = vmatmul.mubr.f32.gmra.mrb[0].mxu0 %v10190
      %v10400 = vpop.f32.mrb[0].mxu0
      %v10401 = vadd.f32 0.0, %v10400
      %v10402 = vpop.f32.mrb[0].mxu0
      %10403 = vmatprep.mubr.f32.mxu0 0.0
      %10404 = vmatmul.mubr.f32.gmra.mrb[0].mxu0 %v10193
      %v10405 = vpop.f32.mrb[0].mxu0
      %v10406 = vadd.f32 0.0, %v10405
      %v10407 = vpop.f32.mrb[0].mxu0
      %10408 = vmatprep.mubr.f32.mxu0 0.0
      %10409 = vmatmul.mubr.f32.gmra.mrb[0].mxu0 %v10196
      %v10410 = vpop.f32.mrb[0].mxu0
      %v10411 = vadd.f32 0.0, %v10410
      %v10412 = vpop.f32.mrb[0].mxu0
      %10413 = vmatprep.mubr.f32.mxu0 0.0
      %10414 = vmatmul.mubr.f32.gmra.mrb[0].mxu0 %v10199
      %v10415 = vpop.f32.mrb[0].mxu0
      %v10416 = vadd.f32 0.0, %v10415
      %v10417 = vpop.f32.mrb[0].mxu0
      %10418 = vmatprep.mubr.f32.mxu0 0.0
      %10419 = vmatmul.mubr.f32.gmra.mrb[0].mxu0 %v10202
      %v10420 = vpop.f32.mrb[0].mxu0
      %v10421 = vadd.f32 0.0, %v10420
      %v10422 = vpop.f32.mrb[0].mxu0
      %10423 = vmatprep.mubr.f32.mxu0 0.0
      %10424 = vmatmul.mubr.f32.gmra.mrb[0].mxu0 %v10205
      %v10425 = vpop.f32.mrb[0].mxu0
      %v10426 = vadd.f32 0.0, %v10425
      %v10427 = vpop.f32.mrb[0].mxu0
      %10428 = vmatprep.mubr.f32.mxu0 0.0
      %10429 = vmatmul.mubr.f32.gmra.mrb[0].mxu0 %v10208
      %v10430 = vpop.f32.mrb[0].mxu0
      %v10431 = vadd.f32 0.0, %v10430
      %v10432 = vpop.f32.mrb[0].mxu0
      %10433 = vmatprep.mubr.f32.mxu0 0.0
      %10434 = vmatmul.mubr.f32.gmra.mrb[0].mxu0 %v10211
      %v10435 = vpop.f32.mrb[0].mxu0
      %v10436 = vadd.f32 0.0, %v10435
      %v10437 = vpop.f32.mrb[0].mxu0
      %10438 = vmatprep.mubr.f32.mxu0 0.0
      %10439 = vmatmul.mubr.f32.gmra.mrb[0].mxu0 %v10214
      %v10440 = vpop.f32.mrb[0].mxu0
      %v10441 = vadd.f32 0.0, %v10440
      %v10442 = vpop.f32.mrb[0].mxu0
      %10443 = vdwg.mxu0
      %v10444 = vadd.f32 %v10055, %v10286
      %v10445 = vadd.f32 %v10056, %v10291
      %v10446 = vadd.f32 %v10057, %v10296
      %v10447 = vadd.f32 %v10058, %v10301
      %v10448 = vadd.f32 %v10059, %v10306
      %v10449 = vadd.f32 %v10060, %v10311
      %v10450 = vadd.f32 %v10061, %v10316
      %v10451 = vadd.f32 %v10062, %v10321
      %v10452 = vadd.f32 %v10063, %v10326
      %v10453 = vadd.f32 %v10064, %v10331
      %v10454 = vadd.f32 %v10065, %v10336
      %v10455 = vadd.f32 %v10066, %v10341
      %v10456 = vadd.f32 %v10067, %v10346
      %v10457 = vadd.f32 %v10068, %v10351
      %v10458 = vadd.f32 %v10069, %v10356
      %v10459 = vadd.f32 %v10070, %v10361
      %v10460 = vadd.f32 %v10071, %v10366
      %v10461 = vadd.f32 %v10072, %v10371
      %v10462 = vadd.f32 %v10073, %v10376
      %v10463 = vadd.f32 %v10074, %v10381
      %v10464 = vadd.f32 %v10075, %v10386
      %v10465 = vadd.f32 %v10076, %v10391
      %v10466 = vadd.f32 %v10077, %v10396
      %v10467 = vadd.f32 %v10078, %v10401
      %v10468 = vadd.f32 %v10079, %v10406
      %v10469 = vadd.f32 %v10080, %v10411
      %v10470 = vadd.f32 %v10081, %v10416
      %v10471 = vadd.f32 %v10082, %v10421
      %v10472 = vadd.f32 %v10083, %v10426
      %v10473 = vadd.f32 %v10084, %v10431
      %v10474 = vadd.f32 %v10085, %v10436
      %v10475 = vadd.f32 %v10086, %v10441
      %v10476 = vld [vmem:[%s3089 + $0x7] sm:$0xff]
      %v10477 = vld [vmem:[%s3089 + $0xf] sm:$0xff]
      %v10478 = vld [vmem:[%s3089 + $0x27] sm:$0xff]
      %v10479 = vld [vmem:[%s3089 + $0x2f] sm:$0xff]
      %v10480 = vld [vmem:[%s3089 + $0x47] sm:$0xff]
      %v10481 = vld [vmem:[%s3089 + $0x4f] sm:$0xff]
      %v10482 = vld [vmem:[%s3089 + $0x67] sm:$0xff]
      %v10483 = vld [vmem:[%s3089 + $0x6f] sm:$0xff]
      %v10484 = vld [vmem:[%s3089 + $0x87] sm:$0xff]
      %v10485 = vld [vmem:[%s3089 + $0x8f] sm:$0xff]
      %v10486 = vld [vmem:[%s3089 + $0xa7] sm:$0xff]
      %v10487 = vld [vmem:[%s3089 + $0xaf] sm:$0xff]
      %v10488 = vld [vmem:[%s3089 + $0xc7] sm:$0xff]
      %v10489 = vld [vmem:[%s3089 + $0xcf] sm:$0xff]
      %v10490 = vld [vmem:[%s3089 + $0xe7] sm:$0xff]
      %v10491 = vld [vmem:[%s3089 + $0xef] sm:$0xff]
      %v10492 = vld [vmem:[%s3089 + $0x107] sm:$0xff]
      %v10493 = vld [vmem:[%s3089 + $0x10f] sm:$0xff]
      %v10494 = vld [vmem:[%s3089 + $0x127] sm:$0xff]
      %v10495 = vld [vmem:[%s3089 + $0x12f] sm:$0xff]
      %v10496 = vld [vmem:[%s3089 + $0x147] sm:$0xff]
      %v10497 = vld [vmem:[%s3089 + $0x14f] sm:$0xff]
      %v10498 = vld [vmem:[%s3089 + $0x167] sm:$0xff]
      %v10499 = vld [vmem:[%s3089 + $0x16f] sm:$0xff]
      %v10500 = vld [vmem:[%s3089 + $0x187] sm:$0xff]
      %v10501 = vld [vmem:[%s3089 + $0x18f] sm:$0xff]
      %v10502 = vld [vmem:[%s3089 + $0x1a7] sm:$0xff]
      %v10503 = vld [vmem:[%s3089 + $0x1af] sm:$0xff]
      %v10504 = vld [vmem:[%s3089 + $0x1c7] sm:$0xff]
      %v10505 = vld [vmem:[%s3089 + $0x1cf] sm:$0xff]
      %v10506 = vld [vmem:[%s3089 + $0x1e7] sm:$0xff]
      %v10507 = vld [vmem:[%s3089 + $0x1ef] sm:$0xff]
      %v10508 = vld [vmem:[%s7 + $0x18] sm:$0xf]
      %v10510 = vsel %vm380, %v10476, 0
      %v10513 = vsel %vm380, %v10477, 0
      %v10516 = vsel %vm380, %v10478, 0
      %v10519 = vsel %vm380, %v10479, 0
      %v10522 = vsel %vm380, %v10480, 0
      %v10525 = vsel %vm380, %v10481, 0
      %v10528 = vsel %vm380, %v10482, 0
      %v10531 = vsel %vm380, %v10483, 0
      %v10534 = vsel %vm380, %v10484, 0
      %v10537 = vsel %vm380, %v10485, 0
      %v10540 = vsel %vm380, %v10486, 0
      %v10543 = vsel %vm380, %v10487, 0
      %v10546 = vsel %vm380, %v10488, 0
      %v10549 = vsel %vm380, %v10489, 0
      %v10552 = vsel %vm380, %v10490, 0
      %v10555 = vsel %vm380, %v10491, 0
      %v10558 = vsel %vm380, %v10492, 0
      %v10561 = vsel %vm380, %v10493, 0
      %v10564 = vsel %vm380, %v10494, 0
      %v10567 = vsel %vm380, %v10495, 0
      %v10570 = vsel %vm380, %v10496, 0
      %v10573 = vsel %vm380, %v10497, 0
      %v10576 = vsel %vm380, %v10498, 0
      %v10579 = vsel %vm380, %v10499, 0
      %v10582 = vsel %vm380, %v10500, 0
      %v10585 = vsel %vm380, %v10501, 0
      %v10588 = vsel %vm380, %v10502, 0
      %v10591 = vsel %vm380, %v10503, 0
      %v10594 = vsel %vm380, %v10504, 0
      %v10597 = vsel %vm380, %v10505, 0
      %v10600 = vsel %vm380, %v10506, 0
      %v10603 = vsel %vm380, %v10507, 0
      %v10606 = vsel %vm980, %v10508, 0
      %10608 = vmatprep.subr.mxu0 0.0
      %10609 = vmatpush1.msra.mxu0 %v10606
      %10610 = vmatprep.subr.mxu0 0.0
      %10611 = vmatpush1.msra.mxu0 0.0
      %10612 = vmatprep.subr.mxu0 0.0
      %10613 = vmatpush1.msra.mxu0 0.0
      %10614 = vmatprep.subr.mxu0 0.0
      %10615 = vmatpush1.msra.mxu0 0.0
      %10616 = vmatprep.subr.mxu0 0.0
      %10617 = vmatpush1.msra.mxu0 0.0
      %10618 = vmatprep.subr.mxu0 0.0
      %10619 = vmatpush1.msra.mxu0 0.0
      %10620 = vmatprep.subr.mxu0 0.0
      %10621 = vmatpush1.msra.mxu0 0.0
      %10622 = vmatprep.subr.mxu0 0.0
      %10623 = vmatpush1.msra.mxu0 0.0
      %10624 = vmatprep.subr.mxu0 0.0
      %10625 = vmatpush1.msra.mxu0 0.0
      %10626 = vmatprep.subr.mxu0 0.0
      %10627 = vmatpush1.msra.mxu0 0.0
      %10628 = vmatprep.subr.mxu0 0.0
      %10629 = vmatpush1.msra.mxu0 0.0
      %10630 = vmatprep.subr.mxu0 0.0
      %10631 = vmatpush1.msra.mxu0 0.0
      %10632 = vmatprep.subr.mxu0 0.0
      %10633 = vmatpush1.msra.mxu0 0.0
      %10634 = vmatprep.subr.mxu0 0.0
      %10635 = vmatpush1.msra.mxu0 0.0
      %10636 = vmatprep.subr.mxu0 0.0
      %10637 = vmatpush1.msra.mxu0 0.0
      %10638 = vmatprep.subr.mxu0 0.0
      %10639 = vmatpush1.msra.mxu0 0.0
      %10640 = vmatprep.subr.mxu0 0.0
      %10641 = vmatpush1.msra.mxu0 0.0
      %10642 = vmatprep.subr.mxu0 0.0
      %10643 = vmatpush1.msra.mxu0 0.0
      %10644 = vmatprep.subr.mxu0 0.0
      %10645 = vmatpush1.msra.mxu0 0.0
      %10646 = vmatprep.subr.mxu0 0.0
      %10647 = vmatpush1.msra.mxu0 0.0
      %10648 = vmatprep.subr.mxu0 0.0
      %10649 = vmatpush1.msra.mxu0 0.0
      %10650 = vmatprep.subr.mxu0 0.0
      %10651 = vmatpush1.msra.mxu0 0.0
      %10652 = vmatprep.subr.mxu0 0.0
      %10653 = vmatpush1.msra.mxu0 0.0
      %10654 = vmatprep.subr.mxu0 0.0
      %10655 = vmatpush1.msra.mxu0 0.0
      %10656 = vmatprep.subr.mxu0 0.0
      %10657 = vmatpush1.msra.mxu0 0.0
      %10658 = vmatprep.subr.mxu0 0.0
      %10659 = vmatpush1.msra.mxu0 0.0
      %10660 = vmatprep.subr.mxu0 0.0
      %10661 = vmatpush1.msra.mxu0 0.0
      %10662 = vmatprep.subr.mxu0 0.0
      %10663 = vmatpush1.msra.mxu0 0.0
      %10664 = vmatprep.subr.mxu0 0.0
      %10665 = vmatpush1.msra.mxu0 0.0
      %10666 = vmatprep.subr.mxu0 0.0
      %10667 = vmatpush1.msra.mxu0 0.0
      %10668 = vmatprep.subr.mxu0 0.0
      %10669 = vmatpush1.msra.mxu0 0.0
      %10670 = vmatprep.subr.mxu0 0.0
      %10671 = vmatpush1.msra.mxu0 0.0
      %10672 = vmatprep.mubr.f32.mxu0 0.0
      %10673 = vmatmul.mubr.f32.gmra.mrb[0].mxu0 %v10510
      %v10674 = vpop.f32.mrb[0].mxu0
      %v10675 = vadd.f32 0.0, %v10674
      %v10676 = vpop.f32.mrb[0].mxu0
      %10677 = vmatprep.mubr.f32.mxu0 0.0
      %10678 = vmatmul.mubr.f32.gmra.mrb[0].mxu0 %v10513
      %v10679 = vpop.f32.mrb[0].mxu0
      %v10680 = vadd.f32 0.0, %v10679
      %v10681 = vpop.f32.mrb[0].mxu0
      %10682 = vmatprep.mubr.f32.mxu0 0.0
      %10683 = vmatmul.mubr.f32.gmra.mrb[0].mxu0 %v10516
      %v10684 = vpop.f32.mrb[0].mxu0
      %v10685 = vadd.f32 0.0, %v10684
      %v10686 = vpop.f32.mrb[0].mxu0
      %10687 = vmatprep.mubr.f32.mxu0 0.0
      %10688 = vmatmul.mubr.f32.gmra.mrb[0].mxu0 %v10519
      %v10689 = vpop.f32.mrb[0].mxu0
      %v10690 = vadd.f32 0.0, %v10689
      %v10691 = vpop.f32.mrb[0].mxu0
      %10692 = vmatprep.mubr.f32.mxu0 0.0
      %10693 = vmatmul.mubr.f32.gmra.mrb[0].mxu0 %v10522
      %v10694 = vpop.f32.mrb[0].mxu0
      %v10695 = vadd.f32 0.0, %v10694
      %v10696 = vpop.f32.mrb[0].mxu0
      %10697 = vmatprep.mubr.f32.mxu0 0.0
      %10698 = vmatmul.mubr.f32.gmra.mrb[0].mxu0 %v10525
      %v10699 = vpop.f32.mrb[0].mxu0
      %v10700 = vadd.f32 0.0, %v10699
      %v10701 = vpop.f32.mrb[0].mxu0
      %10702 = vmatprep.mubr.f32.mxu0 0.0
      %10703 = vmatmul.mubr.f32.gmra.mrb[0].mxu0 %v10528
      %v10704 = vpop.f32.mrb[0].mxu0
      %v10705 = vadd.f32 0.0, %v10704
      %v10706 = vpop.f32.mrb[0].mxu0
      %10707 = vmatprep.mubr.f32.mxu0 0.0
      %10708 = vmatmul.mubr.f32.gmra.mrb[0].mxu0 %v10531
      %v10709 = vpop.f32.mrb[0].mxu0
      %v10710 = vadd.f32 0.0, %v10709
      %v10711 = vpop.f32.mrb[0].mxu0
      %10712 = vmatprep.mubr.f32.mxu0 0.0
      %10713 = vmatmul.mubr.f32.gmra.mrb[0].mxu0 %v10534
      %v10714 = vpop.f32.mrb[0].mxu0
      %v10715 = vadd.f32 0.0, %v10714
      %v10716 = vpop.f32.mrb[0].mxu0
      %10717 = vmatprep.mubr.f32.mxu0 0.0
      %10718 = vmatmul.mubr.f32.gmra.mrb[0].mxu0 %v10537
      %v10719 = vpop.f32.mrb[0].mxu0
      %v10720 = vadd.f32 0.0, %v10719
      %v10721 = vpop.f32.mrb[0].mxu0
      %10722 = vmatprep.mubr.f32.mxu0 0.0
      %10723 = vmatmul.mubr.f32.gmra.mrb[0].mxu0 %v10540
      %v10724 = vpop.f32.mrb[0].mxu0
      %v10725 = vadd.f32 0.0, %v10724
      %v10726 = vpop.f32.mrb[0].mxu0
      %10727 = vmatprep.mubr.f32.mxu0 0.0
      %10728 = vmatmul.mubr.f32.gmra.mrb[0].mxu0 %v10543
      %v10729 = vpop.f32.mrb[0].mxu0
      %v10730 = vadd.f32 0.0, %v10729
      %v10731 = vpop.f32.mrb[0].mxu0
      %10732 = vmatprep.mubr.f32.mxu0 0.0
      %10733 = vmatmul.mubr.f32.gmra.mrb[0].mxu0 %v10546
      %v10734 = vpop.f32.mrb[0].mxu0
      %v10735 = vadd.f32 0.0, %v10734
      %v10736 = vpop.f32.mrb[0].mxu0
      %10737 = vmatprep.mubr.f32.mxu0 0.0
      %10738 = vmatmul.mubr.f32.gmra.mrb[0].mxu0 %v10549
      %v10739 = vpop.f32.mrb[0].mxu0
      %v10740 = vadd.f32 0.0, %v10739
      %v10741 = vpop.f32.mrb[0].mxu0
      %10742 = vmatprep.mubr.f32.mxu0 0.0
      %10743 = vmatmul.mubr.f32.gmra.mrb[0].mxu0 %v10552
      %v10744 = vpop.f32.mrb[0].mxu0
      %v10745 = vadd.f32 0.0, %v10744
      %v10746 = vpop.f32.mrb[0].mxu0
      %10747 = vmatprep.mubr.f32.mxu0 0.0
      %10748 = vmatmul.mubr.f32.gmra.mrb[0].mxu0 %v10555
      %v10749 = vpop.f32.mrb[0].mxu0
      %v10750 = vadd.f32 0.0, %v10749
      %v10751 = vpop.f32.mrb[0].mxu0
      %10752 = vmatprep.mubr.f32.mxu0 0.0
      %10753 = vmatmul.mubr.f32.gmra.mrb[0].mxu0 %v10558
      %v10754 = vpop.f32.mrb[0].mxu0
      %v10755 = vadd.f32 0.0, %v10754
      %v10756 = vpop.f32.mrb[0].mxu0
      %10757 = vmatprep.mubr.f32.mxu0 0.0
      %10758 = vmatmul.mubr.f32.gmra.mrb[0].mxu0 %v10561
      %v10759 = vpop.f32.mrb[0].mxu0
      %v10760 = vadd.f32 0.0, %v10759
      %v10761 = vpop.f32.mrb[0].mxu0
      %10762 = vmatprep.mubr.f32.mxu0 0.0
      %10763 = vmatmul.mubr.f32.gmra.mrb[0].mxu0 %v10564
      %v10764 = vpop.f32.mrb[0].mxu0
      %v10765 = vadd.f32 0.0, %v10764
      %v10766 = vpop.f32.mrb[0].mxu0
      %10767 = vmatprep.mubr.f32.mxu0 0.0
      %10768 = vmatmul.mubr.f32.gmra.mrb[0].mxu0 %v10567
      %v10769 = vpop.f32.mrb[0].mxu0
      %v10770 = vadd.f32 0.0, %v10769
      %v10771 = vpop.f32.mrb[0].mxu0
      %10772 = vmatprep.mubr.f32.mxu0 0.0
      %10773 = vmatmul.mubr.f32.gmra.mrb[0].mxu0 %v10570
      %v10774 = vpop.f32.mrb[0].mxu0
      %v10775 = vadd.f32 0.0, %v10774
      %v10776 = vpop.f32.mrb[0].mxu0
      %10777 = vmatprep.mubr.f32.mxu0 0.0
      %10778 = vmatmul.mubr.f32.gmra.mrb[0].mxu0 %v10573
      %v10779 = vpop.f32.mrb[0].mxu0
      %v10780 = vadd.f32 0.0, %v10779
      %v10781 = vpop.f32.mrb[0].mxu0
      %10782 = vmatprep.mubr.f32.mxu0 0.0
      %10783 = vmatmul.mubr.f32.gmra.mrb[0].mxu0 %v10576
      %v10784 = vpop.f32.mrb[0].mxu0
      %v10785 = vadd.f32 0.0, %v10784
      %v10786 = vpop.f32.mrb[0].mxu0
      %10787 = vmatprep.mubr.f32.mxu0 0.0
      %10788 = vmatmul.mubr.f32.gmra.mrb[0].mxu0 %v10579
      %v10789 = vpop.f32.mrb[0].mxu0
      %v10790 = vadd.f32 0.0, %v10789
      %v10791 = vpop.f32.mrb[0].mxu0
      %10792 = vmatprep.mubr.f32.mxu0 0.0
      %10793 = vmatmul.mubr.f32.gmra.mrb[0].mxu0 %v10582
      %v10794 = vpop.f32.mrb[0].mxu0
      %v10795 = vadd.f32 0.0, %v10794
      %v10796 = vpop.f32.mrb[0].mxu0
      %10797 = vmatprep.mubr.f32.mxu0 0.0
      %10798 = vmatmul.mubr.f32.gmra.mrb[0].mxu0 %v10585
      %v10799 = vpop.f32.mrb[0].mxu0
      %v10800 = vadd.f32 0.0, %v10799
      %v10801 = vpop.f32.mrb[0].mxu0
      %10802 = vmatprep.mubr.f32.mxu0 0.0
      %10803 = vmatmul.mubr.f32.gmra.mrb[0].mxu0 %v10588
      %v10804 = vpop.f32.mrb[0].mxu0
      %v10805 = vadd.f32 0.0, %v10804
      %v10806 = vpop.f32.mrb[0].mxu0
      %10807 = vmatprep.mubr.f32.mxu0 0.0
      %10808 = vmatmul.mubr.f32.gmra.mrb[0].mxu0 %v10591
      %v10809 = vpop.f32.mrb[0].mxu0
      %v10810 = vadd.f32 0.0, %v10809
      %v10811 = vpop.f32.mrb[0].mxu0
      %10812 = vmatprep.mubr.f32.mxu0 0.0
      %10813 = vmatmul.mubr.f32.gmra.mrb[0].mxu0 %v10594
      %v10814 = vpop.f32.mrb[0].mxu0
      %v10815 = vadd.f32 0.0, %v10814
      %v10816 = vpop.f32.mrb[0].mxu0
      %10817 = vmatprep.mubr.f32.mxu0 0.0
      %10818 = vmatmul.mubr.f32.gmra.mrb[0].mxu0 %v10597
      %v10819 = vpop.f32.mrb[0].mxu0
      %v10820 = vadd.f32 0.0, %v10819
      %v10821 = vpop.f32.mrb[0].mxu0
      %10822 = vmatprep.mubr.f32.mxu0 0.0
      %10823 = vmatmul.mubr.f32.gmra.mrb[0].mxu0 %v10600
      %v10824 = vpop.f32.mrb[0].mxu0
      %v10825 = vadd.f32 0.0, %v10824
      %v10826 = vpop.f32.mrb[0].mxu0
      %10827 = vmatprep.mubr.f32.mxu0 0.0
      %10828 = vmatmul.mubr.f32.gmra.mrb[0].mxu0 %v10603
      %v10829 = vpop.f32.mrb[0].mxu0
      %v10830 = vadd.f32 0.0, %v10829
      %v10831 = vpop.f32.mrb[0].mxu0
      %10832 = vdwg.mxu0
      %v10833 = vadd.f32 %v10444, %v10675
      %v10834 = vadd.f32 %v10445, %v10680
      %v10835 = vadd.f32 %v10446, %v10685
      %v10836 = vadd.f32 %v10447, %v10690
      %v10837 = vadd.f32 %v10448, %v10695
      %v10838 = vadd.f32 %v10449, %v10700
      %v10839 = vadd.f32 %v10450, %v10705
      %v10840 = vadd.f32 %v10451, %v10710
      %v10841 = vadd.f32 %v10452, %v10715
      %v10842 = vadd.f32 %v10453, %v10720
      %v10843 = vadd.f32 %v10454, %v10725
      %v10844 = vadd.f32 %v10455, %v10730
      %v10845 = vadd.f32 %v10456, %v10735
      %v10846 = vadd.f32 %v10457, %v10740
      %v10847 = vadd.f32 %v10458, %v10745
      %v10848 = vadd.f32 %v10459, %v10750
      %v10849 = vadd.f32 %v10460, %v10755
      %v10850 = vadd.f32 %v10461, %v10760
      %v10851 = vadd.f32 %v10462, %v10765
      %v10852 = vadd.f32 %v10463, %v10770
      %v10853 = vadd.f32 %v10464, %v10775
      %v10854 = vadd.f32 %v10465, %v10780
      %v10855 = vadd.f32 %v10466, %v10785
      %v10856 = vadd.f32 %v10467, %v10790
      %v10857 = vadd.f32 %v10468, %v10795
      %v10858 = vadd.f32 %v10469, %v10800
      %v10859 = vadd.f32 %v10470, %v10805
      %v10860 = vadd.f32 %v10471, %v10810
      %v10861 = vadd.f32 %v10472, %v10815
      %v10862 = vadd.f32 %v10473, %v10820
      %v10863 = vadd.f32 %v10474, %v10825
      %v10864 = vadd.f32 %v10475, %v10830
      %v10865 = vld [vmem:[%s3089 + $0x8] sm:$0xff]
      %v10866 = vld [vmem:[%s3089 + $0x10] sm:$0xff]
      %v10867 = vld [vmem:[%s3089 + $0x28] sm:$0xff]
      %v10868 = vld [vmem:[%s3089 + $0x30] sm:$0xff]
      %v10869 = vld [vmem:[%s3089 + $0x48] sm:$0xff]
      %v10870 = vld [vmem:[%s3089 + $0x50] sm:$0xff]
      %v10871 = vld [vmem:[%s3089 + $0x68] sm:$0xff]
      %v10872 = vld [vmem:[%s3089 + $0x70] sm:$0xff]
      %v10873 = vld [vmem:[%s3089 + $0x88] sm:$0xff]
      %v10874 = vld [vmem:[%s3089 + $0x90] sm:$0xff]
      %v10875 = vld [vmem:[%s3089 + $0xa8] sm:$0xff]
      %v10876 = vld [vmem:[%s3089 + $0xb0] sm:$0xff]
      %v10877 = vld [vmem:[%s3089 + $0xc8] sm:$0xff]
      %v10878 = vld [vmem:[%s3089 + $0xd0] sm:$0xff]
      %v10879 = vld [vmem:[%s3089 + $0xe8] sm:$0xff]
      %v10880 = vld [vmem:[%s3089 + $0xf0] sm:$0xff]
      %v10881 = vld [vmem:[%s3089 + $0x108] sm:$0xff]
      %v10882 = vld [vmem:[%s3089 + $0x110] sm:$0xff]
      %v10883 = vld [vmem:[%s3089 + $0x128] sm:$0xff]
      %v10884 = vld [vmem:[%s3089 + $0x130] sm:$0xff]
      %v10885 = vld [vmem:[%s3089 + $0x148] sm:$0xff]
      %v10886 = vld [vmem:[%s3089 + $0x150] sm:$0xff]
      %v10887 = vld [vmem:[%s3089 + $0x168] sm:$0xff]
      %v10888 = vld [vmem:[%s3089 + $0x170] sm:$0xff]
      %v10889 = vld [vmem:[%s3089 + $0x188] sm:$0xff]
      %v10890 = vld [vmem:[%s3089 + $0x190] sm:$0xff]
      %v10891 = vld [vmem:[%s3089 + $0x1a8] sm:$0xff]
      %v10892 = vld [vmem:[%s3089 + $0x1b0] sm:$0xff]
      %v10893 = vld [vmem:[%s3089 + $0x1c8] sm:$0xff]
      %v10894 = vld [vmem:[%s3089 + $0x1d0] sm:$0xff]
      %v10895 = vld [vmem:[%s3089 + $0x1e8] sm:$0xff]
      %v10896 = vld [vmem:[%s3089 + $0x1f0] sm:$0xff]
      %v10897 = vld [vmem:[%s7 + $0x1c] sm:$0xf]
      %v10899 = vsel %vm380, %v10865, 0
      %v10902 = vsel %vm380, %v10866, 0
      %v10905 = vsel %vm380, %v10867, 0
      %v10908 = vsel %vm380, %v10868, 0
      %v10911 = vsel %vm380, %v10869, 0
      %v10914 = vsel %vm380, %v10870, 0
      %v10917 = vsel %vm380, %v10871, 0
      %v10920 = vsel %vm380, %v10872, 0
      %v10923 = vsel %vm380, %v10873, 0
      %v10926 = vsel %vm380, %v10874, 0
      %v10929 = vsel %vm380, %v10875, 0
      %v10932 = vsel %vm380, %v10876, 0
      %v10935 = vsel %vm380, %v10877, 0
      %v10938 = vsel %vm380, %v10878, 0
      %v10941 = vsel %vm380, %v10879, 0
      %v10944 = vsel %vm380, %v10880, 0
      %v10947 = vsel %vm380, %v10881, 0
      %v10950 = vsel %vm380, %v10882, 0
      %v10953 = vsel %vm380, %v10883, 0
      %v10956 = vsel %vm380, %v10884, 0
      %v10959 = vsel %vm380, %v10885, 0
      %v10962 = vsel %vm380, %v10886, 0
      %v10965 = vsel %vm380, %v10887, 0
      %v10968 = vsel %vm380, %v10888, 0
      %v10971 = vsel %vm380, %v10889, 0
      %v10974 = vsel %vm380, %v10890, 0
      %v10977 = vsel %vm380, %v10891, 0
      %v10980 = vsel %vm380, %v10892, 0
      %v10983 = vsel %vm380, %v10893, 0
      %v10986 = vsel %vm380, %v10894, 0
      %v10989 = vsel %vm380, %v10895, 0
      %v10992 = vsel %vm380, %v10896, 0
      %v10995 = vsel %vm980, %v10897, 0
      %10997 = vmatprep.subr.mxu0 0.0
      %10998 = vmatpush1.msra.mxu0 %v10995
      %10999 = vmatprep.subr.mxu0 0.0
      %11000 = vmatpush1.msra.mxu0 0.0
      %11001 = vmatprep.subr.mxu0 0.0
      %11002 = vmatpush1.msra.mxu0 0.0
      %11003 = vmatprep.subr.mxu0 0.0
      %11004 = vmatpush1.msra.mxu0 0.0
      %11005 = vmatprep.subr.mxu0 0.0
      %11006 = vmatpush1.msra.mxu0 0.0
      %11007 = vmatprep.subr.mxu0 0.0
      %11008 = vmatpush1.msra.mxu0 0.0
      %11009 = vmatprep.subr.mxu0 0.0
      %11010 = vmatpush1.msra.mxu0 0.0
      %11011 = vmatprep.subr.mxu0 0.0
      %11012 = vmatpush1.msra.mxu0 0.0
      %11013 = vmatprep.subr.mxu0 0.0
      %11014 = vmatpush1.msra.mxu0 0.0
      %11015 = vmatprep.subr.mxu0 0.0
      %11016 = vmatpush1.msra.mxu0 0.0
      %11017 = vmatprep.subr.mxu0 0.0
      %11018 = vmatpush1.msra.mxu0 0.0
      %11019 = vmatprep.subr.mxu0 0.0
      %11020 = vmatpush1.msra.mxu0 0.0
      %11021 = vmatprep.subr.mxu0 0.0
      %11022 = vmatpush1.msra.mxu0 0.0
      %11023 = vmatprep.subr.mxu0 0.0
      %11024 = vmatpush1.msra.mxu0 0.0
      %11025 = vmatprep.subr.mxu0 0.0
      %11026 = vmatpush1.msra.mxu0 0.0
      %11027 = vmatprep.subr.mxu0 0.0
      %11028 = vmatpush1.msra.mxu0 0.0
      %11029 = vmatprep.subr.mxu0 0.0
      %11030 = vmatpush1.msra.mxu0 0.0
      %11031 = vmatprep.subr.mxu0 0.0
      %11032 = vmatpush1.msra.mxu0 0.0
      %11033 = vmatprep.subr.mxu0 0.0
      %11034 = vmatpush1.msra.mxu0 0.0
      %11035 = vmatprep.subr.mxu0 0.0
      %11036 = vmatpush1.msra.mxu0 0.0
      %11037 = vmatprep.subr.mxu0 0.0
      %11038 = vmatpush1.msra.mxu0 0.0
      %11039 = vmatprep.subr.mxu0 0.0
      %11040 = vmatpush1.msra.mxu0 0.0
      %11041 = vmatprep.subr.mxu0 0.0
      %11042 = vmatpush1.msra.mxu0 0.0
      %11043 = vmatprep.subr.mxu0 0.0
      %11044 = vmatpush1.msra.mxu0 0.0
      %11045 = vmatprep.subr.mxu0 0.0
      %11046 = vmatpush1.msra.mxu0 0.0
      %11047 = vmatprep.subr.mxu0 0.0
      %11048 = vmatpush1.msra.mxu0 0.0
      %11049 = vmatprep.subr.mxu0 0.0
      %11050 = vmatpush1.msra.mxu0 0.0
      %11051 = vmatprep.subr.mxu0 0.0
      %11052 = vmatpush1.msra.mxu0 0.0
      %11053 = vmatprep.subr.mxu0 0.0
      %11054 = vmatpush1.msra.mxu0 0.0
      %11055 = vmatprep.subr.mxu0 0.0
      %11056 = vmatpush1.msra.mxu0 0.0
      %11057 = vmatprep.subr.mxu0 0.0
      %11058 = vmatpush1.msra.mxu0 0.0
      %11059 = vmatprep.subr.mxu0 0.0
      %11060 = vmatpush1.msra.mxu0 0.0
      %11061 = vmatprep.mubr.f32.mxu0 0.0
      %11062 = vmatmul.mubr.f32.gmra.mrb[0].mxu0 %v10899
      %v11063 = vpop.f32.mrb[0].mxu0
      %v11064 = vadd.f32 0.0, %v11063
      %v11065 = vpop.f32.mrb[0].mxu0
      %11066 = vmatprep.mubr.f32.mxu0 0.0
      %11067 = vmatmul.mubr.f32.gmra.mrb[0].mxu0 %v10902
      %v11068 = vpop.f32.mrb[0].mxu0
      %v11069 = vadd.f32 0.0, %v11068
      %v11070 = vpop.f32.mrb[0].mxu0
      %11071 = vmatprep.mubr.f32.mxu0 0.0
      %11072 = vmatmul.mubr.f32.gmra.mrb[0].mxu0 %v10905
      %v11073 = vpop.f32.mrb[0].mxu0
      %v11074 = vadd.f32 0.0, %v11073
      %v11075 = vpop.f32.mrb[0].mxu0
      %11076 = vmatprep.mubr.f32.mxu0 0.0
      %11077 = vmatmul.mubr.f32.gmra.mrb[0].mxu0 %v10908
      %v11078 = vpop.f32.mrb[0].mxu0
      %v11079 = vadd.f32 0.0, %v11078
      %v11080 = vpop.f32.mrb[0].mxu0
      %11081 = vmatprep.mubr.f32.mxu0 0.0
      %11082 = vmatmul.mubr.f32.gmra.mrb[0].mxu0 %v10911
      %v11083 = vpop.f32.mrb[0].mxu0
      %v11084 = vadd.f32 0.0, %v11083
      %v11085 = vpop.f32.mrb[0].mxu0
      %11086 = vmatprep.mubr.f32.mxu0 0.0
      %11087 = vmatmul.mubr.f32.gmra.mrb[0].mxu0 %v10914
      %v11088 = vpop.f32.mrb[0].mxu0
      %v11089 = vadd.f32 0.0, %v11088
      %v11090 = vpop.f32.mrb[0].mxu0
      %11091 = vmatprep.mubr.f32.mxu0 0.0
      %11092 = vmatmul.mubr.f32.gmra.mrb[0].mxu0 %v10917
      %v11093 = vpop.f32.mrb[0].mxu0
      %v11094 = vadd.f32 0.0, %v11093
      %v11095 = vpop.f32.mrb[0].mxu0
      %11096 = vmatprep.mubr.f32.mxu0 0.0
      %11097 = vmatmul.mubr.f32.gmra.mrb[0].mxu0 %v10920
      %v11098 = vpop.f32.mrb[0].mxu0
      %v11099 = vadd.f32 0.0, %v11098
      %v11100 = vpop.f32.mrb[0].mxu0
      %11101 = vmatprep.mubr.f32.mxu0 0.0
      %11102 = vmatmul.mubr.f32.gmra.mrb[0].mxu0 %v10923
      %v11103 = vpop.f32.mrb[0].mxu0
      %v11104 = vadd.f32 0.0, %v11103
      %v11105 = vpop.f32.mrb[0].mxu0
      %11106 = vmatprep.mubr.f32.mxu0 0.0
      %11107 = vmatmul.mubr.f32.gmra.mrb[0].mxu0 %v10926
      %v11108 = vpop.f32.mrb[0].mxu0
      %v11109 = vadd.f32 0.0, %v11108
      %v11110 = vpop.f32.mrb[0].mxu0
      %11111 = vmatprep.mubr.f32.mxu0 0.0
      %11112 = vmatmul.mubr.f32.gmra.mrb[0].mxu0 %v10929
      %v11113 = vpop.f32.mrb[0].mxu0
      %v11114 = vadd.f32 0.0, %v11113
      %v11115 = vpop.f32.mrb[0].mxu0
      %11116 = vmatprep.mubr.f32.mxu0 0.0
      %11117 = vmatmul.mubr.f32.gmra.mrb[0].mxu0 %v10932
      %v11118 = vpop.f32.mrb[0].mxu0
      %v11119 = vadd.f32 0.0, %v11118
      %v11120 = vpop.f32.mrb[0].mxu0
      %11121 = vmatprep.mubr.f32.mxu0 0.0
      %11122 = vmatmul.mubr.f32.gmra.mrb[0].mxu0 %v10935
      %v11123 = vpop.f32.mrb[0].mxu0
      %v11124 = vadd.f32 0.0, %v11123
      %v11125 = vpop.f32.mrb[0].mxu0
      %11126 = vmatprep.mubr.f32.mxu0 0.0
      %11127 = vmatmul.mubr.f32.gmra.mrb[0].mxu0 %v10938
      %v11128 = vpop.f32.mrb[0].mxu0
      %v11129 = vadd.f32 0.0, %v11128
      %v11130 = vpop.f32.mrb[0].mxu0
      %11131 = vmatprep.mubr.f32.mxu0 0.0
      %11132 = vmatmul.mubr.f32.gmra.mrb[0].mxu0 %v10941
      %v11133 = vpop.f32.mrb[0].mxu0
      %v11134 = vadd.f32 0.0, %v11133
      %v11135 = vpop.f32.mrb[0].mxu0
      %11136 = vmatprep.mubr.f32.mxu0 0.0
      %11137 = vmatmul.mubr.f32.gmra.mrb[0].mxu0 %v10944
      %v11138 = vpop.f32.mrb[0].mxu0
      %v11139 = vadd.f32 0.0, %v11138
      %v11140 = vpop.f32.mrb[0].mxu0
      %11141 = vmatprep.mubr.f32.mxu0 0.0
      %11142 = vmatmul.mubr.f32.gmra.mrb[0].mxu0 %v10947
      %v11143 = vpop.f32.mrb[0].mxu0
      %v11144 = vadd.f32 0.0, %v11143
      %v11145 = vpop.f32.mrb[0].mxu0
      %11146 = vmatprep.mubr.f32.mxu0 0.0
      %11147 = vmatmul.mubr.f32.gmra.mrb[0].mxu0 %v10950
      %v11148 = vpop.f32.mrb[0].mxu0
      %v11149 = vadd.f32 0.0, %v11148
      %v11150 = vpop.f32.mrb[0].mxu0
      %11151 = vmatprep.mubr.f32.mxu0 0.0
      %11152 = vmatmul.mubr.f32.gmra.mrb[0].mxu0 %v10953
      %v11153 = vpop.f32.mrb[0].mxu0
      %v11154 = vadd.f32 0.0, %v11153
      %v11155 = vpop.f32.mrb[0].mxu0
      %11156 = vmatprep.mubr.f32.mxu0 0.0
      %11157 = vmatmul.mubr.f32.gmra.mrb[0].mxu0 %v10956
      %v11158 = vpop.f32.mrb[0].mxu0
      %v11159 = vadd.f32 0.0, %v11158
      %v11160 = vpop.f32.mrb[0].mxu0
      %11161 = vmatprep.mubr.f32.mxu0 0.0
      %11162 = vmatmul.mubr.f32.gmra.mrb[0].mxu0 %v10959
      %v11163 = vpop.f32.mrb[0].mxu0
      %v11164 = vadd.f32 0.0, %v11163
      %v11165 = vpop.f32.mrb[0].mxu0
      %11166 = vmatprep.mubr.f32.mxu0 0.0
      %11167 = vmatmul.mubr.f32.gmra.mrb[0].mxu0 %v10962
      %v11168 = vpop.f32.mrb[0].mxu0
      %v11169 = vadd.f32 0.0, %v11168
      %v11170 = vpop.f32.mrb[0].mxu0
      %11171 = vmatprep.mubr.f32.mxu0 0.0
      %11172 = vmatmul.mubr.f32.gmra.mrb[0].mxu0 %v10965
      %v11173 = vpop.f32.mrb[0].mxu0
      %v11174 = vadd.f32 0.0, %v11173
      %v11175 = vpop.f32.mrb[0].mxu0
      %11176 = vmatprep.mubr.f32.mxu0 0.0
      %11177 = vmatmul.mubr.f32.gmra.mrb[0].mxu0 %v10968
      %v11178 = vpop.f32.mrb[0].mxu0
      %v11179 = vadd.f32 0.0, %v11178
      %v11180 = vpop.f32.mrb[0].mxu0
      %11181 = vmatprep.mubr.f32.mxu0 0.0
      %11182 = vmatmul.mubr.f32.gmra.mrb[0].mxu0 %v10971
      %v11183 = vpop.f32.mrb[0].mxu0
      %v11184 = vadd.f32 0.0, %v11183
      %v11185 = vpop.f32.mrb[0].mxu0
      %11186 = vmatprep.mubr.f32.mxu0 0.0
      %11187 = vmatmul.mubr.f32.gmra.mrb[0].mxu0 %v10974
      %v11188 = vpop.f32.mrb[0].mxu0
      %v11189 = vadd.f32 0.0, %v11188
      %v11190 = vpop.f32.mrb[0].mxu0
      %11191 = vmatprep.mubr.f32.mxu0 0.0
      %11192 = vmatmul.mubr.f32.gmra.mrb[0].mxu0 %v10977
      %v11193 = vpop.f32.mrb[0].mxu0
      %v11194 = vadd.f32 0.0, %v11193
      %v11195 = vpop.f32.mrb[0].mxu0
      %11196 = vmatprep.mubr.f32.mxu0 0.0
      %11197 = vmatmul.mubr.f32.gmra.mrb[0].mxu0 %v10980
      %v11198 = vpop.f32.mrb[0].mxu0
      %v11199 = vadd.f32 0.0, %v11198
      %v11200 = vpop.f32.mrb[0].mxu0
      %11201 = vmatprep.mubr.f32.mxu0 0.0
      %11202 = vmatmul.mubr.f32.gmra.mrb[0].mxu0 %v10983
      %v11203 = vpop.f32.mrb[0].mxu0
      %v11204 = vadd.f32 0.0, %v11203
      %v11205 = vpop.f32.mrb[0].mxu0
      %11206 = vmatprep.mubr.f32.mxu0 0.0
      %11207 = vmatmul.mubr.f32.gmra.mrb[0].mxu0 %v10986
      %v11208 = vpop.f32.mrb[0].mxu0
      %v11209 = vadd.f32 0.0, %v11208
      %v11210 = vpop.f32.mrb[0].mxu0
      %11211 = vmatprep.mubr.f32.mxu0 0.0
      %11212 = vmatmul.mubr.f32.gmra.mrb[0].mxu0 %v10989
      %v11213 = vpop.f32.mrb[0].mxu0
      %v11214 = vadd.f32 0.0, %v11213
      %v11215 = vpop.f32.mrb[0].mxu0
      %11216 = vmatprep.mubr.f32.mxu0 0.0
      %11217 = vmatmul.mubr.f32.gmra.mrb[0].mxu0 %v10992
      %v11218 = vpop.f32.mrb[0].mxu0
      %v11219 = vadd.f32 0.0, %v11218
      %v11220 = vpop.f32.mrb[0].mxu0
      %11221 = vdwg.mxu0
      %v11222 = vadd.f32 %v10833, %v11064
      %v11223 = vadd.f32 %v10834, %v11069
      %v11224 = vadd.f32 %v10835, %v11074
      %v11225 = vadd.f32 %v10836, %v11079
      %v11226 = vadd.f32 %v10837, %v11084
      %v11227 = vadd.f32 %v10838, %v11089
      %v11228 = vadd.f32 %v10839, %v11094
      %v11229 = vadd.f32 %v10840, %v11099
      %v11230 = vadd.f32 %v10841, %v11104
      %v11231 = vadd.f32 %v10842, %v11109
      %v11232 = vadd.f32 %v10843, %v11114
      %v11233 = vadd.f32 %v10844, %v11119
      %v11234 = vadd.f32 %v10845, %v11124
      %v11235 = vadd.f32 %v10846, %v11129
      %v11236 = vadd.f32 %v10847, %v11134
      %v11237 = vadd.f32 %v10848, %v11139
      %v11238 = vadd.f32 %v10849, %v11144
      %v11239 = vadd.f32 %v10850, %v11149
      %v11240 = vadd.f32 %v10851, %v11154
      %v11241 = vadd.f32 %v10852, %v11159
      %v11242 = vadd.f32 %v10853, %v11164
      %v11243 = vadd.f32 %v10854, %v11169
      %v11244 = vadd.f32 %v10855, %v11174
      %v11245 = vadd.f32 %v10856, %v11179
      %v11246 = vadd.f32 %v10857, %v11184
      %v11247 = vadd.f32 %v10858, %v11189
      %v11248 = vadd.f32 %v10859, %v11194
      %v11249 = vadd.f32 %v10860, %v11199
      %v11250 = vadd.f32 %v10861, %v11204
      %v11251 = vadd.f32 %v10862, %v11209
      %v11252 = vadd.f32 %v10863, %v11214
      %v11253 = vadd.f32 %v10864, %v11219
      %v11254 = vld [vmem:[%s3089 + $0x9] sm:$0xff]
      %v11255 = vld [vmem:[%s3089 + $0x11] sm:$0xff]
      %v11256 = vld [vmem:[%s3089 + $0x29] sm:$0xff]
      %v11257 = vld [vmem:[%s3089 + $0x31] sm:$0xff]
      %v11258 = vld [vmem:[%s3089 + $0x49] sm:$0xff]
      %v11259 = vld [vmem:[%s3089 + $0x51] sm:$0xff]
      %v11260 = vld [vmem:[%s3089 + $0x69] sm:$0xff]
      %v11261 = vld [vmem:[%s3089 + $0x71] sm:$0xff]
      %v11262 = vld [vmem:[%s3089 + $0x89] sm:$0xff]
      %v11263 = vld [vmem:[%s3089 + $0x91] sm:$0xff]
      %v11264 = vld [vmem:[%s3089 + $0xa9] sm:$0xff]
      %v11265 = vld [vmem:[%s3089 + $0xb1] sm:$0xff]
      %v11266 = vld [vmem:[%s3089 + $0xc9] sm:$0xff]
      %v11267 = vld [vmem:[%s3089 + $0xd1] sm:$0xff]
      %v11268 = vld [vmem:[%s3089 + $0xe9] sm:$0xff]
      %v11269 = vld [vmem:[%s3089 + $0xf1] sm:$0xff]
      %v11270 = vld [vmem:[%s3089 + $0x109] sm:$0xff]
      %v11271 = vld [vmem:[%s3089 + $0x111] sm:$0xff]
      %v11272 = vld [vmem:[%s3089 + $0x129] sm:$0xff]
      %v11273 = vld [vmem:[%s3089 + $0x131] sm:$0xff]
      %v11274 = vld [vmem:[%s3089 + $0x149] sm:$0xff]
      %v11275 = vld [vmem:[%s3089 + $0x151] sm:$0xff]
      %v11276 = vld [vmem:[%s3089 + $0x169] sm:$0xff]
      %v11277 = vld [vmem:[%s3089 + $0x171] sm:$0xff]
      %v11278 = vld [vmem:[%s3089 + $0x189] sm:$0xff]
      %v11279 = vld [vmem:[%s3089 + $0x191] sm:$0xff]
      %v11280 = vld [vmem:[%s3089 + $0x1a9] sm:$0xff]
      %v11281 = vld [vmem:[%s3089 + $0x1b1] sm:$0xff]
      %v11282 = vld [vmem:[%s3089 + $0x1c9] sm:$0xff]
      %v11283 = vld [vmem:[%s3089 + $0x1d1] sm:$0xff]
      %v11284 = vld [vmem:[%s3089 + $0x1e9] sm:$0xff]
      %v11285 = vld [vmem:[%s3089 + $0x1f1] sm:$0xff]
      %v11286 = vld [vmem:[%s7 + $0x20] sm:$0xf]
      %v11288 = vsel %vm380, %v11254, 0
      %v11291 = vsel %vm380, %v11255, 0
      %v11294 = vsel %vm380, %v11256, 0
      %v11297 = vsel %vm380, %v11257, 0
      %v11300 = vsel %vm380, %v11258, 0
      %v11303 = vsel %vm380, %v11259, 0
      %v11306 = vsel %vm380, %v11260, 0
      %v11309 = vsel %vm380, %v11261, 0
      %v11312 = vsel %vm380, %v11262, 0
      %v11315 = vsel %vm380, %v11263, 0
      %v11318 = vsel %vm380, %v11264, 0
      %v11321 = vsel %vm380, %v11265, 0
      %v11324 = vsel %vm380, %v11266, 0
      %v11327 = vsel %vm380, %v11267, 0
      %v11330 = vsel %vm380, %v11268, 0
      %v11333 = vsel %vm380, %v11269, 0
      %v11336 = vsel %vm380, %v11270, 0
      %v11339 = vsel %vm380, %v11271, 0
      %v11342 = vsel %vm380, %v11272, 0
      %v11345 = vsel %vm380, %v11273, 0
      %v11348 = vsel %vm380, %v11274, 0
      %v11351 = vsel %vm380, %v11275, 0
      %v11354 = vsel %vm380, %v11276, 0
      %v11357 = vsel %vm380, %v11277, 0
      %v11360 = vsel %vm380, %v11278, 0
      %v11363 = vsel %vm380, %v11279, 0
      %v11366 = vsel %vm380, %v11280, 0
      %v11369 = vsel %vm380, %v11281, 0
      %v11372 = vsel %vm380, %v11282, 0
      %v11375 = vsel %vm380, %v11283, 0
      %v11378 = vsel %vm380, %v11284, 0
      %v11381 = vsel %vm380, %v11285, 0
      %v11384 = vsel %vm980, %v11286, 0
      %11386 = vmatprep.subr.mxu0 0.0
      %11387 = vmatpush1.msra.mxu0 %v11384
      %11388 = vmatprep.subr.mxu0 0.0
      %11389 = vmatpush1.msra.mxu0 0.0
      %11390 = vmatprep.subr.mxu0 0.0
      %11391 = vmatpush1.msra.mxu0 0.0
      %11392 = vmatprep.subr.mxu0 0.0
      %11393 = vmatpush1.msra.mxu0 0.0
      %11394 = vmatprep.subr.mxu0 0.0
      %11395 = vmatpush1.msra.mxu0 0.0
      %11396 = vmatprep.subr.mxu0 0.0
      %11397 = vmatpush1.msra.mxu0 0.0
      %11398 = vmatprep.subr.mxu0 0.0
      %11399 = vmatpush1.msra.mxu0 0.0
      %11400 = vmatprep.subr.mxu0 0.0
      %11401 = vmatpush1.msra.mxu0 0.0
      %11402 = vmatprep.subr.mxu0 0.0
      %11403 = vmatpush1.msra.mxu0 0.0
      %11404 = vmatprep.subr.mxu0 0.0
      %11405 = vmatpush1.msra.mxu0 0.0
      %11406 = vmatprep.subr.mxu0 0.0
      %11407 = vmatpush1.msra.mxu0 0.0
      %11408 = vmatprep.subr.mxu0 0.0
      %11409 = vmatpush1.msra.mxu0 0.0
      %11410 = vmatprep.subr.mxu0 0.0
      %11411 = vmatpush1.msra.mxu0 0.0
      %11412 = vmatprep.subr.mxu0 0.0
      %11413 = vmatpush1.msra.mxu0 0.0
      %11414 = vmatprep.subr.mxu0 0.0
      %11415 = vmatpush1.msra.mxu0 0.0
      %11416 = vmatprep.subr.mxu0 0.0
      %11417 = vmatpush1.msra.mxu0 0.0
      %11418 = vmatprep.subr.mxu0 0.0
      %11419 = vmatpush1.msra.mxu0 0.0
      %11420 = vmatprep.subr.mxu0 0.0
      %11421 = vmatpush1.msra.mxu0 0.0
      %11422 = vmatprep.subr.mxu0 0.0
      %11423 = vmatpush1.msra.mxu0 0.0
      %11424 = vmatprep.subr.mxu0 0.0
      %11425 = vmatpush1.msra.mxu0 0.0
      %11426 = vmatprep.subr.mxu0 0.0
      %11427 = vmatpush1.msra.mxu0 0.0
      %11428 = vmatprep.subr.mxu0 0.0
      %11429 = vmatpush1.msra.mxu0 0.0
      %11430 = vmatprep.subr.mxu0 0.0
      %11431 = vmatpush1.msra.mxu0 0.0
      %11432 = vmatprep.subr.mxu0 0.0
      %11433 = vmatpush1.msra.mxu0 0.0
      %11434 = vmatprep.subr.mxu0 0.0
      %11435 = vmatpush1.msra.mxu0 0.0
      %11436 = vmatprep.subr.mxu0 0.0
      %11437 = vmatpush1.msra.mxu0 0.0
      %11438 = vmatprep.subr.mxu0 0.0
      %11439 = vmatpush1.msra.mxu0 0.0
      %11440 = vmatprep.subr.mxu0 0.0
      %11441 = vmatpush1.msra.mxu0 0.0
      %11442 = vmatprep.subr.mxu0 0.0
      %11443 = vmatpush1.msra.mxu0 0.0
      %11444 = vmatprep.subr.mxu0 0.0
      %11445 = vmatpush1.msra.mxu0 0.0
      %11446 = vmatprep.subr.mxu0 0.0
      %11447 = vmatpush1.msra.mxu0 0.0
      %11448 = vmatprep.subr.mxu0 0.0
      %11449 = vmatpush1.msra.mxu0 0.0
      %11450 = vmatprep.mubr.f32.mxu0 0.0
      %11451 = vmatmul.mubr.f32.gmra.mrb[0].mxu0 %v11288
      %v11452 = vpop.f32.mrb[0].mxu0
      %v11453 = vadd.f32 0.0, %v11452
      %v11454 = vpop.f32.mrb[0].mxu0
      %11455 = vmatprep.mubr.f32.mxu0 0.0
      %11456 = vmatmul.mubr.f32.gmra.mrb[0].mxu0 %v11291
      %v11457 = vpop.f32.mrb[0].mxu0
      %v11458 = vadd.f32 0.0, %v11457
      %v11459 = vpop.f32.mrb[0].mxu0
      %11460 = vmatprep.mubr.f32.mxu0 0.0
      %11461 = vmatmul.mubr.f32.gmra.mrb[0].mxu0 %v11294
      %v11462 = vpop.f32.mrb[0].mxu0
      %v11463 = vadd.f32 0.0, %v11462
      %v11464 = vpop.f32.mrb[0].mxu0
      %11465 = vmatprep.mubr.f32.mxu0 0.0
      %11466 = vmatmul.mubr.f32.gmra.mrb[0].mxu0 %v11297
      %v11467 = vpop.f32.mrb[0].mxu0
      %v11468 = vadd.f32 0.0, %v11467
      %v11469 = vpop.f32.mrb[0].mxu0
      %11470 = vmatprep.mubr.f32.mxu0 0.0
      %11471 = vmatmul.mubr.f32.gmra.mrb[0].mxu0 %v11300
      %v11472 = vpop.f32.mrb[0].mxu0
      %v11473 = vadd.f32 0.0, %v11472
      %v11474 = vpop.f32.mrb[0].mxu0
      %11475 = vmatprep.mubr.f32.mxu0 0.0
      %11476 = vmatmul.mubr.f32.gmra.mrb[0].mxu0 %v11303
      %v11477 = vpop.f32.mrb[0].mxu0
      %v11478 = vadd.f32 0.0, %v11477
      %v11479 = vpop.f32.mrb[0].mxu0
      %11480 = vmatprep.mubr.f32.mxu0 0.0
      %11481 = vmatmul.mubr.f32.gmra.mrb[0].mxu0 %v11306
      %v11482 = vpop.f32.mrb[0].mxu0
      %v11483 = vadd.f32 0.0, %v11482
      %v11484 = vpop.f32.mrb[0].mxu0
      %11485 = vmatprep.mubr.f32.mxu0 0.0
      %11486 = vmatmul.mubr.f32.gmra.mrb[0].mxu0 %v11309
      %v11487 = vpop.f32.mrb[0].mxu0
      %v11488 = vadd.f32 0.0, %v11487
      %v11489 = vpop.f32.mrb[0].mxu0
      %11490 = vmatprep.mubr.f32.mxu0 0.0
      %11491 = vmatmul.mubr.f32.gmra.mrb[0].mxu0 %v11312
      %v11492 = vpop.f32.mrb[0].mxu0
      %v11493 = vadd.f32 0.0, %v11492
      %v11494 = vpop.f32.mrb[0].mxu0
      %11495 = vmatprep.mubr.f32.mxu0 0.0
      %11496 = vmatmul.mubr.f32.gmra.mrb[0].mxu0 %v11315
      %v11497 = vpop.f32.mrb[0].mxu0
      %v11498 = vadd.f32 0.0, %v11497
      %v11499 = vpop.f32.mrb[0].mxu0
      %11500 = vmatprep.mubr.f32.mxu0 0.0
      %11501 = vmatmul.mubr.f32.gmra.mrb[0].mxu0 %v11318
      %v11502 = vpop.f32.mrb[0].mxu0
      %v11503 = vadd.f32 0.0, %v11502
      %v11504 = vpop.f32.mrb[0].mxu0
      %11505 = vmatprep.mubr.f32.mxu0 0.0
      %11506 = vmatmul.mubr.f32.gmra.mrb[0].mxu0 %v11321
      %v11507 = vpop.f32.mrb[0].mxu0
      %v11508 = vadd.f32 0.0, %v11507
      %v11509 = vpop.f32.mrb[0].mxu0
      %11510 = vmatprep.mubr.f32.mxu0 0.0
      %11511 = vmatmul.mubr.f32.gmra.mrb[0].mxu0 %v11324
      %v11512 = vpop.f32.mrb[0].mxu0
      %v11513 = vadd.f32 0.0, %v11512
      %v11514 = vpop.f32.mrb[0].mxu0
      %11515 = vmatprep.mubr.f32.mxu0 0.0
      %11516 = vmatmul.mubr.f32.gmra.mrb[0].mxu0 %v11327
      %v11517 = vpop.f32.mrb[0].mxu0
      %v11518 = vadd.f32 0.0, %v11517
      %v11519 = vpop.f32.mrb[0].mxu0
      %11520 = vmatprep.mubr.f32.mxu0 0.0
      %11521 = vmatmul.mubr.f32.gmra.mrb[0].mxu0 %v11330
      %v11522 = vpop.f32.mrb[0].mxu0
      %v11523 = vadd.f32 0.0, %v11522
      %v11524 = vpop.f32.mrb[0].mxu0
      %11525 = vmatprep.mubr.f32.mxu0 0.0
      %11526 = vmatmul.mubr.f32.gmra.mrb[0].mxu0 %v11333
      %v11527 = vpop.f32.mrb[0].mxu0
      %v11528 = vadd.f32 0.0, %v11527
      %v11529 = vpop.f32.mrb[0].mxu0
      %11530 = vmatprep.mubr.f32.mxu0 0.0
      %11531 = vmatmul.mubr.f32.gmra.mrb[0].mxu0 %v11336
      %v11532 = vpop.f32.mrb[0].mxu0
      %v11533 = vadd.f32 0.0, %v11532
      %v11534 = vpop.f32.mrb[0].mxu0
      %11535 = vmatprep.mubr.f32.mxu0 0.0
      %11536 = vmatmul.mubr.f32.gmra.mrb[0].mxu0 %v11339
      %v11537 = vpop.f32.mrb[0].mxu0
      %v11538 = vadd.f32 0.0, %v11537
      %v11539 = vpop.f32.mrb[0].mxu0
      %11540 = vmatprep.mubr.f32.mxu0 0.0
      %11541 = vmatmul.mubr.f32.gmra.mrb[0].mxu0 %v11342
      %v11542 = vpop.f32.mrb[0].mxu0
      %v11543 = vadd.f32 0.0, %v11542
      %v11544 = vpop.f32.mrb[0].mxu0
      %11545 = vmatprep.mubr.f32.mxu0 0.0
      %11546 = vmatmul.mubr.f32.gmra.mrb[0].mxu0 %v11345
      %v11547 = vpop.f32.mrb[0].mxu0
      %v11548 = vadd.f32 0.0, %v11547
      %v11549 = vpop.f32.mrb[0].mxu0
      %11550 = vmatprep.mubr.f32.mxu0 0.0
      %11551 = vmatmul.mubr.f32.gmra.mrb[0].mxu0 %v11348
      %v11552 = vpop.f32.mrb[0].mxu0
      %v11553 = vadd.f32 0.0, %v11552
      %v11554 = vpop.f32.mrb[0].mxu0
      %11555 = vmatprep.mubr.f32.mxu0 0.0
      %11556 = vmatmul.mubr.f32.gmra.mrb[0].mxu0 %v11351
      %v11557 = vpop.f32.mrb[0].mxu0
      %v11558 = vadd.f32 0.0, %v11557
      %v11559 = vpop.f32.mrb[0].mxu0
      %11560 = vmatprep.mubr.f32.mxu0 0.0
      %11561 = vmatmul.mubr.f32.gmra.mrb[0].mxu0 %v11354
      %v11562 = vpop.f32.mrb[0].mxu0
      %v11563 = vadd.f32 0.0, %v11562
      %v11564 = vpop.f32.mrb[0].mxu0
      %11565 = vmatprep.mubr.f32.mxu0 0.0
      %11566 = vmatmul.mubr.f32.gmra.mrb[0].mxu0 %v11357
      %v11567 = vpop.f32.mrb[0].mxu0
      %v11568 = vadd.f32 0.0, %v11567
      %v11569 = vpop.f32.mrb[0].mxu0
      %11570 = vmatprep.mubr.f32.mxu0 0.0
      %11571 = vmatmul.mubr.f32.gmra.mrb[0].mxu0 %v11360
      %v11572 = vpop.f32.mrb[0].mxu0
      %v11573 = vadd.f32 0.0, %v11572
      %v11574 = vpop.f32.mrb[0].mxu0
      %11575 = vmatprep.mubr.f32.mxu0 0.0
      %11576 = vmatmul.mubr.f32.gmra.mrb[0].mxu0 %v11363
      %v11577 = vpop.f32.mrb[0].mxu0
      %v11578 = vadd.f32 0.0, %v11577
      %v11579 = vpop.f32.mrb[0].mxu0
      %11580 = vmatprep.mubr.f32.mxu0 0.0
      %11581 = vmatmul.mubr.f32.gmra.mrb[0].mxu0 %v11366
      %v11582 = vpop.f32.mrb[0].mxu0
      %v11583 = vadd.f32 0.0, %v11582
      %v11584 = vpop.f32.mrb[0].mxu0
      %11585 = vmatprep.mubr.f32.mxu0 0.0
      %11586 = vmatmul.mubr.f32.gmra.mrb[0].mxu0 %v11369
      %v11587 = vpop.f32.mrb[0].mxu0
      %v11588 = vadd.f32 0.0, %v11587
      %v11589 = vpop.f32.mrb[0].mxu0
      %11590 = vmatprep.mubr.f32.mxu0 0.0
      %11591 = vmatmul.mubr.f32.gmra.mrb[0].mxu0 %v11372
      %v11592 = vpop.f32.mrb[0].mxu0
      %v11593 = vadd.f32 0.0, %v11592
      %v11594 = vpop.f32.mrb[0].mxu0
      %11595 = vmatprep.mubr.f32.mxu0 0.0
      %11596 = vmatmul.mubr.f32.gmra.mrb[0].mxu0 %v11375
      %v11597 = vpop.f32.mrb[0].mxu0
      %v11598 = vadd.f32 0.0, %v11597
      %v11599 = vpop.f32.mrb[0].mxu0
      %11600 = vmatprep.mubr.f32.mxu0 0.0
      %11601 = vmatmul.mubr.f32.gmra.mrb[0].mxu0 %v11378
      %v11602 = vpop.f32.mrb[0].mxu0
      %v11603 = vadd.f32 0.0, %v11602
      %v11604 = vpop.f32.mrb[0].mxu0
      %11605 = vmatprep.mubr.f32.mxu0 0.0
      %11606 = vmatmul.mubr.f32.gmra.mrb[0].mxu0 %v11381
      %v11607 = vpop.f32.mrb[0].mxu0
      %v11608 = vadd.f32 0.0, %v11607
      %v11609 = vpop.f32.mrb[0].mxu0
      %11610 = vdwg.mxu0
      %v11611 = vadd.f32 %v11222, %v11453
      %v11612 = vadd.f32 %v11223, %v11458
      %v11613 = vadd.f32 %v11224, %v11463
      %v11614 = vadd.f32 %v11225, %v11468
      %v11615 = vadd.f32 %v11226, %v11473
      %v11616 = vadd.f32 %v11227, %v11478
      %v11617 = vadd.f32 %v11228, %v11483
      %v11618 = vadd.f32 %v11229, %v11488
      %v11619 = vadd.f32 %v11230, %v11493
      %v11620 = vadd.f32 %v11231, %v11498
      %v11621 = vadd.f32 %v11232, %v11503
      %v11622 = vadd.f32 %v11233, %v11508
      %v11623 = vadd.f32 %v11234, %v11513
      %v11624 = vadd.f32 %v11235, %v11518
      %v11625 = vadd.f32 %v11236, %v11523
      %v11626 = vadd.f32 %v11237, %v11528
      %v11627 = vadd.f32 %v11238, %v11533
      %v11628 = vadd.f32 %v11239, %v11538
      %v11629 = vadd.f32 %v11240, %v11543
      %v11630 = vadd.f32 %v11241, %v11548
      %v11631 = vadd.f32 %v11242, %v11553
      %v11632 = vadd.f32 %v11243, %v11558
      %v11633 = vadd.f32 %v11244, %v11563
      %v11634 = vadd.f32 %v11245, %v11568
      %v11635 = vadd.f32 %v11246, %v11573
      %v11636 = vadd.f32 %v11247, %v11578
      %v11637 = vadd.f32 %v11248, %v11583
      %v11638 = vadd.f32 %v11249, %v11588
      %v11639 = vadd.f32 %v11250, %v11593
      %v11640 = vadd.f32 %v11251, %v11598
      %v11641 = vadd.f32 %v11252, %v11603
      %v11642 = vadd.f32 %v11253, %v11608
      %v11643 = vld [vmem:[%s8] sm:$0x1]
      %v11644 = vld [vmem:[%s9] sm:$0x1]
      %v11645 = vsel %vm380, %v11611, 0.0
      %v11646 = vsel %vm380, %v11612, 0.0
      %v11647 = vadd.f32 %v11645, %v11646
      %v11648 = vsel %vm380, %v11613, 0.0
      %v11649 = vadd.f32 %v11647, %v11648
      %v11650 = vsel %vm380, %v11614, 0.0
      %v11651 = vadd.f32 %v11649, %v11650
      %v11652 = vsel %vm380, %v11615, 0.0
      %v11653 = vadd.f32 %v11651, %v11652
      %v11654 = vsel %vm380, %v11616, 0.0
      %v11655 = vadd.f32 %v11653, %v11654
      %v11656 = vsel %vm380, %v11617, 0.0
      %v11657 = vadd.f32 %v11655, %v11656
      %v11658 = vsel %vm380, %v11618, 0.0
      %v11659 = vadd.f32 %v11657, %v11658
      %v11660 = vsel %vm380, %v11619, 0.0
      %v11661 = vadd.f32 %v11659, %v11660
      %v11662 = vsel %vm380, %v11620, 0.0
      %v11663 = vadd.f32 %v11661, %v11662
      %v11664 = vsel %vm380, %v11621, 0.0
      %v11665 = vadd.f32 %v11663, %v11664
      %v11666 = vsel %vm380, %v11622, 0.0
      %v11667 = vadd.f32 %v11665, %v11666
      %v11668 = vsel %vm380, %v11623, 0.0
      %v11669 = vadd.f32 %v11667, %v11668
      %v11670 = vsel %vm380, %v11624, 0.0
      %v11671 = vadd.f32 %v11669, %v11670
      %v11672 = vsel %vm380, %v11625, 0.0
      %v11673 = vadd.f32 %v11671, %v11672
      %v11674 = vsel %vm380, %v11626, 0.0
      %v11675 = vadd.f32 %v11673, %v11674
      %v11676 = vsel %vm380, %v11627, 0.0
      %v11677 = vadd.f32 %v11675, %v11676
      %v11678 = vsel %vm380, %v11628, 0.0
      %v11679 = vadd.f32 %v11677, %v11678
      %v11680 = vsel %vm380, %v11629, 0.0
      %v11681 = vadd.f32 %v11679, %v11680
      %v11682 = vsel %vm380, %v11630, 0.0
      %v11683 = vadd.f32 %v11681, %v11682
      %v11684 = vsel %vm380, %v11631, 0.0
      %v11685 = vadd.f32 %v11683, %v11684
      %v11686 = vsel %vm380, %v11632, 0.0
      %v11687 = vadd.f32 %v11685, %v11686
      %v11688 = vsel %vm380, %v11633, 0.0
      %v11689 = vadd.f32 %v11687, %v11688
      %v11690 = vsel %vm380, %v11634, 0.0
      %v11691 = vadd.f32 %v11689, %v11690
      %v11692 = vsel %vm380, %v11635, 0.0
      %v11693 = vadd.f32 %v11691, %v11692
      %v11694 = vsel %vm380, %v11636, 0.0
      %v11695 = vadd.f32 %v11693, %v11694
      %v11696 = vsel %vm380, %v11637, 0.0
      %v11697 = vadd.f32 %v11695, %v11696
      %v11698 = vsel %vm380, %v11638, 0.0
      %v11699 = vadd.f32 %v11697, %v11698
      %v11700 = vsel %vm380, %v11639, 0.0
      %v11701 = vadd.f32 %v11699, %v11700
      %v11702 = vsel %vm380, %v11640, 0.0
      %v11703 = vadd.f32 %v11701, %v11702
      %v11704 = vsel %vm380, %v11641, 0.0
      %v11705 = vadd.f32 %v11703, %v11704
      %v11706 = vsel %vm380, %v11642, 0.0
      %v11707 = vadd.f32 %v11705, %v11706
      %v11708 = vrot.slane %v11707, 4
      %v11709 = vadd.f32 %v11707, %v11708
      %v11710 = vrot.slane %v11709, 2
      %v11711 = vadd.f32 %v11709, %v11710
      %v11712 = vrot.slane %v11711, 1
      %v11713 = vadd.f32 %v11711, %v11712
      %v11714 = vmul.f32 %v11611, %v11611
      %v11715 = vmul.f32 %v11612, %v11612
      %v11716 = vmul.f32 %v11613, %v11613
      %v11717 = vmul.f32 %v11614, %v11614
      %v11718 = vmul.f32 %v11615, %v11615
      %v11719 = vmul.f32 %v11616, %v11616
      %v11720 = vmul.f32 %v11617, %v11617
      %v11721 = vmul.f32 %v11618, %v11618
      %v11722 = vmul.f32 %v11619, %v11619
      %v11723 = vmul.f32 %v11620, %v11620
      %v11724 = vmul.f32 %v11621, %v11621
      %v11725 = vmul.f32 %v11622, %v11622
      %v11726 = vmul.f32 %v11623, %v11623
      %v11727 = vmul.f32 %v11624, %v11624
      %v11728 = vmul.f32 %v11625, %v11625
      %v11729 = vmul.f32 %v11626, %v11626
      %v11730 = vmul.f32 %v11627, %v11627
      %v11731 = vmul.f32 %v11628, %v11628
      %v11732 = vmul.f32 %v11629, %v11629
      %v11733 = vmul.f32 %v11630, %v11630
      %v11734 = vmul.f32 %v11631, %v11631
      %v11735 = vmul.f32 %v11632, %v11632
      %v11736 = vmul.f32 %v11633, %v11633
      %v11737 = vmul.f32 %v11634, %v11634
      %v11738 = vmul.f32 %v11635, %v11635
      %v11739 = vmul.f32 %v11636, %v11636
      %v11740 = vmul.f32 %v11637, %v11637
      %v11741 = vmul.f32 %v11638, %v11638
      %v11742 = vmul.f32 %v11639, %v11639
      %v11743 = vmul.f32 %v11640, %v11640
      %v11744 = vmul.f32 %v11641, %v11641
      %v11745 = vmul.f32 %v11642, %v11642
      %v11746 = vsel %vm380, %v11714, 0.0
      %v11747 = vsel %vm380, %v11715, 0.0
      %v11748 = vadd.f32 %v11746, %v11747
      %v11749 = vsel %vm380, %v11716, 0.0
      %v11750 = vadd.f32 %v11748, %v11749
      %v11751 = vsel %vm380, %v11717, 0.0
      %v11752 = vadd.f32 %v11750, %v11751
      %v11753 = vsel %vm380, %v11718, 0.0
      %v11754 = vadd.f32 %v11752, %v11753
      %v11755 = vsel %vm380, %v11719, 0.0
      %v11756 = vadd.f32 %v11754, %v11755
      %v11757 = vsel %vm380, %v11720, 0.0
      %v11758 = vadd.f32 %v11756, %v11757
      %v11759 = vsel %vm380, %v11721, 0.0
      %v11760 = vadd.f32 %v11758, %v11759
      %v11761 = vsel %vm380, %v11722, 0.0
      %v11762 = vadd.f32 %v11760, %v11761
      %v11763 = vsel %vm380, %v11723, 0.0
      %v11764 = vadd.f32 %v11762, %v11763
      %v11765 = vsel %vm380, %v11724, 0.0
      %v11766 = vadd.f32 %v11764, %v11765
      %v11767 = vsel %vm380, %v11725, 0.0
      %v11768 = vadd.f32 %v11766, %v11767
      %v11769 = vsel %vm380, %v11726, 0.0
      %v11770 = vadd.f32 %v11768, %v11769
      %v11771 = vsel %vm380, %v11727, 0.0
      %v11772 = vadd.f32 %v11770, %v11771
      %v11773 = vsel %vm380, %v11728, 0.0
      %v11774 = vadd.f32 %v11772, %v11773
      %v11775 = vsel %vm380, %v11729, 0.0
      %v11776 = vadd.f32 %v11774, %v11775
      %v11777 = vsel %vm380, %v11730, 0.0
      %v11778 = vadd.f32 %v11776, %v11777
      %v11779 = vsel %vm380, %v11731, 0.0
      %v11780 = vadd.f32 %v11778, %v11779
      %v11781 = vsel %vm380, %v11732, 0.0
      %v11782 = vadd.f32 %v11780, %v11781
      %v11783 = vsel %vm380, %v11733, 0.0
      %v11784 = vadd.f32 %v11782, %v11783
      %v11785 = vsel %vm380, %v11734, 0.0
      %v11786 = vadd.f32 %v11784, %v11785
      %v11787 = vsel %vm380, %v11735, 0.0
      %v11788 = vadd.f32 %v11786, %v11787
      %v11789 = vsel %vm380, %v11736, 0.0
      %v11790 = vadd.f32 %v11788, %v11789
      %v11791 = vsel %vm380, %v11737, 0.0
      %v11792 = vadd.f32 %v11790, %v11791
      %v11793 = vsel %vm380, %v11738, 0.0
      %v11794 = vadd.f32 %v11792, %v11793
      %v11795 = vsel %vm380, %v11739, 0.0
      %v11796 = vadd.f32 %v11794, %v11795
      %v11797 = vsel %vm380, %v11740, 0.0
      %v11798 = vadd.f32 %v11796, %v11797
      %v11799 = vsel %vm380, %v11741, 0.0
      %v11800 = vadd.f32 %v11798, %v11799
      %v11801 = vsel %vm380, %v11742, 0.0
      %v11802 = vadd.f32 %v11800, %v11801
      %v11803 = vsel %vm380, %v11743, 0.0
      %v11804 = vadd.f32 %v11802, %v11803
      %v11805 = vsel %vm380, %v11744, 0.0
      %v11806 = vadd.f32 %v11804, %v11805
      %v11807 = vsel %vm380, %v11745, 0.0
      %v11808 = vadd.f32 %v11806, %v11807
      %v11809 = vrot.slane %v11808, 4
      %v11810 = vadd.f32 %v11808, %v11809
      %v11811 = vrot.slane %v11810, 2
      %v11812 = vadd.f32 %v11810, %v11811
      %v11813 = vrot.slane %v11812, 1
      %v11814 = vadd.f32 %v11812, %v11813
      %v11815 = vmul.f32 %v11713, 0.00390625
      %v11816 = vmul.f32 %v11814, 0.00390625
      %v11817 = vmul.f32 %v11815, %v11815
      %v11818 = vsub.f32 %v11816, %v11817
      %v11819 = vmax.f32 %v11818, 0.0
      %v11820 = vsub.f32 %v11611, %v11815
      %v11821 = vsub.f32 %v11612, %v11815
      %v11822 = vsub.f32 %v11613, %v11815
      %v11823 = vsub.f32 %v11614, %v11815
      %v11824 = vsub.f32 %v11615, %v11815
      %v11825 = vsub.f32 %v11616, %v11815
      %v11826 = vsub.f32 %v11617, %v11815
      %v11827 = vsub.f32 %v11618, %v11815
      %v11828 = vsub.f32 %v11619, %v11815
      %v11829 = vsub.f32 %v11620, %v11815
      %v11830 = vsub.f32 %v11621, %v11815
      %v11831 = vsub.f32 %v11622, %v11815
      %v11832 = vsub.f32 %v11623, %v11815
      %v11833 = vsub.f32 %v11624, %v11815
      %v11834 = vsub.f32 %v11625, %v11815
      %v11835 = vsub.f32 %v11626, %v11815
      %v11836 = vsub.f32 %v11627, %v11815
      %v11837 = vsub.f32 %v11628, %v11815
      %v11838 = vsub.f32 %v11629, %v11815
      %v11839 = vsub.f32 %v11630, %v11815
      %v11840 = vsub.f32 %v11631, %v11815
      %v11841 = vsub.f32 %v11632, %v11815
      %v11842 = vsub.f32 %v11633, %v11815
      %v11843 = vsub.f32 %v11634, %v11815
      %v11844 = vsub.f32 %v11635, %v11815
      %v11845 = vsub.f32 %v11636, %v11815
      %v11846 = vsub.f32 %v11637, %v11815
      %v11847 = vsub.f32 %v11638, %v11815
      %v11848 = vsub.f32 %v11639, %v11815
      %v11849 = vsub.f32 %v11640, %v11815
      %v11850 = vsub.f32 %v11641, %v11815
      %v11851 = vsub.f32 %v11642, %v11815
      %v11852 = vadd.f32 %v11819, 1e-05
      %v11853 = vrsqrt.pop %v11852
      %v11854 = vmul.f32 %v11820, %v11853
      %v11855 = vmul.f32 %v11821, %v11853
      %v11856 = vmul.f32 %v11822, %v11853
      %v11857 = vmul.f32 %v11823, %v11853
      %v11858 = vmul.f32 %v11824, %v11853
      %v11859 = vmul.f32 %v11825, %v11853
      %v11860 = vmul.f32 %v11826, %v11853
      %v11861 = vmul.f32 %v11827, %v11853
      %v11862 = vmul.f32 %v11828, %v11853
      %v11863 = vmul.f32 %v11829, %v11853
      %v11864 = vmul.f32 %v11830, %v11853
      %v11865 = vmul.f32 %v11831, %v11853
      %v11866 = vmul.f32 %v11832, %v11853
      %v11867 = vmul.f32 %v11833, %v11853
      %v11868 = vmul.f32 %v11834, %v11853
      %v11869 = vmul.f32 %v11835, %v11853
      %v11870 = vmul.f32 %v11836, %v11853
      %v11871 = vmul.f32 %v11837, %v11853
      %v11872 = vmul.f32 %v11838, %v11853
      %v11873 = vmul.f32 %v11839, %v11853
      %v11874 = vmul.f32 %v11840, %v11853
      %v11875 = vmul.f32 %v11841, %v11853
      %v11876 = vmul.f32 %v11842, %v11853
      %v11877 = vmul.f32 %v11843, %v11853
      %v11878 = vmul.f32 %v11844, %v11853
      %v11879 = vmul.f32 %v11845, %v11853
      %v11880 = vmul.f32 %v11846, %v11853
      %v11881 = vmul.f32 %v11847, %v11853
      %v11882 = vmul.f32 %v11848, %v11853
      %v11883 = vmul.f32 %v11849, %v11853
      %v11884 = vmul.f32 %v11850, %v11853
      %v11885 = vmul.f32 %v11851, %v11853
      %v11887 = vlaneseq
      %v11888 = vshrl.u32 %v11887, 7
      %v11889 = vsub.s32 0, %v11888
      %v11890 = vrot.slane %v11643, %v11889
      %v11892 = vmul.f32 %v11854, %v11890
      %v11893 = vmul.f32 %v11855, %v11890
      %v11894 = vmul.f32 %v11856, %v11890
      %v11895 = vmul.f32 %v11857, %v11890
      %v11896 = vmul.f32 %v11858, %v11890
      %v11897 = vmul.f32 %v11859, %v11890
      %v11898 = vmul.f32 %v11860, %v11890
      %v11899 = vmul.f32 %v11861, %v11890
      %v11900 = vmul.f32 %v11862, %v11890
      %v11901 = vmul.f32 %v11863, %v11890
      %v11902 = vmul.f32 %v11864, %v11890
      %v11903 = vmul.f32 %v11865, %v11890
      %v11904 = vmul.f32 %v11866, %v11890
      %v11905 = vmul.f32 %v11867, %v11890
      %v11906 = vmul.f32 %v11868, %v11890
      %v11907 = vmul.f32 %v11869, %v11890
      %v11908 = vmul.f32 %v11870, %v11890
      %v11909 = vmul.f32 %v11871, %v11890
      %v11910 = vmul.f32 %v11872, %v11890
      %v11911 = vmul.f32 %v11873, %v11890
      %v11912 = vmul.f32 %v11874, %v11890
      %v11913 = vmul.f32 %v11875, %v11890
      %v11914 = vmul.f32 %v11876, %v11890
      %v11915 = vmul.f32 %v11877, %v11890
      %v11916 = vmul.f32 %v11878, %v11890
      %v11917 = vmul.f32 %v11879, %v11890
      %v11918 = vmul.f32 %v11880, %v11890
      %v11919 = vmul.f32 %v11881, %v11890
      %v11920 = vmul.f32 %v11882, %v11890
      %v11921 = vmul.f32 %v11883, %v11890
      %v11922 = vmul.f32 %v11884, %v11890
      %v11923 = vmul.f32 %v11885, %v11890
      %v11925 = vlaneseq
      %v11926 = vshrl.u32 %v11925, 7
      %v11927 = vsub.s32 0, %v11926
      %v11928 = vrot.slane %v11644, %v11927
      %v11930 = vadd.f32 %v11892, %v11928
      %v11931 = vadd.f32 %v11893, %v11928
      %v11932 = vadd.f32 %v11894, %v11928
      %v11933 = vadd.f32 %v11895, %v11928
      %v11934 = vadd.f32 %v11896, %v11928
      %v11935 = vadd.f32 %v11897, %v11928
      %v11936 = vadd.f32 %v11898, %v11928
      %v11937 = vadd.f32 %v11899, %v11928
      %v11938 = vadd.f32 %v11900, %v11928
      %v11939 = vadd.f32 %v11901, %v11928
      %v11940 = vadd.f32 %v11902, %v11928
      %v11941 = vadd.f32 %v11903, %v11928
      %v11942 = vadd.f32 %v11904, %v11928
      %v11943 = vadd.f32 %v11905, %v11928
      %v11944 = vadd.f32 %v11906, %v11928
      %v11945 = vadd.f32 %v11907, %v11928
      %v11946 = vadd.f32 %v11908, %v11928
      %v11947 = vadd.f32 %v11909, %v11928
      %v11948 = vadd.f32 %v11910, %v11928
      %v11949 = vadd.f32 %v11911, %v11928
      %v11950 = vadd.f32 %v11912, %v11928
      %v11951 = vadd.f32 %v11913, %v11928
      %v11952 = vadd.f32 %v11914, %v11928
      %v11953 = vadd.f32 %v11915, %v11928
      %v11954 = vadd.f32 %v11916, %v11928
      %v11955 = vadd.f32 %v11917, %v11928
      %v11956 = vadd.f32 %v11918, %v11928
      %v11957 = vadd.f32 %v11919, %v11928
      %v11958 = vadd.f32 %v11920, %v11928
      %v11959 = vadd.f32 %v11921, %v11928
      %v11960 = vadd.f32 %v11922, %v11928
      %v11961 = vadd.f32 %v11923, %v11928
      %vm11962 = vcmp.ge.f32.partialorder %v11930, 0.0
      %vm11963 = vcmp.ge.f32.partialorder %v11931, 0.0
      %vm11964 = vcmp.ge.f32.partialorder %v11932, 0.0
      %vm11965 = vcmp.ge.f32.partialorder %v11933, 0.0
      %vm11966 = vcmp.ge.f32.partialorder %v11934, 0.0
      %vm11967 = vcmp.ge.f32.partialorder %v11935, 0.0
      %vm11968 = vcmp.ge.f32.partialorder %v11936, 0.0
      %vm11969 = vcmp.ge.f32.partialorder %v11937, 0.0
      %vm11970 = vcmp.ge.f32.partialorder %v11938, 0.0
      %vm11971 = vcmp.ge.f32.partialorder %v11939, 0.0
      %vm11972 = vcmp.ge.f32.partialorder %v11940, 0.0
      %vm11973 = vcmp.ge.f32.partialorder %v11941, 0.0
      %vm11974 = vcmp.ge.f32.partialorder %v11942, 0.0
      %vm11975 = vcmp.ge.f32.partialorder %v11943, 0.0
      %vm11976 = vcmp.ge.f32.partialorder %v11944, 0.0
      %vm11977 = vcmp.ge.f32.partialorder %v11945, 0.0
      %vm11978 = vcmp.ge.f32.partialorder %v11946, 0.0
      %vm11979 = vcmp.ge.f32.partialorder %v11947, 0.0
      %vm11980 = vcmp.ge.f32.partialorder %v11948, 0.0
      %vm11981 = vcmp.ge.f32.partialorder %v11949, 0.0
      %vm11982 = vcmp.ge.f32.partialorder %v11950, 0.0
      %vm11983 = vcmp.ge.f32.partialorder %v11951, 0.0
      %vm11984 = vcmp.ge.f32.partialorder %v11952, 0.0
      %vm11985 = vcmp.ge.f32.partialorder %v11953, 0.0
      %vm11986 = vcmp.ge.f32.partialorder %v11954, 0.0
      %vm11987 = vcmp.ge.f32.partialorder %v11955, 0.0
      %vm11988 = vcmp.ge.f32.partialorder %v11956, 0.0
      %vm11989 = vcmp.ge.f32.partialorder %v11957, 0.0
      %vm11990 = vcmp.ge.f32.partialorder %v11958, 0.0
      %vm11991 = vcmp.ge.f32.partialorder %v11959, 0.0
      %vm11992 = vcmp.ge.f32.partialorder %v11960, 0.0
      %vm11993 = vcmp.ge.f32.partialorder %v11961, 0.0
      %v11994 = vmul.f32 %v11930, 0.01
      %v11995 = vmul.f32 %v11931, 0.01
      %v11996 = vmul.f32 %v11932, 0.01
      %v11997 = vmul.f32 %v11933, 0.01
      %v11998 = vmul.f32 %v11934, 0.01
      %v11999 = vmul.f32 %v11935, 0.01
      %v12000 = vmul.f32 %v11936, 0.01
      %v12001 = vmul.f32 %v11937, 0.01
      %v12002 = vmul.f32 %v11938, 0.01
      %v12003 = vmul.f32 %v11939, 0.01
      %v12004 = vmul.f32 %v11940, 0.01
      %v12005 = vmul.f32 %v11941, 0.01
      %v12006 = vmul.f32 %v11942, 0.01
      %v12007 = vmul.f32 %v11943, 0.01
      %v12008 = vmul.f32 %v11944, 0.01
      %v12009 = vmul.f32 %v11945, 0.01
      %v12010 = vmul.f32 %v11946, 0.01
      %v12011 = vmul.f32 %v11947, 0.01
      %v12012 = vmul.f32 %v11948, 0.01
      %v12013 = vmul.f32 %v11949, 0.01
      %v12014 = vmul.f32 %v11950, 0.01
      %v12015 = vmul.f32 %v11951, 0.01
      %v12016 = vmul.f32 %v11952, 0.01
      %v12017 = vmul.f32 %v11953, 0.01
      %v12018 = vmul.f32 %v11954, 0.01
      %v12019 = vmul.f32 %v11955, 0.01
      %v12020 = vmul.f32 %v11956, 0.01
      %v12021 = vmul.f32 %v11957, 0.01
      %v12022 = vmul.f32 %v11958, 0.01
      %v12023 = vmul.f32 %v11959, 0.01
      %v12024 = vmul.f32 %v11960, 0.01
      %v12025 = vmul.f32 %v11961, 0.01
      %v12026 = vsel %vm11962, %v11930, %v11994
      %v12027 = vsel %vm11963, %v11931, %v11995
      %v12028 = vsel %vm11964, %v11932, %v11996
      %v12029 = vsel %vm11965, %v11933, %v11997
      %v12030 = vsel %vm11966, %v11934, %v11998
      %v12031 = vsel %vm11967, %v11935, %v11999
      %v12032 = vsel %vm11968, %v11936, %v12000
      %v12033 = vsel %vm11969, %v11937, %v12001
      %v12034 = vsel %vm11970, %v11938, %v12002
      %v12035 = vsel %vm11971, %v11939, %v12003
      %v12036 = vsel %vm11972, %v11940, %v12004
      %v12037 = vsel %vm11973, %v11941, %v12005
      %v12038 = vsel %vm11974, %v11942, %v12006
      %v12039 = vsel %vm11975, %v11943, %v12007
      %v12040 = vsel %vm11976, %v11944, %v12008
      %v12041 = vsel %vm11977, %v11945, %v12009
      %v12042 = vsel %vm11978, %v11946, %v12010
      %v12043 = vsel %vm11979, %v11947, %v12011
      %v12044 = vsel %vm11980, %v11948, %v12012
      %v12045 = vsel %vm11981, %v11949, %v12013
      %v12046 = vsel %vm11982, %v11950, %v12014
      %v12047 = vsel %vm11983, %v11951, %v12015
      %v12048 = vsel %vm11984, %v11952, %v12016
      %v12049 = vsel %vm11985, %v11953, %v12017
      %v12050 = vsel %vm11986, %v11954, %v12018
      %v12051 = vsel %vm11987, %v11955, %v12019
      %v12052 = vsel %vm11988, %v11956, %v12020
      %v12053 = vsel %vm11989, %v11957, %v12021
      %v12054 = vsel %vm11990, %v11958, %v12022
      %v12055 = vsel %vm11991, %v11959, %v12023
      %v12056 = vsel %vm11992, %v11960, %v12024
      %v12057 = vsel %vm11993, %v11961, %v12025
      %12058 = vst.msk [vmem:[%s379] sm:$0xff] %vm380, %v12026
      %12059 = vst.msk [vmem:[%s379 + $0x8] sm:$0xff] %vm380, %v12027
      %12060 = vst.msk [vmem:[%s379 + $0x10] sm:$0xff] %vm380, %v12028
      %12061 = vst.msk [vmem:[%s379 + $0x18] sm:$0xff] %vm380, %v12029
      %12062 = vst.msk [vmem:[%s379 + $0x20] sm:$0xff] %vm380, %v12030
      %12063 = vst.msk [vmem:[%s379 + $0x28] sm:$0xff] %vm380, %v12031
      %12064 = vst.msk [vmem:[%s379 + $0x30] sm:$0xff] %vm380, %v12032
      %12065 = vst.msk [vmem:[%s379 + $0x38] sm:$0xff] %vm380, %v12033
      %12066 = vst.msk [vmem:[%s379 + $0x40] sm:$0xff] %vm380, %v12034
      %12067 = vst.msk [vmem:[%s379 + $0x48] sm:$0xff] %vm380, %v12035
      %12068 = vst.msk [vmem:[%s379 + $0x50] sm:$0xff] %vm380, %v12036
      %12069 = vst.msk [vmem:[%s379 + $0x58] sm:$0xff] %vm380, %v12037
      %12070 = vst.msk [vmem:[%s379 + $0x60] sm:$0xff] %vm380, %v12038
      %12071 = vst.msk [vmem:[%s379 + $0x68] sm:$0xff] %vm380, %v12039
      %12072 = vst.msk [vmem:[%s379 + $0x70] sm:$0xff] %vm380, %v12040
      %12073 = vst.msk [vmem:[%s379 + $0x78] sm:$0xff] %vm380, %v12041
      %12074 = vst.msk [vmem:[%s379 + $0x80] sm:$0xff] %vm380, %v12042
      %12075 = vst.msk [vmem:[%s379 + $0x88] sm:$0xff] %vm380, %v12043
      %12076 = vst.msk [vmem:[%s379 + $0x90] sm:$0xff] %vm380, %v12044
      %12077 = vst.msk [vmem:[%s379 + $0x98] sm:$0xff] %vm380, %v12045
      %12078 = vst.msk [vmem:[%s379 + $0xa0] sm:$0xff] %vm380, %v12046
      %12079 = vst.msk [vmem:[%s379 + $0xa8] sm:$0xff] %vm380, %v12047
      %12080 = vst.msk [vmem:[%s379 + $0xb0] sm:$0xff] %vm380, %v12048
      %12081 = vst.msk [vmem:[%s379 + $0xb8] sm:$0xff] %vm380, %v12049
      %12082 = vst.msk [vmem:[%s379 + $0xc0] sm:$0xff] %vm380, %v12050
      %12083 = vst.msk [vmem:[%s379 + $0xc8] sm:$0xff] %vm380, %v12051
      %12084 = vst.msk [vmem:[%s379 + $0xd0] sm:$0xff] %vm380, %v12052
      %12085 = vst.msk [vmem:[%s379 + $0xd8] sm:$0xff] %vm380, %v12053
      %12086 = vst.msk [vmem:[%s379 + $0xe0] sm:$0xff] %vm380, %v12054
      %12087 = vst.msk [vmem:[%s379 + $0xe8] sm:$0xff] %vm380, %v12055
      %12088 = vst.msk [vmem:[%s379 + $0xf0] sm:$0xff] %vm380, %v12056
      %12089 = vst.msk [vmem:[%s379 + $0xf8] sm:$0xff] %vm380, %v12057
      %p12090 = scmp.lt.s32.totalorder %s21, 1
      %s12091 = scalar_select %p12090, %s21, 1
      %s12092 = smul.addr %s12091, 32
      %s12093 = smul.addr %s12092, 8
      %s12094 = scalar_lea.vmem %s10, %s12093
      // Predicated region
      $region68: #{tpu_custom_call.1} parent=59 // pred_check
        %p12095 = pneg %p259
      $region69: #{tpu_custom_call.1} parent=59 // pred_check_branch
        %12097 = sbr.rel (%p12095) target = $region71
      $region70: #{tpu_custom_call.1} parent=59 // pred_region
        _
      $region71: #{tpu_custom_call.1} parent=59 // pred_fallthru
        _
    $region60: #{tpu_custom_call.1} parent=5 // pred_fallthru
      _
    %p12098 = scmp.le.s32.totalorder 2, %s16
    // Predicated region
    $region72: #{tpu_custom_call.1} parent=5 // pred_check
      %p12099 = pneg %p12098
    $region73: #{tpu_custom_call.1} parent=5 // pred_check_branch
      %12101 = sbr.rel (%p12099) target = $region75
    $region74: #{tpu_custom_call.1} parent=5 // pred_region
      %s12102 = ssub.s32 %s16, 2
      // Predicated region
      $region76: #{tpu_custom_call.1} parent=74 // pred_check
        %p12103 = pneg %p265
      $region77: #{tpu_custom_call.1} parent=74 // pred_check_branch
        %12105 = sbr.rel (%p12103) target = $region79
      $region78: #{tpu_custom_call.1} parent=74 // pred_region
        %p12106 = scmp.lt.s32.totalorder %s22, 1
        %s12107 = scalar_select %p12106, %s22, 1
        %s12108 = smul.addr %s12107, 32
        %s12109 = smul.addr %s12108, 8
        %s12110 = scalar_lea.vmem %s10, %s12109
      $region79: #{tpu_custom_call.1} parent=74 // pred_fallthru
        _
    $region75: #{tpu_custom_call.1} parent=5 // pred_fallthru
      _
  $region6: #{tpu_custom_call.1} parent=0 // loop_footer
    %s20 = sadd.s32 1, %s16
  $region7: #{tpu_custom_call.1} parent=0 // loop_footer_branch
    %15 = sbr.rel target = $region3
  $region8: #{tpu_custom_call.1} parent=0 // loop_exit
    _

</llo_original>
